<compile_context>
chip_gen: v7x
topology: tpu7x:2x2x1
jax: 0.10.0
libtpu: 0.0.40
codegen_flags: <defaults>
</compile_context>

<pallas_src>
import functools

import jax
import jax.numpy as jnp
from jax.experimental import pallas as pl
from jax.experimental.pallas import tpu as pltpu


ENET_OUT_SIZE = 1280
NUM_CLASSES = 53
LANE = 128


def _round_up(x, m):
    return ((x + m - 1) // m) * m


# ----------------------------------------------------------------------------
# Generation-aware sizing helpers
# ----------------------------------------------------------------------------
@functools.lru_cache(maxsize=None)
def _vmem_capacity_bytes():
    try:
        return int(pltpu.get_tpu_info().vmem_capacity_bytes)
    except Exception:
        return 64 * 1024 * 1024  # conservative (v7x-sized) fallback


def _vmem_limit_bytes():
    cap = _vmem_capacity_bytes()
    return int(min(3 * cap // 4, 96 * 1024 * 1024))


def _choose_tile(dim, cap, align):
    """Largest tile <= cap that divides dim and is `align`-aligned (else full dim)."""
    if dim <= cap:
        return dim
    t = (min(cap, dim) // align) * align
    while t >= align:
        if dim % t == 0:
            return t
        t -= align
    return dim


# ----------------------------------------------------------------------------
# Kernel 1: k x k conv + folded BN + SiLU -- single concat-K GEMM per grid step
# ----------------------------------------------------------------------------
def _conv_bn_silu_kernel(x_ref, w_ref, scale_ref, bias_ref, o_ref, *,
                         ksize, stride, ho, wo, cin_p):
    # x_ref:  (1, Hg, stride, Wg, stride*Cin_p) bf16  -- bitcast stride-phase view
    # w_ref:  (ksize*ksize*Cin_p, tn) bf16            -- taps concatenated along K
    # scale_ref, bias_ref: (1, tn) f32                -- folded BN affine
    # o_ref:  (1, Ho, Wo, tn)
    taps = []
    for di in range(ksize):
        gi, p = di // stride, di % stride
        for dj in range(ksize):
            gj, q = dj // stride, dj % stride
            # Padded-image row = stride*gi + p, lane index = q*Cin_p + channel.
            win = x_ref[:, gi:gi + ho, p:p + 1, gj:gj + wo,
                        q * cin_p:(q + 1) * cin_p]          # (1, Ho, 1, Wo, Cin_p)
            taps.append(win.reshape(ho, wo, cin_p))
    # One well-fed MXU matmul (K = ksize*ksize*Cin_p) instead of 9 tiny dots.
    lhs = jnp.concatenate(taps, axis=-1).reshape(ho * wo, ksize * ksize * cin_p)
    y = jnp.dot(lhs, w_ref[...], preferred_element_type=jnp.float32)
    y = y * scale_ref[...] + bias_ref[...]
    y = y * jax.nn.sigmoid(y)                                # SiLU
    o_ref[...] = y.reshape(1, ho, wo, -1).astype(o_ref.dtype)


def conv2d_bn_silu(x_nhwc, w_kt, scale, bias, *, ksize, stride, pad):
    """k x k conv + folded BN + SiLU.

    w_kt is the prepared (ksize*ksize*Cin_p, Cout_p) tap-concatenated weight.
    The tap gather happens inside the kernel on a contiguity-preserving (bitcast)
    reshape of the padded activation, so no im2col / relayout tensor hits HBM."""
    kdim, cout_p = w_kt.shape
    cin_p = kdim // (ksize * ksize)
    b, h, w, c = x_nhwc.shape
    assert c <= cin_p
    ho = (h + 2 * pad - ksize) // stride + 1
    wo = (w + 2 * pad - ksize) // stride + 1
    hg = ho + (ksize - 1) // stride
    wg = wo + (ksize - 1) // stride
    hp, wp = stride * hg, stride * wg
    pad_b, pad_r = hp - h - pad, wp - w - pad
    assert pad_b >= 0 and pad_r >= 0

    x = x_nhwc.astype(jnp.bfloat16)          # bf16 once; MXU inputs stay bf16
    x = jnp.pad(x, ((0, 0), (pad, pad_b), (pad, pad_r), (0, cin_p - c)))
    # Contiguity-preserving reshape (bitcast, not a relayout): it only regroups
    # (Hp, Wp, Cin_p) as (Hg, stride, Wg, stride*Cin_p).
    xr = x.reshape(b, hg, stride, wg, stride * cin_p)

    # Cout tiling gives >2 pipeline steps per call for larger layers (v5e) while
    # staying 128-lane dense; at these sizes the exact tile is launch-bound noise.
    tn = _choose_tile(cout_p, 256, LANE)
    grid = (b, cout_p // tn)
    # TODO(synk): for real 224x224 inputs also tile Ho*Wo as a grid axis (with a
    # VMEM scratch accumulator) so per-step blocks stay inside v7x's 64 MiB VMEM.
    out = pl.pallas_call(
        functools.partial(_conv_bn_silu_kernel, ksize=ksize, stride=stride,
                          ho=ho, wo=wo, cin_p=cin_p),
        out_shape=jax.ShapeDtypeStruct((b, ho, wo, cout_p), jnp.bfloat16),
        grid=grid,
        in_specs=[
            pl.BlockSpec((1, hg, stride, wg, stride * cin_p),
                         lambda i, j: (i, 0, 0, 0, 0)),
            pl.BlockSpec((kdim, tn), lambda i, j: (0, j)),
            pl.BlockSpec((1, tn), lambda i, j: (0, j)),
            pl.BlockSpec((1, tn), lambda i, j: (0, j)),
        ],
        out_specs=pl.BlockSpec((1, ho, wo, tn), lambda i, j: (i, 0, 0, j)),
        compiler_params=pltpu.CompilerParams(
            dimension_semantics=("parallel", "parallel"),
            vmem_limit_bytes=_vmem_limit_bytes(),
        ),
    )(xr, w_kt, scale, bias)
    return out


# ----------------------------------------------------------------------------
# Kernel 2: 1x1 conv_head + bn2 + SiLU + global avg pool + classifier Linear
#           fused into one single-step pallas_call
# ----------------------------------------------------------------------------
def _head_gap_fc_kernel(x_ref, wh_ref, hs_ref, hb_ref, wf_ref, fb_ref, o_ref, *,
                        batch, spatial):
    # x_ref: (B*S, Cin_p) bf16; wh_ref: (Cin_p, 1280) bf16; hs/hb: (1, 1280) f32
    # wf_ref: (1280, Npad) bf16; fb_ref: (1, Npad) f32; o_ref: (B, Npad) f32
    y = jnp.dot(x_ref[...], wh_ref[...], preferred_element_type=jnp.float32)  # (B*S,1280)
    y = y * hs_ref[...] + hb_ref[...]
    y = y * jax.nn.sigmoid(y)                                                 # SiLU
    pooled = jnp.mean(y.reshape(batch, spatial, y.shape[-1]), axis=1)         # (B, 1280)
    logits = jnp.dot(pooled.astype(jnp.bfloat16), wf_ref[...],
                     preferred_element_type=jnp.float32) + fb_ref[...]
    o_ref[...] = logits.astype(o_ref.dtype)


def head_gap_classifier(x_nhwc, head_w, head_scale, head_bias, fc_w, fc_b, *, num_classes):
    """conv_head (1x1) + bn2 + SiLU + adaptive avg pool + Flatten + Linear, all in
    one grid step: the (B*S, 1280) activation never leaves VMEM."""
    b, h, w, c = x_nhwc.shape
    s = h * w
    cin_p, cmid = head_w.shape
    assert c == cin_p
    n_pad = fc_w.shape[1]
    x2d = x_nhwc.reshape(b * s, c)            # bitcast reshape, no relayout

    logits = pl.pallas_call(
        functools.partial(_head_gap_fc_kernel, batch=b, spatial=s),
        out_shape=jax.ShapeDtypeStruct((b, n_pad), jnp.float32),
        grid=(1,),
        in_specs=[
            pl.BlockSpec((b * s, cin_p), lambda i: (0, 0)),
            pl.BlockSpec((cin_p, cmid), lambda i: (0, 0)),
            pl.BlockSpec((1, cmid), lambda i: (0, 0)),
            pl.BlockSpec((1, cmid), lambda i: (0, 0)),
            pl.BlockSpec((cmid, n_pad), lambda i: (0, 0)),
            pl.BlockSpec((1, n_pad), lambda i: (0, 0)),
        ],
        out_specs=pl.BlockSpec((b, n_pad), lambda i: (0, 0)),
        compiler_params=pltpu.CompilerParams(
            dimension_semantics=("arbitrary",),
            vmem_limit_bytes=_vmem_limit_bytes(),
        ),
    )(x2d, head_w, head_scale, head_bias, fc_w, fc_b)
    return logits[:, :num_classes]


# ----------------------------------------------------------------------------
# Parameters (deterministic synthetic init, shapes per efficientnet_b0 stem/head)
# ----------------------------------------------------------------------------
def _conv_w(key, cout, cin, kh, kw):
    fan_in = cin * kh * kw
    return jax.random.normal(key, (cout, cin, kh, kw), jnp.float32) / jnp.sqrt(float(fan_in))


def _folded_bn(key, c, eps=1e-5):
    k1, k2, k3, k4 = jax.random.split(key, 4)
    gamma = 1.0 + 0.1 * jax.random.normal(k1, (c,), jnp.float32)
    beta = 0.1 * jax.random.normal(k2, (c,), jnp.float32)
    mean = 0.1 * jax.random.normal(k3, (c,), jnp.float32)
    var = jnp.abs(jax.random.normal(k4, (c,), jnp.float32)) + 0.5
    scale = gamma * jax.lax.rsqrt(var + eps)
    bias = beta - mean * scale
    return scale, bias


def init_params(key, num_classes=NUM_CLASSES):
    ks = jax.random.split(key, 8)
    p = {}
    # conv_stem: 3 -> 32, 3x3 s2  (+ bn1 + SiLU)
    p["stem_w"] = _conv_w(ks[0], 32, 3, 3, 3)
    p["stem_scale"], p["stem_bias"] = _folded_bn(ks[1], 32)
    # blocks (condensed): 32 -> 320, 3x3 s2  (+ bn + SiLU)
    p["blk_w"] = _conv_w(ks[2], 320, 32, 3, 3)
    p["blk_scale"], p["blk_bias"] = _folded_bn(ks[3], 320)
    # conv_head: 320 -> 1280, 1x1  (+ bn2 + SiLU)
    p["head_w"] = _conv_w(ks[4], ENET_OUT_SIZE, 320, 1, 1)
    p["head_scale"], p["head_bias"] = _folded_bn(ks[5], ENET_OUT_SIZE)
    # classifier: nn.Linear(1280, num_classes)
    p["fc_w"] = jax.random.normal(ks[6], (num_classes, ENET_OUT_SIZE), jnp.float32) / jnp.sqrt(
        float(ENET_OUT_SIZE))
    p["fc_b"] = 0.01 * jax.random.normal(ks[7], (num_classes,), jnp.float32)
    return p


def _prep_conv(w_oihw, scale, bias, *, cin_p, cout_p):
    """(Cout,Cin,kh,kw) -> tap-concatenated (kh*kw*Cin_p, Cout_p) bf16 + padded affine."""
    cout, cin, kh, kw = w_oihw.shape
    wt = jnp.transpose(w_oihw, (2, 3, 1, 0))                       # (kh, kw, cin, cout)
    wt = jnp.pad(wt, ((0, 0), (0, 0), (0, cin_p - cin), (0, cout_p - cout)))
    wt = wt.reshape(kh * kw * cin_p, cout_p).astype(jnp.bfloat16)
    s = jnp.pad(scale, (0, cout_p - cout)).astype(jnp.float32).reshape(1, cout_p)
    b = jnp.pad(bias, (0, cout_p - cout)).astype(jnp.float32).reshape(1, cout_p)
    return wt, s, b


def prepare_params(p):
    """One-time weight prep (transpose / zero-pad to lane-dense channels / bf16):
    all of this stays out of the jitted per-call path."""
    stem_cin_p = _round_up(3, LANE)            # 128: lane-aligned in-kernel tap slices
    stem_cout_p = _round_up(32, LANE)          # 128: lane-dense stores
    blk_cout_p = _round_up(320, LANE)          # 384
    w = {}
    w["stem_w"], w["stem_scale"], w["stem_bias"] = _prep_conv(
        p["stem_w"], p["stem_scale"], p["stem_bias"], cin_p=stem_cin_p, cout_p=stem_cout_p)
    w["blk_w"], w["blk_scale"], w["blk_bias"] = _prep_conv(
        p["blk_w"], p["blk_scale"], p["blk_bias"], cin_p=stem_cout_p, cout_p=blk_cout_p)
    # conv_head 1x1: (Cout, Cin, 1, 1) -> (Cin_p, Cout) matmul weight
    cout, cin = p["head_w"].shape[:2]
    hw = p["head_w"].reshape(cout, cin).T
    w["head_w"] = jnp.pad(hw, ((0, blk_cout_p - cin), (0, 0))).astype(jnp.bfloat16)
    w["head_scale"] = p["head_scale"].astype(jnp.float32).reshape(1, cout)
    w["head_bias"] = p["head_bias"].astype(jnp.float32).reshape(1, cout)
    # classifier: pad N to lane-dense 128 once, here (not per forward call)
    ncls = p["fc_w"].shape[0]
    n_pad = _round_up(ncls, LANE)
    w["fc_w"] = jnp.pad(p["fc_w"].T, ((0, 0), (0, n_pad - ncls))).astype(jnp.bfloat16)
    w["fc_b"] = jnp.pad(p["fc_b"], (0, n_pad - ncls)).astype(jnp.float32).reshape(1, n_pad)
    return w


# ----------------------------------------------------------------------------
# Forward pass (mirrors CardClassifier.forward: features -> Flatten -> Linear)
# ----------------------------------------------------------------------------
def card_classifier_forward(wts, x_nchw, *, num_classes=NUM_CLASSES):
    x = jnp.transpose(x_nchw, (0, 2, 3, 1))                       # NCHW -> NHWC

    # features: conv_stem + bn1 + SiLU
    x = conv2d_bn_silu(x, wts["stem_w"], wts["stem_scale"], wts["stem_bias"],
                       ksize=3, stride=2, pad=1)
    # TODO(synk): the 16 pretrained MBConv blocks of efficientnet_b0 (depthwise convs,
    # SE, skip connections, pretrained weights) are condensed into this single 3x3 stage.
    x = conv2d_bn_silu(x, wts["blk_w"], wts["blk_scale"], wts["blk_bias"],
                       ksize=3, stride=2, pad=1)

    # features: conv_head (1x1 -> 1280) + bn2 + SiLU + global avg pool, fused with
    # the classifier (nn.Flatten is a no-op on (B, 1280)).
    return head_gap_classifier(x, wts["head_w"], wts["head_scale"], wts["head_bias"],
                               wts["fc_w"], wts["fc_b"], num_classes=num_classes)


if __name__ == "__main__":
    key = jax.random.PRNGKey(0)
    pkey, xkey = jax.random.split(key)
    params = init_params(pkey, num_classes=NUM_CLASSES)
    wts = prepare_params(params)

    # small input consistent with an image classifier: batch=2, RGB, 32x32 (NCHW)
    x = jax.random.normal(xkey, (2, 3, 32, 32), dtype=jnp.float32)

    logits = jax.jit(card_classifier_forward)(wts, x)
    jax.block_until_ready(logits)

    assert logits.shape == (2, NUM_CLASSES), logits.shape
    assert bool(jnp.all(jnp.isfinite(logits)))
    print("KERNEL_OK")
</pallas_src>

<mosaic_0001>
module attributes {stable_mosaic.version = 11 : i64} {
  func.func @_conv_bn_silu_kernel(%arg0: i32, %arg1: i32, %arg2: memref<1x17x2x17x256xbf16, #tpu.memory_space<vmem>>, %arg3: memref<1152x128xbf16, #tpu.memory_space<vmem>>, %arg4: memref<1x128xf32, #tpu.memory_space<vmem>>, %arg5: memref<1x128xf32, #tpu.memory_space<vmem>>, %arg6: memref<1x16x16x128xbf16, #tpu.memory_space<vmem>>) attributes {dimension_semantics = [#tpu.dimension_semantics<parallel>, #tpu.dimension_semantics<parallel>], iteration_bounds = array<i64: 2, 1>, scalar_prefetch = 0 : i64, scratch_operands = 0 : i64, tpu.core_type = #tpu.core_type<tc>, window_params = [{transform_indices = @transform_0, window_bounds = array<i64: 1, 17, 2, 17, 256>}, {transform_indices = @transform_1, window_bounds = array<i64: 1152, 128>}, {transform_indices = @transform_2, window_bounds = array<i64: 1, 128>}, {transform_indices = @transform_3, window_bounds = array<i64: 1, 128>}, {transform_indices = @transform_4, window_bounds = array<i64: 1, 16, 16, 128>}]} {
    %c0 = arith.constant 0 : index
    %c0_0 = arith.constant 0 : index
    %c0_1 = arith.constant 0 : index
    %c0_2 = arith.constant 0 : index
    %c0_3 = arith.constant 0 : index
    %0 = vector.load %arg2[%c0, %c0_0, %c0_1, %c0_2, %c0_3] : memref<1x17x2x17x256xbf16, #tpu.memory_space<vmem>>, vector<1x16x1x16x128xbf16>
    %1 = vector.shape_cast %0 : vector<1x16x1x16x128xbf16> to vector<16x16x128xbf16>
    %c0_4 = arith.constant 0 : index
    %c0_5 = arith.constant 0 : index
    %c0_6 = arith.constant 0 : index
    %c0_7 = arith.constant 0 : index
    %c128 = arith.constant 128 : index
    %2 = vector.load %arg2[%c0_4, %c0_5, %c0_6, %c0_7, %c128] : memref<1x17x2x17x256xbf16, #tpu.memory_space<vmem>>, vector<1x16x1x16x128xbf16>
    %3 = vector.shape_cast %2 : vector<1x16x1x16x128xbf16> to vector<16x16x128xbf16>
    %c0_8 = arith.constant 0 : index
    %c0_9 = arith.constant 0 : index
    %c0_10 = arith.constant 0 : index
    %c1 = arith.constant 1 : index
    %c0_11 = arith.constant 0 : index
    %4 = vector.load %arg2[%c0_8, %c0_9, %c0_10, %c1, %c0_11] : memref<1x17x2x17x256xbf16, #tpu.memory_space<vmem>>, vector<1x16x1x16x128xbf16>
    %5 = vector.shape_cast %4 : vector<1x16x1x16x128xbf16> to vector<16x16x128xbf16>
    %c0_12 = arith.constant 0 : index
    %c0_13 = arith.constant 0 : index
    %c1_14 = arith.constant 1 : index
    %c0_15 = arith.constant 0 : index
    %c0_16 = arith.constant 0 : index
    %6 = vector.load %arg2[%c0_12, %c0_13, %c1_14, %c0_15, %c0_16] : memref<1x17x2x17x256xbf16, #tpu.memory_space<vmem>>, vector<1x16x1x16x128xbf16>
    %7 = vector.shape_cast %6 : vector<1x16x1x16x128xbf16> to vector<16x16x128xbf16>
    %c0_17 = arith.constant 0 : index
    %c0_18 = arith.constant 0 : index
    %c1_19 = arith.constant 1 : index
    %c0_20 = arith.constant 0 : index
    %c128_21 = arith.constant 128 : index
    %8 = vector.load %arg2[%c0_17, %c0_18, %c1_19, %c0_20, %c128_21] : memref<1x17x2x17x256xbf16, #tpu.memory_space<vmem>>, vector<1x16x1x16x128xbf16>
    %9 = vector.shape_cast %8 : vector<1x16x1x16x128xbf16> to vector<16x16x128xbf16>
    %c0_22 = arith.constant 0 : index
    %c0_23 = arith.constant 0 : index
    %c1_24 = arith.constant 1 : index
    %c1_25 = arith.constant 1 : index
    %c0_26 = arith.constant 0 : index
    %10 = vector.load %arg2[%c0_22, %c0_23, %c1_24, %c1_25, %c0_26] : memref<1x17x2x17x256xbf16, #tpu.memory_space<vmem>>, vector<1x16x1x16x128xbf16>
    %11 = vector.shape_cast %10 : vector<1x16x1x16x128xbf16> to vector<16x16x128xbf16>
    %c0_27 = arith.constant 0 : index
    %c1_28 = arith.constant 1 : index
    %c0_29 = arith.constant 0 : index
    %c0_30 = arith.constant 0 : index
    %c0_31 = arith.constant 0 : index
    %12 = vector.load %arg2[%c0_27, %c1_28, %c0_29, %c0_30, %c0_31] : memref<1x17x2x17x256xbf16, #tpu.memory_space<vmem>>, vector<1x16x1x16x128xbf16>
    %13 = vector.shape_cast %12 : vector<1x16x1x16x128xbf16> to vector<16x16x128xbf16>
    %c0_32 = arith.constant 0 : index
    %c1_33 = arith.constant 1 : index
    %c0_34 = arith.constant 0 : index
    %c0_35 = arith.constant 0 : index
    %c128_36 = arith.constant 128 : index
    %14 = vector.load %arg2[%c0_32, %c1_33, %c0_34, %c0_35, %c128_36] : memref<1x17x2x17x256xbf16, #tpu.memory_space<vmem>>, vector<1x16x1x16x128xbf16>
    %15 = vector.shape_cast %14 : vector<1x16x1x16x128xbf16> to vector<16x16x128xbf16>
    %c0_37 = arith.constant 0 : index
    %c1_38 = arith.constant 1 : index
    %c0_39 = arith.constant 0 : index
    %c1_40 = arith.constant 1 : index
    %c0_41 = arith.constant 0 : index
    %16 = vector.load %arg2[%c0_37, %c1_38, %c0_39, %c1_40, %c0_41] : memref<1x17x2x17x256xbf16, #tpu.memory_space<vmem>>, vector<1x16x1x16x128xbf16>
    %17 = vector.shape_cast %16 : vector<1x16x1x16x128xbf16> to vector<16x16x128xbf16>
    %18 = tpu.concatenate %1, %3, %5, %7, %9, %11, %13, %15, %17 in 2 : vector<16x16x128xbf16>, vector<16x16x128xbf16>, vector<16x16x128xbf16>, vector<16x16x128xbf16>, vector<16x16x128xbf16>, vector<16x16x128xbf16>, vector<16x16x128xbf16>, vector<16x16x128xbf16>, vector<16x16x128xbf16> -> vector<16x16x1152xbf16>
    %19 = vector.shape_cast %18 : vector<16x16x1152xbf16> to vector<256x1152xbf16>
    %c0_42 = arith.constant 0 : index
    %c0_43 = arith.constant 0 : index
    %20 = vector.load %arg3[%c0_42, %c0_43] : memref<1152x128xbf16, #tpu.memory_space<vmem>>, vector<1152x128xbf16>
    %cst = arith.constant dense<0.000000e+00> : vector<256x128xf32>
    %21 = tpu.matmul %19, %20, %cst {dimension_numbers = #tpu.dot_dimension_numbers<[1], [0], [0], [1], [0, 0, 1, 1], [], []>} : vector<256x1152xbf16>, vector<1152x128xbf16>, vector<256x128xf32> -> vector<256x128xf32>
    %c0_44 = arith.constant 0 : index
    %c0_45 = arith.constant 0 : index
    %22 = vector.load %arg4[%c0_44, %c0_45] : memref<1x128xf32, #tpu.memory_space<vmem>>, vector<1x128xf32>
    %23 = vector.broadcast %22 : vector<1x128xf32> to vector<256x128xf32>
    %24 = arith.mulf %21, %23 : vector<256x128xf32>
    %c0_46 = arith.constant 0 : index
    %c0_47 = arith.constant 0 : index
    %25 = vector.load %arg5[%c0_46, %c0_47] : memref<1x128xf32, #tpu.memory_space<vmem>>, vector<1x128xf32>
    %26 = vector.broadcast %25 : vector<1x128xf32> to vector<256x128xf32>
    %27 = arith.addf %24, %26 : vector<256x128xf32>
    %28 = arith.negf %27 : vector<256x128xf32>
    %29 = math.exp %28 : vector<256x128xf32>
    %cst_48 = arith.constant 1.000000e+00 : f32
    %30 = vector.broadcast %cst_48 : f32 to vector<256x128xf32>
    %31 = arith.addf %30, %29 : vector<256x128xf32>
    %32 = arith.divf %30, %31 : vector<256x128xf32>
    %33 = arith.mulf %27, %32 : vector<256x128xf32>
    %34 = vector.shape_cast %33 : vector<256x128xf32> to vector<1x16x16x128xf32>
    %35 = arith.truncf %34 : vector<1x16x16x128xf32> to vector<1x16x16x128xbf16>
    %c0_49 = arith.constant 0 : index
    %c0_50 = arith.constant 0 : index
    %c0_51 = arith.constant 0 : index
    %c0_52 = arith.constant 0 : index
    %36 = vector.load %arg6[%c0_49, %c0_50, %c0_51, %c0_52] : memref<1x16x16x128xbf16, #tpu.memory_space<vmem>>, vector<1x16x16x128xbf16>
    tpu.vector_store %arg6[%c0_49, %c0_50, %c0_51, %c0_52], %35 {strides = array<i32>} : memref<1x16x16x128xbf16, #tpu.memory_space<vmem>>, vector<1x16x16x128xbf16>,
    return
  }
  func.func @transform_0(%arg0: i32, %arg1: i32) -> (i32, i32, i32, i32, i32) {
    %c0_i32 = arith.constant 0 : i32
    %c0_i32_0 = arith.constant 0 : i32
    %c0_i32_1 = arith.constant 0 : i32
    %c0_i32_2 = arith.constant 0 : i32
    %c0_i32_3 = arith.constant 0 : i32
    return %arg0, %c0_i32, %c0_i32_0, %c0_i32_1, %c0_i32_2 : i32, i32, i32, i32, i32
  }
  func.func @transform_1(%arg0: i32, %arg1: i32) -> (i32, i32) {
    %c0_i32 = arith.constant 0 : i32
    %c0_i32_0 = arith.constant 0 : i32
    return %c0_i32, %arg1 : i32, i32
  }
  func.func @transform_2(%arg0: i32, %arg1: i32) -> (i32, i32) {
    %c0_i32 = arith.constant 0 : i32
    %c0_i32_0 = arith.constant 0 : i32
    return %c0_i32, %arg1 : i32, i32
  }
  func.func @transform_3(%arg0: i32, %arg1: i32) -> (i32, i32) {
    %c0_i32 = arith.constant 0 : i32
    %c0_i32_0 = arith.constant 0 : i32
    return %c0_i32, %arg1 : i32, i32
  }
  func.func @transform_4(%arg0: i32, %arg1: i32) -> (i32, i32, i32, i32) {
    %c0_i32 = arith.constant 0 : i32
    %c0_i32_0 = arith.constant 0 : i32
    %c0_i32_1 = arith.constant 0 : i32
    return %arg0, %c0_i32, %c0_i32_0, %arg1 : i32, i32, i32, i32
  }
}

module attributes {stable_mosaic.version = 11 : i64} {
  func.func @_conv_bn_silu_kernel(%arg0: i32, %arg1: i32, %arg2: memref<1x9x2x9x256xbf16, #tpu.memory_space<vmem>>, %arg3: memref<1152x128xbf16, #tpu.memory_space<vmem>>, %arg4: memref<1x128xf32, #tpu.memory_space<vmem>>, %arg5: memref<1x128xf32, #tpu.memory_space<vmem>>, %arg6: memref<1x8x8x128xbf16, #tpu.memory_space<vmem>>) attributes {dimension_semantics = [#tpu.dimension_semantics<parallel>, #tpu.dimension_semantics<parallel>], iteration_bounds = array<i64: 2, 3>, scalar_prefetch = 0 : i64, scratch_operands = 0 : i64, tpu.core_type = #tpu.core_type<tc>, window_params = [{transform_indices = @transform_0, window_bounds = array<i64: 1, 9, 2, 9, 256>}, {transform_indices = @transform_1, window_bounds = array<i64: 1152, 128>}, {transform_indices = @transform_2, window_bounds = array<i64: 1, 128>}, {transform_indices = @transform_3, window_bounds = array<i64: 1, 128>}, {transform_indices = @transform_4, window_bounds = array<i64: 1, 8, 8, 128>}]} {
    %c0 = arith.constant 0 : index
    %c0_0 = arith.constant 0 : index
    %c0_1 = arith.constant 0 : index
    %c0_2 = arith.constant 0 : index
    %c0_3 = arith.constant 0 : index
    %0 = vector.load %arg2[%c0, %c0_0, %c0_1, %c0_2, %c0_3] : memref<1x9x2x9x256xbf16, #tpu.memory_space<vmem>>, vector<1x8x1x8x128xbf16>
    %1 = vector.shape_cast %0 : vector<1x8x1x8x128xbf16> to vector<8x8x128xbf16>
    %c0_4 = arith.constant 0 : index
    %c0_5 = arith.constant 0 : index
    %c0_6 = arith.constant 0 : index
    %c0_7 = arith.constant 0 : index
    %c128 = arith.constant 128 : index
    %2 = vector.load %arg2[%c0_4, %c0_5, %c0_6, %c0_7, %c128] : memref<1x9x2x9x256xbf16, #tpu.memory_space<vmem>>, vector<1x8x1x8x128xbf16>
    %3 = vector.shape_cast %2 : vector<1x8x1x8x128xbf16> to vector<8x8x128xbf16>
    %c0_8 = arith.constant 0 : index
    %c0_9 = arith.constant 0 : index
    %c0_10 = arith.constant 0 : index
    %c1 = arith.constant 1 : index
    %c0_11 = arith.constant 0 : index
    %4 = vector.load %arg2[%c0_8, %c0_9, %c0_10, %c1, %c0_11] : memref<1x9x2x9x256xbf16, #tpu.memory_space<vmem>>, vector<1x8x1x8x128xbf16>
    %5 = vector.shape_cast %4 : vector<1x8x1x8x128xbf16> to vector<8x8x128xbf16>
    %c0_12 = arith.constant 0 : index
    %c0_13 = arith.constant 0 : index
    %c1_14 = arith.constant 1 : index
    %c0_15 = arith.constant 0 : index
    %c0_16 = arith.constant 0 : index
    %6 = vector.load %arg2[%c0_12, %c0_13, %c1_14, %c0_15, %c0_16] : memref<1x9x2x9x256xbf16, #tpu.memory_space<vmem>>, vector<1x8x1x8x128xbf16>
    %7 = vector.shape_cast %6 : vector<1x8x1x8x128xbf16> to vector<8x8x128xbf16>
    %c0_17 = arith.constant 0 : index
    %c0_18 = arith.constant 0 : index
    %c1_19 = arith.constant 1 : index
    %c0_20 = arith.constant 0 : index
    %c128_21 = arith.constant 128 : index
    %8 = vector.load %arg2[%c0_17, %c0_18, %c1_19, %c0_20, %c128_21] : memref<1x9x2x9x256xbf16, #tpu.memory_space<vmem>>, vector<1x8x1x8x128xbf16>
    %9 = vector.shape_cast %8 : vector<1x8x1x8x128xbf16> to vector<8x8x128xbf16>
    %c0_22 = arith.constant 0 : index
    %c0_23 = arith.constant 0 : index
    %c1_24 = arith.constant 1 : index
    %c1_25 = arith.constant 1 : index
    %c0_26 = arith.constant 0 : index
    %10 = vector.load %arg2[%c0_22, %c0_23, %c1_24, %c1_25, %c0_26] : memref<1x9x2x9x256xbf16, #tpu.memory_space<vmem>>, vector<1x8x1x8x128xbf16>
    %11 = vector.shape_cast %10 : vector<1x8x1x8x128xbf16> to vector<8x8x128xbf16>
    %c0_27 = arith.constant 0 : index
    %c1_28 = arith.constant 1 : index
    %c0_29 = arith.constant 0 : index
    %c0_30 = arith.constant 0 : index
    %c0_31 = arith.constant 0 : index
    %12 = vector.load %arg2[%c0_27, %c1_28, %c0_29, %c0_30, %c0_31] : memref<1x9x2x9x256xbf16, #tpu.memory_space<vmem>>, vector<1x8x1x8x128xbf16>
    %13 = vector.shape_cast %12 : vector<1x8x1x8x128xbf16> to vector<8x8x128xbf16>
    %c0_32 = arith.constant 0 : index
    %c1_33 = arith.constant 1 : index
    %c0_34 = arith.constant 0 : index
    %c0_35 = arith.constant 0 : index
    %c128_36 = arith.constant 128 : index
    %14 = vector.load %arg2[%c0_32, %c1_33, %c0_34, %c0_35, %c128_36] : memref<1x9x2x9x256xbf16, #tpu.memory_space<vmem>>, vector<1x8x1x8x128xbf16>
    %15 = vector.shape_cast %14 : vector<1x8x1x8x128xbf16> to vector<8x8x128xbf16>
    %c0_37 = arith.constant 0 : index
    %c1_38 = arith.constant 1 : index
    %c0_39 = arith.constant 0 : index
    %c1_40 = arith.constant 1 : index
    %c0_41 = arith.constant 0 : index
    %16 = vector.load %arg2[%c0_37, %c1_38, %c0_39, %c1_40, %c0_41] : memref<1x9x2x9x256xbf16, #tpu.memory_space<vmem>>, vector<1x8x1x8x128xbf16>
    %17 = vector.shape_cast %16 : vector<1x8x1x8x128xbf16> to vector<8x8x128xbf16>
    %18 = tpu.concatenate %1, %3, %5, %7, %9, %11, %13, %15, %17 in 2 : vector<8x8x128xbf16>, vector<8x8x128xbf16>, vector<8x8x128xbf16>, vector<8x8x128xbf16>, vector<8x8x128xbf16>, vector<8x8x128xbf16>, vector<8x8x128xbf16>, vector<8x8x128xbf16>, vector<8x8x128xbf16> -> vector<8x8x1152xbf16>
    %19 = vector.shape_cast %18 : vector<8x8x1152xbf16> to vector<64x1152xbf16>
    %c0_42 = arith.constant 0 : index
    %c0_43 = arith.constant 0 : index
    %20 = vector.load %arg3[%c0_42, %c0_43] : memref<1152x128xbf16, #tpu.memory_space<vmem>>, vector<1152x128xbf16>
    %cst = arith.constant dense<0.000000e+00> : vector<64x128xf32>
    %21 = tpu.matmul %19, %20, %cst {dimension_numbers = #tpu.dot_dimension_numbers<[1], [0], [0], [1], [0, 0, 1, 1], [], []>} : vector<64x1152xbf16>, vector<1152x128xbf16>, vector<64x128xf32> -> vector<64x128xf32>
    %c0_44 = arith.constant 0 : index
    %c0_45 = arith.constant 0 : index
    %22 = vector.load %arg4[%c0_44, %c0_45] : memref<1x128xf32, #tpu.memory_space<vmem>>, vector<1x128xf32>
    %23 = vector.broadcast %22 : vector<1x128xf32> to vector<64x128xf32>
    %24 = arith.mulf %21, %23 : vector<64x128xf32>
    %c0_46 = arith.constant 0 : index
    %c0_47 = arith.constant 0 : index
    %25 = vector.load %arg5[%c0_46, %c0_47] : memref<1x128xf32, #tpu.memory_space<vmem>>, vector<1x128xf32>
    %26 = vector.broadcast %25 : vector<1x128xf32> to vector<64x128xf32>
    %27 = arith.addf %24, %26 : vector<64x128xf32>
    %28 = arith.negf %27 : vector<64x128xf32>
    %29 = math.exp %28 : vector<64x128xf32>
    %cst_48 = arith.constant 1.000000e+00 : f32
    %30 = vector.broadcast %cst_48 : f32 to vector<64x128xf32>
    %31 = arith.addf %30, %29 : vector<64x128xf32>
    %32 = arith.divf %30, %31 : vector<64x128xf32>
    %33 = arith.mulf %27, %32 : vector<64x128xf32>
    %34 = vector.shape_cast %33 : vector<64x128xf32> to vector<1x8x8x128xf32>
    %35 = arith.truncf %34 : vector<1x8x8x128xf32> to vector<1x8x8x128xbf16>
    %c0_49 = arith.constant 0 : index
    %c0_50 = arith.constant 0 : index
    %c0_51 = arith.constant 0 : index
    %c0_52 = arith.constant 0 : index
    %36 = vector.load %arg6[%c0_49, %c0_50, %c0_51, %c0_52] : memref<1x8x8x128xbf16, #tpu.memory_space<vmem>>, vector<1x8x8x128xbf16>
    tpu.vector_store %arg6[%c0_49, %c0_50, %c0_51, %c0_52], %35 {strides = array<i32>} : memref<1x8x8x128xbf16, #tpu.memory_space<vmem>>, vector<1x8x8x128xbf16>,
    return
  }
  func.func @transform_0(%arg0: i32, %arg1: i32) -> (i32, i32, i32, i32, i32) {
    %c0_i32 = arith.constant 0 : i32
    %c0_i32_0 = arith.constant 0 : i32
    %c0_i32_1 = arith.constant 0 : i32
    %c0_i32_2 = arith.constant 0 : i32
    %c0_i32_3 = arith.constant 0 : i32
    return %arg0, %c0_i32, %c0_i32_0, %c0_i32_1, %c0_i32_2 : i32, i32, i32, i32, i32
  }
  func.func @transform_1(%arg0: i32, %arg1: i32) -> (i32, i32) {
    %c0_i32 = arith.constant 0 : i32
    %c0_i32_0 = arith.constant 0 : i32
    return %c0_i32, %arg1 : i32, i32
  }
  func.func @transform_2(%arg0: i32, %arg1: i32) -> (i32, i32) {
    %c0_i32 = arith.constant 0 : i32
    %c0_i32_0 = arith.constant 0 : i32
    return %c0_i32, %arg1 : i32, i32
  }
  func.func @transform_3(%arg0: i32, %arg1: i32) -> (i32, i32) {
    %c0_i32 = arith.constant 0 : i32
    %c0_i32_0 = arith.constant 0 : i32
    return %c0_i32, %arg1 : i32, i32
  }
  func.func @transform_4(%arg0: i32, %arg1: i32) -> (i32, i32, i32, i32) {
    %c0_i32 = arith.constant 0 : i32
    %c0_i32_0 = arith.constant 0 : i32
    %c0_i32_1 = arith.constant 0 : i32
    return %arg0, %c0_i32, %c0_i32_0, %arg1 : i32, i32, i32, i32
  }
}

module attributes {stable_mosaic.version = 11 : i64} {
  func.func @_head_gap_fc_kernel(%arg0: i32, %arg1: memref<128x384xbf16, #tpu.memory_space<vmem>>, %arg2: memref<384x1280xbf16, #tpu.memory_space<vmem>>, %arg3: memref<1x1280xf32, #tpu.memory_space<vmem>>, %arg4: memref<1x1280xf32, #tpu.memory_space<vmem>>, %arg5: memref<1280x128xbf16, #tpu.memory_space<vmem>>, %arg6: memref<1x128xf32, #tpu.memory_space<vmem>>, %arg7: memref<2x128xf32, #tpu.memory_space<vmem>>) attributes {dimension_semantics = [#tpu.dimension_semantics<arbitrary>], iteration_bounds = array<i64: 1>, scalar_prefetch = 0 : i64, scratch_operands = 0 : i64, tpu.core_type = #tpu.core_type<tc>, window_params = [{pipeline_mode = #tpu.pipeline_mode<synchronous>, transform_indices = @transform_0, window_bounds = array<i64: 128, 384>}, {pipeline_mode = #tpu.pipeline_mode<synchronous>, transform_indices = @transform_1, window_bounds = array<i64: 384, 1280>}, {pipeline_mode = #tpu.pipeline_mode<synchronous>, transform_indices = @transform_2, window_bounds = array<i64: 1, 1280>}, {pipeline_mode = #tpu.pipeline_mode<synchronous>, transform_indices = @transform_3, window_bounds = array<i64: 1, 1280>}, {pipeline_mode = #tpu.pipeline_mode<synchronous>, transform_indices = @transform_4, window_bounds = array<i64: 1280, 128>}, {pipeline_mode = #tpu.pipeline_mode<synchronous>, transform_indices = @transform_5, window_bounds = array<i64: 1, 128>}, {pipeline_mode = #tpu.pipeline_mode<synchronous>, transform_indices = @transform_6, window_bounds = array<i64: 2, 128>}]} {
    %c0 = arith.constant 0 : index
    %c0_0 = arith.constant 0 : index
    %0 = vector.load %arg1[%c0, %c0_0] : memref<128x384xbf16, #tpu.memory_space<vmem>>, vector<128x384xbf16>
    %c0_1 = arith.constant 0 : index
    %c0_2 = arith.constant 0 : index
    %1 = vector.load %arg2[%c0_1, %c0_2] : memref<384x1280xbf16, #tpu.memory_space<vmem>>, vector<384x1280xbf16>
    %cst = arith.constant dense<0.000000e+00> : vector<128x1280xf32>
    %2 = tpu.matmul %0, %1, %cst {dimension_numbers = #tpu.dot_dimension_numbers<[1], [0], [0], [1], [0, 0, 1, 1], [], []>} : vector<128x384xbf16>, vector<384x1280xbf16>, vector<128x1280xf32> -> vector<128x1280xf32>
    %c0_3 = arith.constant 0 : index
    %c0_4 = arith.constant 0 : index
    %3 = vector.load %arg3[%c0_3, %c0_4] : memref<1x1280xf32, #tpu.memory_space<vmem>>, vector<1x1280xf32>
    %4 = vector.broadcast %3 : vector<1x1280xf32> to vector<128x1280xf32>
    %5 = arith.mulf %2, %4 : vector<128x1280xf32>
    %c0_5 = arith.constant 0 : index
    %c0_6 = arith.constant 0 : index
    %6 = vector.load %arg4[%c0_5, %c0_6] : memref<1x1280xf32, #tpu.memory_space<vmem>>, vector<1x1280xf32>
    %7 = vector.broadcast %6 : vector<1x1280xf32> to vector<128x1280xf32>
    %8 = arith.addf %5, %7 : vector<128x1280xf32>
    %9 = arith.negf %8 : vector<128x1280xf32>
    %10 = math.exp %9 : vector<128x1280xf32>
    %cst_7 = arith.constant 1.000000e+00 : f32
    %11 = vector.broadcast %cst_7 : f32 to vector<128x1280xf32>
    %12 = arith.addf %11, %10 : vector<128x1280xf32>
    %13 = arith.divf %11, %12 : vector<128x1280xf32>
    %14 = arith.mulf %8, %13 : vector<128x1280xf32>
    %15 = vector.shape_cast %14 : vector<128x1280xf32> to vector<2x64x1280xf32>
    %cst_8 = arith.constant dense<0.000000e+00> : vector<2x1280xf32>
    %16 = vector.multi_reduction <add>, %15, %cst_8 [1] : vector<2x64x1280xf32> to vector<2x1280xf32>
    %cst_9 = arith.constant 6.400000e+01 : f32
    %17 = vector.broadcast %cst_9 : f32 to vector<2x1280xf32>
    %18 = arith.divf %16, %17 : vector<2x1280xf32>
    %19 = arith.truncf %18 : vector<2x1280xf32> to vector<2x1280xbf16>
    %c0_10 = arith.constant 0 : index
    %c0_11 = arith.constant 0 : index
    %20 = vector.load %arg5[%c0_10, %c0_11] : memref<1280x128xbf16, #tpu.memory_space<vmem>>, vector<1280x128xbf16>
    %cst_12 = arith.constant dense<0.000000e+00> : vector<2x128xf32>
    %21 = tpu.matmul %19, %20, %cst_12 {dimension_numbers = #tpu.dot_dimension_numbers<[1], [0], [0], [1], [0, 0, 1, 1], [], []>} : vector<2x1280xbf16>, vector<1280x128xbf16>, vector<2x128xf32> -> vector<2x128xf32>
    %c0_13 = arith.constant 0 : index
    %c0_14 = arith.constant 0 : index
    %22 = vector.load %arg6[%c0_13, %c0_14] : memref<1x128xf32, #tpu.memory_space<vmem>>, vector<1x128xf32>
    %23 = vector.broadcast %22 : vector<1x128xf32> to vector<2x128xf32>
    %24 = arith.addf %21, %23 : vector<2x128xf32>
    %c0_15 = arith.constant 0 : index
    %c0_16 = arith.constant 0 : index
    %25 = vector.load %arg7[%c0_15, %c0_16] : memref<2x128xf32, #tpu.memory_space<vmem>>, vector<2x128xf32>
    tpu.vector_store %arg7[%c0_15, %c0_16], %24 {strides = array<i32>} : memref<2x128xf32, #tpu.memory_space<vmem>>, vector<2x128xf32>,
    return
  }
  func.func @transform_0(%arg0: i32) -> (i32, i32) {
    %c0_i32 = arith.constant 0 : i32
    %c0_i32_0 = arith.constant 0 : i32
    %c0_i32_1 = arith.constant 0 : i32
    return %c0_i32, %c0_i32_0 : i32, i32
  }
  func.func @transform_1(%arg0: i32) -> (i32, i32) {
    %c0_i32 = arith.constant 0 : i32
    %c0_i32_0 = arith.constant 0 : i32
    %c0_i32_1 = arith.constant 0 : i32
    return %c0_i32, %c0_i32_0 : i32, i32
  }
  func.func @transform_2(%arg0: i32) -> (i32, i32) {
    %c0_i32 = arith.constant 0 : i32
    %c0_i32_0 = arith.constant 0 : i32
    %c0_i32_1 = arith.constant 0 : i32
    return %c0_i32, %c0_i32_0 : i32, i32
  }
  func.func @transform_3(%arg0: i32) -> (i32, i32) {
    %c0_i32 = arith.constant 0 : i32
    %c0_i32_0 = arith.constant 0 : i32
    %c0_i32_1 = arith.constant 0 : i32
    return %c0_i32, %c0_i32_0 : i32, i32
  }
  func.func @transform_4(%arg0: i32) -> (i32, i32) {
    %c0_i32 = arith.constant 0 : i32
    %c0_i32_0 = arith.constant 0 : i32
    %c0_i32_1 = arith.constant 0 : i32
    return %c0_i32, %c0_i32_0 : i32, i32
  }
  func.func @transform_5(%arg0: i32) -> (i32, i32) {
    %c0_i32 = arith.constant 0 : i32
    %c0_i32_0 = arith.constant 0 : i32
    %c0_i32_1 = arith.constant 0 : i32
    return %c0_i32, %c0_i32_0 : i32, i32
  }
  func.func @transform_6(%arg0: i32) -> (i32, i32) {
    %c0_i32 = arith.constant 0 : i32
    %c0_i32_0 = arith.constant 0 : i32
    %c0_i32_1 = arith.constant 0 : i32
    return %c0_i32, %c0_i32_0 : i32, i32
  }
}

</mosaic_0001>

<llo_original>
// kernel: card_classifier_forward.4
$region0: #{card_classifier_forward.4}
  #allocation0 [shape = 'u32[]', space=smem, size = 0x4, offset = 0x4, fixed_abs, tag = 'smem constant byte address 0x4 - core index']
  #allocation1 [shape = 'u32[144,128]{1,0:T(1,128)}', space=vmem, size = 0x12000, scoped, tag = 'internal scratch']
  %s0 = inlined_call_operand.vmem [shape: bf16[2,9,2,9,256], index: 0, kind: input, shape index: {}]
  %s1 = inlined_call_operand.vmem [shape: bf16[1152,384], index: 1, kind: input, shape index: {}]
  %s2 = inlined_call_operand.vmem [shape: f32[1,384], index: 2, kind: input, shape index: {}]
  %s3 = inlined_call_operand.vmem [shape: f32[1,384], index: 3, kind: input, shape index: {}]
  %s4 = inlined_call_operand.vmem [shape: bf16[2,8,8,384], index: 4, kind: output, shape index: {}]
  %s5 = sld [smem:[#allocation0]]
  $region127: #{card_classifier_forward.4} parent=0
    _
  %s7 = ssub.s32 1, %s5
  %s8 = scalar_select 0, %s7, %s5
  $region1: #{card_classifier_forward.4} parent=0
    #allocation2 [shape = 'u8[589824]{0}', space=vmem, size = 0x90000, scoped, tag = 'input window, operand 1']
    #allocation3 [shape = 'u8[32768]{0}', space=vmem, size = 0x8000, scoped, tag = 'output window, operand 0']
    loop: start=0, step=1, limit=8
    $region2: #{card_classifier_forward.4} parent=1 // loop_pre_header
      _
    $region3: #{card_classifier_forward.4} parent=1 // loop_header
      %s10 = sphi 0, %s14
      %p11 = scmp.ge.s32.totalorder %s10, 8
      %s17 = sphi 0, %s29
      %s18 = sphi 0, %s25
      %s19 = sphi 0, %s17
      %s20 = sphi 0, %s18
      %s21 = sphi 0, %s19
      %s22 = sphi 0, %s20
      %s32 = sphi 0, %s34
      %s35 = sphi 0, %s32
      %s36 = sphi 0, %s35
      %s52 = sphi 0, %s36
      %s58 = sphi 0, %s60
      %s61 = sphi 0, %s58
      %s62 = sphi 0, %s61
      %s78 = sphi 0, %s62
      %s84 = sphi 0, %s86
      %s87 = sphi 0, %s84
      %s88 = sphi 0, %s87
      %s104 = sphi 0, %s88
      %s110 = sphi 0, %s112
      %s113 = sphi 0, %s110
      %s114 = sphi 0, %s113
      %s130 = sphi 0, %s114
      %s138 = sphi 0, %s140
      %s141 = sphi 0, %s138
      %s142 = sphi 0, %s141
      %s158 = sphi 0, %s142
    $region4: #{card_classifier_forward.4} parent=1 // loop_header_branch
      %13 = sbr.rel (%p11) target = $region8
    $region5: #{card_classifier_forward.4} parent=1 // loop_body
      %s15 = ssub.s32 %s10, 1
      %s16 = ssub.s32 %s10, 2
      %s23 = sadd.s32 1, %s18
      %p24 = scmp.ge.s32.totalorder %s23, 3
      %s25 = scalar_select %p24, 0, %s23
      %s26 = sadd.s32 1, %s17
      %s27 = scalar_select %p24, %s26, %s17
      %p28 = scmp.ge.s32.totalorder %s27, 2
      %s29 = scalar_select %p28, 0, %s27
      %s30 = ssub.s32 %s17, %s29
      %p31 = scmp.eq.s32.totalorder %s30, 0
      %s33 = sadd.s32 %s32, 1
      %s34 = scalar_select %p31, %s32, %s33
      %p37 = pneg %p31
      %p38 = scmp.eq.s32.totalorder %s10, 5
      %p39 = por %p37, %p38
      %p40 = scmp.ne.s32.totalorder %s32, %s35
      %p41 = scmp.eq.s32.totalorder %s10, 0
      %p42 = por %p40, %p41
      %p43 = scmp.ne.s32.totalorder %s32, %s35
      %p44 = scmp.eq.s32.totalorder %s15, 5
      %p45 = por %p43, %p44
      %p46 = scmp.ne.s32.totalorder %s35, %s36
      %p47 = scmp.eq.s32.totalorder %s15, 0
      %p48 = por %p46, %p47
      %p49 = scmp.ne.s32.totalorder %s35, %s36
      %p50 = scmp.eq.s32.totalorder %s16, 5
      %p51 = por %p49, %p50
      %p53 = scmp.ne.s32.totalorder %s36, %s52
      %p54 = scmp.eq.s32.totalorder %s16, 0
      %p55 = por %p53, %p54
      %s56 = ssub.s32 %s18, %s25
      %p57 = scmp.eq.s32.totalorder %s56, 0
      %s59 = sadd.s32 %s58, 1
      %s60 = scalar_select %p57, %s58, %s59
      %p63 = pneg %p57
      %p64 = scmp.eq.s32.totalorder %s10, 5
      %p65 = por %p63, %p64
      %p66 = scmp.ne.s32.totalorder %s58, %s61
      %p67 = scmp.eq.s32.totalorder %s10, 0
      %p68 = por %p66, %p67
      %p69 = scmp.ne.s32.totalorder %s58, %s61
      %p70 = scmp.eq.s32.totalorder %s15, 5
      %p71 = por %p69, %p70
      %p72 = scmp.ne.s32.totalorder %s61, %s62
      %p73 = scmp.eq.s32.totalorder %s15, 0
      %p74 = por %p72, %p73
      %p75 = scmp.ne.s32.totalorder %s61, %s62
      %p76 = scmp.eq.s32.totalorder %s16, 5
      %p77 = por %p75, %p76
      %p79 = scmp.ne.s32.totalorder %s62, %s78
      %p80 = scmp.eq.s32.totalorder %s16, 0
      %p81 = por %p79, %p80
      %s82 = ssub.s32 %s18, %s25
      %p83 = scmp.eq.s32.totalorder %s82, 0
      %s85 = sadd.s32 %s84, 1
      %s86 = scalar_select %p83, %s84, %s85
      %p89 = pneg %p83
      %p90 = scmp.eq.s32.totalorder %s10, 5
      %p91 = por %p89, %p90
      %p92 = scmp.ne.s32.totalorder %s84, %s87
      %p93 = scmp.eq.s32.totalorder %s10, 0
      %p94 = por %p92, %p93
      %p95 = scmp.ne.s32.totalorder %s84, %s87
      %p96 = scmp.eq.s32.totalorder %s15, 5
      %p97 = por %p95, %p96
      %p98 = scmp.ne.s32.totalorder %s87, %s88
      %p99 = scmp.eq.s32.totalorder %s15, 0
      %p100 = por %p98, %p99
      %p101 = scmp.ne.s32.totalorder %s87, %s88
      %p102 = scmp.eq.s32.totalorder %s16, 5
      %p103 = por %p101, %p102
      %p105 = scmp.ne.s32.totalorder %s88, %s104
      %p106 = scmp.eq.s32.totalorder %s16, 0
      %p107 = por %p105, %p106
      %s108 = ssub.s32 %s18, %s25
      %p109 = scmp.eq.s32.totalorder %s108, 0
      %s111 = sadd.s32 %s110, 1
      %s112 = scalar_select %p109, %s110, %s111
      %p115 = pneg %p109
      %p116 = scmp.eq.s32.totalorder %s10, 5
      %p117 = por %p115, %p116
      %p118 = scmp.ne.s32.totalorder %s110, %s113
      %p119 = scmp.eq.s32.totalorder %s10, 0
      %p120 = por %p118, %p119
      %p121 = scmp.ne.s32.totalorder %s110, %s113
      %p122 = scmp.eq.s32.totalorder %s15, 5
      %p123 = por %p121, %p122
      %p124 = scmp.ne.s32.totalorder %s113, %s114
      %p125 = scmp.eq.s32.totalorder %s15, 0
      %p126 = por %p124, %p125
      %p127 = scmp.ne.s32.totalorder %s113, %s114
      %p128 = scmp.eq.s32.totalorder %s16, 5
      %p129 = por %p127, %p128
      %p131 = scmp.ne.s32.totalorder %s114, %s130
      %p132 = scmp.eq.s32.totalorder %s16, 0
      %p133 = por %p131, %p132
      %s134 = ssub.s32 %s17, %s29
      %s135 = ssub.s32 %s18, %s25
      %s136 = sor.u32 %s134, %s135
      %p137 = scmp.eq.s32.totalorder %s136, 0
      %s139 = sadd.s32 %s138, 1
      %s140 = scalar_select %p137, %s138, %s139
      %p143 = pneg %p137
      %p144 = scmp.eq.s32.totalorder %s10, 5
      %p145 = por %p143, %p144
      %p146 = scmp.ne.s32.totalorder %s138, %s141
      %p147 = scmp.eq.s32.totalorder %s10, 0
      %p148 = por %p146, %p147
      %p149 = scmp.ne.s32.totalorder %s138, %s141
      %p150 = scmp.eq.s32.totalorder %s15, 5
      %p151 = por %p149, %p150
      %p152 = scmp.ne.s32.totalorder %s141, %s142
      %p153 = scmp.eq.s32.totalorder %s15, 0
      %p154 = por %p152, %p153
      %p155 = scmp.ne.s32.totalorder %s141, %s142
      %p156 = scmp.eq.s32.totalorder %s16, 5
      %p157 = por %p155, %p156
      %p159 = scmp.ne.s32.totalorder %s142, %s158
      %p160 = scmp.eq.s32.totalorder %s16, 0
      %p161 = por %p159, %p160
      %p162 = scmp.le.s32.totalorder 1, %s10
      %p163 = scmp.lt.s32.totalorder %s10, 7
      %p164 = pnand %p162, %p163
      %p165 = pneg %p164
      // Predicated region
      $region9: #{card_classifier_forward.4} parent=5 // pred_check
        _
      $region10: #{card_classifier_forward.4} parent=5 // pred_check_branch
        %167 = sbr.rel (%p164) target = $region12
      $region11: #{card_classifier_forward.4} parent=5 // pred_region
        %s168 = ssub.s32 %s10, 1
      $region12: #{card_classifier_forward.4} parent=5 // pred_fallthru
        _
      %p169 = scmp.lt.s32.totalorder %s10, 6
      // Predicated region
      $region13: #{card_classifier_forward.4} parent=5 // pred_check
        %p170 = pneg %p169
      $region14: #{card_classifier_forward.4} parent=5 // pred_check_branch
        %172 = sbr.rel (%p170) target = $region16
      $region15: #{card_classifier_forward.4} parent=5 // pred_region
        // Predicated region
        $region17: #{card_classifier_forward.4} parent=15 // pred_check
          %p173 = pneg %p42
        $region18: #{card_classifier_forward.4} parent=15 // pred_check_branch
          %175 = sbr.rel (%p173) target = $region20
        $region19: #{card_classifier_forward.4} parent=15 // pred_region
          %p176 = scmp.lt.s32.totalorder %s17, 1
          %s177 = scalar_select %p176, %s17, 1
          %s178 = smul.addr %s177, 72
          %s179 = smul.addr %s178, 4
          %s180 = scalar_lea.vmem %s0, %s179
        $region20: #{card_classifier_forward.4} parent=15 // pred_fallthru
          _
        // Predicated region
        $region21: #{card_classifier_forward.4} parent=15 // pred_check
          %p181 = pneg %p68
        $region22: #{card_classifier_forward.4} parent=15 // pred_check_branch
          %183 = sbr.rel (%p181) target = $region24
        $region23: #{card_classifier_forward.4} parent=15 // pred_region
          %s184 = sand.u32 %s58, 1
          %s185 = sand.u32 %s58, 1
          %s186 = smul.addr %s185, 576
          %s187 = scalar_lea.vmem [#allocation2], %s186
          %s188 = smul.addr %s18, 4
          %s189 = scalar_lea.vmem %s1, %s188
          // Predicated region
          $region25: #{card_classifier_forward.4} parent=23 // pred_check
            _
          $region26: #{card_classifier_forward.4} parent=23 // pred_check_branch
            %191 = sbr.rel (0) target = $region28
          $region27: #{card_classifier_forward.4} parent=23 // pred_region
            // Predicated region
            $region29: #{card_classifier_forward.4} parent=27 // pred_check
              _
            $region30: #{card_classifier_forward.4} parent=27 // pred_check_branch
              %193 = sbr.rel target = $region32
            $region31: #{card_classifier_forward.4} parent=27 // pred_region
              // Predicated region
              $region44: #{card_classifier_forward.4} parent=31 // pred_check
                _
              $region45: #{card_classifier_forward.4} parent=31 // pred_check_branch
                %494 = sbr.rel (0) target = $region47
              $region46: #{card_classifier_forward.4} parent=31 // pred_region
                loop: start=0, step=1, limit=1
                $region48: #{card_classifier_forward.4} parent=46 // loop_pre_header
                  _
                $region49: #{card_classifier_forward.4} parent=46 // loop_header
                  %s496 = sphi 0, %s500
                  %p497 = scmp.ge.s32.totalorder %s496, 1
                  %s501 = sphi %s189, %s189
                  %s502 = sphi %s187, %s187
                $region50: #{card_classifier_forward.4} parent=46 // loop_header_branch
                  %499 = sbr.rel (%p497) target = $region54
                $region51: #{card_classifier_forward.4} parent=46 // loop_body
                  _
                $region52: #{card_classifier_forward.4} parent=46 // loop_footer
                  %s500 = sadd.s32 1, %s496
                $region53: #{card_classifier_forward.4} parent=46 // loop_footer_branch
                  %495 = sbr.rel target = $region49
                $region54: #{card_classifier_forward.4} parent=46 // loop_exit
                  _
                loop: start=0, step=1, limit=1
                $region55: #{card_classifier_forward.4} parent=46 // loop_pre_header
                  _
                $region56: #{card_classifier_forward.4} parent=46 // loop_header
                  %s505 = sphi 0, %s509
                  %p506 = scmp.ge.s32.totalorder %s505, 1
                  %s510 = sphi %s189, %s189
                  %s511 = sphi %s187, %s187
                $region57: #{card_classifier_forward.4} parent=46 // loop_header_branch
                  %508 = sbr.rel (%p506) target = $region61
                $region58: #{card_classifier_forward.4} parent=46 // loop_body
                  %v512 = vld [vmem:[%s510] sm:$0xf]
                  %513 = vst [vmem:[%s511] sm:$0xf] %v512
                  %v514 = vld [vmem:[%s510 + $0xc] sm:$0xf]
                  %515 = vst [vmem:[%s511 + $0x4] sm:$0xf] %v514
                  %v516 = vld [vmem:[%s510 + $0x18] sm:$0xf]
                  %517 = vst [vmem:[%s511 + $0x8] sm:$0xf] %v516
                  %v518 = vld [vmem:[%s510 + $0x24] sm:$0xf]
                  %519 = vst [vmem:[%s511 + $0xc] sm:$0xf] %v518
                  %v520 = vld [vmem:[%s510 + $0x30] sm:$0xf]
                  %521 = vst [vmem:[%s511 + $0x10] sm:$0xf] %v520
                  %v522 = vld [vmem:[%s510 + $0x3c] sm:$0xf]
                  %523 = vst [vmem:[%s511 + $0x14] sm:$0xf] %v522
                  %v524 = vld [vmem:[%s510 + $0x48] sm:$0xf]
                  %525 = vst [vmem:[%s511 + $0x18] sm:$0xf] %v524
                  %v526 = vld [vmem:[%s510 + $0x54] sm:$0xf]
                  %527 = vst [vmem:[%s511 + $0x1c] sm:$0xf] %v526
                  %v528 = vld [vmem:[%s510 + $0x60] sm:$0xf]
                  %529 = vst [vmem:[%s511 + $0x20] sm:$0xf] %v528
                  %v530 = vld [vmem:[%s510 + $0x6c] sm:$0xf]
                  %531 = vst [vmem:[%s511 + $0x24] sm:$0xf] %v530
                  %v532 = vld [vmem:[%s510 + $0x78] sm:$0xf]
                  %533 = vst [vmem:[%s511 + $0x28] sm:$0xf] %v532
                  %v534 = vld [vmem:[%s510 + $0x84] sm:$0xf]
                  %535 = vst [vmem:[%s511 + $0x2c] sm:$0xf] %v534
                  %v536 = vld [vmem:[%s510 + $0x90] sm:$0xf]
                  %537 = vst [vmem:[%s511 + $0x30] sm:$0xf] %v536
                  %v538 = vld [vmem:[%s510 + $0x9c] sm:$0xf]
                  %539 = vst [vmem:[%s511 + $0x34] sm:$0xf] %v538
                  %v540 = vld [vmem:[%s510 + $0xa8] sm:$0xf]
                  %541 = vst [vmem:[%s511 + $0x38] sm:$0xf] %v540
                  %v542 = vld [vmem:[%s510 + $0xb4] sm:$0xf]
                  %543 = vst [vmem:[%s511 + $0x3c] sm:$0xf] %v542
                  %v544 = vld [vmem:[%s510 + $0xc0] sm:$0xf]
                  %545 = vst [vmem:[%s511 + $0x40] sm:$0xf] %v544
                  %v546 = vld [vmem:[%s510 + $0xcc] sm:$0xf]
                  %547 = vst [vmem:[%s511 + $0x44] sm:$0xf] %v546
                  %v548 = vld [vmem:[%s510 + $0xd8] sm:$0xf]
                  %549 = vst [vmem:[%s511 + $0x48] sm:$0xf] %v548
                  %v550 = vld [vmem:[%s510 + $0xe4] sm:$0xf]
                  %551 = vst [vmem:[%s511 + $0x4c] sm:$0xf] %v550
                  %v552 = vld [vmem:[%s510 + $0xf0] sm:$0xf]
                  %553 = vst [vmem:[%s511 + $0x50] sm:$0xf] %v552
                  %v554 = vld [vmem:[%s510 + $0xfc] sm:$0xf]
                  %555 = vst [vmem:[%s511 + $0x54] sm:$0xf] %v554
                  %v556 = vld [vmem:[%s510 + $0x108] sm:$0xf]
                  %557 = vst [vmem:[%s511 + $0x58] sm:$0xf] %v556
                  %v558 = vld [vmem:[%s510 + $0x114] sm:$0xf]
                  %559 = vst [vmem:[%s511 + $0x5c] sm:$0xf] %v558
                  %v560 = vld [vmem:[%s510 + $0x120] sm:$0xf]
                  %561 = vst [vmem:[%s511 + $0x60] sm:$0xf] %v560
                  %v562 = vld [vmem:[%s510 + $0x12c] sm:$0xf]
                  %563 = vst [vmem:[%s511 + $0x64] sm:$0xf] %v562
                  %v564 = vld [vmem:[%s510 + $0x138] sm:$0xf]
                  %565 = vst [vmem:[%s511 + $0x68] sm:$0xf] %v564
                  %v566 = vld [vmem:[%s510 + $0x144] sm:$0xf]
                  %567 = vst [vmem:[%s511 + $0x6c] sm:$0xf] %v566
                  %v568 = vld [vmem:[%s510 + $0x150] sm:$0xf]
                  %569 = vst [vmem:[%s511 + $0x70] sm:$0xf] %v568
                  %v570 = vld [vmem:[%s510 + $0x15c] sm:$0xf]
                  %571 = vst [vmem:[%s511 + $0x74] sm:$0xf] %v570
                  %v572 = vld [vmem:[%s510 + $0x168] sm:$0xf]
                  %573 = vst [vmem:[%s511 + $0x78] sm:$0xf] %v572
                  %v574 = vld [vmem:[%s510 + $0x174] sm:$0xf]
                  %575 = vst [vmem:[%s511 + $0x7c] sm:$0xf] %v574
                  %v576 = vld [vmem:[%s510 + $0x180] sm:$0xf]
                  %577 = vst [vmem:[%s511 + $0x80] sm:$0xf] %v576
                  %v578 = vld [vmem:[%s510 + $0x18c] sm:$0xf]
                  %579 = vst [vmem:[%s511 + $0x84] sm:$0xf] %v578
                  %v580 = vld [vmem:[%s510 + $0x198] sm:$0xf]
                  %581 = vst [vmem:[%s511 + $0x88] sm:$0xf] %v580
                  %v582 = vld [vmem:[%s510 + $0x1a4] sm:$0xf]
                  %583 = vst [vmem:[%s511 + $0x8c] sm:$0xf] %v582
                  %v584 = vld [vmem:[%s510 + $0x1b0] sm:$0xf]
                  %585 = vst [vmem:[%s511 + $0x90] sm:$0xf] %v584
                  %v586 = vld [vmem:[%s510 + $0x1bc] sm:$0xf]
                  %587 = vst [vmem:[%s511 + $0x94] sm:$0xf] %v586
                  %v588 = vld [vmem:[%s510 + $0x1c8] sm:$0xf]
                  %589 = vst [vmem:[%s511 + $0x98] sm:$0xf] %v588
                  %v590 = vld [vmem:[%s510 + $0x1d4] sm:$0xf]
                  %591 = vst [vmem:[%s511 + $0x9c] sm:$0xf] %v590
                  %v592 = vld [vmem:[%s510 + $0x1e0] sm:$0xf]
                  %593 = vst [vmem:[%s511 + $0xa0] sm:$0xf] %v592
                  %v594 = vld [vmem:[%s510 + $0x1ec] sm:$0xf]
                  %595 = vst [vmem:[%s511 + $0xa4] sm:$0xf] %v594
                  %v596 = vld [vmem:[%s510 + $0x1f8] sm:$0xf]
                  %597 = vst [vmem:[%s511 + $0xa8] sm:$0xf] %v596
                  %v598 = vld [vmem:[%s510 + $0x204] sm:$0xf]
                  %599 = vst [vmem:[%s511 + $0xac] sm:$0xf] %v598
                  %v600 = vld [vmem:[%s510 + $0x210] sm:$0xf]
                  %601 = vst [vmem:[%s511 + $0xb0] sm:$0xf] %v600
                  %v602 = vld [vmem:[%s510 + $0x21c] sm:$0xf]
                  %603 = vst [vmem:[%s511 + $0xb4] sm:$0xf] %v602
                  %v604 = vld [vmem:[%s510 + $0x228] sm:$0xf]
                  %605 = vst [vmem:[%s511 + $0xb8] sm:$0xf] %v604
                  %v606 = vld [vmem:[%s510 + $0x234] sm:$0xf]
                  %607 = vst [vmem:[%s511 + $0xbc] sm:$0xf] %v606
                  %v608 = vld [vmem:[%s510 + $0x240] sm:$0xf]
                  %609 = vst [vmem:[%s511 + $0xc0] sm:$0xf] %v608
                  %v610 = vld [vmem:[%s510 + $0x24c] sm:$0xf]
                  %611 = vst [vmem:[%s511 + $0xc4] sm:$0xf] %v610
                  %v612 = vld [vmem:[%s510 + $0x258] sm:$0xf]
                  %613 = vst [vmem:[%s511 + $0xc8] sm:$0xf] %v612
                  %v614 = vld [vmem:[%s510 + $0x264] sm:$0xf]
                  %615 = vst [vmem:[%s511 + $0xcc] sm:$0xf] %v614
                  %v616 = vld [vmem:[%s510 + $0x270] sm:$0xf]
                  %617 = vst [vmem:[%s511 + $0xd0] sm:$0xf] %v616
                  %v618 = vld [vmem:[%s510 + $0x27c] sm:$0xf]
                  %619 = vst [vmem:[%s511 + $0xd4] sm:$0xf] %v618
                  %v620 = vld [vmem:[%s510 + $0x288] sm:$0xf]
                  %621 = vst [vmem:[%s511 + $0xd8] sm:$0xf] %v620
                  %v622 = vld [vmem:[%s510 + $0x294] sm:$0xf]
                  %623 = vst [vmem:[%s511 + $0xdc] sm:$0xf] %v622
                  %v624 = vld [vmem:[%s510 + $0x2a0] sm:$0xf]
                  %625 = vst [vmem:[%s511 + $0xe0] sm:$0xf] %v624
                  %v626 = vld [vmem:[%s510 + $0x2ac] sm:$0xf]
                  %627 = vst [vmem:[%s511 + $0xe4] sm:$0xf] %v626
                  %v628 = vld [vmem:[%s510 + $0x2b8] sm:$0xf]
                  %629 = vst [vmem:[%s511 + $0xe8] sm:$0xf] %v628
                  %v630 = vld [vmem:[%s510 + $0x2c4] sm:$0xf]
                  %631 = vst [vmem:[%s511 + $0xec] sm:$0xf] %v630
                  %v632 = vld [vmem:[%s510 + $0x2d0] sm:$0xf]
                  %633 = vst [vmem:[%s511 + $0xf0] sm:$0xf] %v632
                  %v634 = vld [vmem:[%s510 + $0x2dc] sm:$0xf]
                  %635 = vst [vmem:[%s511 + $0xf4] sm:$0xf] %v634
                  %v636 = vld [vmem:[%s510 + $0x2e8] sm:$0xf]
                  %637 = vst [vmem:[%s511 + $0xf8] sm:$0xf] %v636
                  %v638 = vld [vmem:[%s510 + $0x2f4] sm:$0xf]
                  %639 = vst [vmem:[%s511 + $0xfc] sm:$0xf] %v638
                  %v640 = vld [vmem:[%s510 + $0x300] sm:$0xf]
                  %641 = vst [vmem:[%s511 + $0x100] sm:$0xf] %v640
                  %v642 = vld [vmem:[%s510 + $0x30c] sm:$0xf]
                  %643 = vst [vmem:[%s511 + $0x104] sm:$0xf] %v642
                  %v644 = vld [vmem:[%s510 + $0x318] sm:$0xf]
                  %645 = vst [vmem:[%s511 + $0x108] sm:$0xf] %v644
                  %v646 = vld [vmem:[%s510 + $0x324] sm:$0xf]
                  %647 = vst [vmem:[%s511 + $0x10c] sm:$0xf] %v646
                  %v648 = vld [vmem:[%s510 + $0x330] sm:$0xf]
                  %649 = vst [vmem:[%s511 + $0x110] sm:$0xf] %v648
                  %v650 = vld [vmem:[%s510 + $0x33c] sm:$0xf]
                  %651 = vst [vmem:[%s511 + $0x114] sm:$0xf] %v650
                  %v652 = vld [vmem:[%s510 + $0x348] sm:$0xf]
                  %653 = vst [vmem:[%s511 + $0x118] sm:$0xf] %v652
                  %v654 = vld [vmem:[%s510 + $0x354] sm:$0xf]
                  %655 = vst [vmem:[%s511 + $0x11c] sm:$0xf] %v654
                  %v656 = vld [vmem:[%s510 + $0x360] sm:$0xf]
                  %657 = vst [vmem:[%s511 + $0x120] sm:$0xf] %v656
                  %v658 = vld [vmem:[%s510 + $0x36c] sm:$0xf]
                  %659 = vst [vmem:[%s511 + $0x124] sm:$0xf] %v658
                  %v660 = vld [vmem:[%s510 + $0x378] sm:$0xf]
                  %661 = vst [vmem:[%s511 + $0x128] sm:$0xf] %v660
                  %v662 = vld [vmem:[%s510 + $0x384] sm:$0xf]
                  %663 = vst [vmem:[%s511 + $0x12c] sm:$0xf] %v662
                  %v664 = vld [vmem:[%s510 + $0x390] sm:$0xf]
                  %665 = vst [vmem:[%s511 + $0x130] sm:$0xf] %v664
                  %v666 = vld [vmem:[%s510 + $0x39c] sm:$0xf]
                  %667 = vst [vmem:[%s511 + $0x134] sm:$0xf] %v666
                  %v668 = vld [vmem:[%s510 + $0x3a8] sm:$0xf]
                  %669 = vst [vmem:[%s511 + $0x138] sm:$0xf] %v668
                  %v670 = vld [vmem:[%s510 + $0x3b4] sm:$0xf]
                  %671 = vst [vmem:[%s511 + $0x13c] sm:$0xf] %v670
                  %v672 = vld [vmem:[%s510 + $0x3c0] sm:$0xf]
                  %673 = vst [vmem:[%s511 + $0x140] sm:$0xf] %v672
                  %v674 = vld [vmem:[%s510 + $0x3cc] sm:$0xf]
                  %675 = vst [vmem:[%s511 + $0x144] sm:$0xf] %v674
                  %v676 = vld [vmem:[%s510 + $0x3d8] sm:$0xf]
                  %677 = vst [vmem:[%s511 + $0x148] sm:$0xf] %v676
                  %v678 = vld [vmem:[%s510 + $0x3e4] sm:$0xf]
                  %679 = vst [vmem:[%s511 + $0x14c] sm:$0xf] %v678
                  %v680 = vld [vmem:[%s510 + $0x3f0] sm:$0xf]
                  %681 = vst [vmem:[%s511 + $0x150] sm:$0xf] %v680
                  %v682 = vld [vmem:[%s510 + $0x3fc] sm:$0xf]
                  %683 = vst [vmem:[%s511 + $0x154] sm:$0xf] %v682
                  %v684 = vld [vmem:[%s510 + $0x408] sm:$0xf]
                  %685 = vst [vmem:[%s511 + $0x158] sm:$0xf] %v684
                  %v686 = vld [vmem:[%s510 + $0x414] sm:$0xf]
                  %687 = vst [vmem:[%s511 + $0x15c] sm:$0xf] %v686
                  %v688 = vld [vmem:[%s510 + $0x420] sm:$0xf]
                  %689 = vst [vmem:[%s511 + $0x160] sm:$0xf] %v688
                  %v690 = vld [vmem:[%s510 + $0x42c] sm:$0xf]
                  %691 = vst [vmem:[%s511 + $0x164] sm:$0xf] %v690
                  %v692 = vld [vmem:[%s510 + $0x438] sm:$0xf]
                  %693 = vst [vmem:[%s511 + $0x168] sm:$0xf] %v692
                  %v694 = vld [vmem:[%s510 + $0x444] sm:$0xf]
                  %695 = vst [vmem:[%s511 + $0x16c] sm:$0xf] %v694
                  %v696 = vld [vmem:[%s510 + $0x450] sm:$0xf]
                  %697 = vst [vmem:[%s511 + $0x170] sm:$0xf] %v696
                  %v698 = vld [vmem:[%s510 + $0x45c] sm:$0xf]
                  %699 = vst [vmem:[%s511 + $0x174] sm:$0xf] %v698
                  %v700 = vld [vmem:[%s510 + $0x468] sm:$0xf]
                  %701 = vst [vmem:[%s511 + $0x178] sm:$0xf] %v700
                  %v702 = vld [vmem:[%s510 + $0x474] sm:$0xf]
                  %703 = vst [vmem:[%s511 + $0x17c] sm:$0xf] %v702
                  %v704 = vld [vmem:[%s510 + $0x480] sm:$0xf]
                  %705 = vst [vmem:[%s511 + $0x180] sm:$0xf] %v704
                  %v706 = vld [vmem:[%s510 + $0x48c] sm:$0xf]
                  %707 = vst [vmem:[%s511 + $0x184] sm:$0xf] %v706
                  %v708 = vld [vmem:[%s510 + $0x498] sm:$0xf]
                  %709 = vst [vmem:[%s511 + $0x188] sm:$0xf] %v708
                  %v710 = vld [vmem:[%s510 + $0x4a4] sm:$0xf]
                  %711 = vst [vmem:[%s511 + $0x18c] sm:$0xf] %v710
                  %v712 = vld [vmem:[%s510 + $0x4b0] sm:$0xf]
                  %713 = vst [vmem:[%s511 + $0x190] sm:$0xf] %v712
                  %v714 = vld [vmem:[%s510 + $0x4bc] sm:$0xf]
                  %715 = vst [vmem:[%s511 + $0x194] sm:$0xf] %v714
                  %v716 = vld [vmem:[%s510 + $0x4c8] sm:$0xf]
                  %717 = vst [vmem:[%s511 + $0x198] sm:$0xf] %v716
                  %v718 = vld [vmem:[%s510 + $0x4d4] sm:$0xf]
                  %719 = vst [vmem:[%s511 + $0x19c] sm:$0xf] %v718
                  %v720 = vld [vmem:[%s510 + $0x4e0] sm:$0xf]
                  %721 = vst [vmem:[%s511 + $0x1a0] sm:$0xf] %v720
                  %v722 = vld [vmem:[%s510 + $0x4ec] sm:$0xf]
                  %723 = vst [vmem:[%s511 + $0x1a4] sm:$0xf] %v722
                  %v724 = vld [vmem:[%s510 + $0x4f8] sm:$0xf]
                  %725 = vst [vmem:[%s511 + $0x1a8] sm:$0xf] %v724
                  %v726 = vld [vmem:[%s510 + $0x504] sm:$0xf]
                  %727 = vst [vmem:[%s511 + $0x1ac] sm:$0xf] %v726
                  %v728 = vld [vmem:[%s510 + $0x510] sm:$0xf]
                  %729 = vst [vmem:[%s511 + $0x1b0] sm:$0xf] %v728
                  %v730 = vld [vmem:[%s510 + $0x51c] sm:$0xf]
                  %731 = vst [vmem:[%s511 + $0x1b4] sm:$0xf] %v730
                  %v732 = vld [vmem:[%s510 + $0x528] sm:$0xf]
                  %733 = vst [vmem:[%s511 + $0x1b8] sm:$0xf] %v732
                  %v734 = vld [vmem:[%s510 + $0x534] sm:$0xf]
                  %735 = vst [vmem:[%s511 + $0x1bc] sm:$0xf] %v734
                  %v736 = vld [vmem:[%s510 + $0x540] sm:$0xf]
                  %737 = vst [vmem:[%s511 + $0x1c0] sm:$0xf] %v736
                  %v738 = vld [vmem:[%s510 + $0x54c] sm:$0xf]
                  %739 = vst [vmem:[%s511 + $0x1c4] sm:$0xf] %v738
                  %v740 = vld [vmem:[%s510 + $0x558] sm:$0xf]
                  %741 = vst [vmem:[%s511 + $0x1c8] sm:$0xf] %v740
                  %v742 = vld [vmem:[%s510 + $0x564] sm:$0xf]
                  %743 = vst [vmem:[%s511 + $0x1cc] sm:$0xf] %v742
                  %v744 = vld [vmem:[%s510 + $0x570] sm:$0xf]
                  %745 = vst [vmem:[%s511 + $0x1d0] sm:$0xf] %v744
                  %v746 = vld [vmem:[%s510 + $0x57c] sm:$0xf]
                  %747 = vst [vmem:[%s511 + $0x1d4] sm:$0xf] %v746
                  %v748 = vld [vmem:[%s510 + $0x588] sm:$0xf]
                  %749 = vst [vmem:[%s511 + $0x1d8] sm:$0xf] %v748
                  %v750 = vld [vmem:[%s510 + $0x594] sm:$0xf]
                  %751 = vst [vmem:[%s511 + $0x1dc] sm:$0xf] %v750
                  %v752 = vld [vmem:[%s510 + $0x5a0] sm:$0xf]
                  %753 = vst [vmem:[%s511 + $0x1e0] sm:$0xf] %v752
                  %v754 = vld [vmem:[%s510 + $0x5ac] sm:$0xf]
                  %755 = vst [vmem:[%s511 + $0x1e4] sm:$0xf] %v754
                  %v756 = vld [vmem:[%s510 + $0x5b8] sm:$0xf]
                  %757 = vst [vmem:[%s511 + $0x1e8] sm:$0xf] %v756
                  %v758 = vld [vmem:[%s510 + $0x5c4] sm:$0xf]
                  %759 = vst [vmem:[%s511 + $0x1ec] sm:$0xf] %v758
                  %v760 = vld [vmem:[%s510 + $0x5d0] sm:$0xf]
                  %761 = vst [vmem:[%s511 + $0x1f0] sm:$0xf] %v760
                  %v762 = vld [vmem:[%s510 + $0x5dc] sm:$0xf]
                  %763 = vst [vmem:[%s511 + $0x1f4] sm:$0xf] %v762
                  %v764 = vld [vmem:[%s510 + $0x5e8] sm:$0xf]
                  %765 = vst [vmem:[%s511 + $0x1f8] sm:$0xf] %v764
                  %v766 = vld [vmem:[%s510 + $0x5f4] sm:$0xf]
                  %767 = vst [vmem:[%s511 + $0x1fc] sm:$0xf] %v766
                  %v768 = vld [vmem:[%s510 + $0x600] sm:$0xf]
                  %769 = vst [vmem:[%s511 + $0x200] sm:$0xf] %v768
                  %v770 = vld [vmem:[%s510 + $0x60c] sm:$0xf]
                  %771 = vst [vmem:[%s511 + $0x204] sm:$0xf] %v770
                  %v772 = vld [vmem:[%s510 + $0x618] sm:$0xf]
                  %773 = vst [vmem:[%s511 + $0x208] sm:$0xf] %v772
                  %v774 = vld [vmem:[%s510 + $0x624] sm:$0xf]
                  %775 = vst [vmem:[%s511 + $0x20c] sm:$0xf] %v774
                  %v776 = vld [vmem:[%s510 + $0x630] sm:$0xf]
                  %777 = vst [vmem:[%s511 + $0x210] sm:$0xf] %v776
                  %v778 = vld [vmem:[%s510 + $0x63c] sm:$0xf]
                  %779 = vst [vmem:[%s511 + $0x214] sm:$0xf] %v778
                  %v780 = vld [vmem:[%s510 + $0x648] sm:$0xf]
                  %781 = vst [vmem:[%s511 + $0x218] sm:$0xf] %v780
                  %v782 = vld [vmem:[%s510 + $0x654] sm:$0xf]
                  %783 = vst [vmem:[%s511 + $0x21c] sm:$0xf] %v782
                  %v784 = vld [vmem:[%s510 + $0x660] sm:$0xf]
                  %785 = vst [vmem:[%s511 + $0x220] sm:$0xf] %v784
                  %v786 = vld [vmem:[%s510 + $0x66c] sm:$0xf]
                  %787 = vst [vmem:[%s511 + $0x224] sm:$0xf] %v786
                  %v788 = vld [vmem:[%s510 + $0x678] sm:$0xf]
                  %789 = vst [vmem:[%s511 + $0x228] sm:$0xf] %v788
                  %v790 = vld [vmem:[%s510 + $0x684] sm:$0xf]
                  %791 = vst [vmem:[%s511 + $0x22c] sm:$0xf] %v790
                  %v792 = vld [vmem:[%s510 + $0x690] sm:$0xf]
                  %793 = vst [vmem:[%s511 + $0x230] sm:$0xf] %v792
                  %v794 = vld [vmem:[%s510 + $0x69c] sm:$0xf]
                  %795 = vst [vmem:[%s511 + $0x234] sm:$0xf] %v794
                  %v796 = vld [vmem:[%s510 + $0x6a8] sm:$0xf]
                  %797 = vst [vmem:[%s511 + $0x238] sm:$0xf] %v796
                  %v798 = vld [vmem:[%s510 + $0x6b4] sm:$0xf]
                  %799 = vst [vmem:[%s511 + $0x23c] sm:$0xf] %v798
                $region59: #{card_classifier_forward.4} parent=46 // loop_footer
                  %s509 = sadd.s32 1, %s505
                $region60: #{card_classifier_forward.4} parent=46 // loop_footer_branch
                  %504 = sbr.rel target = $region56
                $region61: #{card_classifier_forward.4} parent=46 // loop_exit
                  _
              $region47: #{card_classifier_forward.4} parent=31 // pred_fallthru
                _
            $region32: #{card_classifier_forward.4} parent=27 // pred_fallthru
              _
            // Predicated region
            $region33: #{card_classifier_forward.4} parent=27 // pred_check
              _
            $region34: #{card_classifier_forward.4} parent=27 // pred_check_branch
              %195 = sbr.rel (0) target = $region36
            $region35: #{card_classifier_forward.4} parent=27 // pred_region
              loop: start=0, step=1, limit=1
              $region37: #{card_classifier_forward.4} parent=35 // loop_pre_header
                _
              $region38: #{card_classifier_forward.4} parent=35 // loop_header
                %s198 = sphi 0, %s202
                %p199 = scmp.ge.s32.totalorder %s198, 1
                %s203 = sphi %s189, %s189
                %s204 = sphi %s187, %s187
              $region39: #{card_classifier_forward.4} parent=35 // loop_header_branch
                %201 = sbr.rel (%p199) target = $region43
              $region40: #{card_classifier_forward.4} parent=35 // loop_body
                %v205 = vld [vmem:[%s203] sm:$0xf]
                %206 = vst [vmem:[%s204] sm:$0xf] %v205
                %v207 = vld [vmem:[%s203 + $0xc] sm:$0xf]
                %208 = vst [vmem:[%s204 + $0x4] sm:$0xf] %v207
                %v209 = vld [vmem:[%s203 + $0x18] sm:$0xf]
                %210 = vst [vmem:[%s204 + $0x8] sm:$0xf] %v209
                %v211 = vld [vmem:[%s203 + $0x24] sm:$0xf]
                %212 = vst [vmem:[%s204 + $0xc] sm:$0xf] %v211
                %v213 = vld [vmem:[%s203 + $0x30] sm:$0xf]
                %214 = vst [vmem:[%s204 + $0x10] sm:$0xf] %v213
                %v215 = vld [vmem:[%s203 + $0x3c] sm:$0xf]
                %216 = vst [vmem:[%s204 + $0x14] sm:$0xf] %v215
                %v217 = vld [vmem:[%s203 + $0x48] sm:$0xf]
                %218 = vst [vmem:[%s204 + $0x18] sm:$0xf] %v217
                %v219 = vld [vmem:[%s203 + $0x54] sm:$0xf]
                %220 = vst [vmem:[%s204 + $0x1c] sm:$0xf] %v219
                %v221 = vld [vmem:[%s203 + $0x60] sm:$0xf]
                %222 = vst [vmem:[%s204 + $0x20] sm:$0xf] %v221
                %v223 = vld [vmem:[%s203 + $0x6c] sm:$0xf]
                %224 = vst [vmem:[%s204 + $0x24] sm:$0xf] %v223
                %v225 = vld [vmem:[%s203 + $0x78] sm:$0xf]
                %226 = vst [vmem:[%s204 + $0x28] sm:$0xf] %v225
                %v227 = vld [vmem:[%s203 + $0x84] sm:$0xf]
                %228 = vst [vmem:[%s204 + $0x2c] sm:$0xf] %v227
                %v229 = vld [vmem:[%s203 + $0x90] sm:$0xf]
                %230 = vst [vmem:[%s204 + $0x30] sm:$0xf] %v229
                %v231 = vld [vmem:[%s203 + $0x9c] sm:$0xf]
                %232 = vst [vmem:[%s204 + $0x34] sm:$0xf] %v231
                %v233 = vld [vmem:[%s203 + $0xa8] sm:$0xf]
                %234 = vst [vmem:[%s204 + $0x38] sm:$0xf] %v233
                %v235 = vld [vmem:[%s203 + $0xb4] sm:$0xf]
                %236 = vst [vmem:[%s204 + $0x3c] sm:$0xf] %v235
                %v237 = vld [vmem:[%s203 + $0xc0] sm:$0xf]
                %238 = vst [vmem:[%s204 + $0x40] sm:$0xf] %v237
                %v239 = vld [vmem:[%s203 + $0xcc] sm:$0xf]
                %240 = vst [vmem:[%s204 + $0x44] sm:$0xf] %v239
                %v241 = vld [vmem:[%s203 + $0xd8] sm:$0xf]
                %242 = vst [vmem:[%s204 + $0x48] sm:$0xf] %v241
                %v243 = vld [vmem:[%s203 + $0xe4] sm:$0xf]
                %244 = vst [vmem:[%s204 + $0x4c] sm:$0xf] %v243
                %v245 = vld [vmem:[%s203 + $0xf0] sm:$0xf]
                %246 = vst [vmem:[%s204 + $0x50] sm:$0xf] %v245
                %v247 = vld [vmem:[%s203 + $0xfc] sm:$0xf]
                %248 = vst [vmem:[%s204 + $0x54] sm:$0xf] %v247
                %v249 = vld [vmem:[%s203 + $0x108] sm:$0xf]
                %250 = vst [vmem:[%s204 + $0x58] sm:$0xf] %v249
                %v251 = vld [vmem:[%s203 + $0x114] sm:$0xf]
                %252 = vst [vmem:[%s204 + $0x5c] sm:$0xf] %v251
                %v253 = vld [vmem:[%s203 + $0x120] sm:$0xf]
                %254 = vst [vmem:[%s204 + $0x60] sm:$0xf] %v253
                %v255 = vld [vmem:[%s203 + $0x12c] sm:$0xf]
                %256 = vst [vmem:[%s204 + $0x64] sm:$0xf] %v255
                %v257 = vld [vmem:[%s203 + $0x138] sm:$0xf]
                %258 = vst [vmem:[%s204 + $0x68] sm:$0xf] %v257
                %v259 = vld [vmem:[%s203 + $0x144] sm:$0xf]
                %260 = vst [vmem:[%s204 + $0x6c] sm:$0xf] %v259
                %v261 = vld [vmem:[%s203 + $0x150] sm:$0xf]
                %262 = vst [vmem:[%s204 + $0x70] sm:$0xf] %v261
                %v263 = vld [vmem:[%s203 + $0x15c] sm:$0xf]
                %264 = vst [vmem:[%s204 + $0x74] sm:$0xf] %v263
                %v265 = vld [vmem:[%s203 + $0x168] sm:$0xf]
                %266 = vst [vmem:[%s204 + $0x78] sm:$0xf] %v265
                %v267 = vld [vmem:[%s203 + $0x174] sm:$0xf]
                %268 = vst [vmem:[%s204 + $0x7c] sm:$0xf] %v267
                %v269 = vld [vmem:[%s203 + $0x180] sm:$0xf]
                %270 = vst [vmem:[%s204 + $0x80] sm:$0xf] %v269
                %v271 = vld [vmem:[%s203 + $0x18c] sm:$0xf]
                %272 = vst [vmem:[%s204 + $0x84] sm:$0xf] %v271
                %v273 = vld [vmem:[%s203 + $0x198] sm:$0xf]
                %274 = vst [vmem:[%s204 + $0x88] sm:$0xf] %v273
                %v275 = vld [vmem:[%s203 + $0x1a4] sm:$0xf]
                %276 = vst [vmem:[%s204 + $0x8c] sm:$0xf] %v275
                %v277 = vld [vmem:[%s203 + $0x1b0] sm:$0xf]
                %278 = vst [vmem:[%s204 + $0x90] sm:$0xf] %v277
                %v279 = vld [vmem:[%s203 + $0x1bc] sm:$0xf]
                %280 = vst [vmem:[%s204 + $0x94] sm:$0xf] %v279
                %v281 = vld [vmem:[%s203 + $0x1c8] sm:$0xf]
                %282 = vst [vmem:[%s204 + $0x98] sm:$0xf] %v281
                %v283 = vld [vmem:[%s203 + $0x1d4] sm:$0xf]
                %284 = vst [vmem:[%s204 + $0x9c] sm:$0xf] %v283
                %v285 = vld [vmem:[%s203 + $0x1e0] sm:$0xf]
                %286 = vst [vmem:[%s204 + $0xa0] sm:$0xf] %v285
                %v287 = vld [vmem:[%s203 + $0x1ec] sm:$0xf]
                %288 = vst [vmem:[%s204 + $0xa4] sm:$0xf] %v287
                %v289 = vld [vmem:[%s203 + $0x1f8] sm:$0xf]
                %290 = vst [vmem:[%s204 + $0xa8] sm:$0xf] %v289
                %v291 = vld [vmem:[%s203 + $0x204] sm:$0xf]
                %292 = vst [vmem:[%s204 + $0xac] sm:$0xf] %v291
                %v293 = vld [vmem:[%s203 + $0x210] sm:$0xf]
                %294 = vst [vmem:[%s204 + $0xb0] sm:$0xf] %v293
                %v295 = vld [vmem:[%s203 + $0x21c] sm:$0xf]
                %296 = vst [vmem:[%s204 + $0xb4] sm:$0xf] %v295
                %v297 = vld [vmem:[%s203 + $0x228] sm:$0xf]
                %298 = vst [vmem:[%s204 + $0xb8] sm:$0xf] %v297
                %v299 = vld [vmem:[%s203 + $0x234] sm:$0xf]
                %300 = vst [vmem:[%s204 + $0xbc] sm:$0xf] %v299
                %v301 = vld [vmem:[%s203 + $0x240] sm:$0xf]
                %302 = vst [vmem:[%s204 + $0xc0] sm:$0xf] %v301
                %v303 = vld [vmem:[%s203 + $0x24c] sm:$0xf]
                %304 = vst [vmem:[%s204 + $0xc4] sm:$0xf] %v303
                %v305 = vld [vmem:[%s203 + $0x258] sm:$0xf]
                %306 = vst [vmem:[%s204 + $0xc8] sm:$0xf] %v305
                %v307 = vld [vmem:[%s203 + $0x264] sm:$0xf]
                %308 = vst [vmem:[%s204 + $0xcc] sm:$0xf] %v307
                %v309 = vld [vmem:[%s203 + $0x270] sm:$0xf]
                %310 = vst [vmem:[%s204 + $0xd0] sm:$0xf] %v309
                %v311 = vld [vmem:[%s203 + $0x27c] sm:$0xf]
                %312 = vst [vmem:[%s204 + $0xd4] sm:$0xf] %v311
                %v313 = vld [vmem:[%s203 + $0x288] sm:$0xf]
                %314 = vst [vmem:[%s204 + $0xd8] sm:$0xf] %v313
                %v315 = vld [vmem:[%s203 + $0x294] sm:$0xf]
                %316 = vst [vmem:[%s204 + $0xdc] sm:$0xf] %v315
                %v317 = vld [vmem:[%s203 + $0x2a0] sm:$0xf]
                %318 = vst [vmem:[%s204 + $0xe0] sm:$0xf] %v317
                %v319 = vld [vmem:[%s203 + $0x2ac] sm:$0xf]
                %320 = vst [vmem:[%s204 + $0xe4] sm:$0xf] %v319
                %v321 = vld [vmem:[%s203 + $0x2b8] sm:$0xf]
                %322 = vst [vmem:[%s204 + $0xe8] sm:$0xf] %v321
                %v323 = vld [vmem:[%s203 + $0x2c4] sm:$0xf]
                %324 = vst [vmem:[%s204 + $0xec] sm:$0xf] %v323
                %v325 = vld [vmem:[%s203 + $0x2d0] sm:$0xf]
                %326 = vst [vmem:[%s204 + $0xf0] sm:$0xf] %v325
                %v327 = vld [vmem:[%s203 + $0x2dc] sm:$0xf]
                %328 = vst [vmem:[%s204 + $0xf4] sm:$0xf] %v327
                %v329 = vld [vmem:[%s203 + $0x2e8] sm:$0xf]
                %330 = vst [vmem:[%s204 + $0xf8] sm:$0xf] %v329
                %v331 = vld [vmem:[%s203 + $0x2f4] sm:$0xf]
                %332 = vst [vmem:[%s204 + $0xfc] sm:$0xf] %v331
                %v333 = vld [vmem:[%s203 + $0x300] sm:$0xf]
                %334 = vst [vmem:[%s204 + $0x100] sm:$0xf] %v333
                %v335 = vld [vmem:[%s203 + $0x30c] sm:$0xf]
                %336 = vst [vmem:[%s204 + $0x104] sm:$0xf] %v335
                %v337 = vld [vmem:[%s203 + $0x318] sm:$0xf]
                %338 = vst [vmem:[%s204 + $0x108] sm:$0xf] %v337
                %v339 = vld [vmem:[%s203 + $0x324] sm:$0xf]
                %340 = vst [vmem:[%s204 + $0x10c] sm:$0xf] %v339
                %v341 = vld [vmem:[%s203 + $0x330] sm:$0xf]
                %342 = vst [vmem:[%s204 + $0x110] sm:$0xf] %v341
                %v343 = vld [vmem:[%s203 + $0x33c] sm:$0xf]
                %344 = vst [vmem:[%s204 + $0x114] sm:$0xf] %v343
                %v345 = vld [vmem:[%s203 + $0x348] sm:$0xf]
                %346 = vst [vmem:[%s204 + $0x118] sm:$0xf] %v345
                %v347 = vld [vmem:[%s203 + $0x354] sm:$0xf]
                %348 = vst [vmem:[%s204 + $0x11c] sm:$0xf] %v347
                %v349 = vld [vmem:[%s203 + $0x360] sm:$0xf]
                %350 = vst [vmem:[%s204 + $0x120] sm:$0xf] %v349
                %v351 = vld [vmem:[%s203 + $0x36c] sm:$0xf]
                %352 = vst [vmem:[%s204 + $0x124] sm:$0xf] %v351
                %v353 = vld [vmem:[%s203 + $0x378] sm:$0xf]
                %354 = vst [vmem:[%s204 + $0x128] sm:$0xf] %v353
                %v355 = vld [vmem:[%s203 + $0x384] sm:$0xf]
                %356 = vst [vmem:[%s204 + $0x12c] sm:$0xf] %v355
                %v357 = vld [vmem:[%s203 + $0x390] sm:$0xf]
                %358 = vst [vmem:[%s204 + $0x130] sm:$0xf] %v357
                %v359 = vld [vmem:[%s203 + $0x39c] sm:$0xf]
                %360 = vst [vmem:[%s204 + $0x134] sm:$0xf] %v359
                %v361 = vld [vmem:[%s203 + $0x3a8] sm:$0xf]
                %362 = vst [vmem:[%s204 + $0x138] sm:$0xf] %v361
                %v363 = vld [vmem:[%s203 + $0x3b4] sm:$0xf]
                %364 = vst [vmem:[%s204 + $0x13c] sm:$0xf] %v363
                %v365 = vld [vmem:[%s203 + $0x3c0] sm:$0xf]
                %366 = vst [vmem:[%s204 + $0x140] sm:$0xf] %v365
                %v367 = vld [vmem:[%s203 + $0x3cc] sm:$0xf]
                %368 = vst [vmem:[%s204 + $0x144] sm:$0xf] %v367
                %v369 = vld [vmem:[%s203 + $0x3d8] sm:$0xf]
                %370 = vst [vmem:[%s204 + $0x148] sm:$0xf] %v369
                %v371 = vld [vmem:[%s203 + $0x3e4] sm:$0xf]
                %372 = vst [vmem:[%s204 + $0x14c] sm:$0xf] %v371
                %v373 = vld [vmem:[%s203 + $0x3f0] sm:$0xf]
                %374 = vst [vmem:[%s204 + $0x150] sm:$0xf] %v373
                %v375 = vld [vmem:[%s203 + $0x3fc] sm:$0xf]
                %376 = vst [vmem:[%s204 + $0x154] sm:$0xf] %v375
                %v377 = vld [vmem:[%s203 + $0x408] sm:$0xf]
                %378 = vst [vmem:[%s204 + $0x158] sm:$0xf] %v377
                %v379 = vld [vmem:[%s203 + $0x414] sm:$0xf]
                %380 = vst [vmem:[%s204 + $0x15c] sm:$0xf] %v379
                %v381 = vld [vmem:[%s203 + $0x420] sm:$0xf]
                %382 = vst [vmem:[%s204 + $0x160] sm:$0xf] %v381
                %v383 = vld [vmem:[%s203 + $0x42c] sm:$0xf]
                %384 = vst [vmem:[%s204 + $0x164] sm:$0xf] %v383
                %v385 = vld [vmem:[%s203 + $0x438] sm:$0xf]
                %386 = vst [vmem:[%s204 + $0x168] sm:$0xf] %v385
                %v387 = vld [vmem:[%s203 + $0x444] sm:$0xf]
                %388 = vst [vmem:[%s204 + $0x16c] sm:$0xf] %v387
                %v389 = vld [vmem:[%s203 + $0x450] sm:$0xf]
                %390 = vst [vmem:[%s204 + $0x170] sm:$0xf] %v389
                %v391 = vld [vmem:[%s203 + $0x45c] sm:$0xf]
                %392 = vst [vmem:[%s204 + $0x174] sm:$0xf] %v391
                %v393 = vld [vmem:[%s203 + $0x468] sm:$0xf]
                %394 = vst [vmem:[%s204 + $0x178] sm:$0xf] %v393
                %v395 = vld [vmem:[%s203 + $0x474] sm:$0xf]
                %396 = vst [vmem:[%s204 + $0x17c] sm:$0xf] %v395
                %v397 = vld [vmem:[%s203 + $0x480] sm:$0xf]
                %398 = vst [vmem:[%s204 + $0x180] sm:$0xf] %v397
                %v399 = vld [vmem:[%s203 + $0x48c] sm:$0xf]
                %400 = vst [vmem:[%s204 + $0x184] sm:$0xf] %v399
                %v401 = vld [vmem:[%s203 + $0x498] sm:$0xf]
                %402 = vst [vmem:[%s204 + $0x188] sm:$0xf] %v401
                %v403 = vld [vmem:[%s203 + $0x4a4] sm:$0xf]
                %404 = vst [vmem:[%s204 + $0x18c] sm:$0xf] %v403
                %v405 = vld [vmem:[%s203 + $0x4b0] sm:$0xf]
                %406 = vst [vmem:[%s204 + $0x190] sm:$0xf] %v405
                %v407 = vld [vmem:[%s203 + $0x4bc] sm:$0xf]
                %408 = vst [vmem:[%s204 + $0x194] sm:$0xf] %v407
                %v409 = vld [vmem:[%s203 + $0x4c8] sm:$0xf]
                %410 = vst [vmem:[%s204 + $0x198] sm:$0xf] %v409
                %v411 = vld [vmem:[%s203 + $0x4d4] sm:$0xf]
                %412 = vst [vmem:[%s204 + $0x19c] sm:$0xf] %v411
                %v413 = vld [vmem:[%s203 + $0x4e0] sm:$0xf]
                %414 = vst [vmem:[%s204 + $0x1a0] sm:$0xf] %v413
                %v415 = vld [vmem:[%s203 + $0x4ec] sm:$0xf]
                %416 = vst [vmem:[%s204 + $0x1a4] sm:$0xf] %v415
                %v417 = vld [vmem:[%s203 + $0x4f8] sm:$0xf]
                %418 = vst [vmem:[%s204 + $0x1a8] sm:$0xf] %v417
                %v419 = vld [vmem:[%s203 + $0x504] sm:$0xf]
                %420 = vst [vmem:[%s204 + $0x1ac] sm:$0xf] %v419
                %v421 = vld [vmem:[%s203 + $0x510] sm:$0xf]
                %422 = vst [vmem:[%s204 + $0x1b0] sm:$0xf] %v421
                %v423 = vld [vmem:[%s203 + $0x51c] sm:$0xf]
                %424 = vst [vmem:[%s204 + $0x1b4] sm:$0xf] %v423
                %v425 = vld [vmem:[%s203 + $0x528] sm:$0xf]
                %426 = vst [vmem:[%s204 + $0x1b8] sm:$0xf] %v425
                %v427 = vld [vmem:[%s203 + $0x534] sm:$0xf]
                %428 = vst [vmem:[%s204 + $0x1bc] sm:$0xf] %v427
                %v429 = vld [vmem:[%s203 + $0x540] sm:$0xf]
                %430 = vst [vmem:[%s204 + $0x1c0] sm:$0xf] %v429
                %v431 = vld [vmem:[%s203 + $0x54c] sm:$0xf]
                %432 = vst [vmem:[%s204 + $0x1c4] sm:$0xf] %v431
                %v433 = vld [vmem:[%s203 + $0x558] sm:$0xf]
                %434 = vst [vmem:[%s204 + $0x1c8] sm:$0xf] %v433
                %v435 = vld [vmem:[%s203 + $0x564] sm:$0xf]
                %436 = vst [vmem:[%s204 + $0x1cc] sm:$0xf] %v435
                %v437 = vld [vmem:[%s203 + $0x570] sm:$0xf]
                %438 = vst [vmem:[%s204 + $0x1d0] sm:$0xf] %v437
                %v439 = vld [vmem:[%s203 + $0x57c] sm:$0xf]
                %440 = vst [vmem:[%s204 + $0x1d4] sm:$0xf] %v439
                %v441 = vld [vmem:[%s203 + $0x588] sm:$0xf]
                %442 = vst [vmem:[%s204 + $0x1d8] sm:$0xf] %v441
                %v443 = vld [vmem:[%s203 + $0x594] sm:$0xf]
                %444 = vst [vmem:[%s204 + $0x1dc] sm:$0xf] %v443
                %v445 = vld [vmem:[%s203 + $0x5a0] sm:$0xf]
                %446 = vst [vmem:[%s204 + $0x1e0] sm:$0xf] %v445
                %v447 = vld [vmem:[%s203 + $0x5ac] sm:$0xf]
                %448 = vst [vmem:[%s204 + $0x1e4] sm:$0xf] %v447
                %v449 = vld [vmem:[%s203 + $0x5b8] sm:$0xf]
                %450 = vst [vmem:[%s204 + $0x1e8] sm:$0xf] %v449
                %v451 = vld [vmem:[%s203 + $0x5c4] sm:$0xf]
                %452 = vst [vmem:[%s204 + $0x1ec] sm:$0xf] %v451
                %v453 = vld [vmem:[%s203 + $0x5d0] sm:$0xf]
                %454 = vst [vmem:[%s204 + $0x1f0] sm:$0xf] %v453
                %v455 = vld [vmem:[%s203 + $0x5dc] sm:$0xf]
                %456 = vst [vmem:[%s204 + $0x1f4] sm:$0xf] %v455
                %v457 = vld [vmem:[%s203 + $0x5e8] sm:$0xf]
                %458 = vst [vmem:[%s204 + $0x1f8] sm:$0xf] %v457
                %v459 = vld [vmem:[%s203 + $0x5f4] sm:$0xf]
                %460 = vst [vmem:[%s204 + $0x1fc] sm:$0xf] %v459
                %v461 = vld [vmem:[%s203 + $0x600] sm:$0xf]
                %462 = vst [vmem:[%s204 + $0x200] sm:$0xf] %v461
                %v463 = vld [vmem:[%s203 + $0x60c] sm:$0xf]
                %464 = vst [vmem:[%s204 + $0x204] sm:$0xf] %v463
                %v465 = vld [vmem:[%s203 + $0x618] sm:$0xf]
                %466 = vst [vmem:[%s204 + $0x208] sm:$0xf] %v465
                %v467 = vld [vmem:[%s203 + $0x624] sm:$0xf]
                %468 = vst [vmem:[%s204 + $0x20c] sm:$0xf] %v467
                %v469 = vld [vmem:[%s203 + $0x630] sm:$0xf]
                %470 = vst [vmem:[%s204 + $0x210] sm:$0xf] %v469
                %v471 = vld [vmem:[%s203 + $0x63c] sm:$0xf]
                %472 = vst [vmem:[%s204 + $0x214] sm:$0xf] %v471
                %v473 = vld [vmem:[%s203 + $0x648] sm:$0xf]
                %474 = vst [vmem:[%s204 + $0x218] sm:$0xf] %v473
                %v475 = vld [vmem:[%s203 + $0x654] sm:$0xf]
                %476 = vst [vmem:[%s204 + $0x21c] sm:$0xf] %v475
                %v477 = vld [vmem:[%s203 + $0x660] sm:$0xf]
                %478 = vst [vmem:[%s204 + $0x220] sm:$0xf] %v477
                %v479 = vld [vmem:[%s203 + $0x66c] sm:$0xf]
                %480 = vst [vmem:[%s204 + $0x224] sm:$0xf] %v479
                %v481 = vld [vmem:[%s203 + $0x678] sm:$0xf]
                %482 = vst [vmem:[%s204 + $0x228] sm:$0xf] %v481
                %v483 = vld [vmem:[%s203 + $0x684] sm:$0xf]
                %484 = vst [vmem:[%s204 + $0x22c] sm:$0xf] %v483
                %v485 = vld [vmem:[%s203 + $0x690] sm:$0xf]
                %486 = vst [vmem:[%s204 + $0x230] sm:$0xf] %v485
                %v487 = vld [vmem:[%s203 + $0x69c] sm:$0xf]
                %488 = vst [vmem:[%s204 + $0x234] sm:$0xf] %v487
                %v489 = vld [vmem:[%s203 + $0x6a8] sm:$0xf]
                %490 = vst [vmem:[%s204 + $0x238] sm:$0xf] %v489
                %v491 = vld [vmem:[%s203 + $0x6b4] sm:$0xf]
                %492 = vst [vmem:[%s204 + $0x23c] sm:$0xf] %v491
              $region41: #{card_classifier_forward.4} parent=35 // loop_footer
                %s202 = sadd.s32 1, %s198
              $region42: #{card_classifier_forward.4} parent=35 // loop_footer_branch
                %197 = sbr.rel target = $region38
              $region43: #{card_classifier_forward.4} parent=35 // loop_exit
                _
            $region36: #{card_classifier_forward.4} parent=27 // pred_fallthru
              _
          $region28: #{card_classifier_forward.4} parent=23 // pred_fallthru
            _
          %800 = vnop
        $region24: #{card_classifier_forward.4} parent=15 // pred_fallthru
          _
        // Predicated region
        $region62: #{card_classifier_forward.4} parent=15 // pred_check
          %p801 = pneg %p94
        $region63: #{card_classifier_forward.4} parent=15 // pred_check_branch
          %803 = sbr.rel (%p801) target = $region65
        $region64: #{card_classifier_forward.4} parent=15 // pred_region
          %p804 = scmp.lt.s32.totalorder %s18, 2
          %s805 = scalar_select %p804, %s18, 2
          %s806 = scalar_lea.vmem %s2, %s805
        $region65: #{card_classifier_forward.4} parent=15 // pred_fallthru
          _
        // Predicated region
        $region66: #{card_classifier_forward.4} parent=15 // pred_check
          %p807 = pneg %p120
        $region67: #{card_classifier_forward.4} parent=15 // pred_check_branch
          %809 = sbr.rel (%p807) target = $region69
        $region68: #{card_classifier_forward.4} parent=15 // pred_region
          %p810 = scmp.lt.s32.totalorder %s18, 2
          %s811 = scalar_select %p810, %s18, 2
          %s812 = scalar_lea.vmem %s3, %s811
        $region69: #{card_classifier_forward.4} parent=15 // pred_fallthru
          _
      $region16: #{card_classifier_forward.4} parent=5 // pred_fallthru
        _
      %p813 = scmp.le.s32.totalorder 1, %s10
      %p814 = scmp.lt.s32.totalorder %s10, 7
      %p815 = pnand %p813, %p814
      %p816 = pneg %p815
      // Predicated region
      $region70: #{card_classifier_forward.4} parent=5 // pred_check
        _
      $region71: #{card_classifier_forward.4} parent=5 // pred_check_branch
        %818 = sbr.rel (%p815) target = $region73
      $region72: #{card_classifier_forward.4} parent=5 // pred_region
        %s819 = ssub.s32 %s10, 1
        %s820 = sand.u32 %s61, 1
        %s821 = sand.u32 %s61, 1
        %s822 = smul.addr %s821, 576
        %s823 = scalar_lea.vmem [#allocation2], %s822
        // Predicated region
        $region74: #{card_classifier_forward.4} parent=72 // pred_check
          %p824 = pneg %p74
        $region75: #{card_classifier_forward.4} parent=72 // pred_check_branch
          %826 = sbr.rel (%p824) target = $region77
        $region76: #{card_classifier_forward.4} parent=72 // pred_region
          _
        $region77: #{card_classifier_forward.4} parent=72 // pred_fallthru
          _
        %p827 = scmp.lt.s32.totalorder %s19, 1
        %s828 = scalar_select %p827, %s19, 1
        %s829 = smul.addr %s828, 72
        %s830 = smul.addr %s829, 4
        %s831 = scalar_lea.vmem %s0, %s830
        %p832 = pneg %p48
        %p833 = pneg %p45
        %s834 = sand.u32 %s61, 1
        %s835 = sand.u32 %s61, 1
        %s836 = smul.addr %s835, 576
        %s837 = scalar_lea.vmem [#allocation2], %s836
        %p838 = pneg %p74
        %p839 = pneg %p71
        %p840 = scmp.lt.s32.totalorder %s20, 2
        %s841 = scalar_select %p840, %s20, 2
        %s842 = scalar_lea.vmem %s2, %s841
        %p843 = pneg %p100
        %p844 = pneg %p97
        %p845 = scmp.lt.s32.totalorder %s20, 2
        %s846 = scalar_select %p845, %s20, 2
        %s847 = scalar_lea.vmem %s3, %s846
        %p848 = pneg %p126
        %p849 = pneg %p123
        %p850 = pneg %p154
        %p851 = pneg %p151
        %s852 = sand.u32 %s141, 1
        %s853 = sand.u32 %s141, 1
        %s854 = smul.addr %s853, 32
        %s855 = scalar_lea.vmem [#allocation3], %s854
        %p856 = scmp.lt.s32.totalorder %s19, 1
        %s857 = scalar_select %p856, %s19, 1
        %s858 = smul.addr %s857, 72
        %s859 = smul.addr %s858, 4
        %s860 = scalar_lea.vmem %s0, %s859
        %p861 = scmp.lt.s32.totalorder %s20, 2
        %s862 = scalar_select %p861, %s20, 2
        %s863 = scalar_lea.vmem %s2, %s862
        %p864 = scmp.lt.s32.totalorder %s20, 2
        %s865 = scalar_select %p864, %s20, 2
        %s866 = scalar_lea.vmem %s3, %s865
        %v868 = vld [vmem:[%s860] sm:$0xf]
        %v869 = vld [vmem:[%s860 + $0x20] sm:$0xf]
        %v870 = vld [vmem:[%s860 + $0x40] sm:$0xf]
        %v871 = vld [vmem:[%s860 + $0x60] sm:$0xf]
        %v872 = vld [vmem:[%s860 + $0x80] sm:$0xf]
        %v873 = vld [vmem:[%s860 + $0xa0] sm:$0xf]
        %v874 = vld [vmem:[%s860 + $0xc0] sm:$0xf]
        %v875 = vld [vmem:[%s860 + $0xe0] sm:$0xf]
        %v876 = vld [vmem:[%s860 + $0x4] sm:$0xf]
        %v877 = vld [vmem:[%s860 + $0x24] sm:$0xf]
        %v878 = vld [vmem:[%s860 + $0x44] sm:$0xf]
        %v879 = vld [vmem:[%s860 + $0x64] sm:$0xf]
        %v880 = vld [vmem:[%s860 + $0x84] sm:$0xf]
        %v881 = vld [vmem:[%s860 + $0xa4] sm:$0xf]
        %v882 = vld [vmem:[%s860 + $0xc4] sm:$0xf]
        %v883 = vld [vmem:[%s860 + $0xe4] sm:$0xf]
        %v884 = vld [vmem:[%s860 + $0x8] sm:$0x1]
        %v885 = vld [vmem:[%s860 + $0x28] sm:$0x1]
        %v886 = vld [vmem:[%s860 + $0x48] sm:$0x1]
        %v887 = vld [vmem:[%s860 + $0x68] sm:$0x1]
        %v888 = vld [vmem:[%s860 + $0x88] sm:$0x1]
        %v889 = vld [vmem:[%s860 + $0xa8] sm:$0x1]
        %v890 = vld [vmem:[%s860 + $0xc8] sm:$0x1]
        %v891 = vld [vmem:[%s860 + $0xe8] sm:$0x1]
        %s892 = scalar_lea.vmem %s860, 16
        %v893 = vld [vmem:[%s892] sm:$0xf]
        %v894 = vld [vmem:[%s892 + $0x20] sm:$0xf]
        %v895 = vld [vmem:[%s892 + $0x40] sm:$0xf]
        %v896 = vld [vmem:[%s892 + $0x60] sm:$0xf]
        %v897 = vld [vmem:[%s892 + $0x80] sm:$0xf]
        %v898 = vld [vmem:[%s892 + $0xa0] sm:$0xf]
        %v899 = vld [vmem:[%s892 + $0xc0] sm:$0xf]
        %v900 = vld [vmem:[%s892 + $0xe0] sm:$0xf]
        %v901 = vld [vmem:[%s892 + $0x4] sm:$0xf]
        %v902 = vld [vmem:[%s892 + $0x24] sm:$0xf]
        %v903 = vld [vmem:[%s892 + $0x44] sm:$0xf]
        %v904 = vld [vmem:[%s892 + $0x64] sm:$0xf]
        %v905 = vld [vmem:[%s892 + $0x84] sm:$0xf]
        %v906 = vld [vmem:[%s892 + $0xa4] sm:$0xf]
        %v907 = vld [vmem:[%s892 + $0xc4] sm:$0xf]
        %v908 = vld [vmem:[%s892 + $0xe4] sm:$0xf]
        %v909 = vld [vmem:[%s892 + $0x8] sm:$0x1]
        %v910 = vld [vmem:[%s892 + $0x28] sm:$0x1]
        %v911 = vld [vmem:[%s892 + $0x48] sm:$0x1]
        %v912 = vld [vmem:[%s892 + $0x68] sm:$0x1]
        %v913 = vld [vmem:[%s892 + $0x88] sm:$0x1]
        %v914 = vld [vmem:[%s892 + $0xa8] sm:$0x1]
        %v915 = vld [vmem:[%s892 + $0xc8] sm:$0x1]
        %v916 = vld [vmem:[%s892 + $0xe8] sm:$0x1]
        %s917 = scalar_lea.vmem %s860, 32
        %v918 = vld [vmem:[%s917] sm:$0xf]
        %v919 = vld [vmem:[%s917 + $0x20] sm:$0xf]
        %v920 = vld [vmem:[%s917 + $0x40] sm:$0xf]
        %v921 = vld [vmem:[%s917 + $0x60] sm:$0xf]
        %v922 = vld [vmem:[%s917 + $0x80] sm:$0xf]
        %v923 = vld [vmem:[%s917 + $0xa0] sm:$0xf]
        %v924 = vld [vmem:[%s917 + $0xc0] sm:$0xf]
        %v925 = vld [vmem:[%s917 + $0xe0] sm:$0xf]
        %v926 = vld [vmem:[%s917 + $0x4] sm:$0xf]
        %v927 = vld [vmem:[%s917 + $0x24] sm:$0xf]
        %v928 = vld [vmem:[%s917 + $0x44] sm:$0xf]
        %v929 = vld [vmem:[%s917 + $0x64] sm:$0xf]
        %v930 = vld [vmem:[%s917 + $0x84] sm:$0xf]
        %v931 = vld [vmem:[%s917 + $0xa4] sm:$0xf]
        %v932 = vld [vmem:[%s917 + $0xc4] sm:$0xf]
        %v933 = vld [vmem:[%s917 + $0xe4] sm:$0xf]
        %v934 = vld [vmem:[%s917 + $0x8] sm:$0x1]
        %v935 = vld [vmem:[%s917 + $0x28] sm:$0x1]
        %v936 = vld [vmem:[%s917 + $0x48] sm:$0x1]
        %v937 = vld [vmem:[%s917 + $0x68] sm:$0x1]
        %v938 = vld [vmem:[%s917 + $0x88] sm:$0x1]
        %v939 = vld [vmem:[%s917 + $0xa8] sm:$0x1]
        %v940 = vld [vmem:[%s917 + $0xc8] sm:$0x1]
        %v941 = vld [vmem:[%s917 + $0xe8] sm:$0x1]
        %v958 = vunpack.c.l.b16 %v868
        %v959 = vunpack.c.l.b16 %v884
        %v960 = vunpack.c.l.b16 %v869
        %v961 = vunpack.c.l.b16 %v885
        %v962 = vunpack.c.l.b16 %v870
        %v963 = vunpack.c.l.b16 %v886
        %v964 = vunpack.c.l.b16 %v871
        %v965 = vunpack.c.l.b16 %v887
        %v966 = vunpack.c.l.b16 %v872
        %v967 = vunpack.c.l.b16 %v888
        %v968 = vunpack.c.l.b16 %v873
        %v969 = vunpack.c.l.b16 %v889
        %v970 = vunpack.c.l.b16 %v874
        %v971 = vunpack.c.l.b16 %v890
        %v972 = vunpack.c.l.b16 %v875
        %v973 = vunpack.c.l.b16 %v891
        %v974 = vpack.c.b16 %v959, %v958
        %v975 = vpack.c.b16 %v961, %v960
        %v976 = vpack.c.b16 %v963, %v962
        %v977 = vpack.c.b16 %v965, %v964
        %v978 = vpack.c.b16 %v967, %v966
        %v979 = vpack.c.b16 %v969, %v968
        %v980 = vpack.c.b16 %v971, %v970
        %v981 = vpack.c.b16 %v973, %v972
        %v983 = vshrl.u32 %v974, 16
        %v985 = vshll.u32 %v974, 16
        %v987 = vrot.slane %v985, 1
        %v988 = vor.u32 %v983, %v987
        %v990 = vshrl.u32 %v975, 16
        %v992 = vshll.u32 %v975, 16
        %v994 = vrot.slane %v992, 1
        %v995 = vor.u32 %v990, %v994
        %v997 = vshrl.u32 %v976, 16
        %v999 = vshll.u32 %v976, 16
        %v1001 = vrot.slane %v999, 1
        %v1002 = vor.u32 %v997, %v1001
        %v1004 = vshrl.u32 %v977, 16
        %v1006 = vshll.u32 %v977, 16
        %v1008 = vrot.slane %v1006, 1
        %v1009 = vor.u32 %v1004, %v1008
        %v1011 = vshrl.u32 %v978, 16
        %v1013 = vshll.u32 %v978, 16
        %v1015 = vrot.slane %v1013, 1
        %v1016 = vor.u32 %v1011, %v1015
        %v1018 = vshrl.u32 %v979, 16
        %v1020 = vshll.u32 %v979, 16
        %v1022 = vrot.slane %v1020, 1
        %v1023 = vor.u32 %v1018, %v1022
        %v1025 = vshrl.u32 %v980, 16
        %v1027 = vshll.u32 %v980, 16
        %v1029 = vrot.slane %v1027, 1
        %v1030 = vor.u32 %v1025, %v1029
        %v1032 = vshrl.u32 %v981, 16
        %v1034 = vshll.u32 %v981, 16
        %v1036 = vrot.slane %v1034, 1
        %v1037 = vor.u32 %v1032, %v1036
        %v1054 = vunpack.c.l.b16 %v893
        %v1055 = vunpack.c.l.b16 %v909
        %v1056 = vunpack.c.l.b16 %v894
        %v1057 = vunpack.c.l.b16 %v910
        %v1058 = vunpack.c.l.b16 %v895
        %v1059 = vunpack.c.l.b16 %v911
        %v1060 = vunpack.c.l.b16 %v896
        %v1061 = vunpack.c.l.b16 %v912
        %v1062 = vunpack.c.l.b16 %v897
        %v1063 = vunpack.c.l.b16 %v913
        %v1064 = vunpack.c.l.b16 %v898
        %v1065 = vunpack.c.l.b16 %v914
        %v1066 = vunpack.c.l.b16 %v899
        %v1067 = vunpack.c.l.b16 %v915
        %v1068 = vunpack.c.l.b16 %v900
        %v1069 = vunpack.c.l.b16 %v916
        %v1070 = vpack.c.b16 %v1055, %v1054
        %v1071 = vpack.c.b16 %v1057, %v1056
        %v1072 = vpack.c.b16 %v1059, %v1058
        %v1073 = vpack.c.b16 %v1061, %v1060
        %v1074 = vpack.c.b16 %v1063, %v1062
        %v1075 = vpack.c.b16 %v1065, %v1064
        %v1076 = vpack.c.b16 %v1067, %v1066
        %v1077 = vpack.c.b16 %v1069, %v1068
        %v1079 = vshrl.u32 %v1070, 16
        %v1081 = vshll.u32 %v1070, 16
        %v1083 = vrot.slane %v1081, 1
        %v1084 = vor.u32 %v1079, %v1083
        %v1086 = vshrl.u32 %v1071, 16
        %v1088 = vshll.u32 %v1071, 16
        %v1090 = vrot.slane %v1088, 1
        %v1091 = vor.u32 %v1086, %v1090
        %v1093 = vshrl.u32 %v1072, 16
        %v1095 = vshll.u32 %v1072, 16
        %v1097 = vrot.slane %v1095, 1
        %v1098 = vor.u32 %v1093, %v1097
        %v1100 = vshrl.u32 %v1073, 16
        %v1102 = vshll.u32 %v1073, 16
        %v1104 = vrot.slane %v1102, 1
        %v1105 = vor.u32 %v1100, %v1104
        %v1107 = vshrl.u32 %v1074, 16
        %v1109 = vshll.u32 %v1074, 16
        %v1111 = vrot.slane %v1109, 1
        %v1112 = vor.u32 %v1107, %v1111
        %v1114 = vshrl.u32 %v1075, 16
        %v1116 = vshll.u32 %v1075, 16
        %v1118 = vrot.slane %v1116, 1
        %v1119 = vor.u32 %v1114, %v1118
        %v1121 = vshrl.u32 %v1076, 16
        %v1123 = vshll.u32 %v1076, 16
        %v1125 = vrot.slane %v1123, 1
        %v1126 = vor.u32 %v1121, %v1125
        %v1128 = vshrl.u32 %v1077, 16
        %v1130 = vshll.u32 %v1077, 16
        %v1132 = vrot.slane %v1130, 1
        %v1133 = vor.u32 %v1128, %v1132
        %v1150 = vunpack.c.l.b16 %v918
        %v1151 = vunpack.c.l.b16 %v934
        %v1152 = vunpack.c.l.b16 %v919
        %v1153 = vunpack.c.l.b16 %v935
        %v1154 = vunpack.c.l.b16 %v920
        %v1155 = vunpack.c.l.b16 %v936
        %v1156 = vunpack.c.l.b16 %v921
        %v1157 = vunpack.c.l.b16 %v937
        %v1158 = vunpack.c.l.b16 %v922
        %v1159 = vunpack.c.l.b16 %v938
        %v1160 = vunpack.c.l.b16 %v923
        %v1161 = vunpack.c.l.b16 %v939
        %v1162 = vunpack.c.l.b16 %v924
        %v1163 = vunpack.c.l.b16 %v940
        %v1164 = vunpack.c.l.b16 %v925
        %v1165 = vunpack.c.l.b16 %v941
        %v1166 = vpack.c.b16 %v1151, %v1150
        %v1167 = vpack.c.b16 %v1153, %v1152
        %v1168 = vpack.c.b16 %v1155, %v1154
        %v1169 = vpack.c.b16 %v1157, %v1156
        %v1170 = vpack.c.b16 %v1159, %v1158
        %v1171 = vpack.c.b16 %v1161, %v1160
        %v1172 = vpack.c.b16 %v1163, %v1162
        %v1173 = vpack.c.b16 %v1165, %v1164
        %v1175 = vshrl.u32 %v1166, 16
        %v1177 = vshll.u32 %v1166, 16
        %v1179 = vrot.slane %v1177, 1
        %v1180 = vor.u32 %v1175, %v1179
        %v1182 = vshrl.u32 %v1167, 16
        %v1184 = vshll.u32 %v1167, 16
        %v1186 = vrot.slane %v1184, 1
        %v1187 = vor.u32 %v1182, %v1186
        %v1189 = vshrl.u32 %v1168, 16
        %v1191 = vshll.u32 %v1168, 16
        %v1193 = vrot.slane %v1191, 1
        %v1194 = vor.u32 %v1189, %v1193
        %v1196 = vshrl.u32 %v1169, 16
        %v1198 = vshll.u32 %v1169, 16
        %v1200 = vrot.slane %v1198, 1
        %v1201 = vor.u32 %v1196, %v1200
        %v1203 = vshrl.u32 %v1170, 16
        %v1205 = vshll.u32 %v1170, 16
        %v1207 = vrot.slane %v1205, 1
        %v1208 = vor.u32 %v1203, %v1207
        %v1210 = vshrl.u32 %v1171, 16
        %v1212 = vshll.u32 %v1171, 16
        %v1214 = vrot.slane %v1212, 1
        %v1215 = vor.u32 %v1210, %v1214
        %v1217 = vshrl.u32 %v1172, 16
        %v1219 = vshll.u32 %v1172, 16
        %v1221 = vrot.slane %v1219, 1
        %v1222 = vor.u32 %v1217, %v1221
        %v1224 = vshrl.u32 %v1173, 16
        %v1226 = vshll.u32 %v1173, 16
        %v1228 = vrot.slane %v1226, 1
        %v1229 = vor.u32 %v1224, %v1228
        %v1254 = vunpack.c.l.b16 %v876
        %v1255 = vunpack.c.l.b16 %v988
        %v1256 = vunpack.c.l.b16 %v901
        %v1257 = vunpack.c.l.b16 %v1084
        %v1258 = vunpack.c.l.b16 %v926
        %v1259 = vunpack.c.l.b16 %v1180
        %v1260 = vunpack.c.l.b16 %v877
        %v1261 = vunpack.c.l.b16 %v995
        %v1262 = vunpack.c.l.b16 %v902
        %v1263 = vunpack.c.l.b16 %v1091
        %v1264 = vunpack.c.l.b16 %v927
        %v1265 = vunpack.c.l.b16 %v1187
        %v1266 = vunpack.c.l.b16 %v878
        %v1267 = vunpack.c.l.b16 %v1002
        %v1268 = vunpack.c.l.b16 %v903
        %v1269 = vunpack.c.l.b16 %v1098
        %v1270 = vunpack.c.l.b16 %v928
        %v1271 = vunpack.c.l.b16 %v1194
        %v1272 = vunpack.c.l.b16 %v879
        %v1273 = vunpack.c.l.b16 %v1009
        %v1274 = vunpack.c.l.b16 %v904
        %v1275 = vunpack.c.l.b16 %v1105
        %v1276 = vunpack.c.l.b16 %v929
        %v1277 = vunpack.c.l.b16 %v1201
        %v1278 = vunpack.c.l.b16 %v880
        %v1279 = vunpack.c.l.b16 %v1016
        %v1280 = vunpack.c.l.b16 %v905
        %v1281 = vunpack.c.l.b16 %v1112
        %v1282 = vunpack.c.l.b16 %v930
        %v1283 = vunpack.c.l.b16 %v1208
        %v1284 = vunpack.c.l.b16 %v881
        %v1285 = vunpack.c.l.b16 %v1023
        %v1286 = vunpack.c.l.b16 %v906
        %v1287 = vunpack.c.l.b16 %v1119
        %v1288 = vunpack.c.l.b16 %v931
        %v1289 = vunpack.c.l.b16 %v1215
        %v1290 = vunpack.c.l.b16 %v882
        %v1291 = vunpack.c.l.b16 %v1030
        %v1292 = vunpack.c.l.b16 %v907
        %v1293 = vunpack.c.l.b16 %v1126
        %v1294 = vunpack.c.l.b16 %v932
        %v1295 = vunpack.c.l.b16 %v1222
        %v1296 = vunpack.c.l.b16 %v883
        %v1297 = vunpack.c.l.b16 %v1037
        %v1298 = vunpack.c.l.b16 %v908
        %v1299 = vunpack.c.l.b16 %v1133
        %v1300 = vunpack.c.l.b16 %v933
        %v1301 = vunpack.c.l.b16 %v1229
        %v1302 = vld [vmem:[%s823] sm:$0xf]
        %v1303 = vld [vmem:[%s823 + $0x4] sm:$0xf]
        %v1304 = vld [vmem:[%s823 + $0x8] sm:$0xf]
        %v1305 = vld [vmem:[%s823 + $0xc] sm:$0xf]
        %v1306 = vld [vmem:[%s823 + $0x10] sm:$0xf]
        %v1307 = vld [vmem:[%s823 + $0x14] sm:$0xf]
        %v1308 = vld [vmem:[%s823 + $0x18] sm:$0xf]
        %v1309 = vld [vmem:[%s823 + $0x1c] sm:$0xf]
        %v1310 = vld [vmem:[%s823 + $0x20] sm:$0xf]
        %v1311 = vld [vmem:[%s823 + $0x24] sm:$0xf]
        %v1312 = vld [vmem:[%s823 + $0x28] sm:$0xf]
        %v1313 = vld [vmem:[%s823 + $0x2c] sm:$0xf]
        %v1314 = vld [vmem:[%s823 + $0x30] sm:$0xf]
        %v1315 = vld [vmem:[%s823 + $0x34] sm:$0xf]
        %v1316 = vld [vmem:[%s823 + $0x38] sm:$0xf]
        %v1317 = vld [vmem:[%s823 + $0x3c] sm:$0xf]
        %v1318 = vld [vmem:[%s823 + $0x40] sm:$0xf]
        %v1319 = vld [vmem:[%s823 + $0x44] sm:$0xf]
        %v1320 = vld [vmem:[%s823 + $0x48] sm:$0xf]
        %v1321 = vld [vmem:[%s823 + $0x4c] sm:$0xf]
        %v1322 = vld [vmem:[%s823 + $0x50] sm:$0xf]
        %v1323 = vld [vmem:[%s823 + $0x54] sm:$0xf]
        %v1324 = vld [vmem:[%s823 + $0x58] sm:$0xf]
        %v1325 = vld [vmem:[%s823 + $0x5c] sm:$0xf]
        %v1326 = vld [vmem:[%s823 + $0x60] sm:$0xf]
        %v1327 = vld [vmem:[%s823 + $0x64] sm:$0xf]
        %v1328 = vld [vmem:[%s823 + $0x68] sm:$0xf]
        %v1329 = vld [vmem:[%s823 + $0x6c] sm:$0xf]
        %v1330 = vld [vmem:[%s823 + $0x70] sm:$0xf]
        %v1331 = vld [vmem:[%s823 + $0x74] sm:$0xf]
        %v1332 = vld [vmem:[%s823 + $0x78] sm:$0xf]
        %v1333 = vld [vmem:[%s823 + $0x7c] sm:$0xf]
        %v1334 = vld [vmem:[%s823 + $0x80] sm:$0xf]
        %v1335 = vld [vmem:[%s823 + $0x84] sm:$0xf]
        %v1336 = vld [vmem:[%s823 + $0x88] sm:$0xf]
        %v1337 = vld [vmem:[%s823 + $0x8c] sm:$0xf]
        %v1338 = vld [vmem:[%s823 + $0x90] sm:$0xf]
        %v1339 = vld [vmem:[%s823 + $0x94] sm:$0xf]
        %v1340 = vld [vmem:[%s823 + $0x98] sm:$0xf]
        %v1341 = vld [vmem:[%s823 + $0x9c] sm:$0xf]
        %v1342 = vld [vmem:[%s823 + $0xa0] sm:$0xf]
        %v1343 = vld [vmem:[%s823 + $0xa4] sm:$0xf]
        %v1344 = vld [vmem:[%s823 + $0xa8] sm:$0xf]
        %v1345 = vld [vmem:[%s823 + $0xac] sm:$0xf]
        %v1346 = vld [vmem:[%s823 + $0xb0] sm:$0xf]
        %v1347 = vld [vmem:[%s823 + $0xb4] sm:$0xf]
        %v1348 = vld [vmem:[%s823 + $0xb8] sm:$0xf]
        %v1349 = vld [vmem:[%s823 + $0xbc] sm:$0xf]
        %v1350 = vld [vmem:[%s823 + $0xc0] sm:$0xf]
        %v1351 = vld [vmem:[%s823 + $0xc4] sm:$0xf]
        %v1352 = vld [vmem:[%s823 + $0xc8] sm:$0xf]
        %v1353 = vld [vmem:[%s823 + $0xcc] sm:$0xf]
        %v1354 = vld [vmem:[%s823 + $0xd0] sm:$0xf]
        %v1355 = vld [vmem:[%s823 + $0xd4] sm:$0xf]
        %v1356 = vld [vmem:[%s823 + $0xd8] sm:$0xf]
        %v1357 = vld [vmem:[%s823 + $0xdc] sm:$0xf]
        %v1358 = vld [vmem:[%s823 + $0xe0] sm:$0xf]
        %v1359 = vld [vmem:[%s823 + $0xe4] sm:$0xf]
        %v1360 = vld [vmem:[%s823 + $0xe8] sm:$0xf]
        %v1361 = vld [vmem:[%s823 + $0xec] sm:$0xf]
        %v1362 = vld [vmem:[%s823 + $0xf0] sm:$0xf]
        %v1363 = vld [vmem:[%s823 + $0xf4] sm:$0xf]
        %v1364 = vld [vmem:[%s823 + $0xf8] sm:$0xf]
        %v1365 = vld [vmem:[%s823 + $0xfc] sm:$0xf]
        %v1366 = vld [vmem:[%s823 + $0x100] sm:$0xf]
        %v1367 = vld [vmem:[%s823 + $0x104] sm:$0xf]
        %v1368 = vld [vmem:[%s823 + $0x108] sm:$0xf]
        %v1369 = vld [vmem:[%s823 + $0x10c] sm:$0xf]
        %v1370 = vld [vmem:[%s823 + $0x110] sm:$0xf]
        %v1371 = vld [vmem:[%s823 + $0x114] sm:$0xf]
        %v1372 = vld [vmem:[%s823 + $0x118] sm:$0xf]
        %v1373 = vld [vmem:[%s823 + $0x11c] sm:$0xf]
        %v1374 = vld [vmem:[%s823 + $0x120] sm:$0xf]
        %v1375 = vld [vmem:[%s823 + $0x124] sm:$0xf]
        %v1376 = vld [vmem:[%s823 + $0x128] sm:$0xf]
        %v1377 = vld [vmem:[%s823 + $0x12c] sm:$0xf]
        %v1378 = vld [vmem:[%s823 + $0x130] sm:$0xf]
        %v1379 = vld [vmem:[%s823 + $0x134] sm:$0xf]
        %v1380 = vld [vmem:[%s823 + $0x138] sm:$0xf]
        %v1381 = vld [vmem:[%s823 + $0x13c] sm:$0xf]
        %v1382 = vld [vmem:[%s823 + $0x140] sm:$0xf]
        %v1383 = vld [vmem:[%s823 + $0x144] sm:$0xf]
        %v1384 = vld [vmem:[%s823 + $0x148] sm:$0xf]
        %v1385 = vld [vmem:[%s823 + $0x14c] sm:$0xf]
        %v1386 = vld [vmem:[%s823 + $0x150] sm:$0xf]
        %v1387 = vld [vmem:[%s823 + $0x154] sm:$0xf]
        %v1388 = vld [vmem:[%s823 + $0x158] sm:$0xf]
        %v1389 = vld [vmem:[%s823 + $0x15c] sm:$0xf]
        %v1390 = vld [vmem:[%s823 + $0x160] sm:$0xf]
        %v1391 = vld [vmem:[%s823 + $0x164] sm:$0xf]
        %v1392 = vld [vmem:[%s823 + $0x168] sm:$0xf]
        %v1393 = vld [vmem:[%s823 + $0x16c] sm:$0xf]
        %v1394 = vld [vmem:[%s823 + $0x170] sm:$0xf]
        %v1395 = vld [vmem:[%s823 + $0x174] sm:$0xf]
        %v1396 = vld [vmem:[%s823 + $0x178] sm:$0xf]
        %v1397 = vld [vmem:[%s823 + $0x17c] sm:$0xf]
        %v1398 = vld [vmem:[%s823 + $0x180] sm:$0xf]
        %v1399 = vld [vmem:[%s823 + $0x184] sm:$0xf]
        %v1400 = vld [vmem:[%s823 + $0x188] sm:$0xf]
        %v1401 = vld [vmem:[%s823 + $0x18c] sm:$0xf]
        %v1402 = vld [vmem:[%s823 + $0x190] sm:$0xf]
        %v1403 = vld [vmem:[%s823 + $0x194] sm:$0xf]
        %v1404 = vld [vmem:[%s823 + $0x198] sm:$0xf]
        %v1405 = vld [vmem:[%s823 + $0x19c] sm:$0xf]
        %v1406 = vld [vmem:[%s823 + $0x1a0] sm:$0xf]
        %v1407 = vld [vmem:[%s823 + $0x1a4] sm:$0xf]
        %v1408 = vld [vmem:[%s823 + $0x1a8] sm:$0xf]
        %v1409 = vld [vmem:[%s823 + $0x1ac] sm:$0xf]
        %v1410 = vld [vmem:[%s823 + $0x1b0] sm:$0xf]
        %v1411 = vld [vmem:[%s823 + $0x1b4] sm:$0xf]
        %v1412 = vld [vmem:[%s823 + $0x1b8] sm:$0xf]
        %v1413 = vld [vmem:[%s823 + $0x1bc] sm:$0xf]
        %v1414 = vld [vmem:[%s823 + $0x1c0] sm:$0xf]
        %v1415 = vld [vmem:[%s823 + $0x1c4] sm:$0xf]
        %v1416 = vld [vmem:[%s823 + $0x1c8] sm:$0xf]
        %v1417 = vld [vmem:[%s823 + $0x1cc] sm:$0xf]
        %v1418 = vld [vmem:[%s823 + $0x1d0] sm:$0xf]
        %v1419 = vld [vmem:[%s823 + $0x1d4] sm:$0xf]
        %v1420 = vld [vmem:[%s823 + $0x1d8] sm:$0xf]
        %v1421 = vld [vmem:[%s823 + $0x1dc] sm:$0xf]
        %v1422 = vld [vmem:[%s823 + $0x1e0] sm:$0xf]
        %v1423 = vld [vmem:[%s823 + $0x1e4] sm:$0xf]
        %v1424 = vld [vmem:[%s823 + $0x1e8] sm:$0xf]
        %v1425 = vld [vmem:[%s823 + $0x1ec] sm:$0xf]
        %v1426 = vld [vmem:[%s823 + $0x1f0] sm:$0xf]
        %v1427 = vld [vmem:[%s823 + $0x1f4] sm:$0xf]
        %v1428 = vld [vmem:[%s823 + $0x1f8] sm:$0xf]
        %v1429 = vld [vmem:[%s823 + $0x1fc] sm:$0xf]
        %v1430 = vld [vmem:[%s823 + $0x200] sm:$0xf]
        %v1431 = vld [vmem:[%s823 + $0x204] sm:$0xf]
        %v1432 = vld [vmem:[%s823 + $0x208] sm:$0xf]
        %v1433 = vld [vmem:[%s823 + $0x20c] sm:$0xf]
        %v1434 = vld [vmem:[%s823 + $0x210] sm:$0xf]
        %v1435 = vld [vmem:[%s823 + $0x214] sm:$0xf]
        %v1436 = vld [vmem:[%s823 + $0x218] sm:$0xf]
        %v1437 = vld [vmem:[%s823 + $0x21c] sm:$0xf]
        %v1438 = vld [vmem:[%s823 + $0x220] sm:$0xf]
        %v1439 = vld [vmem:[%s823 + $0x224] sm:$0xf]
        %v1440 = vld [vmem:[%s823 + $0x228] sm:$0xf]
        %v1441 = vld [vmem:[%s823 + $0x22c] sm:$0xf]
        %v1442 = vld [vmem:[%s823 + $0x230] sm:$0xf]
        %v1443 = vld [vmem:[%s823 + $0x234] sm:$0xf]
        %v1444 = vld [vmem:[%s823 + $0x238] sm:$0xf]
        %v1445 = vld [vmem:[%s823 + $0x23c] sm:$0xf]
        %v1446 = vpack.c.b16 %v960, %v958
        %v1447 = vpack.c.b16 %v1260, %v1254
        %v1448 = vpack.c.b16 %v1261, %v1255
        %v1449 = vpack.c.b16 %v1056, %v1054
        %v1450 = vpack.c.b16 %v1262, %v1256
        %v1451 = vpack.c.b16 %v1263, %v1257
        %v1452 = vpack.c.b16 %v1152, %v1150
        %v1453 = vpack.c.b16 %v1264, %v1258
        %v1454 = vpack.c.b16 %v1265, %v1259
        %v1455 = vpack.c.b16 %v964, %v962
        %v1456 = vpack.c.b16 %v1272, %v1266
        %v1457 = vpack.c.b16 %v1273, %v1267
        %v1458 = vpack.c.b16 %v1060, %v1058
        %v1459 = vpack.c.b16 %v1274, %v1268
        %v1460 = vpack.c.b16 %v1275, %v1269
        %v1461 = vpack.c.b16 %v1156, %v1154
        %v1462 = vpack.c.b16 %v1276, %v1270
        %v1463 = vpack.c.b16 %v1277, %v1271
        %v1464 = vpack.c.b16 %v968, %v966
        %v1465 = vpack.c.b16 %v1284, %v1278
        %v1466 = vpack.c.b16 %v1285, %v1279
        %v1467 = vpack.c.b16 %v1064, %v1062
        %v1468 = vpack.c.b16 %v1286, %v1280
        %v1469 = vpack.c.b16 %v1287, %v1281
        %v1470 = vpack.c.b16 %v1160, %v1158
        %v1471 = vpack.c.b16 %v1288, %v1282
        %v1472 = vpack.c.b16 %v1289, %v1283
        %v1473 = vpack.c.b16 %v972, %v970
        %v1474 = vpack.c.b16 %v1296, %v1290
        %v1475 = vpack.c.b16 %v1297, %v1291
        %v1476 = vpack.c.b16 %v1068, %v1066
        %v1477 = vpack.c.b16 %v1298, %v1292
        %v1478 = vpack.c.b16 %v1299, %v1293
        %v1479 = vpack.c.b16 %v1164, %v1162
        %v1480 = vpack.c.b16 %v1300, %v1294
        %v1481 = vpack.c.b16 %v1301, %v1295
        %v1662 = vunpack.c.l.b16 %v1302
        %v1663 = vunpack.c.l.b16 %v1303
        %v1664 = vunpack.c.l.b16 %v1304
        %v1665 = vunpack.c.l.b16 %v1305
        %v1666 = vunpack.c.l.b16 %v1306
        %v1667 = vunpack.c.l.b16 %v1307
        %v1668 = vunpack.c.l.b16 %v1308
        %v1669 = vunpack.c.l.b16 %v1309
        %v1670 = vunpack.c.l.b16 %v1310
        %v1671 = vunpack.c.l.b16 %v1311
        %v1672 = vunpack.c.l.b16 %v1312
        %v1673 = vunpack.c.l.b16 %v1313
        %v1674 = vunpack.c.l.b16 %v1314
        %v1675 = vunpack.c.l.b16 %v1315
        %v1676 = vunpack.c.l.b16 %v1316
        %v1677 = vunpack.c.l.b16 %v1317
        %v1678 = vunpack.c.l.b16 %v1318
        %v1679 = vunpack.c.l.b16 %v1319
        %v1680 = vunpack.c.l.b16 %v1320
        %v1681 = vunpack.c.l.b16 %v1321
        %v1682 = vunpack.c.l.b16 %v1322
        %v1683 = vunpack.c.l.b16 %v1323
        %v1684 = vunpack.c.l.b16 %v1324
        %v1685 = vunpack.c.l.b16 %v1325
        %v1686 = vunpack.c.l.b16 %v1326
        %v1687 = vunpack.c.l.b16 %v1327
        %v1688 = vunpack.c.l.b16 %v1328
        %v1689 = vunpack.c.l.b16 %v1329
        %v1690 = vunpack.c.l.b16 %v1330
        %v1691 = vunpack.c.l.b16 %v1331
        %v1692 = vunpack.c.l.b16 %v1332
        %v1693 = vunpack.c.l.b16 %v1333
        %v1694 = vunpack.c.l.b16 %v1334
        %v1695 = vunpack.c.l.b16 %v1335
        %v1696 = vunpack.c.l.b16 %v1336
        %v1697 = vunpack.c.l.b16 %v1337
        %v1698 = vunpack.c.l.b16 %v1338
        %v1699 = vunpack.c.l.b16 %v1339
        %v1700 = vunpack.c.l.b16 %v1340
        %v1701 = vunpack.c.l.b16 %v1341
        %v1702 = vunpack.c.l.b16 %v1342
        %v1703 = vunpack.c.l.b16 %v1343
        %v1704 = vunpack.c.l.b16 %v1344
        %v1705 = vunpack.c.l.b16 %v1345
        %v1706 = vunpack.c.l.b16 %v1346
        %v1707 = vunpack.c.l.b16 %v1347
        %v1708 = vunpack.c.l.b16 %v1348
        %v1709 = vunpack.c.l.b16 %v1349
        %v1710 = vunpack.c.l.b16 %v1350
        %v1711 = vunpack.c.l.b16 %v1351
        %v1712 = vunpack.c.l.b16 %v1352
        %v1713 = vunpack.c.l.b16 %v1353
        %v1714 = vunpack.c.l.b16 %v1354
        %v1715 = vunpack.c.l.b16 %v1355
        %v1716 = vunpack.c.l.b16 %v1356
        %v1717 = vunpack.c.l.b16 %v1357
        %v1718 = vunpack.c.l.b16 %v1358
        %v1719 = vunpack.c.l.b16 %v1359
        %v1720 = vunpack.c.l.b16 %v1360
        %v1721 = vunpack.c.l.b16 %v1361
        %v1722 = vunpack.c.l.b16 %v1362
        %v1723 = vunpack.c.l.b16 %v1363
        %v1724 = vunpack.c.l.b16 %v1364
        %v1725 = vunpack.c.l.b16 %v1365
        %v1726 = vunpack.c.l.b16 %v1366
        %v1727 = vunpack.c.l.b16 %v1367
        %v1728 = vunpack.c.l.b16 %v1368
        %v1729 = vunpack.c.l.b16 %v1369
        %v1730 = vunpack.c.l.b16 %v1370
        %v1731 = vunpack.c.l.b16 %v1371
        %v1732 = vunpack.c.l.b16 %v1372
        %v1733 = vunpack.c.l.b16 %v1373
        %v1734 = vunpack.c.l.b16 %v1374
        %v1735 = vunpack.c.l.b16 %v1375
        %v1736 = vunpack.c.l.b16 %v1376
        %v1737 = vunpack.c.l.b16 %v1377
        %v1738 = vunpack.c.l.b16 %v1378
        %v1739 = vunpack.c.l.b16 %v1379
        %v1740 = vunpack.c.l.b16 %v1380
        %v1741 = vunpack.c.l.b16 %v1381
        %v1742 = vunpack.c.l.b16 %v1382
        %v1743 = vunpack.c.l.b16 %v1383
        %v1744 = vunpack.c.l.b16 %v1384
        %v1745 = vunpack.c.l.b16 %v1385
        %v1746 = vunpack.c.l.b16 %v1386
        %v1747 = vunpack.c.l.b16 %v1387
        %v1748 = vunpack.c.l.b16 %v1388
        %v1749 = vunpack.c.l.b16 %v1389
        %v1750 = vunpack.c.l.b16 %v1390
        %v1751 = vunpack.c.l.b16 %v1391
        %v1752 = vunpack.c.l.b16 %v1392
        %v1753 = vunpack.c.l.b16 %v1393
        %v1754 = vunpack.c.l.b16 %v1394
        %v1755 = vunpack.c.l.b16 %v1395
        %v1756 = vunpack.c.l.b16 %v1396
        %v1757 = vunpack.c.l.b16 %v1397
        %v1758 = vunpack.c.l.b16 %v1398
        %v1759 = vunpack.c.l.b16 %v1399
        %v1760 = vunpack.c.l.b16 %v1400
        %v1761 = vunpack.c.l.b16 %v1401
        %v1762 = vunpack.c.l.b16 %v1402
        %v1763 = vunpack.c.l.b16 %v1403
        %v1764 = vunpack.c.l.b16 %v1404
        %v1765 = vunpack.c.l.b16 %v1405
        %v1766 = vunpack.c.l.b16 %v1406
        %v1767 = vunpack.c.l.b16 %v1407
        %v1768 = vunpack.c.l.b16 %v1408
        %v1769 = vunpack.c.l.b16 %v1409
        %v1770 = vunpack.c.l.b16 %v1410
        %v1771 = vunpack.c.l.b16 %v1411
        %v1772 = vunpack.c.l.b16 %v1412
        %v1773 = vunpack.c.l.b16 %v1413
        %v1774 = vunpack.c.l.b16 %v1414
        %v1775 = vunpack.c.l.b16 %v1415
        %v1776 = vunpack.c.l.b16 %v1416
        %v1777 = vunpack.c.l.b16 %v1417
        %v1778 = vunpack.c.l.b16 %v1418
        %v1779 = vunpack.c.l.b16 %v1419
        %v1780 = vunpack.c.l.b16 %v1420
        %v1781 = vunpack.c.l.b16 %v1421
        %v1782 = vunpack.c.l.b16 %v1422
        %v1783 = vunpack.c.l.b16 %v1423
        %v1784 = vunpack.c.l.b16 %v1424
        %v1785 = vunpack.c.l.b16 %v1425
        %v1786 = vunpack.c.l.b16 %v1426
        %v1787 = vunpack.c.l.b16 %v1427
        %v1788 = vunpack.c.l.b16 %v1428
        %v1789 = vunpack.c.l.b16 %v1429
        %v1790 = vunpack.c.l.b16 %v1430
        %v1791 = vunpack.c.l.b16 %v1431
        %v1792 = vunpack.c.l.b16 %v1432
        %v1793 = vunpack.c.l.b16 %v1433
        %v1794 = vunpack.c.l.b16 %v1434
        %v1795 = vunpack.c.l.b16 %v1435
        %v1796 = vunpack.c.l.b16 %v1436
        %v1797 = vunpack.c.l.b16 %v1437
        %v1798 = vunpack.c.l.b16 %v1438
        %v1799 = vunpack.c.l.b16 %v1439
        %v1800 = vunpack.c.l.b16 %v1440
        %v1801 = vunpack.c.l.b16 %v1441
        %v1802 = vunpack.c.l.b16 %v1442
        %v1803 = vunpack.c.l.b16 %v1443
        %v1804 = vunpack.c.l.b16 %v1444
        %v1805 = vunpack.c.l.b16 %v1445
        %v1806 = vpack.c.b16 %v1663, %v1662
        %v1807 = vpack.c.b16 %v1665, %v1664
        %v1808 = vpack.c.b16 %v1667, %v1666
        %v1809 = vpack.c.b16 %v1669, %v1668
        %v1810 = vpack.c.b16 %v1671, %v1670
        %v1811 = vpack.c.b16 %v1673, %v1672
        %v1812 = vpack.c.b16 %v1675, %v1674
        %v1813 = vpack.c.b16 %v1677, %v1676
        %v1814 = vpack.c.b16 %v1679, %v1678
        %v1815 = vpack.c.b16 %v1681, %v1680
        %v1816 = vpack.c.b16 %v1683, %v1682
        %v1817 = vpack.c.b16 %v1685, %v1684
        %v1818 = vpack.c.b16 %v1687, %v1686
        %v1819 = vpack.c.b16 %v1689, %v1688
        %v1820 = vpack.c.b16 %v1691, %v1690
        %v1821 = vpack.c.b16 %v1693, %v1692
        %v1822 = vpack.c.b16 %v1695, %v1694
        %v1823 = vpack.c.b16 %v1697, %v1696
        %v1824 = vpack.c.b16 %v1699, %v1698
        %v1825 = vpack.c.b16 %v1701, %v1700
        %v1826 = vpack.c.b16 %v1703, %v1702
        %v1827 = vpack.c.b16 %v1705, %v1704
        %v1828 = vpack.c.b16 %v1707, %v1706
        %v1829 = vpack.c.b16 %v1709, %v1708
        %v1830 = vpack.c.b16 %v1711, %v1710
        %v1831 = vpack.c.b16 %v1713, %v1712
        %v1832 = vpack.c.b16 %v1715, %v1714
        %v1833 = vpack.c.b16 %v1717, %v1716
        %v1834 = vpack.c.b16 %v1719, %v1718
        %v1835 = vpack.c.b16 %v1721, %v1720
        %v1836 = vpack.c.b16 %v1723, %v1722
        %v1837 = vpack.c.b16 %v1725, %v1724
        %v1838 = vpack.c.b16 %v1727, %v1726
        %v1839 = vpack.c.b16 %v1729, %v1728
        %v1840 = vpack.c.b16 %v1731, %v1730
        %v1841 = vpack.c.b16 %v1733, %v1732
        %v1842 = vpack.c.b16 %v1735, %v1734
        %v1843 = vpack.c.b16 %v1737, %v1736
        %v1844 = vpack.c.b16 %v1739, %v1738
        %v1845 = vpack.c.b16 %v1741, %v1740
        %v1846 = vpack.c.b16 %v1743, %v1742
        %v1847 = vpack.c.b16 %v1745, %v1744
        %v1848 = vpack.c.b16 %v1747, %v1746
        %v1849 = vpack.c.b16 %v1749, %v1748
        %v1850 = vpack.c.b16 %v1751, %v1750
        %v1851 = vpack.c.b16 %v1753, %v1752
        %v1852 = vpack.c.b16 %v1755, %v1754
        %v1853 = vpack.c.b16 %v1757, %v1756
        %v1854 = vpack.c.b16 %v1759, %v1758
        %v1855 = vpack.c.b16 %v1761, %v1760
        %v1856 = vpack.c.b16 %v1763, %v1762
        %v1857 = vpack.c.b16 %v1765, %v1764
        %v1858 = vpack.c.b16 %v1767, %v1766
        %v1859 = vpack.c.b16 %v1769, %v1768
        %v1860 = vpack.c.b16 %v1771, %v1770
        %v1861 = vpack.c.b16 %v1773, %v1772
        %v1862 = vpack.c.b16 %v1775, %v1774
        %v1863 = vpack.c.b16 %v1777, %v1776
        %v1864 = vpack.c.b16 %v1779, %v1778
        %v1865 = vpack.c.b16 %v1781, %v1780
        %v1866 = vpack.c.b16 %v1783, %v1782
        %v1867 = vpack.c.b16 %v1785, %v1784
        %v1868 = vpack.c.b16 %v1787, %v1786
        %v1869 = vpack.c.b16 %v1789, %v1788
        %v1870 = vpack.c.b16 %v1791, %v1790
        %v1871 = vpack.c.b16 %v1793, %v1792
        %v1872 = vpack.c.b16 %v1795, %v1794
        %v1873 = vpack.c.b16 %v1797, %v1796
        %v1874 = vpack.c.b16 %v1799, %v1798
        %v1875 = vpack.c.b16 %v1801, %v1800
        %v1876 = vpack.c.b16 %v1803, %v1802
        %v1877 = vpack.c.b16 %v1805, %v1804
        %1950 = vmatprep.subr.bf16.mxu0 0
        %1951 = vmatpush1.bf16.msra.mxu0 %v1806
        %1952 = vmatprep.subr.bf16.mxu0 0
        %1953 = vmatpush1.bf16.msra.mxu0 %v1807
        %1954 = vmatprep.subr.bf16.mxu0 0
        %1955 = vmatpush1.bf16.msra.mxu0 %v1808
        %1956 = vmatprep.subr.bf16.mxu0 0
        %1957 = vmatpush1.bf16.msra.mxu0 %v1809
        %1958 = vmatprep.subr.bf16.mxu0 0
        %1959 = vmatpush1.bf16.msra.mxu0 %v1810
        %1960 = vmatprep.subr.bf16.mxu0 0
        %1961 = vmatpush1.bf16.msra.mxu0 %v1811
        %1962 = vmatprep.subr.bf16.mxu0 0
        %1963 = vmatpush1.bf16.msra.mxu0 %v1812
        %1964 = vmatprep.subr.bf16.mxu0 0
        %1965 = vmatpush1.bf16.msra.mxu0 %v1813
        %1966 = vmatprep.subr.bf16.mxu0 0
        %1967 = vmatpush1.bf16.msra.mxu0 %v1814
        %1968 = vmatprep.subr.bf16.mxu0 0
        %1969 = vmatpush1.bf16.msra.mxu0 %v1815
        %1970 = vmatprep.subr.bf16.mxu0 0
        %1971 = vmatpush1.bf16.msra.mxu0 %v1816
        %1972 = vmatprep.subr.bf16.mxu0 0
        %1973 = vmatpush1.bf16.msra.mxu0 %v1817
        %1974 = vmatprep.subr.bf16.mxu0 0
        %1975 = vmatpush1.bf16.msra.mxu0 %v1818
        %1976 = vmatprep.subr.bf16.mxu0 0
        %1977 = vmatpush1.bf16.msra.mxu0 %v1819
        %1978 = vmatprep.subr.bf16.mxu0 0
        %1979 = vmatpush1.bf16.msra.mxu0 %v1820
        %1980 = vmatprep.subr.bf16.mxu0 0
        %1981 = vmatpush1.bf16.msra.mxu0 %v1821
        %1982 = vmatprep.mubr.bf16.mxu0 %v1447
        %1983 = vmatmul.mubr.bf16.gmra.mrb[0].mxu0 %v1446
        %v1984 = vpop.f32.mrb[0].mxu0
        %v1985 = vadd.f32 0.0, %v1984
        %v1986 = vpop.f32.mrb[0].mxu0
        %v1987 = vpop.f32.mrb[0].mxu0
        %v1988 = vadd.f32 0.0, %v1987
        %v1989 = vpop.f32.mrb[0].mxu0
        %1990 = vmatprep.mubr.bf16.mxu0 %v1456
        %1991 = vmatmul.mubr.bf16.gmra.mrb[0].mxu0 %v1455
        %v1992 = vpop.f32.mrb[0].mxu0
        %v1993 = vadd.f32 0.0, %v1992
        %v1994 = vpop.f32.mrb[0].mxu0
        %v1995 = vpop.f32.mrb[0].mxu0
        %v1996 = vadd.f32 0.0, %v1995
        %v1997 = vpop.f32.mrb[0].mxu0
        %1998 = vmatprep.mubr.bf16.mxu0 %v1465
        %1999 = vmatmul.mubr.bf16.gmra.mrb[0].mxu0 %v1464
        %v2000 = vpop.f32.mrb[0].mxu0
        %v2001 = vadd.f32 0.0, %v2000
        %v2002 = vpop.f32.mrb[0].mxu0
        %v2003 = vpop.f32.mrb[0].mxu0
        %v2004 = vadd.f32 0.0, %v2003
        %v2005 = vpop.f32.mrb[0].mxu0
        %2006 = vmatprep.mubr.bf16.mxu0 %v1474
        %2007 = vmatmul.mubr.bf16.gmra.mrb[0].mxu0 %v1473
        %v2008 = vpop.f32.mrb[0].mxu0
        %v2009 = vadd.f32 0.0, %v2008
        %v2010 = vpop.f32.mrb[0].mxu0
        %v2011 = vpop.f32.mrb[0].mxu0
        %v2012 = vadd.f32 0.0, %v2011
        %v2013 = vpop.f32.mrb[0].mxu0
        %2014 = vdwg.mxu0
        %2015 = vmatprep.subr.bf16.mxu0 0
        %2016 = vmatpush1.bf16.msra.mxu0 %v1822
        %2017 = vmatprep.subr.bf16.mxu0 0
        %2018 = vmatpush1.bf16.msra.mxu0 %v1823
        %2019 = vmatprep.subr.bf16.mxu0 0
        %2020 = vmatpush1.bf16.msra.mxu0 %v1824
        %2021 = vmatprep.subr.bf16.mxu0 0
        %2022 = vmatpush1.bf16.msra.mxu0 %v1825
        %2023 = vmatprep.subr.bf16.mxu0 0
        %2024 = vmatpush1.bf16.msra.mxu0 %v1826
        %2025 = vmatprep.subr.bf16.mxu0 0
        %2026 = vmatpush1.bf16.msra.mxu0 %v1827
        %2027 = vmatprep.subr.bf16.mxu0 0
        %2028 = vmatpush1.bf16.msra.mxu0 %v1828
        %2029 = vmatprep.subr.bf16.mxu0 0
        %2030 = vmatpush1.bf16.msra.mxu0 %v1829
        %2031 = vmatprep.subr.bf16.mxu0 0
        %2032 = vmatpush1.bf16.msra.mxu0 %v1830
        %2033 = vmatprep.subr.bf16.mxu0 0
        %2034 = vmatpush1.bf16.msra.mxu0 %v1831
        %2035 = vmatprep.subr.bf16.mxu0 0
        %2036 = vmatpush1.bf16.msra.mxu0 %v1832
        %2037 = vmatprep.subr.bf16.mxu0 0
        %2038 = vmatpush1.bf16.msra.mxu0 %v1833
        %2039 = vmatprep.subr.bf16.mxu0 0
        %2040 = vmatpush1.bf16.msra.mxu0 %v1834
        %2041 = vmatprep.subr.bf16.mxu0 0
        %2042 = vmatpush1.bf16.msra.mxu0 %v1835
        %2043 = vmatprep.subr.bf16.mxu0 0
        %2044 = vmatpush1.bf16.msra.mxu0 %v1836
        %2045 = vmatprep.subr.bf16.mxu0 0
        %2046 = vmatpush1.bf16.msra.mxu0 %v1837
        %2047 = vmatprep.mubr.bf16.mxu0 %v1449
        %2048 = vmatmul.mubr.bf16.gmra.mrb[0].mxu0 %v1448
        %v2049 = vpop.f32.mrb[0].mxu0
        %v2050 = vadd.f32 %v1985, %v2049
        %v2051 = vpop.f32.mrb[0].mxu0
        %v2052 = vpop.f32.mrb[0].mxu0
        %v2053 = vadd.f32 %v1988, %v2052
        %v2054 = vpop.f32.mrb[0].mxu0
        %2055 = vmatprep.mubr.bf16.mxu0 %v1458
        %2056 = vmatmul.mubr.bf16.gmra.mrb[0].mxu0 %v1457
        %v2057 = vpop.f32.mrb[0].mxu0
        %v2058 = vadd.f32 %v1993, %v2057
        %v2059 = vpop.f32.mrb[0].mxu0
        %v2060 = vpop.f32.mrb[0].mxu0
        %v2061 = vadd.f32 %v1996, %v2060
        %v2062 = vpop.f32.mrb[0].mxu0
        %2063 = vmatprep.mubr.bf16.mxu0 %v1467
        %2064 = vmatmul.mubr.bf16.gmra.mrb[0].mxu0 %v1466
        %v2065 = vpop.f32.mrb[0].mxu0
        %v2066 = vadd.f32 %v2001, %v2065
        %v2067 = vpop.f32.mrb[0].mxu0
        %v2068 = vpop.f32.mrb[0].mxu0
        %v2069 = vadd.f32 %v2004, %v2068
        %v2070 = vpop.f32.mrb[0].mxu0
        %2071 = vmatprep.mubr.bf16.mxu0 %v1476
        %2072 = vmatmul.mubr.bf16.gmra.mrb[0].mxu0 %v1475
        %v2073 = vpop.f32.mrb[0].mxu0
        %v2074 = vadd.f32 %v2009, %v2073
        %v2075 = vpop.f32.mrb[0].mxu0
        %v2076 = vpop.f32.mrb[0].mxu0
        %v2077 = vadd.f32 %v2012, %v2076
        %v2078 = vpop.f32.mrb[0].mxu0
        %2079 = vdwg.mxu0
        %2080 = vmatprep.subr.bf16.mxu0 0
        %2081 = vmatpush1.bf16.msra.mxu0 %v1838
        %2082 = vmatprep.subr.bf16.mxu0 0
        %2083 = vmatpush1.bf16.msra.mxu0 %v1839
        %2084 = vmatprep.subr.bf16.mxu0 0
        %2085 = vmatpush1.bf16.msra.mxu0 %v1840
        %2086 = vmatprep.subr.bf16.mxu0 0
        %2087 = vmatpush1.bf16.msra.mxu0 %v1841
        %2088 = vmatprep.subr.bf16.mxu0 0
        %2089 = vmatpush1.bf16.msra.mxu0 %v1842
        %2090 = vmatprep.subr.bf16.mxu0 0
        %2091 = vmatpush1.bf16.msra.mxu0 %v1843
        %2092 = vmatprep.subr.bf16.mxu0 0
        %2093 = vmatpush1.bf16.msra.mxu0 %v1844
        %2094 = vmatprep.subr.bf16.mxu0 0
        %2095 = vmatpush1.bf16.msra.mxu0 %v1845
        %2096 = vmatprep.subr.bf16.mxu0 0
        %2097 = vmatpush1.bf16.msra.mxu0 %v1846
        %2098 = vmatprep.subr.bf16.mxu0 0
        %2099 = vmatpush1.bf16.msra.mxu0 %v1847
        %2100 = vmatprep.subr.bf16.mxu0 0
        %2101 = vmatpush1.bf16.msra.mxu0 %v1848
        %2102 = vmatprep.subr.bf16.mxu0 0
        %2103 = vmatpush1.bf16.msra.mxu0 %v1849
        %2104 = vmatprep.subr.bf16.mxu0 0
        %2105 = vmatpush1.bf16.msra.mxu0 %v1850
        %2106 = vmatprep.subr.bf16.mxu0 0
        %2107 = vmatpush1.bf16.msra.mxu0 %v1851
        %2108 = vmatprep.subr.bf16.mxu0 0
        %2109 = vmatpush1.bf16.msra.mxu0 %v1852
        %2110 = vmatprep.subr.bf16.mxu0 0
        %2111 = vmatpush1.bf16.msra.mxu0 %v1853
        %2112 = vmatprep.mubr.bf16.mxu0 %v1451
        %2113 = vmatmul.mubr.bf16.gmra.mrb[0].mxu0 %v1450
        %v2114 = vpop.f32.mrb[0].mxu0
        %v2115 = vadd.f32 %v2050, %v2114
        %v2116 = vpop.f32.mrb[0].mxu0
        %v2117 = vpop.f32.mrb[0].mxu0
        %v2118 = vadd.f32 %v2053, %v2117
        %v2119 = vpop.f32.mrb[0].mxu0
        %2120 = vmatprep.mubr.bf16.mxu0 %v1460
        %2121 = vmatmul.mubr.bf16.gmra.mrb[0].mxu0 %v1459
        %v2122 = vpop.f32.mrb[0].mxu0
        %v2123 = vadd.f32 %v2058, %v2122
        %v2124 = vpop.f32.mrb[0].mxu0
        %v2125 = vpop.f32.mrb[0].mxu0
        %v2126 = vadd.f32 %v2061, %v2125
        %v2127 = vpop.f32.mrb[0].mxu0
        %2128 = vmatprep.mubr.bf16.mxu0 %v1469
        %2129 = vmatmul.mubr.bf16.gmra.mrb[0].mxu0 %v1468
        %v2130 = vpop.f32.mrb[0].mxu0
        %v2131 = vadd.f32 %v2066, %v2130
        %v2132 = vpop.f32.mrb[0].mxu0
        %v2133 = vpop.f32.mrb[0].mxu0
        %v2134 = vadd.f32 %v2069, %v2133
        %v2135 = vpop.f32.mrb[0].mxu0
        %2136 = vmatprep.mubr.bf16.mxu0 %v1478
        %2137 = vmatmul.mubr.bf16.gmra.mrb[0].mxu0 %v1477
        %v2138 = vpop.f32.mrb[0].mxu0
        %v2139 = vadd.f32 %v2074, %v2138
        %v2140 = vpop.f32.mrb[0].mxu0
        %v2141 = vpop.f32.mrb[0].mxu0
        %v2142 = vadd.f32 %v2077, %v2141
        %v2143 = vpop.f32.mrb[0].mxu0
        %2144 = vdwg.mxu0
        %2145 = vmatprep.subr.bf16.mxu0 0
        %2146 = vmatpush1.bf16.msra.mxu0 %v1854
        %2147 = vmatprep.subr.bf16.mxu0 0
        %2148 = vmatpush1.bf16.msra.mxu0 %v1855
        %2149 = vmatprep.subr.bf16.mxu0 0
        %2150 = vmatpush1.bf16.msra.mxu0 %v1856
        %2151 = vmatprep.subr.bf16.mxu0 0
        %2152 = vmatpush1.bf16.msra.mxu0 %v1857
        %2153 = vmatprep.subr.bf16.mxu0 0
        %2154 = vmatpush1.bf16.msra.mxu0 %v1858
        %2155 = vmatprep.subr.bf16.mxu0 0
        %2156 = vmatpush1.bf16.msra.mxu0 %v1859
        %2157 = vmatprep.subr.bf16.mxu0 0
        %2158 = vmatpush1.bf16.msra.mxu0 %v1860
        %2159 = vmatprep.subr.bf16.mxu0 0
        %2160 = vmatpush1.bf16.msra.mxu0 %v1861
        %2161 = vmatprep.subr.bf16.mxu0 0
        %2162 = vmatpush1.bf16.msra.mxu0 %v1862
        %2163 = vmatprep.subr.bf16.mxu0 0
        %2164 = vmatpush1.bf16.msra.mxu0 %v1863
        %2165 = vmatprep.subr.bf16.mxu0 0
        %2166 = vmatpush1.bf16.msra.mxu0 %v1864
        %2167 = vmatprep.subr.bf16.mxu0 0
        %2168 = vmatpush1.bf16.msra.mxu0 %v1865
        %2169 = vmatprep.subr.bf16.mxu0 0
        %2170 = vmatpush1.bf16.msra.mxu0 %v1866
        %2171 = vmatprep.subr.bf16.mxu0 0
        %2172 = vmatpush1.bf16.msra.mxu0 %v1867
        %2173 = vmatprep.subr.bf16.mxu0 0
        %2174 = vmatpush1.bf16.msra.mxu0 %v1868
        %2175 = vmatprep.subr.bf16.mxu0 0
        %2176 = vmatpush1.bf16.msra.mxu0 %v1869
        %2177 = vmatprep.mubr.bf16.mxu0 %v1453
        %2178 = vmatmul.mubr.bf16.gmra.mrb[0].mxu0 %v1452
        %v2179 = vpop.f32.mrb[0].mxu0
        %v2180 = vadd.f32 %v2115, %v2179
        %v2181 = vpop.f32.mrb[0].mxu0
        %v2182 = vpop.f32.mrb[0].mxu0
        %v2183 = vadd.f32 %v2118, %v2182
        %v2184 = vpop.f32.mrb[0].mxu0
        %2185 = vmatprep.mubr.bf16.mxu0 %v1462
        %2186 = vmatmul.mubr.bf16.gmra.mrb[0].mxu0 %v1461
        %v2187 = vpop.f32.mrb[0].mxu0
        %v2188 = vadd.f32 %v2123, %v2187
        %v2189 = vpop.f32.mrb[0].mxu0
        %v2190 = vpop.f32.mrb[0].mxu0
        %v2191 = vadd.f32 %v2126, %v2190
        %v2192 = vpop.f32.mrb[0].mxu0
        %2193 = vmatprep.mubr.bf16.mxu0 %v1471
        %2194 = vmatmul.mubr.bf16.gmra.mrb[0].mxu0 %v1470
        %v2195 = vpop.f32.mrb[0].mxu0
        %v2196 = vadd.f32 %v2131, %v2195
        %v2197 = vpop.f32.mrb[0].mxu0
        %v2198 = vpop.f32.mrb[0].mxu0
        %v2199 = vadd.f32 %v2134, %v2198
        %v2200 = vpop.f32.mrb[0].mxu0
        %2201 = vmatprep.mubr.bf16.mxu0 %v1480
        %2202 = vmatmul.mubr.bf16.gmra.mrb[0].mxu0 %v1479
        %v2203 = vpop.f32.mrb[0].mxu0
        %v2204 = vadd.f32 %v2139, %v2203
        %v2205 = vpop.f32.mrb[0].mxu0
        %v2206 = vpop.f32.mrb[0].mxu0
        %v2207 = vadd.f32 %v2142, %v2206
        %v2208 = vpop.f32.mrb[0].mxu0
        %2209 = vdwg.mxu0
        %2210 = vmatprep.subr.bf16.mxu0 0
        %2211 = vmatpush1.bf16.msra.mxu0 %v1870
        %2212 = vmatprep.subr.bf16.mxu0 0
        %2213 = vmatpush1.bf16.msra.mxu0 %v1871
        %2214 = vmatprep.subr.bf16.mxu0 0
        %2215 = vmatpush1.bf16.msra.mxu0 %v1872
        %2216 = vmatprep.subr.bf16.mxu0 0
        %2217 = vmatpush1.bf16.msra.mxu0 %v1873
        %2218 = vmatprep.subr.bf16.mxu0 0
        %2219 = vmatpush1.bf16.msra.mxu0 %v1874
        %2220 = vmatprep.subr.bf16.mxu0 0
        %2221 = vmatpush1.bf16.msra.mxu0 %v1875
        %2222 = vmatprep.subr.bf16.mxu0 0
        %2223 = vmatpush1.bf16.msra.mxu0 %v1876
        %2224 = vmatprep.subr.bf16.mxu0 0
        %2225 = vmatpush1.bf16.msra.mxu0 %v1877
        %2226 = vmatprep.subr.bf16.mxu0 0
        %2227 = vmatpush1.bf16.msra.mxu0 0
        %2228 = vmatprep.subr.bf16.mxu0 0
        %2229 = vmatpush1.bf16.msra.mxu0 0
        %2230 = vmatprep.subr.bf16.mxu0 0
        %2231 = vmatpush1.bf16.msra.mxu0 0
        %2232 = vmatprep.subr.bf16.mxu0 0
        %2233 = vmatpush1.bf16.msra.mxu0 0
        %2234 = vmatprep.subr.bf16.mxu0 0
        %2235 = vmatpush1.bf16.msra.mxu0 0
        %2236 = vmatprep.subr.bf16.mxu0 0
        %2237 = vmatpush1.bf16.msra.mxu0 0
        %2238 = vmatprep.subr.bf16.mxu0 0
        %2239 = vmatpush1.bf16.msra.mxu0 0
        %2240 = vmatprep.subr.bf16.mxu0 0
        %2241 = vmatpush1.bf16.msra.mxu0 0
        %2242 = vmatprep.mubr.bf16.mxu0 0
        %2243 = vmatmul.mubr.bf16.gmra.mrb[0].mxu0 %v1454
        %v2244 = vpop.f32.mrb[0].mxu0
        %v2245 = vadd.f32 %v2180, %v2244
        %v2246 = vpop.f32.mrb[0].mxu0
        %v2247 = vpop.f32.mrb[0].mxu0
        %v2248 = vadd.f32 %v2183, %v2247
        %v2249 = vpop.f32.mrb[0].mxu0
        %2250 = vmatprep.mubr.bf16.mxu0 0
        %2251 = vmatmul.mubr.bf16.gmra.mrb[0].mxu0 %v1463
        %v2252 = vpop.f32.mrb[0].mxu0
        %v2253 = vadd.f32 %v2188, %v2252
        %v2254 = vpop.f32.mrb[0].mxu0
        %v2255 = vpop.f32.mrb[0].mxu0
        %v2256 = vadd.f32 %v2191, %v2255
        %v2257 = vpop.f32.mrb[0].mxu0
        %2258 = vmatprep.mubr.bf16.mxu0 0
        %2259 = vmatmul.mubr.bf16.gmra.mrb[0].mxu0 %v1472
        %v2260 = vpop.f32.mrb[0].mxu0
        %v2261 = vadd.f32 %v2196, %v2260
        %v2262 = vpop.f32.mrb[0].mxu0
        %v2263 = vpop.f32.mrb[0].mxu0
        %v2264 = vadd.f32 %v2199, %v2263
        %v2265 = vpop.f32.mrb[0].mxu0
        %2266 = vmatprep.mubr.bf16.mxu0 0
        %2267 = vmatmul.mubr.bf16.gmra.mrb[0].mxu0 %v1481
        %v2268 = vpop.f32.mrb[0].mxu0
        %v2269 = vadd.f32 %v2204, %v2268
        %v2270 = vpop.f32.mrb[0].mxu0
        %v2271 = vpop.f32.mrb[0].mxu0
        %v2272 = vadd.f32 %v2207, %v2271
        %v2273 = vpop.f32.mrb[0].mxu0
        %2274 = vdwg.mxu0
        %v2275 = vld [vmem:[%s863] sm:$0x1]
        %v2277 = vlaneseq
        %v2278 = vshrl.u32 %v2277, 7
        %v2279 = vsub.s32 0, %v2278
        %v2280 = vrot.slane %v2275, %v2279
        %v2282 = vmul.f32 %v2245, %v2280
        %v2283 = vmul.f32 %v2248, %v2280
        %v2284 = vmul.f32 %v2253, %v2280
        %v2285 = vmul.f32 %v2256, %v2280
        %v2286 = vmul.f32 %v2261, %v2280
        %v2287 = vmul.f32 %v2264, %v2280
        %v2288 = vmul.f32 %v2269, %v2280
        %v2289 = vmul.f32 %v2272, %v2280
        %v2290 = vld [vmem:[%s866] sm:$0x1]
        %v2292 = vlaneseq
        %v2293 = vshrl.u32 %v2292, 7
        %v2294 = vsub.s32 0, %v2293
        %v2295 = vrot.slane %v2290, %v2294
        %v2297 = vadd.f32 %v2282, %v2295
        %v2298 = vadd.f32 %v2283, %v2295
        %v2299 = vadd.f32 %v2284, %v2295
        %v2300 = vadd.f32 %v2285, %v2295
        %v2301 = vadd.f32 %v2286, %v2295
        %v2302 = vadd.f32 %v2287, %v2295
        %v2303 = vadd.f32 %v2288, %v2295
        %v2304 = vadd.f32 %v2289, %v2295
        %v2305 = vxor.u32 %v2297, 2147483648
        %v2306 = vxor.u32 %v2298, 2147483648
        %v2307 = vxor.u32 %v2299, 2147483648
        %v2308 = vxor.u32 %v2300, 2147483648
        %v2309 = vxor.u32 %v2301, 2147483648
        %v2310 = vxor.u32 %v2302, 2147483648
        %v2311 = vxor.u32 %v2303, 2147483648
        %v2312 = vxor.u32 %v2304, 2147483648
        %v2313 = vmul.f32 %v2305, 1.442695
        %v2314 = vpow.pop %v2313
        %v2315 = vmul.f32 %v2306, 1.442695
        %v2316 = vpow.pop %v2315
        %v2317 = vmul.f32 %v2307, 1.442695
        %v2318 = vpow.pop %v2317
        %v2319 = vmul.f32 %v2308, 1.442695
        %v2320 = vpow.pop %v2319
        %v2321 = vmul.f32 %v2309, 1.442695
        %v2322 = vpow.pop %v2321
        %v2323 = vmul.f32 %v2310, 1.442695
        %v2324 = vpow.pop %v2323
        %v2325 = vmul.f32 %v2311, 1.442695
        %v2326 = vpow.pop %v2325
        %v2327 = vmul.f32 %v2312, 1.442695
        %v2328 = vpow.pop %v2327
        %v2329 = vadd.f32 %v2314, 1.0
        %v2330 = vadd.f32 %v2316, 1.0
        %v2331 = vadd.f32 %v2318, 1.0
        %v2332 = vadd.f32 %v2320, 1.0
        %v2333 = vadd.f32 %v2322, 1.0
        %v2334 = vadd.f32 %v2324, 1.0
        %v2335 = vadd.f32 %v2326, 1.0
        %v2336 = vadd.f32 %v2328, 1.0
        %v2337 = vrcp.pop %v2329
        %v2338 = vmul.f32 1.0, %v2337
        %v2339 = vrcp.pop %v2330
        %v2340 = vmul.f32 1.0, %v2339
        %v2341 = vrcp.pop %v2331
        %v2342 = vmul.f32 1.0, %v2341
        %v2343 = vrcp.pop %v2332
        %v2344 = vmul.f32 1.0, %v2343
        %v2345 = vrcp.pop %v2333
        %v2346 = vmul.f32 1.0, %v2345
        %v2347 = vrcp.pop %v2334
        %v2348 = vmul.f32 1.0, %v2347
        %v2349 = vrcp.pop %v2335
        %v2350 = vmul.f32 1.0, %v2349
        %v2351 = vrcp.pop %v2336
        %v2352 = vmul.f32 1.0, %v2351
        %v2353 = vmul.f32 %v2297, %v2338
        %v2354 = vmul.f32 %v2298, %v2340
        %v2355 = vmul.f32 %v2299, %v2342
        %v2356 = vmul.f32 %v2300, %v2344
        %v2357 = vmul.f32 %v2301, %v2346
        %v2358 = vmul.f32 %v2302, %v2348
        %v2359 = vmul.f32 %v2303, %v2350
        %v2360 = vmul.f32 %v2304, %v2352
        %v2361 = vpack.c.bf16 %v2353, %v2353
        %v2362 = vpack.c.bf16 %v2354, %v2354
        %v2363 = vpack.c.bf16 %v2355, %v2355
        %v2364 = vpack.c.bf16 %v2356, %v2356
        %v2365 = vpack.c.bf16 %v2357, %v2357
        %v2366 = vpack.c.bf16 %v2358, %v2358
        %v2367 = vpack.c.bf16 %v2359, %v2359
        %v2368 = vpack.c.bf16 %v2360, %v2360
        %2369 = vst [vmem:[%s855] sm:$0xf] %v2361
        %2370 = vst [vmem:[%s855 + $0x4] sm:$0xf] %v2362
        %2371 = vst [vmem:[%s855 + $0x8] sm:$0xf] %v2363
        %2372 = vst [vmem:[%s855 + $0xc] sm:$0xf] %v2364
        %2373 = vst [vmem:[%s855 + $0x10] sm:$0xf] %v2365
        %2374 = vst [vmem:[%s855 + $0x14] sm:$0xf] %v2366
        %2375 = vst [vmem:[%s855 + $0x18] sm:$0xf] %v2367
        %2376 = vst [vmem:[%s855 + $0x1c] sm:$0xf] %v2368
        %s2377 = sand.u32 %s141, 1
        %s2378 = sand.u32 %s141, 1
        %s2379 = smul.addr %s2378, 32
        %s2380 = scalar_lea.vmem [#allocation3], %s2379
        // Predicated region
        $region78: #{card_classifier_forward.4} parent=72 // pred_check
          %p2381 = pneg %p151
        $region79: #{card_classifier_forward.4} parent=72 // pred_check_branch
          %2383 = sbr.rel (%p2381) target = $region81
        $region80: #{card_classifier_forward.4} parent=72 // pred_region
          %s2384 = smul.addr %s19, 24
          %s2385 = sadd.s32 %s20, %s2384
          %s2386 = smul.addr %s2385, 4
          %s2387 = scalar_lea.vmem %s4, %s2386
          // Predicated region
          $region82: #{card_classifier_forward.4} parent=80 // pred_check
            _
          $region83: #{card_classifier_forward.4} parent=80 // pred_check_branch
            %2389 = sbr.rel (0) target = $region85
          $region84: #{card_classifier_forward.4} parent=80 // pred_region
            // Predicated region
            $region86: #{card_classifier_forward.4} parent=84 // pred_check
              _
            $region87: #{card_classifier_forward.4} parent=84 // pred_check_branch
              %2391 = sbr.rel target = $region89
            $region88: #{card_classifier_forward.4} parent=84 // pred_region
              // Predicated region
              $region101: #{card_classifier_forward.4} parent=88 // pred_check
                _
              $region102: #{card_classifier_forward.4} parent=88 // pred_check_branch
                %2420 = sbr.rel (0) target = $region104
              $region103: #{card_classifier_forward.4} parent=88 // pred_region
                loop: start=0, step=1, limit=1
                $region105: #{card_classifier_forward.4} parent=103 // loop_pre_header
                  _
                $region106: #{card_classifier_forward.4} parent=103 // loop_header
                  %s2422 = sphi 0, %s2426
                  %p2423 = scmp.ge.s32.totalorder %s2422, 1
                  %s2427 = sphi %s2380, %s2380
                  %s2428 = sphi %s2387, %s2387
                $region107: #{card_classifier_forward.4} parent=103 // loop_header_branch
                  %2425 = sbr.rel (%p2423) target = $region111
                $region108: #{card_classifier_forward.4} parent=103 // loop_body
                  _
                $region109: #{card_classifier_forward.4} parent=103 // loop_footer
                  %s2426 = sadd.s32 1, %s2422
                $region110: #{card_classifier_forward.4} parent=103 // loop_footer_branch
                  %2421 = sbr.rel target = $region106
                $region111: #{card_classifier_forward.4} parent=103 // loop_exit
                  _
                loop: start=0, step=1, limit=1
                $region112: #{card_classifier_forward.4} parent=103 // loop_pre_header
                  _
                $region113: #{card_classifier_forward.4} parent=103 // loop_header
                  %s2431 = sphi 0, %s2435
                  %p2432 = scmp.ge.s32.totalorder %s2431, 1
                  %s2436 = sphi %s2380, %s2380
                  %s2437 = sphi %s2387, %s2387
                $region114: #{card_classifier_forward.4} parent=103 // loop_header_branch
                  %2434 = sbr.rel (%p2432) target = $region118
                $region115: #{card_classifier_forward.4} parent=103 // loop_body
                  %v2438 = vld [vmem:[%s2436] sm:$0xf]
                  %2439 = vst [vmem:[%s2437] sm:$0xf] %v2438
                  %v2440 = vld [vmem:[%s2436 + $0x4] sm:$0xf]
                  %2441 = vst [vmem:[%s2437 + $0xc] sm:$0xf] %v2440
                  %v2442 = vld [vmem:[%s2436 + $0x8] sm:$0xf]
                  %2443 = vst [vmem:[%s2437 + $0x18] sm:$0xf] %v2442
                  %v2444 = vld [vmem:[%s2436 + $0xc] sm:$0xf]
                  %2445 = vst [vmem:[%s2437 + $0x24] sm:$0xf] %v2444
                  %v2446 = vld [vmem:[%s2436 + $0x10] sm:$0xf]
                  %2447 = vst [vmem:[%s2437 + $0x30] sm:$0xf] %v2446
                  %v2448 = vld [vmem:[%s2436 + $0x14] sm:$0xf]
                  %2449 = vst [vmem:[%s2437 + $0x3c] sm:$0xf] %v2448
                  %v2450 = vld [vmem:[%s2436 + $0x18] sm:$0xf]
                  %2451 = vst [vmem:[%s2437 + $0x48] sm:$0xf] %v2450
                  %v2452 = vld [vmem:[%s2436 + $0x1c] sm:$0xf]
                  %2453 = vst [vmem:[%s2437 + $0x54] sm:$0xf] %v2452
                $region116: #{card_classifier_forward.4} parent=103 // loop_footer
                  %s2435 = sadd.s32 1, %s2431
                $region117: #{card_classifier_forward.4} parent=103 // loop_footer_branch
                  %2430 = sbr.rel target = $region113
                $region118: #{card_classifier_forward.4} parent=103 // loop_exit
                  _
              $region104: #{card_classifier_forward.4} parent=88 // pred_fallthru
                _
            $region89: #{card_classifier_forward.4} parent=84 // pred_fallthru
              _
            // Predicated region
            $region90: #{card_classifier_forward.4} parent=84 // pred_check
              _
            $region91: #{card_classifier_forward.4} parent=84 // pred_check_branch
              %2393 = sbr.rel (0) target = $region93
            $region92: #{card_classifier_forward.4} parent=84 // pred_region
              loop: start=0, step=1, limit=1
              $region94: #{card_classifier_forward.4} parent=92 // loop_pre_header
                _
              $region95: #{card_classifier_forward.4} parent=92 // loop_header
                %s2396 = sphi 0, %s2400
                %p2397 = scmp.ge.s32.totalorder %s2396, 1
                %s2401 = sphi %s2380, %s2380
                %s2402 = sphi %s2387, %s2387
              $region96: #{card_classifier_forward.4} parent=92 // loop_header_branch
                %2399 = sbr.rel (%p2397) target = $region100
              $region97: #{card_classifier_forward.4} parent=92 // loop_body
                %v2403 = vld [vmem:[%s2401] sm:$0xf]
                %2404 = vst [vmem:[%s2402] sm:$0xf] %v2403
                %v2405 = vld [vmem:[%s2401 + $0x4] sm:$0xf]
                %2406 = vst [vmem:[%s2402 + $0xc] sm:$0xf] %v2405
                %v2407 = vld [vmem:[%s2401 + $0x8] sm:$0xf]
                %2408 = vst [vmem:[%s2402 + $0x18] sm:$0xf] %v2407
                %v2409 = vld [vmem:[%s2401 + $0xc] sm:$0xf]
                %2410 = vst [vmem:[%s2402 + $0x24] sm:$0xf] %v2409
                %v2411 = vld [vmem:[%s2401 + $0x10] sm:$0xf]
                %2412 = vst [vmem:[%s2402 + $0x30] sm:$0xf] %v2411
                %v2413 = vld [vmem:[%s2401 + $0x14] sm:$0xf]
                %2414 = vst [vmem:[%s2402 + $0x3c] sm:$0xf] %v2413
                %v2415 = vld [vmem:[%s2401 + $0x18] sm:$0xf]
                %2416 = vst [vmem:[%s2402 + $0x48] sm:$0xf] %v2415
                %v2417 = vld [vmem:[%s2401 + $0x1c] sm:$0xf]
                %2418 = vst [vmem:[%s2402 + $0x54] sm:$0xf] %v2417
              $region98: #{card_classifier_forward.4} parent=92 // loop_footer
                %s2400 = sadd.s32 1, %s2396
              $region99: #{card_classifier_forward.4} parent=92 // loop_footer_branch
                %2395 = sbr.rel target = $region95
              $region100: #{card_classifier_forward.4} parent=92 // loop_exit
                _
            $region93: #{card_classifier_forward.4} parent=84 // pred_fallthru
              _
          $region85: #{card_classifier_forward.4} parent=80 // pred_fallthru
            _
          %2454 = vnop
        $region81: #{card_classifier_forward.4} parent=72 // pred_fallthru
          _
      $region73: #{card_classifier_forward.4} parent=5 // pred_fallthru
        _
      %p2455 = scmp.le.s32.totalorder 2, %s10
      // Predicated region
      $region119: #{card_classifier_forward.4} parent=5 // pred_check
        %p2456 = pneg %p2455
      $region120: #{card_classifier_forward.4} parent=5 // pred_check_branch
        %2458 = sbr.rel (%p2456) target = $region122
      $region121: #{card_classifier_forward.4} parent=5 // pred_region
        %s2459 = ssub.s32 %s10, 2
        // Predicated region
        $region123: #{card_classifier_forward.4} parent=121 // pred_check
          %p2460 = pneg %p157
        $region124: #{card_classifier_forward.4} parent=121 // pred_check_branch
          %2462 = sbr.rel (%p2460) target = $region126
        $region125: #{card_classifier_forward.4} parent=121 // pred_region
          %s2463 = sand.u32 %s142, 1
          %s2464 = sand.u32 %s142, 1
          %s2465 = smul.addr %s2464, 32
          %s2466 = scalar_lea.vmem [#allocation3], %s2465
        $region126: #{card_classifier_forward.4} parent=121 // pred_fallthru
          _
      $region122: #{card_classifier_forward.4} parent=5 // pred_fallthru
        _
    $region6: #{card_classifier_forward.4} parent=1 // loop_footer
      %s14 = sadd.s32 1, %s10
    $region7: #{card_classifier_forward.4} parent=1 // loop_footer_branch
      %9 = sbr.rel target = $region3
    $region8: #{card_classifier_forward.4} parent=1 // loop_exit
      _

// kernel: card_classifier_forward.3
$region0: #{card_classifier_forward.3}
  #allocation0 [shape = 'u32[]', space=smem, size = 0x4, offset = 0x4, fixed_abs, tag = 'smem constant byte address 0x4 - core index']
  #allocation1 [shape = 'u32[144,128]{1,0:T(1,128)}', space=vmem, size = 0x12000, scoped, tag = 'internal scratch']
  %s0 = inlined_call_operand.vmem [shape: bf16[2,17,2,17,256], index: 0, kind: input, shape index: {}]
  %s1 = inlined_call_operand.vmem [shape: bf16[1152,128], index: 1, kind: input, shape index: {}]
  %s2 = inlined_call_operand.vmem [shape: f32[1,128], index: 2, kind: input, shape index: {}]
  %s3 = inlined_call_operand.vmem [shape: f32[1,128], index: 3, kind: input, shape index: {}]
  %s4 = inlined_call_operand.vmem [shape: bf16[2,16,16,128], index: 4, kind: output, shape index: {}]
  %s5 = sld [smem:[#allocation0]]
  $region49: #{card_classifier_forward.3} parent=0
    _
  %s7 = ssub.s32 1, %s5
  %s8 = scalar_select 0, %s7, %s5
  loop: start=0, step=1, limit=4
  $region2: #{card_classifier_forward.3} parent=0 // loop_pre_header
    _
  $region3: #{card_classifier_forward.3} parent=0 // loop_header
    %s10 = sphi 0, %s14
    %p11 = scmp.ge.s32.totalorder %s10, 4
    %s17 = sphi 0, %s29
    %s18 = sphi 0, %s25
    %s19 = sphi 0, %s17
    %s20 = sphi 0, %s18
    %s21 = sphi 0, %s19
    %s22 = sphi 0, %s20
    %s32 = sphi 0, %s34
    %s35 = sphi 0, %s32
    %s36 = sphi 0, %s35
    %s52 = sphi 0, %s36
    %s58 = sphi 0, %s60
    %s61 = sphi 0, %s58
    %s62 = sphi 0, %s61
    %s78 = sphi 0, %s62
    %s84 = sphi 0, %s86
    %s87 = sphi 0, %s84
    %s88 = sphi 0, %s87
    %s104 = sphi 0, %s88
    %s110 = sphi 0, %s112
    %s113 = sphi 0, %s110
    %s114 = sphi 0, %s113
    %s130 = sphi 0, %s114
    %s138 = sphi 0, %s140
    %s141 = sphi 0, %s138
    %s142 = sphi 0, %s141
    %s158 = sphi 0, %s142
  $region4: #{card_classifier_forward.3} parent=0 // loop_header_branch
    %13 = sbr.rel (%p11) target = $region8
  $region5: #{card_classifier_forward.3} parent=0 // loop_body
    %s15 = ssub.s32 %s10, 1
    %s16 = ssub.s32 %s10, 2
    %s23 = sadd.s32 1, %s18
    %p24 = scmp.ge.s32.totalorder %s23, 1
    %s25 = scalar_select %p24, 0, %s23
    %s26 = sadd.s32 1, %s17
    %s27 = scalar_select %p24, %s26, %s17
    %p28 = scmp.ge.s32.totalorder %s27, 2
    %s29 = scalar_select %p28, 0, %s27
    %s30 = ssub.s32 %s17, %s29
    %p31 = scmp.eq.s32.totalorder %s30, 0
    %s33 = sadd.s32 %s32, 1
    %s34 = scalar_select %p31, %s32, %s33
    %p37 = pneg %p31
    %p38 = scmp.eq.s32.totalorder %s10, 1
    %p39 = por %p37, %p38
    %p40 = scmp.ne.s32.totalorder %s32, %s35
    %p41 = scmp.eq.s32.totalorder %s10, 0
    %p42 = por %p40, %p41
    %p43 = scmp.ne.s32.totalorder %s32, %s35
    %p44 = scmp.eq.s32.totalorder %s15, 1
    %p45 = por %p43, %p44
    %p46 = scmp.ne.s32.totalorder %s35, %s36
    %p47 = scmp.eq.s32.totalorder %s15, 0
    %p48 = por %p46, %p47
    %p49 = scmp.ne.s32.totalorder %s35, %s36
    %p50 = scmp.eq.s32.totalorder %s16, 1
    %p51 = por %p49, %p50
    %p53 = scmp.ne.s32.totalorder %s36, %s52
    %p54 = scmp.eq.s32.totalorder %s16, 0
    %p55 = por %p53, %p54
    %s56 = ssub.s32 %s18, %s25
    %p57 = scmp.eq.s32.totalorder %s56, 0
    %s59 = sadd.s32 %s58, 1
    %s60 = scalar_select %p57, %s58, %s59
    %p63 = pneg %p57
    %p64 = scmp.eq.s32.totalorder %s10, 1
    %p65 = por %p63, %p64
    %p66 = scmp.ne.s32.totalorder %s58, %s61
    %p67 = scmp.eq.s32.totalorder %s10, 0
    %p68 = por %p66, %p67
    %p69 = scmp.ne.s32.totalorder %s58, %s61
    %p70 = scmp.eq.s32.totalorder %s15, 1
    %p71 = por %p69, %p70
    %p72 = scmp.ne.s32.totalorder %s61, %s62
    %p73 = scmp.eq.s32.totalorder %s15, 0
    %p74 = por %p72, %p73
    %p75 = scmp.ne.s32.totalorder %s61, %s62
    %p76 = scmp.eq.s32.totalorder %s16, 1
    %p77 = por %p75, %p76
    %p79 = scmp.ne.s32.totalorder %s62, %s78
    %p80 = scmp.eq.s32.totalorder %s16, 0
    %p81 = por %p79, %p80
    %s82 = ssub.s32 %s18, %s25
    %p83 = scmp.eq.s32.totalorder %s82, 0
    %s85 = sadd.s32 %s84, 1
    %s86 = scalar_select %p83, %s84, %s85
    %p89 = pneg %p83
    %p90 = scmp.eq.s32.totalorder %s10, 1
    %p91 = por %p89, %p90
    %p92 = scmp.ne.s32.totalorder %s84, %s87
    %p93 = scmp.eq.s32.totalorder %s10, 0
    %p94 = por %p92, %p93
    %p95 = scmp.ne.s32.totalorder %s84, %s87
    %p96 = scmp.eq.s32.totalorder %s15, 1
    %p97 = por %p95, %p96
    %p98 = scmp.ne.s32.totalorder %s87, %s88
    %p99 = scmp.eq.s32.totalorder %s15, 0
    %p100 = por %p98, %p99
    %p101 = scmp.ne.s32.totalorder %s87, %s88
    %p102 = scmp.eq.s32.totalorder %s16, 1
    %p103 = por %p101, %p102
    %p105 = scmp.ne.s32.totalorder %s88, %s104
    %p106 = scmp.eq.s32.totalorder %s16, 0
    %p107 = por %p105, %p106
    %s108 = ssub.s32 %s18, %s25
    %p109 = scmp.eq.s32.totalorder %s108, 0
    %s111 = sadd.s32 %s110, 1
    %s112 = scalar_select %p109, %s110, %s111
    %p115 = pneg %p109
    %p116 = scmp.eq.s32.totalorder %s10, 1
    %p117 = por %p115, %p116
    %p118 = scmp.ne.s32.totalorder %s110, %s113
    %p119 = scmp.eq.s32.totalorder %s10, 0
    %p120 = por %p118, %p119
    %p121 = scmp.ne.s32.totalorder %s110, %s113
    %p122 = scmp.eq.s32.totalorder %s15, 1
    %p123 = por %p121, %p122
    %p124 = scmp.ne.s32.totalorder %s113, %s114
    %p125 = scmp.eq.s32.totalorder %s15, 0
    %p126 = por %p124, %p125
    %p127 = scmp.ne.s32.totalorder %s113, %s114
    %p128 = scmp.eq.s32.totalorder %s16, 1
    %p129 = por %p127, %p128
    %p131 = scmp.ne.s32.totalorder %s114, %s130
    %p132 = scmp.eq.s32.totalorder %s16, 0
    %p133 = por %p131, %p132
    %s134 = ssub.s32 %s17, %s29
    %s135 = ssub.s32 %s18, %s25
    %s136 = sor.u32 %s134, %s135
    %p137 = scmp.eq.s32.totalorder %s136, 0
    %s139 = sadd.s32 %s138, 1
    %s140 = scalar_select %p137, %s138, %s139
    %p143 = pneg %p137
    %p144 = scmp.eq.s32.totalorder %s10, 1
    %p145 = por %p143, %p144
    %p146 = scmp.ne.s32.totalorder %s138, %s141
    %p147 = scmp.eq.s32.totalorder %s10, 0
    %p148 = por %p146, %p147
    %p149 = scmp.ne.s32.totalorder %s138, %s141
    %p150 = scmp.eq.s32.totalorder %s15, 1
    %p151 = por %p149, %p150
    %p152 = scmp.ne.s32.totalorder %s141, %s142
    %p153 = scmp.eq.s32.totalorder %s15, 0
    %p154 = por %p152, %p153
    %p155 = scmp.ne.s32.totalorder %s141, %s142
    %p156 = scmp.eq.s32.totalorder %s16, 1
    %p157 = por %p155, %p156
    %p159 = scmp.ne.s32.totalorder %s142, %s158
    %p160 = scmp.eq.s32.totalorder %s16, 0
    %p161 = por %p159, %p160
    %p162 = scmp.le.s32.totalorder 1, %s10
    %p163 = scmp.lt.s32.totalorder %s10, 3
    %p164 = pnand %p162, %p163
    %p165 = pneg %p164
    // Predicated region
    $region9: #{card_classifier_forward.3} parent=5 // pred_check
      _
    $region10: #{card_classifier_forward.3} parent=5 // pred_check_branch
      %167 = sbr.rel (%p164) target = $region12
    $region11: #{card_classifier_forward.3} parent=5 // pred_region
      %s168 = ssub.s32 %s10, 1
      // Predicated region
      $region13: #{card_classifier_forward.3} parent=11 // pred_check
        %p169 = pneg %p74
      $region14: #{card_classifier_forward.3} parent=11 // pred_check_branch
        %171 = sbr.rel (%p169) target = $region16
      $region15: #{card_classifier_forward.3} parent=11 // pred_region
        %p172 = scmp.lt.s32.totalorder %s20, 0
        %s173 = scalar_select %p172, %s20, 0
        %s174 = smul.addr %s173, 4
        %s175 = scalar_lea.vmem %s1, %s174
      $region16: #{card_classifier_forward.3} parent=11 // pred_fallthru
        _
      // Predicated region
      $region17: #{card_classifier_forward.3} parent=11 // pred_check
        %p176 = pneg %p100
      $region18: #{card_classifier_forward.3} parent=11 // pred_check_branch
        %178 = sbr.rel (%p176) target = $region20
      $region19: #{card_classifier_forward.3} parent=11 // pred_region
        %p179 = scmp.lt.s32.totalorder %s20, 0
        %s180 = scalar_select %p179, %s20, 0
        %s181 = scalar_lea.vmem %s2, %s180
      $region20: #{card_classifier_forward.3} parent=11 // pred_fallthru
        _
      // Predicated region
      $region21: #{card_classifier_forward.3} parent=11 // pred_check
        %p182 = pneg %p126
      $region22: #{card_classifier_forward.3} parent=11 // pred_check_branch
        %184 = sbr.rel (%p182) target = $region24
      $region23: #{card_classifier_forward.3} parent=11 // pred_region
        %p185 = scmp.lt.s32.totalorder %s20, 0
        %s186 = scalar_select %p185, %s20, 0
        %s187 = scalar_lea.vmem %s3, %s186
      $region24: #{card_classifier_forward.3} parent=11 // pred_fallthru
        _
    $region12: #{card_classifier_forward.3} parent=5 // pred_fallthru
      _
    %p188 = scmp.lt.s32.totalorder %s10, 2
    // Predicated region
    $region25: #{card_classifier_forward.3} parent=5 // pred_check
      %p189 = pneg %p188
    $region26: #{card_classifier_forward.3} parent=5 // pred_check_branch
      %191 = sbr.rel (%p189) target = $region28
    $region27: #{card_classifier_forward.3} parent=5 // pred_region
      // Predicated region
      $region29: #{card_classifier_forward.3} parent=27 // pred_check
        %p192 = pneg %p42
      $region30: #{card_classifier_forward.3} parent=27 // pred_check_branch
        %194 = sbr.rel (%p192) target = $region32
      $region31: #{card_classifier_forward.3} parent=27 // pred_region
        %p195 = scmp.lt.s32.totalorder %s17, 1
        %s196 = scalar_select %p195, %s17, 1
        %s197 = smul.addr %s196, 204
        %s198 = smul.addr %s197, 4
        %s199 = scalar_lea.vmem %s0, %s198
      $region32: #{card_classifier_forward.3} parent=27 // pred_fallthru
        _
    $region28: #{card_classifier_forward.3} parent=5 // pred_fallthru
      _
    %p200 = scmp.le.s32.totalorder 1, %s10
    %p201 = scmp.lt.s32.totalorder %s10, 3
    %p202 = pnand %p200, %p201
    %p203 = pneg %p202
    // Predicated region
    $region33: #{card_classifier_forward.3} parent=5 // pred_check
      _
    $region34: #{card_classifier_forward.3} parent=5 // pred_check_branch
      %205 = sbr.rel (%p202) target = $region36
    $region35: #{card_classifier_forward.3} parent=5 // pred_region
      %s206 = ssub.s32 %s10, 1
      %p207 = scmp.lt.s32.totalorder %s19, 1
      %s208 = scalar_select %p207, %s19, 1
      %s209 = smul.addr %s208, 204
      %s210 = smul.addr %s209, 4
      %s211 = scalar_lea.vmem %s0, %s210
      %p212 = pneg %p48
      %p213 = pneg %p45
      %p214 = scmp.lt.s32.totalorder %s20, 0
      %s215 = scalar_select %p214, %s20, 0
      %s216 = smul.addr %s215, 4
      %s217 = scalar_lea.vmem %s1, %s216
      %p218 = pneg %p74
      %p219 = pneg %p71
      %p220 = scmp.lt.s32.totalorder %s20, 0
      %s221 = scalar_select %p220, %s20, 0
      %s222 = scalar_lea.vmem %s2, %s221
      %p223 = pneg %p100
      %p224 = pneg %p97
      %p225 = scmp.lt.s32.totalorder %s20, 0
      %s226 = scalar_select %p225, %s20, 0
      %s227 = scalar_lea.vmem %s3, %s226
      %p228 = pneg %p126
      %p229 = pneg %p123
      %p230 = pneg %p154
      %p231 = pneg %p151
      %p232 = scmp.lt.s32.totalorder %s19, 1
      %s233 = scalar_select %p232, %s19, 1
      %p234 = scmp.lt.s32.totalorder %s20, 0
      %s235 = scalar_select %p234, %s20, 0
      %s236 = smul.addr %s233, 32
      %s237 = sadd.s32 %s235, %s236
      %s238 = smul.addr %s237, 4
      %s239 = scalar_lea.vmem %s4, %s238
      %p240 = scmp.lt.s32.totalorder %s19, 1
      %s241 = scalar_select %p240, %s19, 1
      %s242 = smul.addr %s241, 204
      %s243 = smul.addr %s242, 4
      %s244 = scalar_lea.vmem %s0, %s243
      %p245 = scmp.lt.s32.totalorder %s20, 0
      %s246 = scalar_select %p245, %s20, 0
      %s247 = smul.addr %s246, 4
      %s248 = scalar_lea.vmem %s1, %s247
      %p249 = scmp.lt.s32.totalorder %s20, 0
      %s250 = scalar_select %p249, %s20, 0
      %s251 = scalar_lea.vmem %s2, %s250
      %p252 = scmp.lt.s32.totalorder %s20, 0
      %s253 = scalar_select %p252, %s20, 0
      %s254 = scalar_lea.vmem %s3, %s253
      %p255 = scmp.lt.s32.totalorder %s19, 1
      %s256 = scalar_select %p255, %s19, 1
      %p257 = scmp.lt.s32.totalorder %s20, 0
      %s258 = scalar_select %p257, %s20, 0
      %s259 = smul.addr %s256, 32
      %s260 = sadd.s32 %s258, %s259
      %s261 = smul.addr %s260, 4
      %s262 = scalar_lea.vmem %s4, %s261
      %v264 = vld [vmem:[%s244] sm:$0xf]
      %v265 = vld [vmem:[%s244 + $0x8] sm:$0xf]
      %v266 = vld [vmem:[%s244 + $0x30] sm:$0xf]
      %v267 = vld [vmem:[%s244 + $0x38] sm:$0xf]
      %v268 = vld [vmem:[%s244 + $0x60] sm:$0xf]
      %v269 = vld [vmem:[%s244 + $0x68] sm:$0xf]
      %v270 = vld [vmem:[%s244 + $0x90] sm:$0xf]
      %v271 = vld [vmem:[%s244 + $0x98] sm:$0xf]
      %v272 = vld [vmem:[%s244 + $0xc0] sm:$0xf]
      %v273 = vld [vmem:[%s244 + $0xc8] sm:$0xf]
      %v274 = vld [vmem:[%s244 + $0xf0] sm:$0xf]
      %v275 = vld [vmem:[%s244 + $0xf8] sm:$0xf]
      %v276 = vld [vmem:[%s244 + $0x120] sm:$0xf]
      %v277 = vld [vmem:[%s244 + $0x128] sm:$0xf]
      %v278 = vld [vmem:[%s244 + $0x150] sm:$0xf]
      %v279 = vld [vmem:[%s244 + $0x158] sm:$0xf]
      %v280 = vld [vmem:[%s244 + $0x180] sm:$0xf]
      %v281 = vld [vmem:[%s244 + $0x188] sm:$0xf]
      %v282 = vld [vmem:[%s244 + $0x1b0] sm:$0xf]
      %v283 = vld [vmem:[%s244 + $0x1b8] sm:$0xf]
      %v284 = vld [vmem:[%s244 + $0x1e0] sm:$0xf]
      %v285 = vld [vmem:[%s244 + $0x1e8] sm:$0xf]
      %v286 = vld [vmem:[%s244 + $0x210] sm:$0xf]
      %v287 = vld [vmem:[%s244 + $0x218] sm:$0xf]
      %v288 = vld [vmem:[%s244 + $0x240] sm:$0xf]
      %v289 = vld [vmem:[%s244 + $0x248] sm:$0xf]
      %v290 = vld [vmem:[%s244 + $0x270] sm:$0xf]
      %v291 = vld [vmem:[%s244 + $0x278] sm:$0xf]
      %v292 = vld [vmem:[%s244 + $0x2a0] sm:$0xf]
      %v293 = vld [vmem:[%s244 + $0x2a8] sm:$0xf]
      %v294 = vld [vmem:[%s244 + $0x2d0] sm:$0xf]
      %v295 = vld [vmem:[%s244 + $0x2d8] sm:$0xf]
      %v296 = vld [vmem:[%s244 + $0x4] sm:$0xf]
      %v297 = vld [vmem:[%s244 + $0xc] sm:$0xf]
      %v298 = vld [vmem:[%s244 + $0x34] sm:$0xf]
      %v299 = vld [vmem:[%s244 + $0x3c] sm:$0xf]
      %v300 = vld [vmem:[%s244 + $0x64] sm:$0xf]
      %v301 = vld [vmem:[%s244 + $0x6c] sm:$0xf]
      %v302 = vld [vmem:[%s244 + $0x94] sm:$0xf]
      %v303 = vld [vmem:[%s244 + $0x9c] sm:$0xf]
      %v304 = vld [vmem:[%s244 + $0xc4] sm:$0xf]
      %v305 = vld [vmem:[%s244 + $0xcc] sm:$0xf]
      %v306 = vld [vmem:[%s244 + $0xf4] sm:$0xf]
      %v307 = vld [vmem:[%s244 + $0xfc] sm:$0xf]
      %v308 = vld [vmem:[%s244 + $0x124] sm:$0xf]
      %v309 = vld [vmem:[%s244 + $0x12c] sm:$0xf]
      %v310 = vld [vmem:[%s244 + $0x154] sm:$0xf]
      %v311 = vld [vmem:[%s244 + $0x15c] sm:$0xf]
      %v312 = vld [vmem:[%s244 + $0x184] sm:$0xf]
      %v313 = vld [vmem:[%s244 + $0x18c] sm:$0xf]
      %v314 = vld [vmem:[%s244 + $0x1b4] sm:$0xf]
      %v315 = vld [vmem:[%s244 + $0x1bc] sm:$0xf]
      %v316 = vld [vmem:[%s244 + $0x1e4] sm:$0xf]
      %v317 = vld [vmem:[%s244 + $0x1ec] sm:$0xf]
      %v318 = vld [vmem:[%s244 + $0x214] sm:$0xf]
      %v319 = vld [vmem:[%s244 + $0x21c] sm:$0xf]
      %v320 = vld [vmem:[%s244 + $0x244] sm:$0xf]
      %v321 = vld [vmem:[%s244 + $0x24c] sm:$0xf]
      %v322 = vld [vmem:[%s244 + $0x274] sm:$0xf]
      %v323 = vld [vmem:[%s244 + $0x27c] sm:$0xf]
      %v324 = vld [vmem:[%s244 + $0x2a4] sm:$0xf]
      %v325 = vld [vmem:[%s244 + $0x2ac] sm:$0xf]
      %v326 = vld [vmem:[%s244 + $0x2d4] sm:$0xf]
      %v327 = vld [vmem:[%s244 + $0x2dc] sm:$0xf]
      %v328 = vld [vmem:[%s244 + $0x10] sm:$0x1]
      %v329 = vld [vmem:[%s244 + $0x40] sm:$0x1]
      %v330 = vld [vmem:[%s244 + $0x70] sm:$0x1]
      %v331 = vld [vmem:[%s244 + $0xa0] sm:$0x1]
      %v332 = vld [vmem:[%s244 + $0xd0] sm:$0x1]
      %v333 = vld [vmem:[%s244 + $0x100] sm:$0x1]
      %v334 = vld [vmem:[%s244 + $0x130] sm:$0x1]
      %v335 = vld [vmem:[%s244 + $0x160] sm:$0x1]
      %v336 = vld [vmem:[%s244 + $0x190] sm:$0x1]
      %v337 = vld [vmem:[%s244 + $0x1c0] sm:$0x1]
      %v338 = vld [vmem:[%s244 + $0x1f0] sm:$0x1]
      %v339 = vld [vmem:[%s244 + $0x220] sm:$0x1]
      %v340 = vld [vmem:[%s244 + $0x250] sm:$0x1]
      %v341 = vld [vmem:[%s244 + $0x280] sm:$0x1]
      %v342 = vld [vmem:[%s244 + $0x2b0] sm:$0x1]
      %v343 = vld [vmem:[%s244 + $0x2e0] sm:$0x1]
      %s344 = scalar_lea.vmem %s244, 24
      %v345 = vld [vmem:[%s344] sm:$0xf]
      %v346 = vld [vmem:[%s344 + $0x8] sm:$0xf]
      %v347 = vld [vmem:[%s344 + $0x30] sm:$0xf]
      %v348 = vld [vmem:[%s344 + $0x38] sm:$0xf]
      %v349 = vld [vmem:[%s344 + $0x60] sm:$0xf]
      %v350 = vld [vmem:[%s344 + $0x68] sm:$0xf]
      %v351 = vld [vmem:[%s344 + $0x90] sm:$0xf]
      %v352 = vld [vmem:[%s344 + $0x98] sm:$0xf]
      %v353 = vld [vmem:[%s344 + $0xc0] sm:$0xf]
      %v354 = vld [vmem:[%s344 + $0xc8] sm:$0xf]
      %v355 = vld [vmem:[%s344 + $0xf0] sm:$0xf]
      %v356 = vld [vmem:[%s344 + $0xf8] sm:$0xf]
      %v357 = vld [vmem:[%s344 + $0x120] sm:$0xf]
      %v358 = vld [vmem:[%s344 + $0x128] sm:$0xf]
      %v359 = vld [vmem:[%s344 + $0x150] sm:$0xf]
      %v360 = vld [vmem:[%s344 + $0x158] sm:$0xf]
      %v361 = vld [vmem:[%s344 + $0x180] sm:$0xf]
      %v362 = vld [vmem:[%s344 + $0x188] sm:$0xf]
      %v363 = vld [vmem:[%s344 + $0x1b0] sm:$0xf]
      %v364 = vld [vmem:[%s344 + $0x1b8] sm:$0xf]
      %v365 = vld [vmem:[%s344 + $0x1e0] sm:$0xf]
      %v366 = vld [vmem:[%s344 + $0x1e8] sm:$0xf]
      %v367 = vld [vmem:[%s344 + $0x210] sm:$0xf]
      %v368 = vld [vmem:[%s344 + $0x218] sm:$0xf]
      %v369 = vld [vmem:[%s344 + $0x240] sm:$0xf]
      %v370 = vld [vmem:[%s344 + $0x248] sm:$0xf]
      %v371 = vld [vmem:[%s344 + $0x270] sm:$0xf]
      %v372 = vld [vmem:[%s344 + $0x278] sm:$0xf]
      %v373 = vld [vmem:[%s344 + $0x2a0] sm:$0xf]
      %v374 = vld [vmem:[%s344 + $0x2a8] sm:$0xf]
      %v375 = vld [vmem:[%s344 + $0x2d0] sm:$0xf]
      %v376 = vld [vmem:[%s344 + $0x2d8] sm:$0xf]
      %v377 = vld [vmem:[%s344 + $0x4] sm:$0xf]
      %v378 = vld [vmem:[%s344 + $0xc] sm:$0xf]
      %v379 = vld [vmem:[%s344 + $0x34] sm:$0xf]
      %v380 = vld [vmem:[%s344 + $0x3c] sm:$0xf]
      %v381 = vld [vmem:[%s344 + $0x64] sm:$0xf]
      %v382 = vld [vmem:[%s344 + $0x6c] sm:$0xf]
      %v383 = vld [vmem:[%s344 + $0x94] sm:$0xf]
      %v384 = vld [vmem:[%s344 + $0x9c] sm:$0xf]
      %v385 = vld [vmem:[%s344 + $0xc4] sm:$0xf]
      %v386 = vld [vmem:[%s344 + $0xcc] sm:$0xf]
      %v387 = vld [vmem:[%s344 + $0xf4] sm:$0xf]
      %v388 = vld [vmem:[%s344 + $0xfc] sm:$0xf]
      %v389 = vld [vmem:[%s344 + $0x124] sm:$0xf]
      %v390 = vld [vmem:[%s344 + $0x12c] sm:$0xf]
      %v391 = vld [vmem:[%s344 + $0x154] sm:$0xf]
      %v392 = vld [vmem:[%s344 + $0x15c] sm:$0xf]
      %v393 = vld [vmem:[%s344 + $0x184] sm:$0xf]
      %v394 = vld [vmem:[%s344 + $0x18c] sm:$0xf]
      %v395 = vld [vmem:[%s344 + $0x1b4] sm:$0xf]
      %v396 = vld [vmem:[%s344 + $0x1bc] sm:$0xf]
      %v397 = vld [vmem:[%s344 + $0x1e4] sm:$0xf]
      %v398 = vld [vmem:[%s344 + $0x1ec] sm:$0xf]
      %v399 = vld [vmem:[%s344 + $0x214] sm:$0xf]
      %v400 = vld [vmem:[%s344 + $0x21c] sm:$0xf]
      %v401 = vld [vmem:[%s344 + $0x244] sm:$0xf]
      %v402 = vld [vmem:[%s344 + $0x24c] sm:$0xf]
      %v403 = vld [vmem:[%s344 + $0x274] sm:$0xf]
      %v404 = vld [vmem:[%s344 + $0x27c] sm:$0xf]
      %v405 = vld [vmem:[%s344 + $0x2a4] sm:$0xf]
      %v406 = vld [vmem:[%s344 + $0x2ac] sm:$0xf]
      %v407 = vld [vmem:[%s344 + $0x2d4] sm:$0xf]
      %v408 = vld [vmem:[%s344 + $0x2dc] sm:$0xf]
      %v409 = vld [vmem:[%s344 + $0x10] sm:$0x1]
      %v410 = vld [vmem:[%s344 + $0x40] sm:$0x1]
      %v411 = vld [vmem:[%s344 + $0x70] sm:$0x1]
      %v412 = vld [vmem:[%s344 + $0xa0] sm:$0x1]
      %v413 = vld [vmem:[%s344 + $0xd0] sm:$0x1]
      %v414 = vld [vmem:[%s344 + $0x100] sm:$0x1]
      %v415 = vld [vmem:[%s344 + $0x130] sm:$0x1]
      %v416 = vld [vmem:[%s344 + $0x160] sm:$0x1]
      %v417 = vld [vmem:[%s344 + $0x190] sm:$0x1]
      %v418 = vld [vmem:[%s344 + $0x1c0] sm:$0x1]
      %v419 = vld [vmem:[%s344 + $0x1f0] sm:$0x1]
      %v420 = vld [vmem:[%s344 + $0x220] sm:$0x1]
      %v421 = vld [vmem:[%s344 + $0x250] sm:$0x1]
      %v422 = vld [vmem:[%s344 + $0x280] sm:$0x1]
      %v423 = vld [vmem:[%s344 + $0x2b0] sm:$0x1]
      %v424 = vld [vmem:[%s344 + $0x2e0] sm:$0x1]
      %s425 = scalar_lea.vmem %s244, 48
      %v426 = vld [vmem:[%s425] sm:$0xf]
      %v427 = vld [vmem:[%s425 + $0x8] sm:$0xf]
      %v428 = vld [vmem:[%s425 + $0x30] sm:$0xf]
      %v429 = vld [vmem:[%s425 + $0x38] sm:$0xf]
      %v430 = vld [vmem:[%s425 + $0x60] sm:$0xf]
      %v431 = vld [vmem:[%s425 + $0x68] sm:$0xf]
      %v432 = vld [vmem:[%s425 + $0x90] sm:$0xf]
      %v433 = vld [vmem:[%s425 + $0x98] sm:$0xf]
      %v434 = vld [vmem:[%s425 + $0xc0] sm:$0xf]
      %v435 = vld [vmem:[%s425 + $0xc8] sm:$0xf]
      %v436 = vld [vmem:[%s425 + $0xf0] sm:$0xf]
      %v437 = vld [vmem:[%s425 + $0xf8] sm:$0xf]
      %v438 = vld [vmem:[%s425 + $0x120] sm:$0xf]
      %v439 = vld [vmem:[%s425 + $0x128] sm:$0xf]
      %v440 = vld [vmem:[%s425 + $0x150] sm:$0xf]
      %v441 = vld [vmem:[%s425 + $0x158] sm:$0xf]
      %v442 = vld [vmem:[%s425 + $0x180] sm:$0xf]
      %v443 = vld [vmem:[%s425 + $0x188] sm:$0xf]
      %v444 = vld [vmem:[%s425 + $0x1b0] sm:$0xf]
      %v445 = vld [vmem:[%s425 + $0x1b8] sm:$0xf]
      %v446 = vld [vmem:[%s425 + $0x1e0] sm:$0xf]
      %v447 = vld [vmem:[%s425 + $0x1e8] sm:$0xf]
      %v448 = vld [vmem:[%s425 + $0x210] sm:$0xf]
      %v449 = vld [vmem:[%s425 + $0x218] sm:$0xf]
      %v450 = vld [vmem:[%s425 + $0x240] sm:$0xf]
      %v451 = vld [vmem:[%s425 + $0x248] sm:$0xf]
      %v452 = vld [vmem:[%s425 + $0x270] sm:$0xf]
      %v453 = vld [vmem:[%s425 + $0x278] sm:$0xf]
      %v454 = vld [vmem:[%s425 + $0x2a0] sm:$0xf]
      %v455 = vld [vmem:[%s425 + $0x2a8] sm:$0xf]
      %v456 = vld [vmem:[%s425 + $0x2d0] sm:$0xf]
      %v457 = vld [vmem:[%s425 + $0x2d8] sm:$0xf]
      %v458 = vld [vmem:[%s425 + $0x4] sm:$0xf]
      %v459 = vld [vmem:[%s425 + $0xc] sm:$0xf]
      %v460 = vld [vmem:[%s425 + $0x34] sm:$0xf]
      %v461 = vld [vmem:[%s425 + $0x3c] sm:$0xf]
      %v462 = vld [vmem:[%s425 + $0x64] sm:$0xf]
      %v463 = vld [vmem:[%s425 + $0x6c] sm:$0xf]
      %v464 = vld [vmem:[%s425 + $0x94] sm:$0xf]
      %v465 = vld [vmem:[%s425 + $0x9c] sm:$0xf]
      %v466 = vld [vmem:[%s425 + $0xc4] sm:$0xf]
      %v467 = vld [vmem:[%s425 + $0xcc] sm:$0xf]
      %v468 = vld [vmem:[%s425 + $0xf4] sm:$0xf]
      %v469 = vld [vmem:[%s425 + $0xfc] sm:$0xf]
      %v470 = vld [vmem:[%s425 + $0x124] sm:$0xf]
      %v471 = vld [vmem:[%s425 + $0x12c] sm:$0xf]
      %v472 = vld [vmem:[%s425 + $0x154] sm:$0xf]
      %v473 = vld [vmem:[%s425 + $0x15c] sm:$0xf]
      %v474 = vld [vmem:[%s425 + $0x184] sm:$0xf]
      %v475 = vld [vmem:[%s425 + $0x18c] sm:$0xf]
      %v476 = vld [vmem:[%s425 + $0x1b4] sm:$0xf]
      %v477 = vld [vmem:[%s425 + $0x1bc] sm:$0xf]
      %v478 = vld [vmem:[%s425 + $0x1e4] sm:$0xf]
      %v479 = vld [vmem:[%s425 + $0x1ec] sm:$0xf]
      %v480 = vld [vmem:[%s425 + $0x214] sm:$0xf]
      %v481 = vld [vmem:[%s425 + $0x21c] sm:$0xf]
      %v482 = vld [vmem:[%s425 + $0x244] sm:$0xf]
      %v483 = vld [vmem:[%s425 + $0x24c] sm:$0xf]
      %v484 = vld [vmem:[%s425 + $0x274] sm:$0xf]
      %v485 = vld [vmem:[%s425 + $0x27c] sm:$0xf]
      %v486 = vld [vmem:[%s425 + $0x2a4] sm:$0xf]
      %v487 = vld [vmem:[%s425 + $0x2ac] sm:$0xf]
      %v488 = vld [vmem:[%s425 + $0x2d4] sm:$0xf]
      %v489 = vld [vmem:[%s425 + $0x2dc] sm:$0xf]
      %v490 = vld [vmem:[%s425 + $0x10] sm:$0x1]
      %v491 = vld [vmem:[%s425 + $0x40] sm:$0x1]
      %v492 = vld [vmem:[%s425 + $0x70] sm:$0x1]
      %v493 = vld [vmem:[%s425 + $0xa0] sm:$0x1]
      %v494 = vld [vmem:[%s425 + $0xd0] sm:$0x1]
      %v495 = vld [vmem:[%s425 + $0x100] sm:$0x1]
      %v496 = vld [vmem:[%s425 + $0x130] sm:$0x1]
      %v497 = vld [vmem:[%s425 + $0x160] sm:$0x1]
      %v498 = vld [vmem:[%s425 + $0x190] sm:$0x1]
      %v499 = vld [vmem:[%s425 + $0x1c0] sm:$0x1]
      %v500 = vld [vmem:[%s425 + $0x1f0] sm:$0x1]
      %v501 = vld [vmem:[%s425 + $0x220] sm:$0x1]
      %v502 = vld [vmem:[%s425 + $0x250] sm:$0x1]
      %v503 = vld [vmem:[%s425 + $0x280] sm:$0x1]
      %v504 = vld [vmem:[%s425 + $0x2b0] sm:$0x1]
      %v505 = vld [vmem:[%s425 + $0x2e0] sm:$0x1]
      %v538 = vunpack.c.l.b16 %v264
      %v539 = vunpack.c.l.b16 %v265
      %v540 = vunpack.c.l.b16 %v266
      %v541 = vunpack.c.l.b16 %v267
      %v542 = vunpack.c.l.b16 %v268
      %v543 = vunpack.c.l.b16 %v269
      %v544 = vunpack.c.l.b16 %v270
      %v545 = vunpack.c.l.b16 %v271
      %v546 = vunpack.c.l.b16 %v272
      %v547 = vunpack.c.l.b16 %v273
      %v548 = vunpack.c.l.b16 %v274
      %v549 = vunpack.c.l.b16 %v275
      %v550 = vunpack.c.l.b16 %v276
      %v551 = vunpack.c.l.b16 %v277
      %v552 = vunpack.c.l.b16 %v278
      %v553 = vunpack.c.l.b16 %v279
      %v554 = vunpack.c.l.b16 %v280
      %v555 = vunpack.c.l.b16 %v281
      %v556 = vunpack.c.l.b16 %v282
      %v557 = vunpack.c.l.b16 %v283
      %v558 = vunpack.c.l.b16 %v284
      %v559 = vunpack.c.l.b16 %v285
      %v560 = vunpack.c.l.b16 %v286
      %v561 = vunpack.c.l.b16 %v287
      %v562 = vunpack.c.l.b16 %v288
      %v563 = vunpack.c.l.b16 %v289
      %v564 = vunpack.c.l.b16 %v290
      %v565 = vunpack.c.l.b16 %v291
      %v566 = vunpack.c.l.b16 %v292
      %v567 = vunpack.c.l.b16 %v293
      %v568 = vunpack.c.l.b16 %v294
      %v569 = vunpack.c.l.b16 %v295
      %v570 = vpack.c.b16 %v539, %v538
      %v571 = vpack.c.b16 %v541, %v540
      %v572 = vpack.c.b16 %v543, %v542
      %v573 = vpack.c.b16 %v545, %v544
      %v574 = vpack.c.b16 %v547, %v546
      %v575 = vpack.c.b16 %v549, %v548
      %v576 = vpack.c.b16 %v551, %v550
      %v577 = vpack.c.b16 %v553, %v552
      %v578 = vpack.c.b16 %v555, %v554
      %v579 = vpack.c.b16 %v557, %v556
      %v580 = vpack.c.b16 %v559, %v558
      %v581 = vpack.c.b16 %v561, %v560
      %v582 = vpack.c.b16 %v563, %v562
      %v583 = vpack.c.b16 %v565, %v564
      %v584 = vpack.c.b16 %v567, %v566
      %v585 = vpack.c.b16 %v569, %v568
      %v634 = vunpack.c.l.b16 %v296
      %v635 = vunpack.c.l.b16 %v297
      %v636 = vunpack.c.l.b16 %v298
      %v637 = vunpack.c.l.b16 %v299
      %v638 = vunpack.c.l.b16 %v300
      %v639 = vunpack.c.l.b16 %v301
      %v640 = vunpack.c.l.b16 %v302
      %v641 = vunpack.c.l.b16 %v303
      %v642 = vunpack.c.l.b16 %v304
      %v643 = vunpack.c.l.b16 %v305
      %v644 = vunpack.c.l.b16 %v306
      %v645 = vunpack.c.l.b16 %v307
      %v646 = vunpack.c.l.b16 %v308
      %v647 = vunpack.c.l.b16 %v309
      %v648 = vunpack.c.l.b16 %v310
      %v649 = vunpack.c.l.b16 %v311
      %v650 = vunpack.c.l.b16 %v312
      %v651 = vunpack.c.l.b16 %v313
      %v652 = vunpack.c.l.b16 %v314
      %v653 = vunpack.c.l.b16 %v315
      %v654 = vunpack.c.l.b16 %v316
      %v655 = vunpack.c.l.b16 %v317
      %v656 = vunpack.c.l.b16 %v318
      %v657 = vunpack.c.l.b16 %v319
      %v658 = vunpack.c.l.b16 %v320
      %v659 = vunpack.c.l.b16 %v321
      %v660 = vunpack.c.l.b16 %v322
      %v661 = vunpack.c.l.b16 %v323
      %v662 = vunpack.c.l.b16 %v324
      %v663 = vunpack.c.l.b16 %v325
      %v664 = vunpack.c.l.b16 %v326
      %v665 = vunpack.c.l.b16 %v327
      %v666 = vpack.c.b16 %v635, %v634
      %v667 = vpack.c.b16 %v637, %v636
      %v668 = vpack.c.b16 %v639, %v638
      %v669 = vpack.c.b16 %v641, %v640
      %v670 = vpack.c.b16 %v643, %v642
      %v671 = vpack.c.b16 %v645, %v644
      %v672 = vpack.c.b16 %v647, %v646
      %v673 = vpack.c.b16 %v649, %v648
      %v674 = vpack.c.b16 %v651, %v650
      %v675 = vpack.c.b16 %v653, %v652
      %v676 = vpack.c.b16 %v655, %v654
      %v677 = vpack.c.b16 %v657, %v656
      %v678 = vpack.c.b16 %v659, %v658
      %v679 = vpack.c.b16 %v661, %v660
      %v680 = vpack.c.b16 %v663, %v662
      %v681 = vpack.c.b16 %v665, %v664
      %v714 = vunpack.c.l.b16 %v328
      %v715 = vunpack.c.l.b16 %v329
      %v716 = vunpack.c.l.b16 %v330
      %v717 = vunpack.c.l.b16 %v331
      %v718 = vunpack.c.l.b16 %v332
      %v719 = vunpack.c.l.b16 %v333
      %v720 = vunpack.c.l.b16 %v334
      %v721 = vunpack.c.l.b16 %v335
      %v722 = vunpack.c.l.b16 %v336
      %v723 = vunpack.c.l.b16 %v337
      %v724 = vunpack.c.l.b16 %v338
      %v725 = vunpack.c.l.b16 %v339
      %v726 = vunpack.c.l.b16 %v340
      %v727 = vunpack.c.l.b16 %v341
      %v728 = vunpack.c.l.b16 %v342
      %v729 = vunpack.c.l.b16 %v343
      %v730 = vpack.c.b16 %v714, %v714
      %v731 = vpack.c.b16 %v715, %v715
      %v732 = vpack.c.b16 %v716, %v716
      %v733 = vpack.c.b16 %v717, %v717
      %v734 = vpack.c.b16 %v718, %v718
      %v735 = vpack.c.b16 %v719, %v719
      %v736 = vpack.c.b16 %v720, %v720
      %v737 = vpack.c.b16 %v721, %v721
      %v738 = vpack.c.b16 %v722, %v722
      %v739 = vpack.c.b16 %v723, %v723
      %v740 = vpack.c.b16 %v724, %v724
      %v741 = vpack.c.b16 %v725, %v725
      %v742 = vpack.c.b16 %v726, %v726
      %v743 = vpack.c.b16 %v727, %v727
      %v744 = vpack.c.b16 %v728, %v728
      %v745 = vpack.c.b16 %v729, %v729
      %vm746 = vsmask.f32 7424
      %v748 = vshrl.u32 %v570, 16
      %v750 = vshll.u32 %v570, 16
      %v752 = vrot.slane %v750, 1
      %v753 = vor.u32 %v748, %v752
      %v755 = vshll.u32 %v730, 16
      %v757 = vrot.slane %v755, 1
      %v758 = vsel %vm746, %v753, %v757
      %v760 = vshrl.u32 %v571, 16
      %v762 = vshll.u32 %v571, 16
      %v764 = vrot.slane %v762, 1
      %v765 = vor.u32 %v760, %v764
      %v767 = vshll.u32 %v731, 16
      %v769 = vrot.slane %v767, 1
      %v770 = vsel %vm746, %v765, %v769
      %v772 = vshrl.u32 %v572, 16
      %v774 = vshll.u32 %v572, 16
      %v776 = vrot.slane %v774, 1
      %v777 = vor.u32 %v772, %v776
      %v779 = vshll.u32 %v732, 16
      %v781 = vrot.slane %v779, 1
      %v782 = vsel %vm746, %v777, %v781
      %v784 = vshrl.u32 %v573, 16
      %v786 = vshll.u32 %v573, 16
      %v788 = vrot.slane %v786, 1
      %v789 = vor.u32 %v784, %v788
      %v791 = vshll.u32 %v733, 16
      %v793 = vrot.slane %v791, 1
      %v794 = vsel %vm746, %v789, %v793
      %v796 = vshrl.u32 %v574, 16
      %v798 = vshll.u32 %v574, 16
      %v800 = vrot.slane %v798, 1
      %v801 = vor.u32 %v796, %v800
      %v803 = vshll.u32 %v734, 16
      %v805 = vrot.slane %v803, 1
      %v806 = vsel %vm746, %v801, %v805
      %v808 = vshrl.u32 %v575, 16
      %v810 = vshll.u32 %v575, 16
      %v812 = vrot.slane %v810, 1
      %v813 = vor.u32 %v808, %v812
      %v815 = vshll.u32 %v735, 16
      %v817 = vrot.slane %v815, 1
      %v818 = vsel %vm746, %v813, %v817
      %v820 = vshrl.u32 %v576, 16
      %v822 = vshll.u32 %v576, 16
      %v824 = vrot.slane %v822, 1
      %v825 = vor.u32 %v820, %v824
      %v827 = vshll.u32 %v736, 16
      %v829 = vrot.slane %v827, 1
      %v830 = vsel %vm746, %v825, %v829
      %v832 = vshrl.u32 %v577, 16
      %v834 = vshll.u32 %v577, 16
      %v836 = vrot.slane %v834, 1
      %v837 = vor.u32 %v832, %v836
      %v839 = vshll.u32 %v737, 16
      %v841 = vrot.slane %v839, 1
      %v842 = vsel %vm746, %v837, %v841
      %v844 = vshrl.u32 %v578, 16
      %v846 = vshll.u32 %v578, 16
      %v848 = vrot.slane %v846, 1
      %v849 = vor.u32 %v844, %v848
      %v851 = vshll.u32 %v738, 16
      %v853 = vrot.slane %v851, 1
      %v854 = vsel %vm746, %v849, %v853
      %v856 = vshrl.u32 %v579, 16
      %v858 = vshll.u32 %v579, 16
      %v860 = vrot.slane %v858, 1
      %v861 = vor.u32 %v856, %v860
      %v863 = vshll.u32 %v739, 16
      %v865 = vrot.slane %v863, 1
      %v866 = vsel %vm746, %v861, %v865
      %v868 = vshrl.u32 %v580, 16
      %v870 = vshll.u32 %v580, 16
      %v872 = vrot.slane %v870, 1
      %v873 = vor.u32 %v868, %v872
      %v875 = vshll.u32 %v740, 16
      %v877 = vrot.slane %v875, 1
      %v878 = vsel %vm746, %v873, %v877
      %v880 = vshrl.u32 %v581, 16
      %v882 = vshll.u32 %v581, 16
      %v884 = vrot.slane %v882, 1
      %v885 = vor.u32 %v880, %v884
      %v887 = vshll.u32 %v741, 16
      %v889 = vrot.slane %v887, 1
      %v890 = vsel %vm746, %v885, %v889
      %v892 = vshrl.u32 %v582, 16
      %v894 = vshll.u32 %v582, 16
      %v896 = vrot.slane %v894, 1
      %v897 = vor.u32 %v892, %v896
      %v899 = vshll.u32 %v742, 16
      %v901 = vrot.slane %v899, 1
      %v902 = vsel %vm746, %v897, %v901
      %v904 = vshrl.u32 %v583, 16
      %v906 = vshll.u32 %v583, 16
      %v908 = vrot.slane %v906, 1
      %v909 = vor.u32 %v904, %v908
      %v911 = vshll.u32 %v743, 16
      %v913 = vrot.slane %v911, 1
      %v914 = vsel %vm746, %v909, %v913
      %v916 = vshrl.u32 %v584, 16
      %v918 = vshll.u32 %v584, 16
      %v920 = vrot.slane %v918, 1
      %v921 = vor.u32 %v916, %v920
      %v923 = vshll.u32 %v744, 16
      %v925 = vrot.slane %v923, 1
      %v926 = vsel %vm746, %v921, %v925
      %v928 = vshrl.u32 %v585, 16
      %v930 = vshll.u32 %v585, 16
      %v932 = vrot.slane %v930, 1
      %v933 = vor.u32 %v928, %v932
      %v935 = vshll.u32 %v745, 16
      %v937 = vrot.slane %v935, 1
      %v938 = vsel %vm746, %v933, %v937
      %v987 = vunpack.c.l.b16 %v345
      %v988 = vunpack.c.l.b16 %v346
      %v989 = vunpack.c.l.b16 %v347
      %v990 = vunpack.c.l.b16 %v348
      %v991 = vunpack.c.l.b16 %v349
      %v992 = vunpack.c.l.b16 %v350
      %v993 = vunpack.c.l.b16 %v351
      %v994 = vunpack.c.l.b16 %v352
      %v995 = vunpack.c.l.b16 %v353
      %v996 = vunpack.c.l.b16 %v354
      %v997 = vunpack.c.l.b16 %v355
      %v998 = vunpack.c.l.b16 %v356
      %v999 = vunpack.c.l.b16 %v357
      %v1000 = vunpack.c.l.b16 %v358
      %v1001 = vunpack.c.l.b16 %v359
      %v1002 = vunpack.c.l.b16 %v360
      %v1003 = vunpack.c.l.b16 %v361
      %v1004 = vunpack.c.l.b16 %v362
      %v1005 = vunpack.c.l.b16 %v363
      %v1006 = vunpack.c.l.b16 %v364
      %v1007 = vunpack.c.l.b16 %v365
      %v1008 = vunpack.c.l.b16 %v366
      %v1009 = vunpack.c.l.b16 %v367
      %v1010 = vunpack.c.l.b16 %v368
      %v1011 = vunpack.c.l.b16 %v369
      %v1012 = vunpack.c.l.b16 %v370
      %v1013 = vunpack.c.l.b16 %v371
      %v1014 = vunpack.c.l.b16 %v372
      %v1015 = vunpack.c.l.b16 %v373
      %v1016 = vunpack.c.l.b16 %v374
      %v1017 = vunpack.c.l.b16 %v375
      %v1018 = vunpack.c.l.b16 %v376
      %v1019 = vpack.c.b16 %v988, %v987
      %v1020 = vpack.c.b16 %v990, %v989
      %v1021 = vpack.c.b16 %v992, %v991
      %v1022 = vpack.c.b16 %v994, %v993
      %v1023 = vpack.c.b16 %v996, %v995
      %v1024 = vpack.c.b16 %v998, %v997
      %v1025 = vpack.c.b16 %v1000, %v999
      %v1026 = vpack.c.b16 %v1002, %v1001
      %v1027 = vpack.c.b16 %v1004, %v1003
      %v1028 = vpack.c.b16 %v1006, %v1005
      %v1029 = vpack.c.b16 %v1008, %v1007
      %v1030 = vpack.c.b16 %v1010, %v1009
      %v1031 = vpack.c.b16 %v1012, %v1011
      %v1032 = vpack.c.b16 %v1014, %v1013
      %v1033 = vpack.c.b16 %v1016, %v1015
      %v1034 = vpack.c.b16 %v1018, %v1017
      %v1083 = vunpack.c.l.b16 %v377
      %v1084 = vunpack.c.l.b16 %v378
      %v1085 = vunpack.c.l.b16 %v379
      %v1086 = vunpack.c.l.b16 %v380
      %v1087 = vunpack.c.l.b16 %v381
      %v1088 = vunpack.c.l.b16 %v382
      %v1089 = vunpack.c.l.b16 %v383
      %v1090 = vunpack.c.l.b16 %v384
      %v1091 = vunpack.c.l.b16 %v385
      %v1092 = vunpack.c.l.b16 %v386
      %v1093 = vunpack.c.l.b16 %v387
      %v1094 = vunpack.c.l.b16 %v388
      %v1095 = vunpack.c.l.b16 %v389
      %v1096 = vunpack.c.l.b16 %v390
      %v1097 = vunpack.c.l.b16 %v391
      %v1098 = vunpack.c.l.b16 %v392
      %v1099 = vunpack.c.l.b16 %v393
      %v1100 = vunpack.c.l.b16 %v394
      %v1101 = vunpack.c.l.b16 %v395
      %v1102 = vunpack.c.l.b16 %v396
      %v1103 = vunpack.c.l.b16 %v397
      %v1104 = vunpack.c.l.b16 %v398
      %v1105 = vunpack.c.l.b16 %v399
      %v1106 = vunpack.c.l.b16 %v400
      %v1107 = vunpack.c.l.b16 %v401
      %v1108 = vunpack.c.l.b16 %v402
      %v1109 = vunpack.c.l.b16 %v403
      %v1110 = vunpack.c.l.b16 %v404
      %v1111 = vunpack.c.l.b16 %v405
      %v1112 = vunpack.c.l.b16 %v406
      %v1113 = vunpack.c.l.b16 %v407
      %v1114 = vunpack.c.l.b16 %v408
      %v1115 = vpack.c.b16 %v1084, %v1083
      %v1116 = vpack.c.b16 %v1086, %v1085
      %v1117 = vpack.c.b16 %v1088, %v1087
      %v1118 = vpack.c.b16 %v1090, %v1089
      %v1119 = vpack.c.b16 %v1092, %v1091
      %v1120 = vpack.c.b16 %v1094, %v1093
      %v1121 = vpack.c.b16 %v1096, %v1095
      %v1122 = vpack.c.b16 %v1098, %v1097
      %v1123 = vpack.c.b16 %v1100, %v1099
      %v1124 = vpack.c.b16 %v1102, %v1101
      %v1125 = vpack.c.b16 %v1104, %v1103
      %v1126 = vpack.c.b16 %v1106, %v1105
      %v1127 = vpack.c.b16 %v1108, %v1107
      %v1128 = vpack.c.b16 %v1110, %v1109
      %v1129 = vpack.c.b16 %v1112, %v1111
      %v1130 = vpack.c.b16 %v1114, %v1113
      %v1163 = vunpack.c.l.b16 %v409
      %v1164 = vunpack.c.l.b16 %v410
      %v1165 = vunpack.c.l.b16 %v411
      %v1166 = vunpack.c.l.b16 %v412
      %v1167 = vunpack.c.l.b16 %v413
      %v1168 = vunpack.c.l.b16 %v414
      %v1169 = vunpack.c.l.b16 %v415
      %v1170 = vunpack.c.l.b16 %v416
      %v1171 = vunpack.c.l.b16 %v417
      %v1172 = vunpack.c.l.b16 %v418
      %v1173 = vunpack.c.l.b16 %v419
      %v1174 = vunpack.c.l.b16 %v420
      %v1175 = vunpack.c.l.b16 %v421
      %v1176 = vunpack.c.l.b16 %v422
      %v1177 = vunpack.c.l.b16 %v423
      %v1178 = vunpack.c.l.b16 %v424
      %v1179 = vpack.c.b16 %v1163, %v1163
      %v1180 = vpack.c.b16 %v1164, %v1164
      %v1181 = vpack.c.b16 %v1165, %v1165
      %v1182 = vpack.c.b16 %v1166, %v1166
      %v1183 = vpack.c.b16 %v1167, %v1167
      %v1184 = vpack.c.b16 %v1168, %v1168
      %v1185 = vpack.c.b16 %v1169, %v1169
      %v1186 = vpack.c.b16 %v1170, %v1170
      %v1187 = vpack.c.b16 %v1171, %v1171
      %v1188 = vpack.c.b16 %v1172, %v1172
      %v1189 = vpack.c.b16 %v1173, %v1173
      %v1190 = vpack.c.b16 %v1174, %v1174
      %v1191 = vpack.c.b16 %v1175, %v1175
      %v1192 = vpack.c.b16 %v1176, %v1176
      %v1193 = vpack.c.b16 %v1177, %v1177
      %v1194 = vpack.c.b16 %v1178, %v1178
      %v1196 = vshrl.u32 %v1019, 16
      %v1198 = vshll.u32 %v1019, 16
      %v1200 = vrot.slane %v1198, 1
      %v1201 = vor.u32 %v1196, %v1200
      %v1203 = vshll.u32 %v1179, 16
      %v1205 = vrot.slane %v1203, 1
      %v1206 = vsel %vm746, %v1201, %v1205
      %v1208 = vshrl.u32 %v1020, 16
      %v1210 = vshll.u32 %v1020, 16
      %v1212 = vrot.slane %v1210, 1
      %v1213 = vor.u32 %v1208, %v1212
      %v1215 = vshll.u32 %v1180, 16
      %v1217 = vrot.slane %v1215, 1
      %v1218 = vsel %vm746, %v1213, %v1217
      %v1220 = vshrl.u32 %v1021, 16
      %v1222 = vshll.u32 %v1021, 16
      %v1224 = vrot.slane %v1222, 1
      %v1225 = vor.u32 %v1220, %v1224
      %v1227 = vshll.u32 %v1181, 16
      %v1229 = vrot.slane %v1227, 1
      %v1230 = vsel %vm746, %v1225, %v1229
      %v1232 = vshrl.u32 %v1022, 16
      %v1234 = vshll.u32 %v1022, 16
      %v1236 = vrot.slane %v1234, 1
      %v1237 = vor.u32 %v1232, %v1236
      %v1239 = vshll.u32 %v1182, 16
      %v1241 = vrot.slane %v1239, 1
      %v1242 = vsel %vm746, %v1237, %v1241
      %v1244 = vshrl.u32 %v1023, 16
      %v1246 = vshll.u32 %v1023, 16
      %v1248 = vrot.slane %v1246, 1
      %v1249 = vor.u32 %v1244, %v1248
      %v1251 = vshll.u32 %v1183, 16
      %v1253 = vrot.slane %v1251, 1
      %v1254 = vsel %vm746, %v1249, %v1253
      %v1256 = vshrl.u32 %v1024, 16
      %v1258 = vshll.u32 %v1024, 16
      %v1260 = vrot.slane %v1258, 1
      %v1261 = vor.u32 %v1256, %v1260
      %v1263 = vshll.u32 %v1184, 16
      %v1265 = vrot.slane %v1263, 1
      %v1266 = vsel %vm746, %v1261, %v1265
      %v1268 = vshrl.u32 %v1025, 16
      %v1270 = vshll.u32 %v1025, 16
      %v1272 = vrot.slane %v1270, 1
      %v1273 = vor.u32 %v1268, %v1272
      %v1275 = vshll.u32 %v1185, 16
      %v1277 = vrot.slane %v1275, 1
      %v1278 = vsel %vm746, %v1273, %v1277
      %v1280 = vshrl.u32 %v1026, 16
      %v1282 = vshll.u32 %v1026, 16
      %v1284 = vrot.slane %v1282, 1
      %v1285 = vor.u32 %v1280, %v1284
      %v1287 = vshll.u32 %v1186, 16
      %v1289 = vrot.slane %v1287, 1
      %v1290 = vsel %vm746, %v1285, %v1289
      %v1292 = vshrl.u32 %v1027, 16
      %v1294 = vshll.u32 %v1027, 16
      %v1296 = vrot.slane %v1294, 1
      %v1297 = vor.u32 %v1292, %v1296
      %v1299 = vshll.u32 %v1187, 16
      %v1301 = vrot.slane %v1299, 1
      %v1302 = vsel %vm746, %v1297, %v1301
      %v1304 = vshrl.u32 %v1028, 16
      %v1306 = vshll.u32 %v1028, 16
      %v1308 = vrot.slane %v1306, 1
      %v1309 = vor.u32 %v1304, %v1308
      %v1311 = vshll.u32 %v1188, 16
      %v1313 = vrot.slane %v1311, 1
      %v1314 = vsel %vm746, %v1309, %v1313
      %v1316 = vshrl.u32 %v1029, 16
      %v1318 = vshll.u32 %v1029, 16
      %v1320 = vrot.slane %v1318, 1
      %v1321 = vor.u32 %v1316, %v1320
      %v1323 = vshll.u32 %v1189, 16
      %v1325 = vrot.slane %v1323, 1
      %v1326 = vsel %vm746, %v1321, %v1325
      %v1328 = vshrl.u32 %v1030, 16
      %v1330 = vshll.u32 %v1030, 16
      %v1332 = vrot.slane %v1330, 1
      %v1333 = vor.u32 %v1328, %v1332
      %v1335 = vshll.u32 %v1190, 16
      %v1337 = vrot.slane %v1335, 1
      %v1338 = vsel %vm746, %v1333, %v1337
      %v1340 = vshrl.u32 %v1031, 16
      %v1342 = vshll.u32 %v1031, 16
      %v1344 = vrot.slane %v1342, 1
      %v1345 = vor.u32 %v1340, %v1344
      %v1347 = vshll.u32 %v1191, 16
      %v1349 = vrot.slane %v1347, 1
      %v1350 = vsel %vm746, %v1345, %v1349
      %v1352 = vshrl.u32 %v1032, 16
      %v1354 = vshll.u32 %v1032, 16
      %v1356 = vrot.slane %v1354, 1
      %v1357 = vor.u32 %v1352, %v1356
      %v1359 = vshll.u32 %v1192, 16
      %v1361 = vrot.slane %v1359, 1
      %v1362 = vsel %vm746, %v1357, %v1361
      %v1364 = vshrl.u32 %v1033, 16
      %v1366 = vshll.u32 %v1033, 16
      %v1368 = vrot.slane %v1366, 1
      %v1369 = vor.u32 %v1364, %v1368
      %v1371 = vshll.u32 %v1193, 16
      %v1373 = vrot.slane %v1371, 1
      %v1374 = vsel %vm746, %v1369, %v1373
      %v1376 = vshrl.u32 %v1034, 16
      %v1378 = vshll.u32 %v1034, 16
      %v1380 = vrot.slane %v1378, 1
      %v1381 = vor.u32 %v1376, %v1380
      %v1383 = vshll.u32 %v1194, 16
      %v1385 = vrot.slane %v1383, 1
      %v1386 = vsel %vm746, %v1381, %v1385
      %v1435 = vunpack.c.l.b16 %v426
      %v1436 = vunpack.c.l.b16 %v427
      %v1437 = vunpack.c.l.b16 %v428
      %v1438 = vunpack.c.l.b16 %v429
      %v1439 = vunpack.c.l.b16 %v430
      %v1440 = vunpack.c.l.b16 %v431
      %v1441 = vunpack.c.l.b16 %v432
      %v1442 = vunpack.c.l.b16 %v433
      %v1443 = vunpack.c.l.b16 %v434
      %v1444 = vunpack.c.l.b16 %v435
      %v1445 = vunpack.c.l.b16 %v436
      %v1446 = vunpack.c.l.b16 %v437
      %v1447 = vunpack.c.l.b16 %v438
      %v1448 = vunpack.c.l.b16 %v439
      %v1449 = vunpack.c.l.b16 %v440
      %v1450 = vunpack.c.l.b16 %v441
      %v1451 = vunpack.c.l.b16 %v442
      %v1452 = vunpack.c.l.b16 %v443
      %v1453 = vunpack.c.l.b16 %v444
      %v1454 = vunpack.c.l.b16 %v445
      %v1455 = vunpack.c.l.b16 %v446
      %v1456 = vunpack.c.l.b16 %v447
      %v1457 = vunpack.c.l.b16 %v448
      %v1458 = vunpack.c.l.b16 %v449
      %v1459 = vunpack.c.l.b16 %v450
      %v1460 = vunpack.c.l.b16 %v451
      %v1461 = vunpack.c.l.b16 %v452
      %v1462 = vunpack.c.l.b16 %v453
      %v1463 = vunpack.c.l.b16 %v454
      %v1464 = vunpack.c.l.b16 %v455
      %v1465 = vunpack.c.l.b16 %v456
      %v1466 = vunpack.c.l.b16 %v457
      %v1467 = vpack.c.b16 %v1436, %v1435
      %v1468 = vpack.c.b16 %v1438, %v1437
      %v1469 = vpack.c.b16 %v1440, %v1439
      %v1470 = vpack.c.b16 %v1442, %v1441
      %v1471 = vpack.c.b16 %v1444, %v1443
      %v1472 = vpack.c.b16 %v1446, %v1445
      %v1473 = vpack.c.b16 %v1448, %v1447
      %v1474 = vpack.c.b16 %v1450, %v1449
      %v1475 = vpack.c.b16 %v1452, %v1451
      %v1476 = vpack.c.b16 %v1454, %v1453
      %v1477 = vpack.c.b16 %v1456, %v1455
      %v1478 = vpack.c.b16 %v1458, %v1457
      %v1479 = vpack.c.b16 %v1460, %v1459
      %v1480 = vpack.c.b16 %v1462, %v1461
      %v1481 = vpack.c.b16 %v1464, %v1463
      %v1482 = vpack.c.b16 %v1466, %v1465
      %v1531 = vunpack.c.l.b16 %v458
      %v1532 = vunpack.c.l.b16 %v459
      %v1533 = vunpack.c.l.b16 %v460
      %v1534 = vunpack.c.l.b16 %v461
      %v1535 = vunpack.c.l.b16 %v462
      %v1536 = vunpack.c.l.b16 %v463
      %v1537 = vunpack.c.l.b16 %v464
      %v1538 = vunpack.c.l.b16 %v465
      %v1539 = vunpack.c.l.b16 %v466
      %v1540 = vunpack.c.l.b16 %v467
      %v1541 = vunpack.c.l.b16 %v468
      %v1542 = vunpack.c.l.b16 %v469
      %v1543 = vunpack.c.l.b16 %v470
      %v1544 = vunpack.c.l.b16 %v471
      %v1545 = vunpack.c.l.b16 %v472
      %v1546 = vunpack.c.l.b16 %v473
      %v1547 = vunpack.c.l.b16 %v474
      %v1548 = vunpack.c.l.b16 %v475
      %v1549 = vunpack.c.l.b16 %v476
      %v1550 = vunpack.c.l.b16 %v477
      %v1551 = vunpack.c.l.b16 %v478
      %v1552 = vunpack.c.l.b16 %v479
      %v1553 = vunpack.c.l.b16 %v480
      %v1554 = vunpack.c.l.b16 %v481
      %v1555 = vunpack.c.l.b16 %v482
      %v1556 = vunpack.c.l.b16 %v483
      %v1557 = vunpack.c.l.b16 %v484
      %v1558 = vunpack.c.l.b16 %v485
      %v1559 = vunpack.c.l.b16 %v486
      %v1560 = vunpack.c.l.b16 %v487
      %v1561 = vunpack.c.l.b16 %v488
      %v1562 = vunpack.c.l.b16 %v489
      %v1563 = vpack.c.b16 %v1532, %v1531
      %v1564 = vpack.c.b16 %v1534, %v1533
      %v1565 = vpack.c.b16 %v1536, %v1535
      %v1566 = vpack.c.b16 %v1538, %v1537
      %v1567 = vpack.c.b16 %v1540, %v1539
      %v1568 = vpack.c.b16 %v1542, %v1541
      %v1569 = vpack.c.b16 %v1544, %v1543
      %v1570 = vpack.c.b16 %v1546, %v1545
      %v1571 = vpack.c.b16 %v1548, %v1547
      %v1572 = vpack.c.b16 %v1550, %v1549
      %v1573 = vpack.c.b16 %v1552, %v1551
      %v1574 = vpack.c.b16 %v1554, %v1553
      %v1575 = vpack.c.b16 %v1556, %v1555
      %v1576 = vpack.c.b16 %v1558, %v1557
      %v1577 = vpack.c.b16 %v1560, %v1559
      %v1578 = vpack.c.b16 %v1562, %v1561
      %v1611 = vunpack.c.l.b16 %v490
      %v1612 = vunpack.c.l.b16 %v491
      %v1613 = vunpack.c.l.b16 %v492
      %v1614 = vunpack.c.l.b16 %v493
      %v1615 = vunpack.c.l.b16 %v494
      %v1616 = vunpack.c.l.b16 %v495
      %v1617 = vunpack.c.l.b16 %v496
      %v1618 = vunpack.c.l.b16 %v497
      %v1619 = vunpack.c.l.b16 %v498
      %v1620 = vunpack.c.l.b16 %v499
      %v1621 = vunpack.c.l.b16 %v500
      %v1622 = vunpack.c.l.b16 %v501
      %v1623 = vunpack.c.l.b16 %v502
      %v1624 = vunpack.c.l.b16 %v503
      %v1625 = vunpack.c.l.b16 %v504
      %v1626 = vunpack.c.l.b16 %v505
      %v1627 = vpack.c.b16 %v1611, %v1611
      %v1628 = vpack.c.b16 %v1612, %v1612
      %v1629 = vpack.c.b16 %v1613, %v1613
      %v1630 = vpack.c.b16 %v1614, %v1614
      %v1631 = vpack.c.b16 %v1615, %v1615
      %v1632 = vpack.c.b16 %v1616, %v1616
      %v1633 = vpack.c.b16 %v1617, %v1617
      %v1634 = vpack.c.b16 %v1618, %v1618
      %v1635 = vpack.c.b16 %v1619, %v1619
      %v1636 = vpack.c.b16 %v1620, %v1620
      %v1637 = vpack.c.b16 %v1621, %v1621
      %v1638 = vpack.c.b16 %v1622, %v1622
      %v1639 = vpack.c.b16 %v1623, %v1623
      %v1640 = vpack.c.b16 %v1624, %v1624
      %v1641 = vpack.c.b16 %v1625, %v1625
      %v1642 = vpack.c.b16 %v1626, %v1626
      %v1644 = vshrl.u32 %v1467, 16
      %v1646 = vshll.u32 %v1467, 16
      %v1648 = vrot.slane %v1646, 1
      %v1649 = vor.u32 %v1644, %v1648
      %v1651 = vshll.u32 %v1627, 16
      %v1653 = vrot.slane %v1651, 1
      %v1654 = vsel %vm746, %v1649, %v1653
      %v1656 = vshrl.u32 %v1468, 16
      %v1658 = vshll.u32 %v1468, 16
      %v1660 = vrot.slane %v1658, 1
      %v1661 = vor.u32 %v1656, %v1660
      %v1663 = vshll.u32 %v1628, 16
      %v1665 = vrot.slane %v1663, 1
      %v1666 = vsel %vm746, %v1661, %v1665
      %v1668 = vshrl.u32 %v1469, 16
      %v1670 = vshll.u32 %v1469, 16
      %v1672 = vrot.slane %v1670, 1
      %v1673 = vor.u32 %v1668, %v1672
      %v1675 = vshll.u32 %v1629, 16
      %v1677 = vrot.slane %v1675, 1
      %v1678 = vsel %vm746, %v1673, %v1677
      %v1680 = vshrl.u32 %v1470, 16
      %v1682 = vshll.u32 %v1470, 16
      %v1684 = vrot.slane %v1682, 1
      %v1685 = vor.u32 %v1680, %v1684
      %v1687 = vshll.u32 %v1630, 16
      %v1689 = vrot.slane %v1687, 1
      %v1690 = vsel %vm746, %v1685, %v1689
      %v1692 = vshrl.u32 %v1471, 16
      %v1694 = vshll.u32 %v1471, 16
      %v1696 = vrot.slane %v1694, 1
      %v1697 = vor.u32 %v1692, %v1696
      %v1699 = vshll.u32 %v1631, 16
      %v1701 = vrot.slane %v1699, 1
      %v1702 = vsel %vm746, %v1697, %v1701
      %v1704 = vshrl.u32 %v1472, 16
      %v1706 = vshll.u32 %v1472, 16
      %v1708 = vrot.slane %v1706, 1
      %v1709 = vor.u32 %v1704, %v1708
      %v1711 = vshll.u32 %v1632, 16
      %v1713 = vrot.slane %v1711, 1
      %v1714 = vsel %vm746, %v1709, %v1713
      %v1716 = vshrl.u32 %v1473, 16
      %v1718 = vshll.u32 %v1473, 16
      %v1720 = vrot.slane %v1718, 1
      %v1721 = vor.u32 %v1716, %v1720
      %v1723 = vshll.u32 %v1633, 16
      %v1725 = vrot.slane %v1723, 1
      %v1726 = vsel %vm746, %v1721, %v1725
      %v1728 = vshrl.u32 %v1474, 16
      %v1730 = vshll.u32 %v1474, 16
      %v1732 = vrot.slane %v1730, 1
      %v1733 = vor.u32 %v1728, %v1732
      %v1735 = vshll.u32 %v1634, 16
      %v1737 = vrot.slane %v1735, 1
      %v1738 = vsel %vm746, %v1733, %v1737
      %v1740 = vshrl.u32 %v1475, 16
      %v1742 = vshll.u32 %v1475, 16
      %v1744 = vrot.slane %v1742, 1
      %v1745 = vor.u32 %v1740, %v1744
      %v1747 = vshll.u32 %v1635, 16
      %v1749 = vrot.slane %v1747, 1
      %v1750 = vsel %vm746, %v1745, %v1749
      %v1752 = vshrl.u32 %v1476, 16
      %v1754 = vshll.u32 %v1476, 16
      %v1756 = vrot.slane %v1754, 1
      %v1757 = vor.u32 %v1752, %v1756
      %v1759 = vshll.u32 %v1636, 16
      %v1761 = vrot.slane %v1759, 1
      %v1762 = vsel %vm746, %v1757, %v1761
      %v1764 = vshrl.u32 %v1477, 16
      %v1766 = vshll.u32 %v1477, 16
      %v1768 = vrot.slane %v1766, 1
      %v1769 = vor.u32 %v1764, %v1768
      %v1771 = vshll.u32 %v1637, 16
      %v1773 = vrot.slane %v1771, 1
      %v1774 = vsel %vm746, %v1769, %v1773
      %v1776 = vshrl.u32 %v1478, 16
      %v1778 = vshll.u32 %v1478, 16
      %v1780 = vrot.slane %v1778, 1
      %v1781 = vor.u32 %v1776, %v1780
      %v1783 = vshll.u32 %v1638, 16
      %v1785 = vrot.slane %v1783, 1
      %v1786 = vsel %vm746, %v1781, %v1785
      %v1788 = vshrl.u32 %v1479, 16
      %v1790 = vshll.u32 %v1479, 16
      %v1792 = vrot.slane %v1790, 1
      %v1793 = vor.u32 %v1788, %v1792
      %v1795 = vshll.u32 %v1639, 16
      %v1797 = vrot.slane %v1795, 1
      %v1798 = vsel %vm746, %v1793, %v1797
      %v1800 = vshrl.u32 %v1480, 16
      %v1802 = vshll.u32 %v1480, 16
      %v1804 = vrot.slane %v1802, 1
      %v1805 = vor.u32 %v1800, %v1804
      %v1807 = vshll.u32 %v1640, 16
      %v1809 = vrot.slane %v1807, 1
      %v1810 = vsel %vm746, %v1805, %v1809
      %v1812 = vshrl.u32 %v1481, 16
      %v1814 = vshll.u32 %v1481, 16
      %v1816 = vrot.slane %v1814, 1
      %v1817 = vor.u32 %v1812, %v1816
      %v1819 = vshll.u32 %v1641, 16
      %v1821 = vrot.slane %v1819, 1
      %v1822 = vsel %vm746, %v1817, %v1821
      %v1824 = vshrl.u32 %v1482, 16
      %v1826 = vshll.u32 %v1482, 16
      %v1828 = vrot.slane %v1826, 1
      %v1829 = vor.u32 %v1824, %v1828
      %v1831 = vshll.u32 %v1642, 16
      %v1833 = vrot.slane %v1831, 1
      %v1834 = vsel %vm746, %v1829, %v1833
      %v1851 = vld [vmem:[%s248] sm:$0xf]
      %v1852 = vld [vmem:[%s248 + $0x4] sm:$0xf]
      %v1853 = vld [vmem:[%s248 + $0x8] sm:$0xf]
      %v1854 = vld [vmem:[%s248 + $0xc] sm:$0xf]
      %v1855 = vld [vmem:[%s248 + $0x10] sm:$0xf]
      %v1856 = vld [vmem:[%s248 + $0x14] sm:$0xf]
      %v1857 = vld [vmem:[%s248 + $0x18] sm:$0xf]
      %v1858 = vld [vmem:[%s248 + $0x1c] sm:$0xf]
      %v1859 = vld [vmem:[%s248 + $0x20] sm:$0xf]
      %v1860 = vld [vmem:[%s248 + $0x24] sm:$0xf]
      %v1861 = vld [vmem:[%s248 + $0x28] sm:$0xf]
      %v1862 = vld [vmem:[%s248 + $0x2c] sm:$0xf]
      %v1863 = vld [vmem:[%s248 + $0x30] sm:$0xf]
      %v1864 = vld [vmem:[%s248 + $0x34] sm:$0xf]
      %v1865 = vld [vmem:[%s248 + $0x38] sm:$0xf]
      %v1866 = vld [vmem:[%s248 + $0x3c] sm:$0xf]
      %v1867 = vld [vmem:[%s248 + $0x40] sm:$0xf]
      %v1868 = vld [vmem:[%s248 + $0x44] sm:$0xf]
      %v1869 = vld [vmem:[%s248 + $0x48] sm:$0xf]
      %v1870 = vld [vmem:[%s248 + $0x4c] sm:$0xf]
      %v1871 = vld [vmem:[%s248 + $0x50] sm:$0xf]
      %v1872 = vld [vmem:[%s248 + $0x54] sm:$0xf]
      %v1873 = vld [vmem:[%s248 + $0x58] sm:$0xf]
      %v1874 = vld [vmem:[%s248 + $0x5c] sm:$0xf]
      %v1875 = vld [vmem:[%s248 + $0x60] sm:$0xf]
      %v1876 = vld [vmem:[%s248 + $0x64] sm:$0xf]
      %v1877 = vld [vmem:[%s248 + $0x68] sm:$0xf]
      %v1878 = vld [vmem:[%s248 + $0x6c] sm:$0xf]
      %v1879 = vld [vmem:[%s248 + $0x70] sm:$0xf]
      %v1880 = vld [vmem:[%s248 + $0x74] sm:$0xf]
      %v1881 = vld [vmem:[%s248 + $0x78] sm:$0xf]
      %v1882 = vld [vmem:[%s248 + $0x7c] sm:$0xf]
      %v1883 = vld [vmem:[%s248 + $0x80] sm:$0xf]
      %v1884 = vld [vmem:[%s248 + $0x84] sm:$0xf]
      %v1885 = vld [vmem:[%s248 + $0x88] sm:$0xf]
      %v1886 = vld [vmem:[%s248 + $0x8c] sm:$0xf]
      %v1887 = vld [vmem:[%s248 + $0x90] sm:$0xf]
      %v1888 = vld [vmem:[%s248 + $0x94] sm:$0xf]
      %v1889 = vld [vmem:[%s248 + $0x98] sm:$0xf]
      %v1890 = vld [vmem:[%s248 + $0x9c] sm:$0xf]
      %v1891 = vld [vmem:[%s248 + $0xa0] sm:$0xf]
      %v1892 = vld [vmem:[%s248 + $0xa4] sm:$0xf]
      %v1893 = vld [vmem:[%s248 + $0xa8] sm:$0xf]
      %v1894 = vld [vmem:[%s248 + $0xac] sm:$0xf]
      %v1895 = vld [vmem:[%s248 + $0xb0] sm:$0xf]
      %v1896 = vld [vmem:[%s248 + $0xb4] sm:$0xf]
      %v1897 = vld [vmem:[%s248 + $0xb8] sm:$0xf]
      %v1898 = vld [vmem:[%s248 + $0xbc] sm:$0xf]
      %v1899 = vld [vmem:[%s248 + $0xc0] sm:$0xf]
      %v1900 = vld [vmem:[%s248 + $0xc4] sm:$0xf]
      %v1901 = vld [vmem:[%s248 + $0xc8] sm:$0xf]
      %v1902 = vld [vmem:[%s248 + $0xcc] sm:$0xf]
      %v1903 = vld [vmem:[%s248 + $0xd0] sm:$0xf]
      %v1904 = vld [vmem:[%s248 + $0xd4] sm:$0xf]
      %v1905 = vld [vmem:[%s248 + $0xd8] sm:$0xf]
      %v1906 = vld [vmem:[%s248 + $0xdc] sm:$0xf]
      %v1907 = vld [vmem:[%s248 + $0xe0] sm:$0xf]
      %v1908 = vld [vmem:[%s248 + $0xe4] sm:$0xf]
      %v1909 = vld [vmem:[%s248 + $0xe8] sm:$0xf]
      %v1910 = vld [vmem:[%s248 + $0xec] sm:$0xf]
      %v1911 = vld [vmem:[%s248 + $0xf0] sm:$0xf]
      %v1912 = vld [vmem:[%s248 + $0xf4] sm:$0xf]
      %v1913 = vld [vmem:[%s248 + $0xf8] sm:$0xf]
      %v1914 = vld [vmem:[%s248 + $0xfc] sm:$0xf]
      %v1915 = vld [vmem:[%s248 + $0x100] sm:$0xf]
      %v1916 = vld [vmem:[%s248 + $0x104] sm:$0xf]
      %v1917 = vld [vmem:[%s248 + $0x108] sm:$0xf]
      %v1918 = vld [vmem:[%s248 + $0x10c] sm:$0xf]
      %v1919 = vld [vmem:[%s248 + $0x110] sm:$0xf]
      %v1920 = vld [vmem:[%s248 + $0x114] sm:$0xf]
      %v1921 = vld [vmem:[%s248 + $0x118] sm:$0xf]
      %v1922 = vld [vmem:[%s248 + $0x11c] sm:$0xf]
      %v1923 = vld [vmem:[%s248 + $0x120] sm:$0xf]
      %v1924 = vld [vmem:[%s248 + $0x124] sm:$0xf]
      %v1925 = vld [vmem:[%s248 + $0x128] sm:$0xf]
      %v1926 = vld [vmem:[%s248 + $0x12c] sm:$0xf]
      %v1927 = vld [vmem:[%s248 + $0x130] sm:$0xf]
      %v1928 = vld [vmem:[%s248 + $0x134] sm:$0xf]
      %v1929 = vld [vmem:[%s248 + $0x138] sm:$0xf]
      %v1930 = vld [vmem:[%s248 + $0x13c] sm:$0xf]
      %v1931 = vld [vmem:[%s248 + $0x140] sm:$0xf]
      %v1932 = vld [vmem:[%s248 + $0x144] sm:$0xf]
      %v1933 = vld [vmem:[%s248 + $0x148] sm:$0xf]
      %v1934 = vld [vmem:[%s248 + $0x14c] sm:$0xf]
      %v1935 = vld [vmem:[%s248 + $0x150] sm:$0xf]
      %v1936 = vld [vmem:[%s248 + $0x154] sm:$0xf]
      %v1937 = vld [vmem:[%s248 + $0x158] sm:$0xf]
      %v1938 = vld [vmem:[%s248 + $0x15c] sm:$0xf]
      %v1939 = vld [vmem:[%s248 + $0x160] sm:$0xf]
      %v1940 = vld [vmem:[%s248 + $0x164] sm:$0xf]
      %v1941 = vld [vmem:[%s248 + $0x168] sm:$0xf]
      %v1942 = vld [vmem:[%s248 + $0x16c] sm:$0xf]
      %v1943 = vld [vmem:[%s248 + $0x170] sm:$0xf]
      %v1944 = vld [vmem:[%s248 + $0x174] sm:$0xf]
      %v1945 = vld [vmem:[%s248 + $0x178] sm:$0xf]
      %v1946 = vld [vmem:[%s248 + $0x17c] sm:$0xf]
      %v1947 = vld [vmem:[%s248 + $0x180] sm:$0xf]
      %v1948 = vld [vmem:[%s248 + $0x184] sm:$0xf]
      %v1949 = vld [vmem:[%s248 + $0x188] sm:$0xf]
      %v1950 = vld [vmem:[%s248 + $0x18c] sm:$0xf]
      %v1951 = vld [vmem:[%s248 + $0x190] sm:$0xf]
      %v1952 = vld [vmem:[%s248 + $0x194] sm:$0xf]
      %v1953 = vld [vmem:[%s248 + $0x198] sm:$0xf]
      %v1954 = vld [vmem:[%s248 + $0x19c] sm:$0xf]
      %v1955 = vld [vmem:[%s248 + $0x1a0] sm:$0xf]
      %v1956 = vld [vmem:[%s248 + $0x1a4] sm:$0xf]
      %v1957 = vld [vmem:[%s248 + $0x1a8] sm:$0xf]
      %v1958 = vld [vmem:[%s248 + $0x1ac] sm:$0xf]
      %v1959 = vld [vmem:[%s248 + $0x1b0] sm:$0xf]
      %v1960 = vld [vmem:[%s248 + $0x1b4] sm:$0xf]
      %v1961 = vld [vmem:[%s248 + $0x1b8] sm:$0xf]
      %v1962 = vld [vmem:[%s248 + $0x1bc] sm:$0xf]
      %v1963 = vld [vmem:[%s248 + $0x1c0] sm:$0xf]
      %v1964 = vld [vmem:[%s248 + $0x1c4] sm:$0xf]
      %v1965 = vld [vmem:[%s248 + $0x1c8] sm:$0xf]
      %v1966 = vld [vmem:[%s248 + $0x1cc] sm:$0xf]
      %v1967 = vld [vmem:[%s248 + $0x1d0] sm:$0xf]
      %v1968 = vld [vmem:[%s248 + $0x1d4] sm:$0xf]
      %v1969 = vld [vmem:[%s248 + $0x1d8] sm:$0xf]
      %v1970 = vld [vmem:[%s248 + $0x1dc] sm:$0xf]
      %v1971 = vld [vmem:[%s248 + $0x1e0] sm:$0xf]
      %v1972 = vld [vmem:[%s248 + $0x1e4] sm:$0xf]
      %v1973 = vld [vmem:[%s248 + $0x1e8] sm:$0xf]
      %v1974 = vld [vmem:[%s248 + $0x1ec] sm:$0xf]
      %v1975 = vld [vmem:[%s248 + $0x1f0] sm:$0xf]
      %v1976 = vld [vmem:[%s248 + $0x1f4] sm:$0xf]
      %v1977 = vld [vmem:[%s248 + $0x1f8] sm:$0xf]
      %v1978 = vld [vmem:[%s248 + $0x1fc] sm:$0xf]
      %v1979 = vld [vmem:[%s248 + $0x200] sm:$0xf]
      %v1980 = vld [vmem:[%s248 + $0x204] sm:$0xf]
      %v1981 = vld [vmem:[%s248 + $0x208] sm:$0xf]
      %v1982 = vld [vmem:[%s248 + $0x20c] sm:$0xf]
      %v1983 = vld [vmem:[%s248 + $0x210] sm:$0xf]
      %v1984 = vld [vmem:[%s248 + $0x214] sm:$0xf]
      %v1985 = vld [vmem:[%s248 + $0x218] sm:$0xf]
      %v1986 = vld [vmem:[%s248 + $0x21c] sm:$0xf]
      %v1987 = vld [vmem:[%s248 + $0x220] sm:$0xf]
      %v1988 = vld [vmem:[%s248 + $0x224] sm:$0xf]
      %v1989 = vld [vmem:[%s248 + $0x228] sm:$0xf]
      %v1990 = vld [vmem:[%s248 + $0x22c] sm:$0xf]
      %v1991 = vld [vmem:[%s248 + $0x230] sm:$0xf]
      %v1992 = vld [vmem:[%s248 + $0x234] sm:$0xf]
      %v1993 = vld [vmem:[%s248 + $0x238] sm:$0xf]
      %v1994 = vld [vmem:[%s248 + $0x23c] sm:$0xf]
      %v2139 = vunpack.c.l.b16 %v1851
      %v2140 = vunpack.c.l.b16 %v1852
      %v2141 = vunpack.c.l.b16 %v1853
      %v2142 = vunpack.c.l.b16 %v1854
      %v2143 = vunpack.c.l.b16 %v1855
      %v2144 = vunpack.c.l.b16 %v1856
      %v2145 = vunpack.c.l.b16 %v1857
      %v2146 = vunpack.c.l.b16 %v1858
      %v2147 = vunpack.c.l.b16 %v1859
      %v2148 = vunpack.c.l.b16 %v1860
      %v2149 = vunpack.c.l.b16 %v1861
      %v2150 = vunpack.c.l.b16 %v1862
      %v2151 = vunpack.c.l.b16 %v1863
      %v2152 = vunpack.c.l.b16 %v1864
      %v2153 = vunpack.c.l.b16 %v1865
      %v2154 = vunpack.c.l.b16 %v1866
      %v2155 = vunpack.c.l.b16 %v1867
      %v2156 = vunpack.c.l.b16 %v1868
      %v2157 = vunpack.c.l.b16 %v1869
      %v2158 = vunpack.c.l.b16 %v1870
      %v2159 = vunpack.c.l.b16 %v1871
      %v2160 = vunpack.c.l.b16 %v1872
      %v2161 = vunpack.c.l.b16 %v1873
      %v2162 = vunpack.c.l.b16 %v1874
      %v2163 = vunpack.c.l.b16 %v1875
      %v2164 = vunpack.c.l.b16 %v1876
      %v2165 = vunpack.c.l.b16 %v1877
      %v2166 = vunpack.c.l.b16 %v1878
      %v2167 = vunpack.c.l.b16 %v1879
      %v2168 = vunpack.c.l.b16 %v1880
      %v2169 = vunpack.c.l.b16 %v1881
      %v2170 = vunpack.c.l.b16 %v1882
      %v2171 = vunpack.c.l.b16 %v1883
      %v2172 = vunpack.c.l.b16 %v1884
      %v2173 = vunpack.c.l.b16 %v1885
      %v2174 = vunpack.c.l.b16 %v1886
      %v2175 = vunpack.c.l.b16 %v1887
      %v2176 = vunpack.c.l.b16 %v1888
      %v2177 = vunpack.c.l.b16 %v1889
      %v2178 = vunpack.c.l.b16 %v1890
      %v2179 = vunpack.c.l.b16 %v1891
      %v2180 = vunpack.c.l.b16 %v1892
      %v2181 = vunpack.c.l.b16 %v1893
      %v2182 = vunpack.c.l.b16 %v1894
      %v2183 = vunpack.c.l.b16 %v1895
      %v2184 = vunpack.c.l.b16 %v1896
      %v2185 = vunpack.c.l.b16 %v1897
      %v2186 = vunpack.c.l.b16 %v1898
      %v2187 = vunpack.c.l.b16 %v1899
      %v2188 = vunpack.c.l.b16 %v1900
      %v2189 = vunpack.c.l.b16 %v1901
      %v2190 = vunpack.c.l.b16 %v1902
      %v2191 = vunpack.c.l.b16 %v1903
      %v2192 = vunpack.c.l.b16 %v1904
      %v2193 = vunpack.c.l.b16 %v1905
      %v2194 = vunpack.c.l.b16 %v1906
      %v2195 = vunpack.c.l.b16 %v1907
      %v2196 = vunpack.c.l.b16 %v1908
      %v2197 = vunpack.c.l.b16 %v1909
      %v2198 = vunpack.c.l.b16 %v1910
      %v2199 = vunpack.c.l.b16 %v1911
      %v2200 = vunpack.c.l.b16 %v1912
      %v2201 = vunpack.c.l.b16 %v1913
      %v2202 = vunpack.c.l.b16 %v1914
      %v2203 = vunpack.c.l.b16 %v1915
      %v2204 = vunpack.c.l.b16 %v1916
      %v2205 = vunpack.c.l.b16 %v1917
      %v2206 = vunpack.c.l.b16 %v1918
      %v2207 = vunpack.c.l.b16 %v1919
      %v2208 = vunpack.c.l.b16 %v1920
      %v2209 = vunpack.c.l.b16 %v1921
      %v2210 = vunpack.c.l.b16 %v1922
      %v2211 = vunpack.c.l.b16 %v1923
      %v2212 = vunpack.c.l.b16 %v1924
      %v2213 = vunpack.c.l.b16 %v1925
      %v2214 = vunpack.c.l.b16 %v1926
      %v2215 = vunpack.c.l.b16 %v1927
      %v2216 = vunpack.c.l.b16 %v1928
      %v2217 = vunpack.c.l.b16 %v1929
      %v2218 = vunpack.c.l.b16 %v1930
      %v2219 = vunpack.c.l.b16 %v1931
      %v2220 = vunpack.c.l.b16 %v1932
      %v2221 = vunpack.c.l.b16 %v1933
      %v2222 = vunpack.c.l.b16 %v1934
      %v2223 = vunpack.c.l.b16 %v1935
      %v2224 = vunpack.c.l.b16 %v1936
      %v2225 = vunpack.c.l.b16 %v1937
      %v2226 = vunpack.c.l.b16 %v1938
      %v2227 = vunpack.c.l.b16 %v1939
      %v2228 = vunpack.c.l.b16 %v1940
      %v2229 = vunpack.c.l.b16 %v1941
      %v2230 = vunpack.c.l.b16 %v1942
      %v2231 = vunpack.c.l.b16 %v1943
      %v2232 = vunpack.c.l.b16 %v1944
      %v2233 = vunpack.c.l.b16 %v1945
      %v2234 = vunpack.c.l.b16 %v1946
      %v2235 = vunpack.c.l.b16 %v1947
      %v2236 = vunpack.c.l.b16 %v1948
      %v2237 = vunpack.c.l.b16 %v1949
      %v2238 = vunpack.c.l.b16 %v1950
      %v2239 = vunpack.c.l.b16 %v1951
      %v2240 = vunpack.c.l.b16 %v1952
      %v2241 = vunpack.c.l.b16 %v1953
      %v2242 = vunpack.c.l.b16 %v1954
      %v2243 = vunpack.c.l.b16 %v1955
      %v2244 = vunpack.c.l.b16 %v1956
      %v2245 = vunpack.c.l.b16 %v1957
      %v2246 = vunpack.c.l.b16 %v1958
      %v2247 = vunpack.c.l.b16 %v1959
      %v2248 = vunpack.c.l.b16 %v1960
      %v2249 = vunpack.c.l.b16 %v1961
      %v2250 = vunpack.c.l.b16 %v1962
      %v2251 = vunpack.c.l.b16 %v1963
      %v2252 = vunpack.c.l.b16 %v1964
      %v2253 = vunpack.c.l.b16 %v1965
      %v2254 = vunpack.c.l.b16 %v1966
      %v2255 = vunpack.c.l.b16 %v1967
      %v2256 = vunpack.c.l.b16 %v1968
      %v2257 = vunpack.c.l.b16 %v1969
      %v2258 = vunpack.c.l.b16 %v1970
      %v2259 = vunpack.c.l.b16 %v1971
      %v2260 = vunpack.c.l.b16 %v1972
      %v2261 = vunpack.c.l.b16 %v1973
      %v2262 = vunpack.c.l.b16 %v1974
      %v2263 = vunpack.c.l.b16 %v1975
      %v2264 = vunpack.c.l.b16 %v1976
      %v2265 = vunpack.c.l.b16 %v1977
      %v2266 = vunpack.c.l.b16 %v1978
      %v2267 = vunpack.c.l.b16 %v1979
      %v2268 = vunpack.c.l.b16 %v1980
      %v2269 = vunpack.c.l.b16 %v1981
      %v2270 = vunpack.c.l.b16 %v1982
      %v2271 = vunpack.c.l.b16 %v1983
      %v2272 = vunpack.c.l.b16 %v1984
      %v2273 = vunpack.c.l.b16 %v1985
      %v2274 = vunpack.c.l.b16 %v1986
      %v2275 = vunpack.c.l.b16 %v1987
      %v2276 = vunpack.c.l.b16 %v1988
      %v2277 = vunpack.c.l.b16 %v1989
      %v2278 = vunpack.c.l.b16 %v1990
      %v2279 = vunpack.c.l.b16 %v1991
      %v2280 = vunpack.c.l.b16 %v1992
      %v2281 = vunpack.c.l.b16 %v1993
      %v2282 = vunpack.c.l.b16 %v1994
      %v2283 = vpack.c.b16 %v2140, %v2139
      %v2284 = vpack.c.b16 %v2142, %v2141
      %v2285 = vpack.c.b16 %v2144, %v2143
      %v2286 = vpack.c.b16 %v2146, %v2145
      %v2287 = vpack.c.b16 %v2148, %v2147
      %v2288 = vpack.c.b16 %v2150, %v2149
      %v2289 = vpack.c.b16 %v2152, %v2151
      %v2290 = vpack.c.b16 %v2154, %v2153
      %v2291 = vpack.c.b16 %v2156, %v2155
      %v2292 = vpack.c.b16 %v2158, %v2157
      %v2293 = vpack.c.b16 %v2160, %v2159
      %v2294 = vpack.c.b16 %v2162, %v2161
      %v2295 = vpack.c.b16 %v2164, %v2163
      %v2296 = vpack.c.b16 %v2166, %v2165
      %v2297 = vpack.c.b16 %v2168, %v2167
      %v2298 = vpack.c.b16 %v2170, %v2169
      %v2299 = vpack.c.b16 %v2172, %v2171
      %v2300 = vpack.c.b16 %v2174, %v2173
      %v2301 = vpack.c.b16 %v2176, %v2175
      %v2302 = vpack.c.b16 %v2178, %v2177
      %v2303 = vpack.c.b16 %v2180, %v2179
      %v2304 = vpack.c.b16 %v2182, %v2181
      %v2305 = vpack.c.b16 %v2184, %v2183
      %v2306 = vpack.c.b16 %v2186, %v2185
      %v2307 = vpack.c.b16 %v2188, %v2187
      %v2308 = vpack.c.b16 %v2190, %v2189
      %v2309 = vpack.c.b16 %v2192, %v2191
      %v2310 = vpack.c.b16 %v2194, %v2193
      %v2311 = vpack.c.b16 %v2196, %v2195
      %v2312 = vpack.c.b16 %v2198, %v2197
      %v2313 = vpack.c.b16 %v2200, %v2199
      %v2314 = vpack.c.b16 %v2202, %v2201
      %v2315 = vpack.c.b16 %v2204, %v2203
      %v2316 = vpack.c.b16 %v2206, %v2205
      %v2317 = vpack.c.b16 %v2208, %v2207
      %v2318 = vpack.c.b16 %v2210, %v2209
      %v2319 = vpack.c.b16 %v2212, %v2211
      %v2320 = vpack.c.b16 %v2214, %v2213
      %v2321 = vpack.c.b16 %v2216, %v2215
      %v2322 = vpack.c.b16 %v2218, %v2217
      %v2323 = vpack.c.b16 %v2220, %v2219
      %v2324 = vpack.c.b16 %v2222, %v2221
      %v2325 = vpack.c.b16 %v2224, %v2223
      %v2326 = vpack.c.b16 %v2226, %v2225
      %v2327 = vpack.c.b16 %v2228, %v2227
      %v2328 = vpack.c.b16 %v2230, %v2229
      %v2329 = vpack.c.b16 %v2232, %v2231
      %v2330 = vpack.c.b16 %v2234, %v2233
      %v2331 = vpack.c.b16 %v2236, %v2235
      %v2332 = vpack.c.b16 %v2238, %v2237
      %v2333 = vpack.c.b16 %v2240, %v2239
      %v2334 = vpack.c.b16 %v2242, %v2241
      %v2335 = vpack.c.b16 %v2244, %v2243
      %v2336 = vpack.c.b16 %v2246, %v2245
      %v2337 = vpack.c.b16 %v2248, %v2247
      %v2338 = vpack.c.b16 %v2250, %v2249
      %v2339 = vpack.c.b16 %v2252, %v2251
      %v2340 = vpack.c.b16 %v2254, %v2253
      %v2341 = vpack.c.b16 %v2256, %v2255
      %v2342 = vpack.c.b16 %v2258, %v2257
      %v2343 = vpack.c.b16 %v2260, %v2259
      %v2344 = vpack.c.b16 %v2262, %v2261
      %v2345 = vpack.c.b16 %v2264, %v2263
      %v2346 = vpack.c.b16 %v2266, %v2265
      %v2347 = vpack.c.b16 %v2268, %v2267
      %v2348 = vpack.c.b16 %v2270, %v2269
      %v2349 = vpack.c.b16 %v2272, %v2271
      %v2350 = vpack.c.b16 %v2274, %v2273
      %v2351 = vpack.c.b16 %v2276, %v2275
      %v2352 = vpack.c.b16 %v2278, %v2277
      %v2353 = vpack.c.b16 %v2280, %v2279
      %v2354 = vpack.c.b16 %v2282, %v2281
      %2427 = vmatprep.subr.bf16.mxu0 0
      %2428 = vmatpush1.bf16.msra.mxu0 %v2283
      %2429 = vmatprep.subr.bf16.mxu0 0
      %2430 = vmatpush1.bf16.msra.mxu0 %v2284
      %2431 = vmatprep.subr.bf16.mxu0 0
      %2432 = vmatpush1.bf16.msra.mxu0 %v2285
      %2433 = vmatprep.subr.bf16.mxu0 0
      %2434 = vmatpush1.bf16.msra.mxu0 %v2286
      %2435 = vmatprep.subr.bf16.mxu0 0
      %2436 = vmatpush1.bf16.msra.mxu0 %v2287
      %2437 = vmatprep.subr.bf16.mxu0 0
      %2438 = vmatpush1.bf16.msra.mxu0 %v2288
      %2439 = vmatprep.subr.bf16.mxu0 0
      %2440 = vmatpush1.bf16.msra.mxu0 %v2289
      %2441 = vmatprep.subr.bf16.mxu0 0
      %2442 = vmatpush1.bf16.msra.mxu0 %v2290
      %2443 = vmatprep.subr.bf16.mxu0 0
      %2444 = vmatpush1.bf16.msra.mxu0 %v2291
      %2445 = vmatprep.subr.bf16.mxu0 0
      %2446 = vmatpush1.bf16.msra.mxu0 %v2292
      %2447 = vmatprep.subr.bf16.mxu0 0
      %2448 = vmatpush1.bf16.msra.mxu0 %v2293
      %2449 = vmatprep.subr.bf16.mxu0 0
      %2450 = vmatpush1.bf16.msra.mxu0 %v2294
      %2451 = vmatprep.subr.bf16.mxu0 0
      %2452 = vmatpush1.bf16.msra.mxu0 %v2295
      %2453 = vmatprep.subr.bf16.mxu0 0
      %2454 = vmatpush1.bf16.msra.mxu0 %v2296
      %2455 = vmatprep.subr.bf16.mxu0 0
      %2456 = vmatpush1.bf16.msra.mxu0 %v2297
      %2457 = vmatprep.subr.bf16.mxu0 0
      %2458 = vmatpush1.bf16.msra.mxu0 %v2298
      %2459 = vmatprep.mubr.bf16.mxu0 %v666
      %2460 = vmatmul.mubr.bf16.gmra.mrb[0].mxu0 %v570
      %v2461 = vpop.f32.mrb[0].mxu0
      %v2462 = vadd.f32 0.0, %v2461
      %v2463 = vpop.f32.mrb[0].mxu0
      %v2464 = vpop.f32.mrb[0].mxu0
      %v2465 = vadd.f32 0.0, %v2464
      %v2466 = vpop.f32.mrb[0].mxu0
      %2467 = vmatprep.mubr.bf16.mxu0 %v667
      %2468 = vmatmul.mubr.bf16.gmra.mrb[0].mxu0 %v571
      %v2469 = vpop.f32.mrb[0].mxu0
      %v2470 = vadd.f32 0.0, %v2469
      %v2471 = vpop.f32.mrb[0].mxu0
      %v2472 = vpop.f32.mrb[0].mxu0
      %v2473 = vadd.f32 0.0, %v2472
      %v2474 = vpop.f32.mrb[0].mxu0
      %2475 = vmatprep.mubr.bf16.mxu0 %v668
      %2476 = vmatmul.mubr.bf16.gmra.mrb[0].mxu0 %v572
      %v2477 = vpop.f32.mrb[0].mxu0
      %v2478 = vadd.f32 0.0, %v2477
      %v2479 = vpop.f32.mrb[0].mxu0
      %v2480 = vpop.f32.mrb[0].mxu0
      %v2481 = vadd.f32 0.0, %v2480
      %v2482 = vpop.f32.mrb[0].mxu0
      %2483 = vmatprep.mubr.bf16.mxu0 %v669
      %2484 = vmatmul.mubr.bf16.gmra.mrb[0].mxu0 %v573
      %v2485 = vpop.f32.mrb[0].mxu0
      %v2486 = vadd.f32 0.0, %v2485
      %v2487 = vpop.f32.mrb[0].mxu0
      %v2488 = vpop.f32.mrb[0].mxu0
      %v2489 = vadd.f32 0.0, %v2488
      %v2490 = vpop.f32.mrb[0].mxu0
      %2491 = vmatprep.mubr.bf16.mxu0 %v670
      %2492 = vmatmul.mubr.bf16.gmra.mrb[0].mxu0 %v574
      %v2493 = vpop.f32.mrb[0].mxu0
      %v2494 = vadd.f32 0.0, %v2493
      %v2495 = vpop.f32.mrb[0].mxu0
      %v2496 = vpop.f32.mrb[0].mxu0
      %v2497 = vadd.f32 0.0, %v2496
      %v2498 = vpop.f32.mrb[0].mxu0
      %2499 = vmatprep.mubr.bf16.mxu0 %v671
      %2500 = vmatmul.mubr.bf16.gmra.mrb[0].mxu0 %v575
      %v2501 = vpop.f32.mrb[0].mxu0
      %v2502 = vadd.f32 0.0, %v2501
      %v2503 = vpop.f32.mrb[0].mxu0
      %v2504 = vpop.f32.mrb[0].mxu0
      %v2505 = vadd.f32 0.0, %v2504
      %v2506 = vpop.f32.mrb[0].mxu0
      %2507 = vmatprep.mubr.bf16.mxu0 %v672
      %2508 = vmatmul.mubr.bf16.gmra.mrb[0].mxu0 %v576
      %v2509 = vpop.f32.mrb[0].mxu0
      %v2510 = vadd.f32 0.0, %v2509
      %v2511 = vpop.f32.mrb[0].mxu0
      %v2512 = vpop.f32.mrb[0].mxu0
      %v2513 = vadd.f32 0.0, %v2512
      %v2514 = vpop.f32.mrb[0].mxu0
      %2515 = vmatprep.mubr.bf16.mxu0 %v673
      %2516 = vmatmul.mubr.bf16.gmra.mrb[0].mxu0 %v577
      %v2517 = vpop.f32.mrb[0].mxu0
      %v2518 = vadd.f32 0.0, %v2517
      %v2519 = vpop.f32.mrb[0].mxu0
      %v2520 = vpop.f32.mrb[0].mxu0
      %v2521 = vadd.f32 0.0, %v2520
      %v2522 = vpop.f32.mrb[0].mxu0
      %2523 = vmatprep.mubr.bf16.mxu0 %v674
      %2524 = vmatmul.mubr.bf16.gmra.mrb[0].mxu0 %v578
      %v2525 = vpop.f32.mrb[0].mxu0
      %v2526 = vadd.f32 0.0, %v2525
      %v2527 = vpop.f32.mrb[0].mxu0
      %v2528 = vpop.f32.mrb[0].mxu0
      %v2529 = vadd.f32 0.0, %v2528
      %v2530 = vpop.f32.mrb[0].mxu0
      %2531 = vmatprep.mubr.bf16.mxu0 %v675
      %2532 = vmatmul.mubr.bf16.gmra.mrb[0].mxu0 %v579
      %v2533 = vpop.f32.mrb[0].mxu0
      %v2534 = vadd.f32 0.0, %v2533
      %v2535 = vpop.f32.mrb[0].mxu0
      %v2536 = vpop.f32.mrb[0].mxu0
      %v2537 = vadd.f32 0.0, %v2536
      %v2538 = vpop.f32.mrb[0].mxu0
      %2539 = vmatprep.mubr.bf16.mxu0 %v676
      %2540 = vmatmul.mubr.bf16.gmra.mrb[0].mxu0 %v580
      %v2541 = vpop.f32.mrb[0].mxu0
      %v2542 = vadd.f32 0.0, %v2541
      %v2543 = vpop.f32.mrb[0].mxu0
      %v2544 = vpop.f32.mrb[0].mxu0
      %v2545 = vadd.f32 0.0, %v2544
      %v2546 = vpop.f32.mrb[0].mxu0
      %2547 = vmatprep.mubr.bf16.mxu0 %v677
      %2548 = vmatmul.mubr.bf16.gmra.mrb[0].mxu0 %v581
      %v2549 = vpop.f32.mrb[0].mxu0
      %v2550 = vadd.f32 0.0, %v2549
      %v2551 = vpop.f32.mrb[0].mxu0
      %v2552 = vpop.f32.mrb[0].mxu0
      %v2553 = vadd.f32 0.0, %v2552
      %v2554 = vpop.f32.mrb[0].mxu0
      %2555 = vmatprep.mubr.bf16.mxu0 %v678
      %2556 = vmatmul.mubr.bf16.gmra.mrb[0].mxu0 %v582
      %v2557 = vpop.f32.mrb[0].mxu0
      %v2558 = vadd.f32 0.0, %v2557
      %v2559 = vpop.f32.mrb[0].mxu0
      %v2560 = vpop.f32.mrb[0].mxu0
      %v2561 = vadd.f32 0.0, %v2560
      %v2562 = vpop.f32.mrb[0].mxu0
      %2563 = vmatprep.mubr.bf16.mxu0 %v679
      %2564 = vmatmul.mubr.bf16.gmra.mrb[0].mxu0 %v583
      %v2565 = vpop.f32.mrb[0].mxu0
      %v2566 = vadd.f32 0.0, %v2565
      %v2567 = vpop.f32.mrb[0].mxu0
      %v2568 = vpop.f32.mrb[0].mxu0
      %v2569 = vadd.f32 0.0, %v2568
      %v2570 = vpop.f32.mrb[0].mxu0
      %2571 = vmatprep.mubr.bf16.mxu0 %v680
      %2572 = vmatmul.mubr.bf16.gmra.mrb[0].mxu0 %v584
      %v2573 = vpop.f32.mrb[0].mxu0
      %v2574 = vadd.f32 0.0, %v2573
      %v2575 = vpop.f32.mrb[0].mxu0
      %v2576 = vpop.f32.mrb[0].mxu0
      %v2577 = vadd.f32 0.0, %v2576
      %v2578 = vpop.f32.mrb[0].mxu0
      %2579 = vmatprep.mubr.bf16.mxu0 %v681
      %2580 = vmatmul.mubr.bf16.gmra.mrb[0].mxu0 %v585
      %v2581 = vpop.f32.mrb[0].mxu0
      %v2582 = vadd.f32 0.0, %v2581
      %v2583 = vpop.f32.mrb[0].mxu0
      %v2584 = vpop.f32.mrb[0].mxu0
      %v2585 = vadd.f32 0.0, %v2584
      %v2586 = vpop.f32.mrb[0].mxu0
      %2587 = vdwg.mxu0
      %2588 = vmatprep.subr.bf16.mxu0 0
      %2589 = vmatpush1.bf16.msra.mxu0 %v2299
      %2590 = vmatprep.subr.bf16.mxu0 0
      %2591 = vmatpush1.bf16.msra.mxu0 %v2300
      %2592 = vmatprep.subr.bf16.mxu0 0
      %2593 = vmatpush1.bf16.msra.mxu0 %v2301
      %2594 = vmatprep.subr.bf16.mxu0 0
      %2595 = vmatpush1.bf16.msra.mxu0 %v2302
      %2596 = vmatprep.subr.bf16.mxu0 0
      %2597 = vmatpush1.bf16.msra.mxu0 %v2303
      %2598 = vmatprep.subr.bf16.mxu0 0
      %2599 = vmatpush1.bf16.msra.mxu0 %v2304
      %2600 = vmatprep.subr.bf16.mxu0 0
      %2601 = vmatpush1.bf16.msra.mxu0 %v2305
      %2602 = vmatprep.subr.bf16.mxu0 0
      %2603 = vmatpush1.bf16.msra.mxu0 %v2306
      %2604 = vmatprep.subr.bf16.mxu0 0
      %2605 = vmatpush1.bf16.msra.mxu0 %v2307
      %2606 = vmatprep.subr.bf16.mxu0 0
      %2607 = vmatpush1.bf16.msra.mxu0 %v2308
      %2608 = vmatprep.subr.bf16.mxu0 0
      %2609 = vmatpush1.bf16.msra.mxu0 %v2309
      %2610 = vmatprep.subr.bf16.mxu0 0
      %2611 = vmatpush1.bf16.msra.mxu0 %v2310
      %2612 = vmatprep.subr.bf16.mxu0 0
      %2613 = vmatpush1.bf16.msra.mxu0 %v2311
      %2614 = vmatprep.subr.bf16.mxu0 0
      %2615 = vmatpush1.bf16.msra.mxu0 %v2312
      %2616 = vmatprep.subr.bf16.mxu0 0
      %2617 = vmatpush1.bf16.msra.mxu0 %v2313
      %2618 = vmatprep.subr.bf16.mxu0 0
      %2619 = vmatpush1.bf16.msra.mxu0 %v2314
      %2620 = vmatprep.mubr.bf16.mxu0 %v1019
      %2621 = vmatmul.mubr.bf16.gmra.mrb[0].mxu0 %v758
      %v2622 = vpop.f32.mrb[0].mxu0
      %v2623 = vadd.f32 %v2462, %v2622
      %v2624 = vpop.f32.mrb[0].mxu0
      %v2625 = vpop.f32.mrb[0].mxu0
      %v2626 = vadd.f32 %v2465, %v2625
      %v2627 = vpop.f32.mrb[0].mxu0
      %2628 = vmatprep.mubr.bf16.mxu0 %v1020
      %2629 = vmatmul.mubr.bf16.gmra.mrb[0].mxu0 %v770
      %v2630 = vpop.f32.mrb[0].mxu0
      %v2631 = vadd.f32 %v2470, %v2630
      %v2632 = vpop.f32.mrb[0].mxu0
      %v2633 = vpop.f32.mrb[0].mxu0
      %v2634 = vadd.f32 %v2473, %v2633
      %v2635 = vpop.f32.mrb[0].mxu0
      %2636 = vmatprep.mubr.bf16.mxu0 %v1021
      %2637 = vmatmul.mubr.bf16.gmra.mrb[0].mxu0 %v782
      %v2638 = vpop.f32.mrb[0].mxu0
      %v2639 = vadd.f32 %v2478, %v2638
      %v2640 = vpop.f32.mrb[0].mxu0
      %v2641 = vpop.f32.mrb[0].mxu0
      %v2642 = vadd.f32 %v2481, %v2641
      %v2643 = vpop.f32.mrb[0].mxu0
      %2644 = vmatprep.mubr.bf16.mxu0 %v1022
      %2645 = vmatmul.mubr.bf16.gmra.mrb[0].mxu0 %v794
      %v2646 = vpop.f32.mrb[0].mxu0
      %v2647 = vadd.f32 %v2486, %v2646
      %v2648 = vpop.f32.mrb[0].mxu0
      %v2649 = vpop.f32.mrb[0].mxu0
      %v2650 = vadd.f32 %v2489, %v2649
      %v2651 = vpop.f32.mrb[0].mxu0
      %2652 = vmatprep.mubr.bf16.mxu0 %v1023
      %2653 = vmatmul.mubr.bf16.gmra.mrb[0].mxu0 %v806
      %v2654 = vpop.f32.mrb[0].mxu0
      %v2655 = vadd.f32 %v2494, %v2654
      %v2656 = vpop.f32.mrb[0].mxu0
      %v2657 = vpop.f32.mrb[0].mxu0
      %v2658 = vadd.f32 %v2497, %v2657
      %v2659 = vpop.f32.mrb[0].mxu0
      %2660 = vmatprep.mubr.bf16.mxu0 %v1024
      %2661 = vmatmul.mubr.bf16.gmra.mrb[0].mxu0 %v818
      %v2662 = vpop.f32.mrb[0].mxu0
      %v2663 = vadd.f32 %v2502, %v2662
      %v2664 = vpop.f32.mrb[0].mxu0
      %v2665 = vpop.f32.mrb[0].mxu0
      %v2666 = vadd.f32 %v2505, %v2665
      %v2667 = vpop.f32.mrb[0].mxu0
      %2668 = vmatprep.mubr.bf16.mxu0 %v1025
      %2669 = vmatmul.mubr.bf16.gmra.mrb[0].mxu0 %v830
      %v2670 = vpop.f32.mrb[0].mxu0
      %v2671 = vadd.f32 %v2510, %v2670
      %v2672 = vpop.f32.mrb[0].mxu0
      %v2673 = vpop.f32.mrb[0].mxu0
      %v2674 = vadd.f32 %v2513, %v2673
      %v2675 = vpop.f32.mrb[0].mxu0
      %2676 = vmatprep.mubr.bf16.mxu0 %v1026
      %2677 = vmatmul.mubr.bf16.gmra.mrb[0].mxu0 %v842
      %v2678 = vpop.f32.mrb[0].mxu0
      %v2679 = vadd.f32 %v2518, %v2678
      %v2680 = vpop.f32.mrb[0].mxu0
      %v2681 = vpop.f32.mrb[0].mxu0
      %v2682 = vadd.f32 %v2521, %v2681
      %v2683 = vpop.f32.mrb[0].mxu0
      %2684 = vmatprep.mubr.bf16.mxu0 %v1027
      %2685 = vmatmul.mubr.bf16.gmra.mrb[0].mxu0 %v854
      %v2686 = vpop.f32.mrb[0].mxu0
      %v2687 = vadd.f32 %v2526, %v2686
      %v2688 = vpop.f32.mrb[0].mxu0
      %v2689 = vpop.f32.mrb[0].mxu0
      %v2690 = vadd.f32 %v2529, %v2689
      %v2691 = vpop.f32.mrb[0].mxu0
      %2692 = vmatprep.mubr.bf16.mxu0 %v1028
      %2693 = vmatmul.mubr.bf16.gmra.mrb[0].mxu0 %v866
      %v2694 = vpop.f32.mrb[0].mxu0
      %v2695 = vadd.f32 %v2534, %v2694
      %v2696 = vpop.f32.mrb[0].mxu0
      %v2697 = vpop.f32.mrb[0].mxu0
      %v2698 = vadd.f32 %v2537, %v2697
      %v2699 = vpop.f32.mrb[0].mxu0
      %2700 = vmatprep.mubr.bf16.mxu0 %v1029
      %2701 = vmatmul.mubr.bf16.gmra.mrb[0].mxu0 %v878
      %v2702 = vpop.f32.mrb[0].mxu0
      %v2703 = vadd.f32 %v2542, %v2702
      %v2704 = vpop.f32.mrb[0].mxu0
      %v2705 = vpop.f32.mrb[0].mxu0
      %v2706 = vadd.f32 %v2545, %v2705
      %v2707 = vpop.f32.mrb[0].mxu0
      %2708 = vmatprep.mubr.bf16.mxu0 %v1030
      %2709 = vmatmul.mubr.bf16.gmra.mrb[0].mxu0 %v890
      %v2710 = vpop.f32.mrb[0].mxu0
      %v2711 = vadd.f32 %v2550, %v2710
      %v2712 = vpop.f32.mrb[0].mxu0
      %v2713 = vpop.f32.mrb[0].mxu0
      %v2714 = vadd.f32 %v2553, %v2713
      %v2715 = vpop.f32.mrb[0].mxu0
      %2716 = vmatprep.mubr.bf16.mxu0 %v1031
      %2717 = vmatmul.mubr.bf16.gmra.mrb[0].mxu0 %v902
      %v2718 = vpop.f32.mrb[0].mxu0
      %v2719 = vadd.f32 %v2558, %v2718
      %v2720 = vpop.f32.mrb[0].mxu0
      %v2721 = vpop.f32.mrb[0].mxu0
      %v2722 = vadd.f32 %v2561, %v2721
      %v2723 = vpop.f32.mrb[0].mxu0
      %2724 = vmatprep.mubr.bf16.mxu0 %v1032
      %2725 = vmatmul.mubr.bf16.gmra.mrb[0].mxu0 %v914
      %v2726 = vpop.f32.mrb[0].mxu0
      %v2727 = vadd.f32 %v2566, %v2726
      %v2728 = vpop.f32.mrb[0].mxu0
      %v2729 = vpop.f32.mrb[0].mxu0
      %v2730 = vadd.f32 %v2569, %v2729
      %v2731 = vpop.f32.mrb[0].mxu0
      %2732 = vmatprep.mubr.bf16.mxu0 %v1033
      %2733 = vmatmul.mubr.bf16.gmra.mrb[0].mxu0 %v926
      %v2734 = vpop.f32.mrb[0].mxu0
      %v2735 = vadd.f32 %v2574, %v2734
      %v2736 = vpop.f32.mrb[0].mxu0
      %v2737 = vpop.f32.mrb[0].mxu0
      %v2738 = vadd.f32 %v2577, %v2737
      %v2739 = vpop.f32.mrb[0].mxu0
      %2740 = vmatprep.mubr.bf16.mxu0 %v1034
      %2741 = vmatmul.mubr.bf16.gmra.mrb[0].mxu0 %v938
      %v2742 = vpop.f32.mrb[0].mxu0
      %v2743 = vadd.f32 %v2582, %v2742
      %v2744 = vpop.f32.mrb[0].mxu0
      %v2745 = vpop.f32.mrb[0].mxu0
      %v2746 = vadd.f32 %v2585, %v2745
      %v2747 = vpop.f32.mrb[0].mxu0
      %2748 = vdwg.mxu0
      %2749 = vmatprep.subr.bf16.mxu0 0
      %2750 = vmatpush1.bf16.msra.mxu0 %v2315
      %2751 = vmatprep.subr.bf16.mxu0 0
      %2752 = vmatpush1.bf16.msra.mxu0 %v2316
      %2753 = vmatprep.subr.bf16.mxu0 0
      %2754 = vmatpush1.bf16.msra.mxu0 %v2317
      %2755 = vmatprep.subr.bf16.mxu0 0
      %2756 = vmatpush1.bf16.msra.mxu0 %v2318
      %2757 = vmatprep.subr.bf16.mxu0 0
      %2758 = vmatpush1.bf16.msra.mxu0 %v2319
      %2759 = vmatprep.subr.bf16.mxu0 0
      %2760 = vmatpush1.bf16.msra.mxu0 %v2320
      %2761 = vmatprep.subr.bf16.mxu0 0
      %2762 = vmatpush1.bf16.msra.mxu0 %v2321
      %2763 = vmatprep.subr.bf16.mxu0 0
      %2764 = vmatpush1.bf16.msra.mxu0 %v2322
      %2765 = vmatprep.subr.bf16.mxu0 0
      %2766 = vmatpush1.bf16.msra.mxu0 %v2323
      %2767 = vmatprep.subr.bf16.mxu0 0
      %2768 = vmatpush1.bf16.msra.mxu0 %v2324
      %2769 = vmatprep.subr.bf16.mxu0 0
      %2770 = vmatpush1.bf16.msra.mxu0 %v2325
      %2771 = vmatprep.subr.bf16.mxu0 0
      %2772 = vmatpush1.bf16.msra.mxu0 %v2326
      %2773 = vmatprep.subr.bf16.mxu0 0
      %2774 = vmatpush1.bf16.msra.mxu0 %v2327
      %2775 = vmatprep.subr.bf16.mxu0 0
      %2776 = vmatpush1.bf16.msra.mxu0 %v2328
      %2777 = vmatprep.subr.bf16.mxu0 0
      %2778 = vmatpush1.bf16.msra.mxu0 %v2329
      %2779 = vmatprep.subr.bf16.mxu0 0
      %2780 = vmatpush1.bf16.msra.mxu0 %v2330
      %2781 = vmatprep.mubr.bf16.mxu0 %v1206
      %2782 = vmatmul.mubr.bf16.gmra.mrb[0].mxu0 %v1115
      %v2783 = vpop.f32.mrb[0].mxu0
      %v2784 = vadd.f32 %v2623, %v2783
      %v2785 = vpop.f32.mrb[0].mxu0
      %v2786 = vpop.f32.mrb[0].mxu0
      %v2787 = vadd.f32 %v2626, %v2786
      %v2788 = vpop.f32.mrb[0].mxu0
      %2789 = vmatprep.mubr.bf16.mxu0 %v1218
      %2790 = vmatmul.mubr.bf16.gmra.mrb[0].mxu0 %v1116
      %v2791 = vpop.f32.mrb[0].mxu0
      %v2792 = vadd.f32 %v2631, %v2791
      %v2793 = vpop.f32.mrb[0].mxu0
      %v2794 = vpop.f32.mrb[0].mxu0
      %v2795 = vadd.f32 %v2634, %v2794
      %v2796 = vpop.f32.mrb[0].mxu0
      %2797 = vmatprep.mubr.bf16.mxu0 %v1230
      %2798 = vmatmul.mubr.bf16.gmra.mrb[0].mxu0 %v1117
      %v2799 = vpop.f32.mrb[0].mxu0
      %v2800 = vadd.f32 %v2639, %v2799
      %v2801 = vpop.f32.mrb[0].mxu0
      %v2802 = vpop.f32.mrb[0].mxu0
      %v2803 = vadd.f32 %v2642, %v2802
      %v2804 = vpop.f32.mrb[0].mxu0
      %2805 = vmatprep.mubr.bf16.mxu0 %v1242
      %2806 = vmatmul.mubr.bf16.gmra.mrb[0].mxu0 %v1118
      %v2807 = vpop.f32.mrb[0].mxu0
      %v2808 = vadd.f32 %v2647, %v2807
      %v2809 = vpop.f32.mrb[0].mxu0
      %v2810 = vpop.f32.mrb[0].mxu0
      %v2811 = vadd.f32 %v2650, %v2810
      %v2812 = vpop.f32.mrb[0].mxu0
      %2813 = vmatprep.mubr.bf16.mxu0 %v1254
      %2814 = vmatmul.mubr.bf16.gmra.mrb[0].mxu0 %v1119
      %v2815 = vpop.f32.mrb[0].mxu0
      %v2816 = vadd.f32 %v2655, %v2815
      %v2817 = vpop.f32.mrb[0].mxu0
      %v2818 = vpop.f32.mrb[0].mxu0
      %v2819 = vadd.f32 %v2658, %v2818
      %v2820 = vpop.f32.mrb[0].mxu0
      %2821 = vmatprep.mubr.bf16.mxu0 %v1266
      %2822 = vmatmul.mubr.bf16.gmra.mrb[0].mxu0 %v1120
      %v2823 = vpop.f32.mrb[0].mxu0
      %v2824 = vadd.f32 %v2663, %v2823
      %v2825 = vpop.f32.mrb[0].mxu0
      %v2826 = vpop.f32.mrb[0].mxu0
      %v2827 = vadd.f32 %v2666, %v2826
      %v2828 = vpop.f32.mrb[0].mxu0
      %2829 = vmatprep.mubr.bf16.mxu0 %v1278
      %2830 = vmatmul.mubr.bf16.gmra.mrb[0].mxu0 %v1121
      %v2831 = vpop.f32.mrb[0].mxu0
      %v2832 = vadd.f32 %v2671, %v2831
      %v2833 = vpop.f32.mrb[0].mxu0
      %v2834 = vpop.f32.mrb[0].mxu0
      %v2835 = vadd.f32 %v2674, %v2834
      %v2836 = vpop.f32.mrb[0].mxu0
      %2837 = vmatprep.mubr.bf16.mxu0 %v1290
      %2838 = vmatmul.mubr.bf16.gmra.mrb[0].mxu0 %v1122
      %v2839 = vpop.f32.mrb[0].mxu0
      %v2840 = vadd.f32 %v2679, %v2839
      %v2841 = vpop.f32.mrb[0].mxu0
      %v2842 = vpop.f32.mrb[0].mxu0
      %v2843 = vadd.f32 %v2682, %v2842
      %v2844 = vpop.f32.mrb[0].mxu0
      %2845 = vmatprep.mubr.bf16.mxu0 %v1302
      %2846 = vmatmul.mubr.bf16.gmra.mrb[0].mxu0 %v1123
      %v2847 = vpop.f32.mrb[0].mxu0
      %v2848 = vadd.f32 %v2687, %v2847
      %v2849 = vpop.f32.mrb[0].mxu0
      %v2850 = vpop.f32.mrb[0].mxu0
      %v2851 = vadd.f32 %v2690, %v2850
      %v2852 = vpop.f32.mrb[0].mxu0
      %2853 = vmatprep.mubr.bf16.mxu0 %v1314
      %2854 = vmatmul.mubr.bf16.gmra.mrb[0].mxu0 %v1124
      %v2855 = vpop.f32.mrb[0].mxu0
      %v2856 = vadd.f32 %v2695, %v2855
      %v2857 = vpop.f32.mrb[0].mxu0
      %v2858 = vpop.f32.mrb[0].mxu0
      %v2859 = vadd.f32 %v2698, %v2858
      %v2860 = vpop.f32.mrb[0].mxu0
      %2861 = vmatprep.mubr.bf16.mxu0 %v1326
      %2862 = vmatmul.mubr.bf16.gmra.mrb[0].mxu0 %v1125
      %v2863 = vpop.f32.mrb[0].mxu0
      %v2864 = vadd.f32 %v2703, %v2863
      %v2865 = vpop.f32.mrb[0].mxu0
      %v2866 = vpop.f32.mrb[0].mxu0
      %v2867 = vadd.f32 %v2706, %v2866
      %v2868 = vpop.f32.mrb[0].mxu0
      %2869 = vmatprep.mubr.bf16.mxu0 %v1338
      %2870 = vmatmul.mubr.bf16.gmra.mrb[0].mxu0 %v1126
      %v2871 = vpop.f32.mrb[0].mxu0
      %v2872 = vadd.f32 %v2711, %v2871
      %v2873 = vpop.f32.mrb[0].mxu0
      %v2874 = vpop.f32.mrb[0].mxu0
      %v2875 = vadd.f32 %v2714, %v2874
      %v2876 = vpop.f32.mrb[0].mxu0
      %2877 = vmatprep.mubr.bf16.mxu0 %v1350
      %2878 = vmatmul.mubr.bf16.gmra.mrb[0].mxu0 %v1127
      %v2879 = vpop.f32.mrb[0].mxu0
      %v2880 = vadd.f32 %v2719, %v2879
      %v2881 = vpop.f32.mrb[0].mxu0
      %v2882 = vpop.f32.mrb[0].mxu0
      %v2883 = vadd.f32 %v2722, %v2882
      %v2884 = vpop.f32.mrb[0].mxu0
      %2885 = vmatprep.mubr.bf16.mxu0 %v1362
      %2886 = vmatmul.mubr.bf16.gmra.mrb[0].mxu0 %v1128
      %v2887 = vpop.f32.mrb[0].mxu0
      %v2888 = vadd.f32 %v2727, %v2887
      %v2889 = vpop.f32.mrb[0].mxu0
      %v2890 = vpop.f32.mrb[0].mxu0
      %v2891 = vadd.f32 %v2730, %v2890
      %v2892 = vpop.f32.mrb[0].mxu0
      %2893 = vmatprep.mubr.bf16.mxu0 %v1374
      %2894 = vmatmul.mubr.bf16.gmra.mrb[0].mxu0 %v1129
      %v2895 = vpop.f32.mrb[0].mxu0
      %v2896 = vadd.f32 %v2735, %v2895
      %v2897 = vpop.f32.mrb[0].mxu0
      %v2898 = vpop.f32.mrb[0].mxu0
      %v2899 = vadd.f32 %v2738, %v2898
      %v2900 = vpop.f32.mrb[0].mxu0
      %2901 = vmatprep.mubr.bf16.mxu0 %v1386
      %2902 = vmatmul.mubr.bf16.gmra.mrb[0].mxu0 %v1130
      %v2903 = vpop.f32.mrb[0].mxu0
      %v2904 = vadd.f32 %v2743, %v2903
      %v2905 = vpop.f32.mrb[0].mxu0
      %v2906 = vpop.f32.mrb[0].mxu0
      %v2907 = vadd.f32 %v2746, %v2906
      %v2908 = vpop.f32.mrb[0].mxu0
      %2909 = vdwg.mxu0
      %2910 = vmatprep.subr.bf16.mxu0 0
      %2911 = vmatpush1.bf16.msra.mxu0 %v2331
      %2912 = vmatprep.subr.bf16.mxu0 0
      %2913 = vmatpush1.bf16.msra.mxu0 %v2332
      %2914 = vmatprep.subr.bf16.mxu0 0
      %2915 = vmatpush1.bf16.msra.mxu0 %v2333
      %2916 = vmatprep.subr.bf16.mxu0 0
      %2917 = vmatpush1.bf16.msra.mxu0 %v2334
      %2918 = vmatprep.subr.bf16.mxu0 0
      %2919 = vmatpush1.bf16.msra.mxu0 %v2335
      %2920 = vmatprep.subr.bf16.mxu0 0
      %2921 = vmatpush1.bf16.msra.mxu0 %v2336
      %2922 = vmatprep.subr.bf16.mxu0 0
      %2923 = vmatpush1.bf16.msra.mxu0 %v2337
      %2924 = vmatprep.subr.bf16.mxu0 0
      %2925 = vmatpush1.bf16.msra.mxu0 %v2338
      %2926 = vmatprep.subr.bf16.mxu0 0
      %2927 = vmatpush1.bf16.msra.mxu0 %v2339
      %2928 = vmatprep.subr.bf16.mxu0 0
      %2929 = vmatpush1.bf16.msra.mxu0 %v2340
      %2930 = vmatprep.subr.bf16.mxu0 0
      %2931 = vmatpush1.bf16.msra.mxu0 %v2341
      %2932 = vmatprep.subr.bf16.mxu0 0
      %2933 = vmatpush1.bf16.msra.mxu0 %v2342
      %2934 = vmatprep.subr.bf16.mxu0 0
      %2935 = vmatpush1.bf16.msra.mxu0 %v2343
      %2936 = vmatprep.subr.bf16.mxu0 0
      %2937 = vmatpush1.bf16.msra.mxu0 %v2344
      %2938 = vmatprep.subr.bf16.mxu0 0
      %2939 = vmatpush1.bf16.msra.mxu0 %v2345
      %2940 = vmatprep.subr.bf16.mxu0 0
      %2941 = vmatpush1.bf16.msra.mxu0 %v2346
      %2942 = vmatprep.mubr.bf16.mxu0 %v1563
      %2943 = vmatmul.mubr.bf16.gmra.mrb[0].mxu0 %v1467
      %v2944 = vpop.f32.mrb[0].mxu0
      %v2945 = vadd.f32 %v2784, %v2944
      %v2946 = vpop.f32.mrb[0].mxu0
      %v2947 = vpop.f32.mrb[0].mxu0
      %v2948 = vadd.f32 %v2787, %v2947
      %v2949 = vpop.f32.mrb[0].mxu0
      %2950 = vmatprep.mubr.bf16.mxu0 %v1564
      %2951 = vmatmul.mubr.bf16.gmra.mrb[0].mxu0 %v1468
      %v2952 = vpop.f32.mrb[0].mxu0
      %v2953 = vadd.f32 %v2792, %v2952
      %v2954 = vpop.f32.mrb[0].mxu0
      %v2955 = vpop.f32.mrb[0].mxu0
      %v2956 = vadd.f32 %v2795, %v2955
      %v2957 = vpop.f32.mrb[0].mxu0
      %2958 = vmatprep.mubr.bf16.mxu0 %v1565
      %2959 = vmatmul.mubr.bf16.gmra.mrb[0].mxu0 %v1469
      %v2960 = vpop.f32.mrb[0].mxu0
      %v2961 = vadd.f32 %v2800, %v2960
      %v2962 = vpop.f32.mrb[0].mxu0
      %v2963 = vpop.f32.mrb[0].mxu0
      %v2964 = vadd.f32 %v2803, %v2963
      %v2965 = vpop.f32.mrb[0].mxu0
      %2966 = vmatprep.mubr.bf16.mxu0 %v1566
      %2967 = vmatmul.mubr.bf16.gmra.mrb[0].mxu0 %v1470
      %v2968 = vpop.f32.mrb[0].mxu0
      %v2969 = vadd.f32 %v2808, %v2968
      %v2970 = vpop.f32.mrb[0].mxu0
      %v2971 = vpop.f32.mrb[0].mxu0
      %v2972 = vadd.f32 %v2811, %v2971
      %v2973 = vpop.f32.mrb[0].mxu0
      %2974 = vmatprep.mubr.bf16.mxu0 %v1567
      %2975 = vmatmul.mubr.bf16.gmra.mrb[0].mxu0 %v1471
      %v2976 = vpop.f32.mrb[0].mxu0
      %v2977 = vadd.f32 %v2816, %v2976
      %v2978 = vpop.f32.mrb[0].mxu0
      %v2979 = vpop.f32.mrb[0].mxu0
      %v2980 = vadd.f32 %v2819, %v2979
      %v2981 = vpop.f32.mrb[0].mxu0
      %2982 = vmatprep.mubr.bf16.mxu0 %v1568
      %2983 = vmatmul.mubr.bf16.gmra.mrb[0].mxu0 %v1472
      %v2984 = vpop.f32.mrb[0].mxu0
      %v2985 = vadd.f32 %v2824, %v2984
      %v2986 = vpop.f32.mrb[0].mxu0
      %v2987 = vpop.f32.mrb[0].mxu0
      %v2988 = vadd.f32 %v2827, %v2987
      %v2989 = vpop.f32.mrb[0].mxu0
      %2990 = vmatprep.mubr.bf16.mxu0 %v1569
      %2991 = vmatmul.mubr.bf16.gmra.mrb[0].mxu0 %v1473
      %v2992 = vpop.f32.mrb[0].mxu0
      %v2993 = vadd.f32 %v2832, %v2992
      %v2994 = vpop.f32.mrb[0].mxu0
      %v2995 = vpop.f32.mrb[0].mxu0
      %v2996 = vadd.f32 %v2835, %v2995
      %v2997 = vpop.f32.mrb[0].mxu0
      %2998 = vmatprep.mubr.bf16.mxu0 %v1570
      %2999 = vmatmul.mubr.bf16.gmra.mrb[0].mxu0 %v1474
      %v3000 = vpop.f32.mrb[0].mxu0
      %v3001 = vadd.f32 %v2840, %v3000
      %v3002 = vpop.f32.mrb[0].mxu0
      %v3003 = vpop.f32.mrb[0].mxu0
      %v3004 = vadd.f32 %v2843, %v3003
      %v3005 = vpop.f32.mrb[0].mxu0
      %3006 = vmatprep.mubr.bf16.mxu0 %v1571
      %3007 = vmatmul.mubr.bf16.gmra.mrb[0].mxu0 %v1475
      %v3008 = vpop.f32.mrb[0].mxu0
      %v3009 = vadd.f32 %v2848, %v3008
      %v3010 = vpop.f32.mrb[0].mxu0
      %v3011 = vpop.f32.mrb[0].mxu0
      %v3012 = vadd.f32 %v2851, %v3011
      %v3013 = vpop.f32.mrb[0].mxu0
      %3014 = vmatprep.mubr.bf16.mxu0 %v1572
      %3015 = vmatmul.mubr.bf16.gmra.mrb[0].mxu0 %v1476
      %v3016 = vpop.f32.mrb[0].mxu0
      %v3017 = vadd.f32 %v2856, %v3016
      %v3018 = vpop.f32.mrb[0].mxu0
      %v3019 = vpop.f32.mrb[0].mxu0
      %v3020 = vadd.f32 %v2859, %v3019
      %v3021 = vpop.f32.mrb[0].mxu0
      %3022 = vmatprep.mubr.bf16.mxu0 %v1573
      %3023 = vmatmul.mubr.bf16.gmra.mrb[0].mxu0 %v1477
      %v3024 = vpop.f32.mrb[0].mxu0
      %v3025 = vadd.f32 %v2864, %v3024
      %v3026 = vpop.f32.mrb[0].mxu0
      %v3027 = vpop.f32.mrb[0].mxu0
      %v3028 = vadd.f32 %v2867, %v3027
      %v3029 = vpop.f32.mrb[0].mxu0
      %3030 = vmatprep.mubr.bf16.mxu0 %v1574
      %3031 = vmatmul.mubr.bf16.gmra.mrb[0].mxu0 %v1478
      %v3032 = vpop.f32.mrb[0].mxu0
      %v3033 = vadd.f32 %v2872, %v3032
      %v3034 = vpop.f32.mrb[0].mxu0
      %v3035 = vpop.f32.mrb[0].mxu0
      %v3036 = vadd.f32 %v2875, %v3035
      %v3037 = vpop.f32.mrb[0].mxu0
      %3038 = vmatprep.mubr.bf16.mxu0 %v1575
      %3039 = vmatmul.mubr.bf16.gmra.mrb[0].mxu0 %v1479
      %v3040 = vpop.f32.mrb[0].mxu0
      %v3041 = vadd.f32 %v2880, %v3040
      %v3042 = vpop.f32.mrb[0].mxu0
      %v3043 = vpop.f32.mrb[0].mxu0
      %v3044 = vadd.f32 %v2883, %v3043
      %v3045 = vpop.f32.mrb[0].mxu0
      %3046 = vmatprep.mubr.bf16.mxu0 %v1576
      %3047 = vmatmul.mubr.bf16.gmra.mrb[0].mxu0 %v1480
      %v3048 = vpop.f32.mrb[0].mxu0
      %v3049 = vadd.f32 %v2888, %v3048
      %v3050 = vpop.f32.mrb[0].mxu0
      %v3051 = vpop.f32.mrb[0].mxu0
      %v3052 = vadd.f32 %v2891, %v3051
      %v3053 = vpop.f32.mrb[0].mxu0
      %3054 = vmatprep.mubr.bf16.mxu0 %v1577
      %3055 = vmatmul.mubr.bf16.gmra.mrb[0].mxu0 %v1481
      %v3056 = vpop.f32.mrb[0].mxu0
      %v3057 = vadd.f32 %v2896, %v3056
      %v3058 = vpop.f32.mrb[0].mxu0
      %v3059 = vpop.f32.mrb[0].mxu0
      %v3060 = vadd.f32 %v2899, %v3059
      %v3061 = vpop.f32.mrb[0].mxu0
      %3062 = vmatprep.mubr.bf16.mxu0 %v1578
      %3063 = vmatmul.mubr.bf16.gmra.mrb[0].mxu0 %v1482
      %v3064 = vpop.f32.mrb[0].mxu0
      %v3065 = vadd.f32 %v2904, %v3064
      %v3066 = vpop.f32.mrb[0].mxu0
      %v3067 = vpop.f32.mrb[0].mxu0
      %v3068 = vadd.f32 %v2907, %v3067
      %v3069 = vpop.f32.mrb[0].mxu0
      %3070 = vdwg.mxu0
      %3071 = vmatprep.subr.bf16.mxu0 0
      %3072 = vmatpush1.bf16.msra.mxu0 %v2347
      %3073 = vmatprep.subr.bf16.mxu0 0
      %3074 = vmatpush1.bf16.msra.mxu0 %v2348
      %3075 = vmatprep.subr.bf16.mxu0 0
      %3076 = vmatpush1.bf16.msra.mxu0 %v2349
      %3077 = vmatprep.subr.bf16.mxu0 0
      %3078 = vmatpush1.bf16.msra.mxu0 %v2350
      %3079 = vmatprep.subr.bf16.mxu0 0
      %3080 = vmatpush1.bf16.msra.mxu0 %v2351
      %3081 = vmatprep.subr.bf16.mxu0 0
      %3082 = vmatpush1.bf16.msra.mxu0 %v2352
      %3083 = vmatprep.subr.bf16.mxu0 0
      %3084 = vmatpush1.bf16.msra.mxu0 %v2353
      %3085 = vmatprep.subr.bf16.mxu0 0
      %3086 = vmatpush1.bf16.msra.mxu0 %v2354
      %3087 = vmatprep.subr.bf16.mxu0 0
      %3088 = vmatpush1.bf16.msra.mxu0 0
      %3089 = vmatprep.subr.bf16.mxu0 0
      %3090 = vmatpush1.bf16.msra.mxu0 0
      %3091 = vmatprep.subr.bf16.mxu0 0
      %3092 = vmatpush1.bf16.msra.mxu0 0
      %3093 = vmatprep.subr.bf16.mxu0 0
      %3094 = vmatpush1.bf16.msra.mxu0 0
      %3095 = vmatprep.subr.bf16.mxu0 0
      %3096 = vmatpush1.bf16.msra.mxu0 0
      %3097 = vmatprep.subr.bf16.mxu0 0
      %3098 = vmatpush1.bf16.msra.mxu0 0
      %3099 = vmatprep.subr.bf16.mxu0 0
      %3100 = vmatpush1.bf16.msra.mxu0 0
      %3101 = vmatprep.subr.bf16.mxu0 0
      %3102 = vmatpush1.bf16.msra.mxu0 0
      %3103 = vmatprep.mubr.bf16.mxu0 0
      %3104 = vmatmul.mubr.bf16.gmra.mrb[0].mxu0 %v1654
      %v3105 = vpop.f32.mrb[0].mxu0
      %v3106 = vadd.f32 %v2945, %v3105
      %v3107 = vpop.f32.mrb[0].mxu0
      %v3108 = vpop.f32.mrb[0].mxu0
      %v3109 = vadd.f32 %v2948, %v3108
      %v3110 = vpop.f32.mrb[0].mxu0
      %3111 = vmatprep.mubr.bf16.mxu0 0
      %3112 = vmatmul.mubr.bf16.gmra.mrb[0].mxu0 %v1666
      %v3113 = vpop.f32.mrb[0].mxu0
      %v3114 = vadd.f32 %v2953, %v3113
      %v3115 = vpop.f32.mrb[0].mxu0
      %v3116 = vpop.f32.mrb[0].mxu0
      %v3117 = vadd.f32 %v2956, %v3116
      %v3118 = vpop.f32.mrb[0].mxu0
      %3119 = vmatprep.mubr.bf16.mxu0 0
      %3120 = vmatmul.mubr.bf16.gmra.mrb[0].mxu0 %v1678
      %v3121 = vpop.f32.mrb[0].mxu0
      %v3122 = vadd.f32 %v2961, %v3121
      %v3123 = vpop.f32.mrb[0].mxu0
      %v3124 = vpop.f32.mrb[0].mxu0
      %v3125 = vadd.f32 %v2964, %v3124
      %v3126 = vpop.f32.mrb[0].mxu0
      %3127 = vmatprep.mubr.bf16.mxu0 0
      %3128 = vmatmul.mubr.bf16.gmra.mrb[0].mxu0 %v1690
      %v3129 = vpop.f32.mrb[0].mxu0
      %v3130 = vadd.f32 %v2969, %v3129
      %v3131 = vpop.f32.mrb[0].mxu0
      %v3132 = vpop.f32.mrb[0].mxu0
      %v3133 = vadd.f32 %v2972, %v3132
      %v3134 = vpop.f32.mrb[0].mxu0
      %3135 = vmatprep.mubr.bf16.mxu0 0
      %3136 = vmatmul.mubr.bf16.gmra.mrb[0].mxu0 %v1702
      %v3137 = vpop.f32.mrb[0].mxu0
      %v3138 = vadd.f32 %v2977, %v3137
      %v3139 = vpop.f32.mrb[0].mxu0
      %v3140 = vpop.f32.mrb[0].mxu0
      %v3141 = vadd.f32 %v2980, %v3140
      %v3142 = vpop.f32.mrb[0].mxu0
      %3143 = vmatprep.mubr.bf16.mxu0 0
      %3144 = vmatmul.mubr.bf16.gmra.mrb[0].mxu0 %v1714
      %v3145 = vpop.f32.mrb[0].mxu0
      %v3146 = vadd.f32 %v2985, %v3145
      %v3147 = vpop.f32.mrb[0].mxu0
      %v3148 = vpop.f32.mrb[0].mxu0
      %v3149 = vadd.f32 %v2988, %v3148
      %v3150 = vpop.f32.mrb[0].mxu0
      %3151 = vmatprep.mubr.bf16.mxu0 0
      %3152 = vmatmul.mubr.bf16.gmra.mrb[0].mxu0 %v1726
      %v3153 = vpop.f32.mrb[0].mxu0
      %v3154 = vadd.f32 %v2993, %v3153
      %v3155 = vpop.f32.mrb[0].mxu0
      %v3156 = vpop.f32.mrb[0].mxu0
      %v3157 = vadd.f32 %v2996, %v3156
      %v3158 = vpop.f32.mrb[0].mxu0
      %3159 = vmatprep.mubr.bf16.mxu0 0
      %3160 = vmatmul.mubr.bf16.gmra.mrb[0].mxu0 %v1738
      %v3161 = vpop.f32.mrb[0].mxu0
      %v3162 = vadd.f32 %v3001, %v3161
      %v3163 = vpop.f32.mrb[0].mxu0
      %v3164 = vpop.f32.mrb[0].mxu0
      %v3165 = vadd.f32 %v3004, %v3164
      %v3166 = vpop.f32.mrb[0].mxu0
      %3167 = vmatprep.mubr.bf16.mxu0 0
      %3168 = vmatmul.mubr.bf16.gmra.mrb[0].mxu0 %v1750
      %v3169 = vpop.f32.mrb[0].mxu0
      %v3170 = vadd.f32 %v3009, %v3169
      %v3171 = vpop.f32.mrb[0].mxu0
      %v3172 = vpop.f32.mrb[0].mxu0
      %v3173 = vadd.f32 %v3012, %v3172
      %v3174 = vpop.f32.mrb[0].mxu0
      %3175 = vmatprep.mubr.bf16.mxu0 0
      %3176 = vmatmul.mubr.bf16.gmra.mrb[0].mxu0 %v1762
      %v3177 = vpop.f32.mrb[0].mxu0
      %v3178 = vadd.f32 %v3017, %v3177
      %v3179 = vpop.f32.mrb[0].mxu0
      %v3180 = vpop.f32.mrb[0].mxu0
      %v3181 = vadd.f32 %v3020, %v3180
      %v3182 = vpop.f32.mrb[0].mxu0
      %3183 = vmatprep.mubr.bf16.mxu0 0
      %3184 = vmatmul.mubr.bf16.gmra.mrb[0].mxu0 %v1774
      %v3185 = vpop.f32.mrb[0].mxu0
      %v3186 = vadd.f32 %v3025, %v3185
      %v3187 = vpop.f32.mrb[0].mxu0
      %v3188 = vpop.f32.mrb[0].mxu0
      %v3189 = vadd.f32 %v3028, %v3188
      %v3190 = vpop.f32.mrb[0].mxu0
      %3191 = vmatprep.mubr.bf16.mxu0 0
      %3192 = vmatmul.mubr.bf16.gmra.mrb[0].mxu0 %v1786
      %v3193 = vpop.f32.mrb[0].mxu0
      %v3194 = vadd.f32 %v3033, %v3193
      %v3195 = vpop.f32.mrb[0].mxu0
      %v3196 = vpop.f32.mrb[0].mxu0
      %v3197 = vadd.f32 %v3036, %v3196
      %v3198 = vpop.f32.mrb[0].mxu0
      %3199 = vmatprep.mubr.bf16.mxu0 0
      %3200 = vmatmul.mubr.bf16.gmra.mrb[0].mxu0 %v1798
      %v3201 = vpop.f32.mrb[0].mxu0
      %v3202 = vadd.f32 %v3041, %v3201
      %v3203 = vpop.f32.mrb[0].mxu0
      %v3204 = vpop.f32.mrb[0].mxu0
      %v3205 = vadd.f32 %v3044, %v3204
      %v3206 = vpop.f32.mrb[0].mxu0
      %3207 = vmatprep.mubr.bf16.mxu0 0
      %3208 = vmatmul.mubr.bf16.gmra.mrb[0].mxu0 %v1810
      %v3209 = vpop.f32.mrb[0].mxu0
      %v3210 = vadd.f32 %v3049, %v3209
      %v3211 = vpop.f32.mrb[0].mxu0
      %v3212 = vpop.f32.mrb[0].mxu0
      %v3213 = vadd.f32 %v3052, %v3212
      %v3214 = vpop.f32.mrb[0].mxu0
      %3215 = vmatprep.mubr.bf16.mxu0 0
      %3216 = vmatmul.mubr.bf16.gmra.mrb[0].mxu0 %v1822
      %v3217 = vpop.f32.mrb[0].mxu0
      %v3218 = vadd.f32 %v3057, %v3217
      %v3219 = vpop.f32.mrb[0].mxu0
      %v3220 = vpop.f32.mrb[0].mxu0
      %v3221 = vadd.f32 %v3060, %v3220
      %v3222 = vpop.f32.mrb[0].mxu0
      %3223 = vmatprep.mubr.bf16.mxu0 0
      %3224 = vmatmul.mubr.bf16.gmra.mrb[0].mxu0 %v1834
      %v3225 = vpop.f32.mrb[0].mxu0
      %v3226 = vadd.f32 %v3065, %v3225
      %v3227 = vpop.f32.mrb[0].mxu0
      %v3228 = vpop.f32.mrb[0].mxu0
      %v3229 = vadd.f32 %v3068, %v3228
      %v3230 = vpop.f32.mrb[0].mxu0
      %3231 = vdwg.mxu0
      %v3232 = vld [vmem:[%s251] sm:$0x1]
      %v3234 = vlaneseq
      %v3235 = vshrl.u32 %v3234, 7
      %v3236 = vsub.s32 0, %v3235
      %v3237 = vrot.slane %v3232, %v3236
      %v3239 = vmul.f32 %v3106, %v3237
      %v3240 = vmul.f32 %v3109, %v3237
      %v3241 = vmul.f32 %v3114, %v3237
      %v3242 = vmul.f32 %v3117, %v3237
      %v3243 = vmul.f32 %v3122, %v3237
      %v3244 = vmul.f32 %v3125, %v3237
      %v3245 = vmul.f32 %v3130, %v3237
      %v3246 = vmul.f32 %v3133, %v3237
      %v3247 = vmul.f32 %v3138, %v3237
      %v3248 = vmul.f32 %v3141, %v3237
      %v3249 = vmul.f32 %v3146, %v3237
      %v3250 = vmul.f32 %v3149, %v3237
      %v3251 = vmul.f32 %v3154, %v3237
      %v3252 = vmul.f32 %v3157, %v3237
      %v3253 = vmul.f32 %v3162, %v3237
      %v3254 = vmul.f32 %v3165, %v3237
      %v3255 = vmul.f32 %v3170, %v3237
      %v3256 = vmul.f32 %v3173, %v3237
      %v3257 = vmul.f32 %v3178, %v3237
      %v3258 = vmul.f32 %v3181, %v3237
      %v3259 = vmul.f32 %v3186, %v3237
      %v3260 = vmul.f32 %v3189, %v3237
      %v3261 = vmul.f32 %v3194, %v3237
      %v3262 = vmul.f32 %v3197, %v3237
      %v3263 = vmul.f32 %v3202, %v3237
      %v3264 = vmul.f32 %v3205, %v3237
      %v3265 = vmul.f32 %v3210, %v3237
      %v3266 = vmul.f32 %v3213, %v3237
      %v3267 = vmul.f32 %v3218, %v3237
      %v3268 = vmul.f32 %v3221, %v3237
      %v3269 = vmul.f32 %v3226, %v3237
      %v3270 = vmul.f32 %v3229, %v3237
      %v3271 = vld [vmem:[%s254] sm:$0x1]
      %v3273 = vlaneseq
      %v3274 = vshrl.u32 %v3273, 7
      %v3275 = vsub.s32 0, %v3274
      %v3276 = vrot.slane %v3271, %v3275
      %v3278 = vadd.f32 %v3239, %v3276
      %v3279 = vadd.f32 %v3240, %v3276
      %v3280 = vadd.f32 %v3241, %v3276
      %v3281 = vadd.f32 %v3242, %v3276
      %v3282 = vadd.f32 %v3243, %v3276
      %v3283 = vadd.f32 %v3244, %v3276
      %v3284 = vadd.f32 %v3245, %v3276
      %v3285 = vadd.f32 %v3246, %v3276
      %v3286 = vadd.f32 %v3247, %v3276
      %v3287 = vadd.f32 %v3248, %v3276
      %v3288 = vadd.f32 %v3249, %v3276
      %v3289 = vadd.f32 %v3250, %v3276
      %v3290 = vadd.f32 %v3251, %v3276
      %v3291 = vadd.f32 %v3252, %v3276
      %v3292 = vadd.f32 %v3253, %v3276
      %v3293 = vadd.f32 %v3254, %v3276
      %v3294 = vadd.f32 %v3255, %v3276
      %v3295 = vadd.f32 %v3256, %v3276
      %v3296 = vadd.f32 %v3257, %v3276
      %v3297 = vadd.f32 %v3258, %v3276
      %v3298 = vadd.f32 %v3259, %v3276
      %v3299 = vadd.f32 %v3260, %v3276
      %v3300 = vadd.f32 %v3261, %v3276
      %v3301 = vadd.f32 %v3262, %v3276
      %v3302 = vadd.f32 %v3263, %v3276
      %v3303 = vadd.f32 %v3264, %v3276
      %v3304 = vadd.f32 %v3265, %v3276
      %v3305 = vadd.f32 %v3266, %v3276
      %v3306 = vadd.f32 %v3267, %v3276
      %v3307 = vadd.f32 %v3268, %v3276
      %v3308 = vadd.f32 %v3269, %v3276
      %v3309 = vadd.f32 %v3270, %v3276
      %v3310 = vxor.u32 %v3278, 2147483648
      %v3311 = vxor.u32 %v3279, 2147483648
      %v3312 = vxor.u32 %v3280, 2147483648
      %v3313 = vxor.u32 %v3281, 2147483648
      %v3314 = vxor.u32 %v3282, 2147483648
      %v3315 = vxor.u32 %v3283, 2147483648
      %v3316 = vxor.u32 %v3284, 2147483648
      %v3317 = vxor.u32 %v3285, 2147483648
      %v3318 = vxor.u32 %v3286, 2147483648
      %v3319 = vxor.u32 %v3287, 2147483648
      %v3320 = vxor.u32 %v3288, 2147483648
      %v3321 = vxor.u32 %v3289, 2147483648
      %v3322 = vxor.u32 %v3290, 2147483648
      %v3323 = vxor.u32 %v3291, 2147483648
      %v3324 = vxor.u32 %v3292, 2147483648
      %v3325 = vxor.u32 %v3293, 2147483648
      %v3326 = vxor.u32 %v3294, 2147483648
      %v3327 = vxor.u32 %v3295, 2147483648
      %v3328 = vxor.u32 %v3296, 2147483648
      %v3329 = vxor.u32 %v3297, 2147483648
      %v3330 = vxor.u32 %v3298, 2147483648
      %v3331 = vxor.u32 %v3299, 2147483648
      %v3332 = vxor.u32 %v3300, 2147483648
      %v3333 = vxor.u32 %v3301, 2147483648
      %v3334 = vxor.u32 %v3302, 2147483648
      %v3335 = vxor.u32 %v3303, 2147483648
      %v3336 = vxor.u32 %v3304, 2147483648
      %v3337 = vxor.u32 %v3305, 2147483648
      %v3338 = vxor.u32 %v3306, 2147483648
      %v3339 = vxor.u32 %v3307, 2147483648
      %v3340 = vxor.u32 %v3308, 2147483648
      %v3341 = vxor.u32 %v3309, 2147483648
      %v3342 = vmul.f32 %v3310, 1.442695
      %v3343 = vpow.pop %v3342
      %v3344 = vmul.f32 %v3311, 1.442695
      %v3345 = vpow.pop %v3344
      %v3346 = vmul.f32 %v3312, 1.442695
      %v3347 = vpow.pop %v3346
      %v3348 = vmul.f32 %v3313, 1.442695
      %v3349 = vpow.pop %v3348
      %v3350 = vmul.f32 %v3314, 1.442695
      %v3351 = vpow.pop %v3350
      %v3352 = vmul.f32 %v3315, 1.442695
      %v3353 = vpow.pop %v3352
      %v3354 = vmul.f32 %v3316, 1.442695
      %v3355 = vpow.pop %v3354
      %v3356 = vmul.f32 %v3317, 1.442695
      %v3357 = vpow.pop %v3356
      %v3358 = vmul.f32 %v3318, 1.442695
      %v3359 = vpow.pop %v3358
      %v3360 = vmul.f32 %v3319, 1.442695
      %v3361 = vpow.pop %v3360
      %v3362 = vmul.f32 %v3320, 1.442695
      %v3363 = vpow.pop %v3362
      %v3364 = vmul.f32 %v3321, 1.442695
      %v3365 = vpow.pop %v3364
      %v3366 = vmul.f32 %v3322, 1.442695
      %v3367 = vpow.pop %v3366
      %v3368 = vmul.f32 %v3323, 1.442695
      %v3369 = vpow.pop %v3368
      %v3370 = vmul.f32 %v3324, 1.442695
      %v3371 = vpow.pop %v3370
      %v3372 = vmul.f32 %v3325, 1.442695
      %v3373 = vpow.pop %v3372
      %v3374 = vmul.f32 %v3326, 1.442695
      %v3375 = vpow.pop %v3374
      %v3376 = vmul.f32 %v3327, 1.442695
      %v3377 = vpow.pop %v3376
      %v3378 = vmul.f32 %v3328, 1.442695
      %v3379 = vpow.pop %v3378
      %v3380 = vmul.f32 %v3329, 1.442695
      %v3381 = vpow.pop %v3380
      %v3382 = vmul.f32 %v3330, 1.442695
      %v3383 = vpow.pop %v3382
      %v3384 = vmul.f32 %v3331, 1.442695
      %v3385 = vpow.pop %v3384
      %v3386 = vmul.f32 %v3332, 1.442695
      %v3387 = vpow.pop %v3386
      %v3388 = vmul.f32 %v3333, 1.442695
      %v3389 = vpow.pop %v3388
      %v3390 = vmul.f32 %v3334, 1.442695
      %v3391 = vpow.pop %v3390
      %v3392 = vmul.f32 %v3335, 1.442695
      %v3393 = vpow.pop %v3392
      %v3394 = vmul.f32 %v3336, 1.442695
      %v3395 = vpow.pop %v3394
      %v3396 = vmul.f32 %v3337, 1.442695
      %v3397 = vpow.pop %v3396
      %v3398 = vmul.f32 %v3338, 1.442695
      %v3399 = vpow.pop %v3398
      %v3400 = vmul.f32 %v3339, 1.442695
      %v3401 = vpow.pop %v3400
      %v3402 = vmul.f32 %v3340, 1.442695
      %v3403 = vpow.pop %v3402
      %v3404 = vmul.f32 %v3341, 1.442695
      %v3405 = vpow.pop %v3404
      %v3406 = vadd.f32 %v3343, 1.0
      %v3407 = vadd.f32 %v3345, 1.0
      %v3408 = vadd.f32 %v3347, 1.0
      %v3409 = vadd.f32 %v3349, 1.0
      %v3410 = vadd.f32 %v3351, 1.0
      %v3411 = vadd.f32 %v3353, 1.0
      %v3412 = vadd.f32 %v3355, 1.0
      %v3413 = vadd.f32 %v3357, 1.0
      %v3414 = vadd.f32 %v3359, 1.0
      %v3415 = vadd.f32 %v3361, 1.0
      %v3416 = vadd.f32 %v3363, 1.0
      %v3417 = vadd.f32 %v3365, 1.0
      %v3418 = vadd.f32 %v3367, 1.0
      %v3419 = vadd.f32 %v3369, 1.0
      %v3420 = vadd.f32 %v3371, 1.0
      %v3421 = vadd.f32 %v3373, 1.0
      %v3422 = vadd.f32 %v3375, 1.0
      %v3423 = vadd.f32 %v3377, 1.0
      %v3424 = vadd.f32 %v3379, 1.0
      %v3425 = vadd.f32 %v3381, 1.0
      %v3426 = vadd.f32 %v3383, 1.0
      %v3427 = vadd.f32 %v3385, 1.0
      %v3428 = vadd.f32 %v3387, 1.0
      %v3429 = vadd.f32 %v3389, 1.0
      %v3430 = vadd.f32 %v3391, 1.0
      %v3431 = vadd.f32 %v3393, 1.0
      %v3432 = vadd.f32 %v3395, 1.0
      %v3433 = vadd.f32 %v3397, 1.0
      %v3434 = vadd.f32 %v3399, 1.0
      %v3435 = vadd.f32 %v3401, 1.0
      %v3436 = vadd.f32 %v3403, 1.0
      %v3437 = vadd.f32 %v3405, 1.0
      %v3438 = vrcp.pop %v3406
      %v3439 = vmul.f32 1.0, %v3438
      %v3440 = vrcp.pop %v3407
      %v3441 = vmul.f32 1.0, %v3440
      %v3442 = vrcp.pop %v3408
      %v3443 = vmul.f32 1.0, %v3442
      %v3444 = vrcp.pop %v3409
      %v3445 = vmul.f32 1.0, %v3444
      %v3446 = vrcp.pop %v3410
      %v3447 = vmul.f32 1.0, %v3446
      %v3448 = vrcp.pop %v3411
      %v3449 = vmul.f32 1.0, %v3448
      %v3450 = vrcp.pop %v3412
      %v3451 = vmul.f32 1.0, %v3450
      %v3452 = vrcp.pop %v3413
      %v3453 = vmul.f32 1.0, %v3452
      %v3454 = vrcp.pop %v3414
      %v3455 = vmul.f32 1.0, %v3454
      %v3456 = vrcp.pop %v3415
      %v3457 = vmul.f32 1.0, %v3456
      %v3458 = vrcp.pop %v3416
      %v3459 = vmul.f32 1.0, %v3458
      %v3460 = vrcp.pop %v3417
      %v3461 = vmul.f32 1.0, %v3460
      %v3462 = vrcp.pop %v3418
      %v3463 = vmul.f32 1.0, %v3462
      %v3464 = vrcp.pop %v3419
      %v3465 = vmul.f32 1.0, %v3464
      %v3466 = vrcp.pop %v3420
      %v3467 = vmul.f32 1.0, %v3466
      %v3468 = vrcp.pop %v3421
      %v3469 = vmul.f32 1.0, %v3468
      %v3470 = vrcp.pop %v3422
      %v3471 = vmul.f32 1.0, %v3470
      %v3472 = vrcp.pop %v3423
      %v3473 = vmul.f32 1.0, %v3472
      %v3474 = vrcp.pop %v3424
      %v3475 = vmul.f32 1.0, %v3474
      %v3476 = vrcp.pop %v3425
      %v3477 = vmul.f32 1.0, %v3476
      %v3478 = vrcp.pop %v3426
      %v3479 = vmul.f32 1.0, %v3478
      %v3480 = vrcp.pop %v3427
      %v3481 = vmul.f32 1.0, %v3480
      %v3482 = vrcp.pop %v3428
      %v3483 = vmul.f32 1.0, %v3482
      %v3484 = vrcp.pop %v3429
      %v3485 = vmul.f32 1.0, %v3484
      %v3486 = vrcp.pop %v3430
      %v3487 = vmul.f32 1.0, %v3486
      %v3488 = vrcp.pop %v3431
      %v3489 = vmul.f32 1.0, %v3488
      %v3490 = vrcp.pop %v3432
      %v3491 = vmul.f32 1.0, %v3490
      %v3492 = vrcp.pop %v3433
      %v3493 = vmul.f32 1.0, %v3492
      %v3494 = vrcp.pop %v3434
      %v3495 = vmul.f32 1.0, %v3494
      %v3496 = vrcp.pop %v3435
      %v3497 = vmul.f32 1.0, %v3496
      %v3498 = vrcp.pop %v3436
      %v3499 = vmul.f32 1.0, %v3498
      %v3500 = vrcp.pop %v3437
      %v3501 = vmul.f32 1.0, %v3500
      %v3502 = vmul.f32 %v3278, %v3439
      %v3503 = vmul.f32 %v3279, %v3441
      %v3504 = vmul.f32 %v3280, %v3443
      %v3505 = vmul.f32 %v3281, %v3445
      %v3506 = vmul.f32 %v3282, %v3447
      %v3507 = vmul.f32 %v3283, %v3449
      %v3508 = vmul.f32 %v3284, %v3451
      %v3509 = vmul.f32 %v3285, %v3453
      %v3510 = vmul.f32 %v3286, %v3455
      %v3511 = vmul.f32 %v3287, %v3457
      %v3512 = vmul.f32 %v3288, %v3459
      %v3513 = vmul.f32 %v3289, %v3461
      %v3514 = vmul.f32 %v3290, %v3463
      %v3515 = vmul.f32 %v3291, %v3465
      %v3516 = vmul.f32 %v3292, %v3467
      %v3517 = vmul.f32 %v3293, %v3469
      %v3518 = vmul.f32 %v3294, %v3471
      %v3519 = vmul.f32 %v3295, %v3473
      %v3520 = vmul.f32 %v3296, %v3475
      %v3521 = vmul.f32 %v3297, %v3477
      %v3522 = vmul.f32 %v3298, %v3479
      %v3523 = vmul.f32 %v3299, %v3481
      %v3524 = vmul.f32 %v3300, %v3483
      %v3525 = vmul.f32 %v3301, %v3485
      %v3526 = vmul.f32 %v3302, %v3487
      %v3527 = vmul.f32 %v3303, %v3489
      %v3528 = vmul.f32 %v3304, %v3491
      %v3529 = vmul.f32 %v3305, %v3493
      %v3530 = vmul.f32 %v3306, %v3495
      %v3531 = vmul.f32 %v3307, %v3497
      %v3532 = vmul.f32 %v3308, %v3499
      %v3533 = vmul.f32 %v3309, %v3501
      %v3534 = vpack.c.bf16 %v3503, %v3502
      %v3535 = vpack.c.bf16 %v3505, %v3504
      %v3536 = vpack.c.bf16 %v3507, %v3506
      %v3537 = vpack.c.bf16 %v3509, %v3508
      %v3538 = vpack.c.bf16 %v3511, %v3510
      %v3539 = vpack.c.bf16 %v3513, %v3512
      %v3540 = vpack.c.bf16 %v3515, %v3514
      %v3541 = vpack.c.bf16 %v3517, %v3516
      %v3542 = vpack.c.bf16 %v3519, %v3518
      %v3543 = vpack.c.bf16 %v3521, %v3520
      %v3544 = vpack.c.bf16 %v3523, %v3522
      %v3545 = vpack.c.bf16 %v3525, %v3524
      %v3546 = vpack.c.bf16 %v3527, %v3526
      %v3547 = vpack.c.bf16 %v3529, %v3528
      %v3548 = vpack.c.bf16 %v3531, %v3530
      %v3549 = vpack.c.bf16 %v3533, %v3532
      %v3566 = vunpack.c.l.b16 %v3534
      %v3567 = vunpack.c.h.b16 %v3534
      %v3568 = vunpack.c.l.b16 %v3535
      %v3569 = vunpack.c.h.b16 %v3535
      %v3570 = vunpack.c.l.b16 %v3536
      %v3571 = vunpack.c.h.b16 %v3536
      %v3572 = vunpack.c.l.b16 %v3537
      %v3573 = vunpack.c.h.b16 %v3537
      %v3574 = vunpack.c.l.b16 %v3538
      %v3575 = vunpack.c.h.b16 %v3538
      %v3576 = vunpack.c.l.b16 %v3539
      %v3577 = vunpack.c.h.b16 %v3539
      %v3578 = vunpack.c.l.b16 %v3540
      %v3579 = vunpack.c.h.b16 %v3540
      %v3580 = vunpack.c.l.b16 %v3541
      %v3581 = vunpack.c.h.b16 %v3541
      %v3582 = vunpack.c.l.b16 %v3542
      %v3583 = vunpack.c.h.b16 %v3542
      %v3584 = vunpack.c.l.b16 %v3543
      %v3585 = vunpack.c.h.b16 %v3543
      %v3586 = vunpack.c.l.b16 %v3544
      %v3587 = vunpack.c.h.b16 %v3544
      %v3588 = vunpack.c.l.b16 %v3545
      %v3589 = vunpack.c.h.b16 %v3545
      %v3590 = vunpack.c.l.b16 %v3546
      %v3591 = vunpack.c.h.b16 %v3546
      %v3592 = vunpack.c.l.b16 %v3547
      %v3593 = vunpack.c.h.b16 %v3547
      %v3594 = vunpack.c.l.b16 %v3548
      %v3595 = vunpack.c.h.b16 %v3548
      %v3596 = vunpack.c.l.b16 %v3549
      %v3597 = vunpack.c.h.b16 %v3549
      %v3598 = vpack.c.b16 %v3566, %v3566
      %v3599 = vpack.c.b16 %v3567, %v3567
      %v3600 = vpack.c.b16 %v3568, %v3568
      %v3601 = vpack.c.b16 %v3569, %v3569
      %v3602 = vpack.c.b16 %v3570, %v3570
      %v3603 = vpack.c.b16 %v3571, %v3571
      %v3604 = vpack.c.b16 %v3572, %v3572
      %v3605 = vpack.c.b16 %v3573, %v3573
      %v3606 = vpack.c.b16 %v3574, %v3574
      %v3607 = vpack.c.b16 %v3575, %v3575
      %v3608 = vpack.c.b16 %v3576, %v3576
      %v3609 = vpack.c.b16 %v3577, %v3577
      %v3610 = vpack.c.b16 %v3578, %v3578
      %v3611 = vpack.c.b16 %v3579, %v3579
      %v3612 = vpack.c.b16 %v3580, %v3580
      %v3613 = vpack.c.b16 %v3581, %v3581
      %v3614 = vpack.c.b16 %v3582, %v3582
      %v3615 = vpack.c.b16 %v3583, %v3583
      %v3616 = vpack.c.b16 %v3584, %v3584
      %v3617 = vpack.c.b16 %v3585, %v3585
      %v3618 = vpack.c.b16 %v3586, %v3586
      %v3619 = vpack.c.b16 %v3587, %v3587
      %v3620 = vpack.c.b16 %v3588, %v3588
      %v3621 = vpack.c.b16 %v3589, %v3589
      %v3622 = vpack.c.b16 %v3590, %v3590
      %v3623 = vpack.c.b16 %v3591, %v3591
      %v3624 = vpack.c.b16 %v3592, %v3592
      %v3625 = vpack.c.b16 %v3593, %v3593
      %v3626 = vpack.c.b16 %v3594, %v3594
      %v3627 = vpack.c.b16 %v3595, %v3595
      %v3628 = vpack.c.b16 %v3596, %v3596
      %v3629 = vpack.c.b16 %v3597, %v3597
      %3662 = vst [vmem:[%s262] sm:$0xf] %v3598
      %3663 = vst [vmem:[%s262 + $0x4] sm:$0xf] %v3599
      %3664 = vst [vmem:[%s262 + $0x8] sm:$0xf] %v3600
      %3665 = vst [vmem:[%s262 + $0xc] sm:$0xf] %v3601
      %3666 = vst [vmem:[%s262 + $0x10] sm:$0xf] %v3602
      %3667 = vst [vmem:[%s262 + $0x14] sm:$0xf] %v3603
      %3668 = vst [vmem:[%s262 + $0x18] sm:$0xf] %v3604
      %3669 = vst [vmem:[%s262 + $0x1c] sm:$0xf] %v3605
      %3670 = vst [vmem:[%s262 + $0x20] sm:$0xf] %v3606
      %3671 = vst [vmem:[%s262 + $0x24] sm:$0xf] %v3607
      %3672 = vst [vmem:[%s262 + $0x28] sm:$0xf] %v3608
      %3673 = vst [vmem:[%s262 + $0x2c] sm:$0xf] %v3609
      %3674 = vst [vmem:[%s262 + $0x30] sm:$0xf] %v3610
      %3675 = vst [vmem:[%s262 + $0x34] sm:$0xf] %v3611
      %3676 = vst [vmem:[%s262 + $0x38] sm:$0xf] %v3612
      %3677 = vst [vmem:[%s262 + $0x3c] sm:$0xf] %v3613
      %3678 = vst [vmem:[%s262 + $0x40] sm:$0xf] %v3614
      %3679 = vst [vmem:[%s262 + $0x44] sm:$0xf] %v3615
      %3680 = vst [vmem:[%s262 + $0x48] sm:$0xf] %v3616
      %3681 = vst [vmem:[%s262 + $0x4c] sm:$0xf] %v3617
      %3682 = vst [vmem:[%s262 + $0x50] sm:$0xf] %v3618
      %3683 = vst [vmem:[%s262 + $0x54] sm:$0xf] %v3619
      %3684 = vst [vmem:[%s262 + $0x58] sm:$0xf] %v3620
      %3685 = vst [vmem:[%s262 + $0x5c] sm:$0xf] %v3621
      %3686 = vst [vmem:[%s262 + $0x60] sm:$0xf] %v3622
      %3687 = vst [vmem:[%s262 + $0x64] sm:$0xf] %v3623
      %3688 = vst [vmem:[%s262 + $0x68] sm:$0xf] %v3624
      %3689 = vst [vmem:[%s262 + $0x6c] sm:$0xf] %v3625
      %3690 = vst [vmem:[%s262 + $0x70] sm:$0xf] %v3626
      %3691 = vst [vmem:[%s262 + $0x74] sm:$0xf] %v3627
      %3692 = vst [vmem:[%s262 + $0x78] sm:$0xf] %v3628
      %3693 = vst [vmem:[%s262 + $0x7c] sm:$0xf] %v3629
      %p3694 = scmp.lt.s32.totalorder %s19, 1
      %s3695 = scalar_select %p3694, %s19, 1
      %p3696 = scmp.lt.s32.totalorder %s20, 0
      %s3697 = scalar_select %p3696, %s20, 0
      %s3698 = smul.addr %s3695, 32
      %s3699 = sadd.s32 %s3697, %s3698
      %s3700 = smul.addr %s3699, 4
      %s3701 = scalar_lea.vmem %s4, %s3700
      // Predicated region
      $region37: #{card_classifier_forward.3} parent=35 // pred_check
        %p3702 = pneg %p151
      $region38: #{card_classifier_forward.3} parent=35 // pred_check_branch
        %3704 = sbr.rel (%p3702) target = $region40
      $region39: #{card_classifier_forward.3} parent=35 // pred_region
        _
      $region40: #{card_classifier_forward.3} parent=35 // pred_fallthru
        _
    $region36: #{card_classifier_forward.3} parent=5 // pred_fallthru
      _
    %p3705 = scmp.le.s32.totalorder 2, %s10
    // Predicated region
    $region41: #{card_classifier_forward.3} parent=5 // pred_check
      %p3706 = pneg %p3705
    $region42: #{card_classifier_forward.3} parent=5 // pred_check_branch
      %3708 = sbr.rel (%p3706) target = $region44
    $region43: #{card_classifier_forward.3} parent=5 // pred_region
      %s3709 = ssub.s32 %s10, 2
      // Predicated region
      $region45: #{card_classifier_forward.3} parent=43 // pred_check
        %p3710 = pneg %p157
      $region46: #{card_classifier_forward.3} parent=43 // pred_check_branch
        %3712 = sbr.rel (%p3710) target = $region48
      $region47: #{card_classifier_forward.3} parent=43 // pred_region
        %p3713 = scmp.lt.s32.totalorder %s21, 1
        %s3714 = scalar_select %p3713, %s21, 1
        %p3715 = scmp.lt.s32.totalorder %s22, 0
        %s3716 = scalar_select %p3715, %s22, 0
        %s3717 = smul.addr %s3714, 32
        %s3718 = sadd.s32 %s3716, %s3717
        %s3719 = smul.addr %s3718, 4
        %s3720 = scalar_lea.vmem %s4, %s3719
      $region48: #{card_classifier_forward.3} parent=43 // pred_fallthru
        _
    $region44: #{card_classifier_forward.3} parent=5 // pred_fallthru
      _
  $region6: #{card_classifier_forward.3} parent=0 // loop_footer
    %s14 = sadd.s32 1, %s10
  $region7: #{card_classifier_forward.3} parent=0 // loop_footer_branch
    %9 = sbr.rel target = $region3
  $region8: #{card_classifier_forward.3} parent=0 // loop_exit
    _

// kernel: card_classifier_forward.5
$region0: #{card_classifier_forward.5}
  #allocation0 [shape = 'u32[]', space=smem, size = 0x4, offset = 0x4, fixed_abs, tag = 'smem constant byte address 0x4 - core index']
  #allocation1 [shape = 'u32[144,128]{1,0:T(1,128)}', space=vmem, size = 0x12000, scoped, tag = 'internal scratch']
  %s0 = inlined_call_operand.vmem [shape: bf16[128,384], index: 0, kind: input, shape index: {}]
  %s1 = inlined_call_operand.vmem [shape: bf16[384,1280], index: 1, kind: input, shape index: {}]
  %s2 = inlined_call_operand.vmem [shape: f32[1,1280], index: 2, kind: input, shape index: {}]
  %s3 = inlined_call_operand.vmem [shape: f32[1,1280], index: 3, kind: input, shape index: {}]
  %s4 = inlined_call_operand.vmem [shape: bf16[1280,128], index: 4, kind: input, shape index: {}]
  %s5 = inlined_call_operand.vmem [shape: f32[1,128], index: 5, kind: input, shape index: {}]
  %s6 = inlined_call_operand.hbm [shape: f32[2,128], index: 6, kind: output, shape index: {}]
  %s7 = sld [smem:[#allocation0]]
  $region34: #{card_classifier_forward.5} parent=0
    _
  %s9 = ssub.s32 1, %s7
  %s10 = scalar_select 0, %s9, %s7
  $region1: #{card_classifier_forward.5} parent=0
    #allocation2 [shape = 'u8[1024]{0}', space=vmem, size = 0x400, scoped, tag = 'output window, operand 0, single buffered']
    #allocation3 [shape = 's32[1]{0}', space=sflag, size = 0x4, scoped, tag = 'scoped memory for card_classifier_forward.5']
    %11 = vsyncpa [#allocation3], 0
    // Predicated region
    $region2: #{card_classifier_forward.5} parent=1 // pred_check
      _
    $region3: #{card_classifier_forward.5} parent=1 // pred_check_branch
      %13 = sbr.rel (0) target = $region5
    $region4: #{card_classifier_forward.5} parent=1 // pred_region
      _
    $region5: #{card_classifier_forward.5} parent=1 // pred_fallthru
      _
    // Predicated region
    $region6: #{card_classifier_forward.5} parent=1 // pred_check
      _
    $region7: #{card_classifier_forward.5} parent=1 // pred_check_branch
      %15 = sbr.rel (0) target = $region9
    $region8: #{card_classifier_forward.5} parent=1 // pred_region
      _
    $region9: #{card_classifier_forward.5} parent=1 // pred_fallthru
      _
    // Predicated region
    $region10: #{card_classifier_forward.5} parent=1 // pred_check
      _
    $region11: #{card_classifier_forward.5} parent=1 // pred_check_branch
      %17 = sbr.rel (0) target = $region13
    $region12: #{card_classifier_forward.5} parent=1 // pred_region
      _
    $region13: #{card_classifier_forward.5} parent=1 // pred_fallthru
      _
    // Predicated region
    $region14: #{card_classifier_forward.5} parent=1 // pred_check
      _
    $region15: #{card_classifier_forward.5} parent=1 // pred_check_branch
      %19 = sbr.rel (0) target = $region17
    $region16: #{card_classifier_forward.5} parent=1 // pred_region
      _
    $region17: #{card_classifier_forward.5} parent=1 // pred_fallthru
      _
    // Predicated region
    $region18: #{card_classifier_forward.5} parent=1 // pred_check
      _
    $region19: #{card_classifier_forward.5} parent=1 // pred_check_branch
      %21 = sbr.rel (0) target = $region21
    $region20: #{card_classifier_forward.5} parent=1 // pred_region
      _
    $region21: #{card_classifier_forward.5} parent=1 // pred_fallthru
      _
    // Predicated region
    $region22: #{card_classifier_forward.5} parent=1 // pred_check
      _
    $region23: #{card_classifier_forward.5} parent=1 // pred_check_branch
      %23 = sbr.rel (0) target = $region25
    $region24: #{card_classifier_forward.5} parent=1 // pred_region
      _
    $region25: #{card_classifier_forward.5} parent=1 // pred_fallthru
      _
    %v25 = vld [vmem:[%s0] sm:$0xff]
    %v26 = vld [vmem:[%s0 + $0x8] sm:$0xf]
    %v27 = vld [vmem:[%s0 + $0xc] sm:$0xff]
    %v28 = vld [vmem:[%s0 + $0x14] sm:$0xf]
    %v29 = vld [vmem:[%s0 + $0x18] sm:$0xff]
    %v30 = vld [vmem:[%s0 + $0x20] sm:$0xf]
    %v31 = vld [vmem:[%s0 + $0x24] sm:$0xff]
    %v32 = vld [vmem:[%s0 + $0x2c] sm:$0xf]
    %v33 = vld [vmem:[%s0 + $0x30] sm:$0xff]
    %v34 = vld [vmem:[%s0 + $0x38] sm:$0xf]
    %v35 = vld [vmem:[%s0 + $0x3c] sm:$0xff]
    %v36 = vld [vmem:[%s0 + $0x44] sm:$0xf]
    %v37 = vld [vmem:[%s0 + $0x48] sm:$0xff]
    %v38 = vld [vmem:[%s0 + $0x50] sm:$0xf]
    %v39 = vld [vmem:[%s0 + $0x54] sm:$0xff]
    %v40 = vld [vmem:[%s0 + $0x5c] sm:$0xf]
    %v41 = vld [vmem:[%s0 + $0x60] sm:$0xff]
    %v42 = vld [vmem:[%s0 + $0x68] sm:$0xf]
    %v43 = vld [vmem:[%s0 + $0x6c] sm:$0xff]
    %v44 = vld [vmem:[%s0 + $0x74] sm:$0xf]
    %v45 = vld [vmem:[%s0 + $0x78] sm:$0xff]
    %v46 = vld [vmem:[%s0 + $0x80] sm:$0xf]
    %v47 = vld [vmem:[%s0 + $0x84] sm:$0xff]
    %v48 = vld [vmem:[%s0 + $0x8c] sm:$0xf]
    %v49 = vld [vmem:[%s0 + $0x90] sm:$0xff]
    %v50 = vld [vmem:[%s0 + $0x98] sm:$0xf]
    %v51 = vld [vmem:[%s0 + $0x9c] sm:$0xff]
    %v52 = vld [vmem:[%s0 + $0xa4] sm:$0xf]
    %v53 = vld [vmem:[%s0 + $0xa8] sm:$0xff]
    %v54 = vld [vmem:[%s0 + $0xb0] sm:$0xf]
    %v55 = vld [vmem:[%s0 + $0xb4] sm:$0xff]
    %v56 = vld [vmem:[%s0 + $0xbc] sm:$0xf]
    %v57 = vld [vmem:[%s1] sm:$0xff]
    %v58 = vld [vmem:[%s1 + $0x8] sm:$0xff]
    %v59 = vld [vmem:[%s1 + $0x10] sm:$0xff]
    %v60 = vld [vmem:[%s1 + $0x18] sm:$0xff]
    %v61 = vld [vmem:[%s1 + $0x20] sm:$0xff]
    %v62 = vld [vmem:[%s1 + $0x28] sm:$0xff]
    %v63 = vld [vmem:[%s1 + $0x30] sm:$0xff]
    %v64 = vld [vmem:[%s1 + $0x38] sm:$0xff]
    %v65 = vld [vmem:[%s1 + $0x40] sm:$0xff]
    %v66 = vld [vmem:[%s1 + $0x48] sm:$0xff]
    %v67 = vld [vmem:[%s1 + $0x50] sm:$0xff]
    %v68 = vld [vmem:[%s1 + $0x58] sm:$0xff]
    %v69 = vld [vmem:[%s1 + $0x60] sm:$0xff]
    %v70 = vld [vmem:[%s1 + $0x68] sm:$0xff]
    %v71 = vld [vmem:[%s1 + $0x70] sm:$0xff]
    %v72 = vld [vmem:[%s1 + $0x78] sm:$0xff]
    %v73 = vld [vmem:[%s1 + $0x80] sm:$0xff]
    %v74 = vld [vmem:[%s1 + $0x88] sm:$0xff]
    %v75 = vld [vmem:[%s1 + $0x90] sm:$0xff]
    %v76 = vld [vmem:[%s1 + $0x98] sm:$0xff]
    %v77 = vld [vmem:[%s1 + $0xa0] sm:$0xff]
    %v78 = vld [vmem:[%s1 + $0xa8] sm:$0xff]
    %v79 = vld [vmem:[%s1 + $0xb0] sm:$0xff]
    %v80 = vld [vmem:[%s1 + $0xb8] sm:$0xff]
    %v81 = vld [vmem:[%s1 + $0xc0] sm:$0xff]
    %v82 = vld [vmem:[%s1 + $0xc8] sm:$0xff]
    %v83 = vld [vmem:[%s1 + $0xd0] sm:$0xff]
    %v84 = vld [vmem:[%s1 + $0xd8] sm:$0xff]
    %v85 = vld [vmem:[%s1 + $0xe0] sm:$0xff]
    %v86 = vld [vmem:[%s1 + $0xe8] sm:$0xff]
    %v87 = vld [vmem:[%s1 + $0xf0] sm:$0xff]
    %v88 = vld [vmem:[%s1 + $0xf8] sm:$0xff]
    %v89 = vld [vmem:[%s1 + $0x100] sm:$0xff]
    %v90 = vld [vmem:[%s1 + $0x108] sm:$0xff]
    %v91 = vld [vmem:[%s1 + $0x110] sm:$0xff]
    %v92 = vld [vmem:[%s1 + $0x118] sm:$0xff]
    %v93 = vld [vmem:[%s1 + $0x120] sm:$0xff]
    %v94 = vld [vmem:[%s1 + $0x128] sm:$0xff]
    %v95 = vld [vmem:[%s1 + $0x130] sm:$0xff]
    %v96 = vld [vmem:[%s1 + $0x138] sm:$0xff]
    %v97 = vld [vmem:[%s1 + $0x140] sm:$0xff]
    %v98 = vld [vmem:[%s1 + $0x148] sm:$0xff]
    %v99 = vld [vmem:[%s1 + $0x150] sm:$0xff]
    %v100 = vld [vmem:[%s1 + $0x158] sm:$0xff]
    %v101 = vld [vmem:[%s1 + $0x160] sm:$0xff]
    %v102 = vld [vmem:[%s1 + $0x168] sm:$0xff]
    %v103 = vld [vmem:[%s1 + $0x170] sm:$0xff]
    %v104 = vld [vmem:[%s1 + $0x178] sm:$0xff]
    %v105 = vld [vmem:[%s1 + $0x180] sm:$0xff]
    %v106 = vld [vmem:[%s1 + $0x188] sm:$0xff]
    %v107 = vld [vmem:[%s1 + $0x190] sm:$0xff]
    %v108 = vld [vmem:[%s1 + $0x198] sm:$0xff]
    %v109 = vld [vmem:[%s1 + $0x1a0] sm:$0xff]
    %v110 = vld [vmem:[%s1 + $0x1a8] sm:$0xff]
    %v111 = vld [vmem:[%s1 + $0x1b0] sm:$0xff]
    %v112 = vld [vmem:[%s1 + $0x1b8] sm:$0xff]
    %v113 = vld [vmem:[%s1 + $0x1c0] sm:$0xff]
    %v114 = vld [vmem:[%s1 + $0x1c8] sm:$0xff]
    %v115 = vld [vmem:[%s1 + $0x1d0] sm:$0xff]
    %v116 = vld [vmem:[%s1 + $0x1d8] sm:$0xff]
    %v117 = vld [vmem:[%s1 + $0x1e0] sm:$0xff]
    %v118 = vld [vmem:[%s1 + $0x1e8] sm:$0xff]
    %v119 = vld [vmem:[%s1 + $0x1f0] sm:$0xff]
    %v120 = vld [vmem:[%s1 + $0x1f8] sm:$0xff]
    %v121 = vld [vmem:[%s1 + $0x200] sm:$0xff]
    %v122 = vld [vmem:[%s1 + $0x208] sm:$0xff]
    %v123 = vld [vmem:[%s1 + $0x210] sm:$0xff]
    %v124 = vld [vmem:[%s1 + $0x218] sm:$0xff]
    %v125 = vld [vmem:[%s1 + $0x220] sm:$0xff]
    %v126 = vld [vmem:[%s1 + $0x228] sm:$0xff]
    %v127 = vld [vmem:[%s1 + $0x230] sm:$0xff]
    %v128 = vld [vmem:[%s1 + $0x238] sm:$0xff]
    %v129 = vld [vmem:[%s1 + $0x240] sm:$0xff]
    %v130 = vld [vmem:[%s1 + $0x248] sm:$0xff]
    %v131 = vld [vmem:[%s1 + $0x250] sm:$0xff]
    %v132 = vld [vmem:[%s1 + $0x258] sm:$0xff]
    %v133 = vld [vmem:[%s1 + $0x260] sm:$0xff]
    %v134 = vld [vmem:[%s1 + $0x268] sm:$0xff]
    %v135 = vld [vmem:[%s1 + $0x270] sm:$0xff]
    %v136 = vld [vmem:[%s1 + $0x278] sm:$0xff]
    %v137 = vld [vmem:[%s1 + $0x280] sm:$0xff]
    %v138 = vld [vmem:[%s1 + $0x288] sm:$0xff]
    %v139 = vld [vmem:[%s1 + $0x290] sm:$0xff]
    %v140 = vld [vmem:[%s1 + $0x298] sm:$0xff]
    %v141 = vld [vmem:[%s1 + $0x2a0] sm:$0xff]
    %v142 = vld [vmem:[%s1 + $0x2a8] sm:$0xff]
    %v143 = vld [vmem:[%s1 + $0x2b0] sm:$0xff]
    %v144 = vld [vmem:[%s1 + $0x2b8] sm:$0xff]
    %v145 = vld [vmem:[%s1 + $0x2c0] sm:$0xff]
    %v146 = vld [vmem:[%s1 + $0x2c8] sm:$0xff]
    %v147 = vld [vmem:[%s1 + $0x2d0] sm:$0xff]
    %v148 = vld [vmem:[%s1 + $0x2d8] sm:$0xff]
    %v149 = vld [vmem:[%s1 + $0x2e0] sm:$0xff]
    %v150 = vld [vmem:[%s1 + $0x2e8] sm:$0xff]
    %v151 = vld [vmem:[%s1 + $0x2f0] sm:$0xff]
    %v152 = vld [vmem:[%s1 + $0x2f8] sm:$0xff]
    %v153 = vld [vmem:[%s1 + $0x300] sm:$0xff]
    %v154 = vld [vmem:[%s1 + $0x308] sm:$0xff]
    %v155 = vld [vmem:[%s1 + $0x310] sm:$0xff]
    %v156 = vld [vmem:[%s1 + $0x318] sm:$0xff]
    %v157 = vld [vmem:[%s1 + $0x320] sm:$0xff]
    %v158 = vld [vmem:[%s1 + $0x328] sm:$0xff]
    %v159 = vld [vmem:[%s1 + $0x330] sm:$0xff]
    %v160 = vld [vmem:[%s1 + $0x338] sm:$0xff]
    %v161 = vld [vmem:[%s1 + $0x340] sm:$0xff]
    %v162 = vld [vmem:[%s1 + $0x348] sm:$0xff]
    %v163 = vld [vmem:[%s1 + $0x350] sm:$0xff]
    %v164 = vld [vmem:[%s1 + $0x358] sm:$0xff]
    %v165 = vld [vmem:[%s1 + $0x360] sm:$0xff]
    %v166 = vld [vmem:[%s1 + $0x368] sm:$0xff]
    %v167 = vld [vmem:[%s1 + $0x370] sm:$0xff]
    %v168 = vld [vmem:[%s1 + $0x378] sm:$0xff]
    %v169 = vld [vmem:[%s1 + $0x380] sm:$0xff]
    %v170 = vld [vmem:[%s1 + $0x388] sm:$0xff]
    %v171 = vld [vmem:[%s1 + $0x390] sm:$0xff]
    %v172 = vld [vmem:[%s1 + $0x398] sm:$0xff]
    %v173 = vld [vmem:[%s1 + $0x3a0] sm:$0xff]
    %v174 = vld [vmem:[%s1 + $0x3a8] sm:$0xff]
    %v175 = vld [vmem:[%s1 + $0x3b0] sm:$0xff]
    %v176 = vld [vmem:[%s1 + $0x3b8] sm:$0xff]
    %v177 = vld [vmem:[%s1 + $0x3c0] sm:$0xff]
    %v178 = vld [vmem:[%s1 + $0x3c8] sm:$0xff]
    %v179 = vld [vmem:[%s1 + $0x3d0] sm:$0xff]
    %v180 = vld [vmem:[%s1 + $0x3d8] sm:$0xff]
    %v181 = vld [vmem:[%s1 + $0x3e0] sm:$0xff]
    %v182 = vld [vmem:[%s1 + $0x3e8] sm:$0xff]
    %v183 = vld [vmem:[%s1 + $0x3f0] sm:$0xff]
    %v184 = vld [vmem:[%s1 + $0x3f8] sm:$0xff]
    %v185 = vld [vmem:[%s1 + $0x400] sm:$0xff]
    %v186 = vld [vmem:[%s1 + $0x408] sm:$0xff]
    %v187 = vld [vmem:[%s1 + $0x410] sm:$0xff]
    %v188 = vld [vmem:[%s1 + $0x418] sm:$0xff]
    %v189 = vld [vmem:[%s1 + $0x420] sm:$0xff]
    %v190 = vld [vmem:[%s1 + $0x428] sm:$0xff]
    %v191 = vld [vmem:[%s1 + $0x430] sm:$0xff]
    %v192 = vld [vmem:[%s1 + $0x438] sm:$0xff]
    %v193 = vld [vmem:[%s1 + $0x440] sm:$0xff]
    %v194 = vld [vmem:[%s1 + $0x448] sm:$0xff]
    %v195 = vld [vmem:[%s1 + $0x450] sm:$0xff]
    %v196 = vld [vmem:[%s1 + $0x458] sm:$0xff]
    %v197 = vld [vmem:[%s1 + $0x460] sm:$0xff]
    %v198 = vld [vmem:[%s1 + $0x468] sm:$0xff]
    %v199 = vld [vmem:[%s1 + $0x470] sm:$0xff]
    %v200 = vld [vmem:[%s1 + $0x478] sm:$0xff]
    %v201 = vld [vmem:[%s1 + $0x480] sm:$0xff]
    %v202 = vld [vmem:[%s1 + $0x488] sm:$0xff]
    %v203 = vld [vmem:[%s1 + $0x490] sm:$0xff]
    %v204 = vld [vmem:[%s1 + $0x498] sm:$0xff]
    %v205 = vld [vmem:[%s1 + $0x4a0] sm:$0xff]
    %v206 = vld [vmem:[%s1 + $0x4a8] sm:$0xff]
    %v207 = vld [vmem:[%s1 + $0x4b0] sm:$0xff]
    %v208 = vld [vmem:[%s1 + $0x4b8] sm:$0xff]
    %v209 = vld [vmem:[%s1 + $0x4c0] sm:$0xff]
    %v210 = vld [vmem:[%s1 + $0x4c8] sm:$0xff]
    %v211 = vld [vmem:[%s1 + $0x4d0] sm:$0xff]
    %v212 = vld [vmem:[%s1 + $0x4d8] sm:$0xff]
    %v213 = vld [vmem:[%s1 + $0x4e0] sm:$0xff]
    %v214 = vld [vmem:[%s1 + $0x4e8] sm:$0xff]
    %v215 = vld [vmem:[%s1 + $0x4f0] sm:$0xff]
    %v216 = vld [vmem:[%s1 + $0x4f8] sm:$0xff]
    %v217 = vld [vmem:[%s1 + $0x500] sm:$0xff]
    %v218 = vld [vmem:[%s1 + $0x508] sm:$0xff]
    %v219 = vld [vmem:[%s1 + $0x510] sm:$0xff]
    %v220 = vld [vmem:[%s1 + $0x518] sm:$0xff]
    %v221 = vld [vmem:[%s1 + $0x520] sm:$0xff]
    %v222 = vld [vmem:[%s1 + $0x528] sm:$0xff]
    %v223 = vld [vmem:[%s1 + $0x530] sm:$0xff]
    %v224 = vld [vmem:[%s1 + $0x538] sm:$0xff]
    %v225 = vld [vmem:[%s1 + $0x540] sm:$0xff]
    %v226 = vld [vmem:[%s1 + $0x548] sm:$0xff]
    %v227 = vld [vmem:[%s1 + $0x550] sm:$0xff]
    %v228 = vld [vmem:[%s1 + $0x558] sm:$0xff]
    %v229 = vld [vmem:[%s1 + $0x560] sm:$0xff]
    %v230 = vld [vmem:[%s1 + $0x568] sm:$0xff]
    %v231 = vld [vmem:[%s1 + $0x570] sm:$0xff]
    %v232 = vld [vmem:[%s1 + $0x578] sm:$0xff]
    %v233 = vld [vmem:[%s1 + $0x580] sm:$0xff]
    %v234 = vld [vmem:[%s1 + $0x588] sm:$0xff]
    %v235 = vld [vmem:[%s1 + $0x590] sm:$0xff]
    %v236 = vld [vmem:[%s1 + $0x598] sm:$0xff]
    %v237 = vld [vmem:[%s1 + $0x5a0] sm:$0xff]
    %v238 = vld [vmem:[%s1 + $0x5a8] sm:$0xff]
    %v239 = vld [vmem:[%s1 + $0x5b0] sm:$0xff]
    %v240 = vld [vmem:[%s1 + $0x5b8] sm:$0xff]
    %v241 = vld [vmem:[%s1 + $0x5c0] sm:$0xff]
    %v242 = vld [vmem:[%s1 + $0x5c8] sm:$0xff]
    %v243 = vld [vmem:[%s1 + $0x5d0] sm:$0xff]
    %v244 = vld [vmem:[%s1 + $0x5d8] sm:$0xff]
    %v245 = vld [vmem:[%s1 + $0x5e0] sm:$0xff]
    %v246 = vld [vmem:[%s1 + $0x5e8] sm:$0xff]
    %v247 = vld [vmem:[%s1 + $0x5f0] sm:$0xff]
    %v248 = vld [vmem:[%s1 + $0x5f8] sm:$0xff]
    %v249 = vld [vmem:[%s1 + $0x600] sm:$0xff]
    %v250 = vld [vmem:[%s1 + $0x608] sm:$0xff]
    %v251 = vld [vmem:[%s1 + $0x610] sm:$0xff]
    %v252 = vld [vmem:[%s1 + $0x618] sm:$0xff]
    %v253 = vld [vmem:[%s1 + $0x620] sm:$0xff]
    %v254 = vld [vmem:[%s1 + $0x628] sm:$0xff]
    %v255 = vld [vmem:[%s1 + $0x630] sm:$0xff]
    %v256 = vld [vmem:[%s1 + $0x638] sm:$0xff]
    %v257 = vld [vmem:[%s1 + $0x640] sm:$0xff]
    %v258 = vld [vmem:[%s1 + $0x648] sm:$0xff]
    %v259 = vld [vmem:[%s1 + $0x650] sm:$0xff]
    %v260 = vld [vmem:[%s1 + $0x658] sm:$0xff]
    %v261 = vld [vmem:[%s1 + $0x660] sm:$0xff]
    %v262 = vld [vmem:[%s1 + $0x668] sm:$0xff]
    %v263 = vld [vmem:[%s1 + $0x670] sm:$0xff]
    %v264 = vld [vmem:[%s1 + $0x678] sm:$0xff]
    %v265 = vld [vmem:[%s1 + $0x680] sm:$0xff]
    %v266 = vld [vmem:[%s1 + $0x688] sm:$0xff]
    %v267 = vld [vmem:[%s1 + $0x690] sm:$0xff]
    %v268 = vld [vmem:[%s1 + $0x698] sm:$0xff]
    %v269 = vld [vmem:[%s1 + $0x6a0] sm:$0xff]
    %v270 = vld [vmem:[%s1 + $0x6a8] sm:$0xff]
    %v271 = vld [vmem:[%s1 + $0x6b0] sm:$0xff]
    %v272 = vld [vmem:[%s1 + $0x6b8] sm:$0xff]
    %v273 = vld [vmem:[%s1 + $0x6c0] sm:$0xff]
    %v274 = vld [vmem:[%s1 + $0x6c8] sm:$0xff]
    %v275 = vld [vmem:[%s1 + $0x6d0] sm:$0xff]
    %v276 = vld [vmem:[%s1 + $0x6d8] sm:$0xff]
    %v277 = vld [vmem:[%s1 + $0x6e0] sm:$0xff]
    %v278 = vld [vmem:[%s1 + $0x6e8] sm:$0xff]
    %v279 = vld [vmem:[%s1 + $0x6f0] sm:$0xff]
    %v280 = vld [vmem:[%s1 + $0x6f8] sm:$0xff]
    %v281 = vld [vmem:[%s1 + $0x700] sm:$0xff]
    %v282 = vld [vmem:[%s1 + $0x708] sm:$0xff]
    %v283 = vld [vmem:[%s1 + $0x710] sm:$0xff]
    %v284 = vld [vmem:[%s1 + $0x718] sm:$0xff]
    %v285 = vld [vmem:[%s1 + $0x720] sm:$0xff]
    %v286 = vld [vmem:[%s1 + $0x728] sm:$0xff]
    %v287 = vld [vmem:[%s1 + $0x730] sm:$0xff]
    %v288 = vld [vmem:[%s1 + $0x738] sm:$0xff]
    %v289 = vld [vmem:[%s1 + $0x740] sm:$0xff]
    %v290 = vld [vmem:[%s1 + $0x748] sm:$0xff]
    %v291 = vld [vmem:[%s1 + $0x750] sm:$0xff]
    %v292 = vld [vmem:[%s1 + $0x758] sm:$0xff]
    %v293 = vld [vmem:[%s1 + $0x760] sm:$0xff]
    %v294 = vld [vmem:[%s1 + $0x768] sm:$0xff]
    %v295 = vld [vmem:[%s1 + $0x770] sm:$0xff]
    %v296 = vld [vmem:[%s1 + $0x778] sm:$0xff]
    %v329 = vunpack.c.l.b16 %v25
    %v330 = vunpack.c.h.b16 %v25
    %v331 = vunpack.c.l.b16 %v26
    %v332 = vunpack.c.l.b16 %v27
    %v333 = vunpack.c.h.b16 %v27
    %v334 = vunpack.c.l.b16 %v28
    %v335 = vunpack.c.l.b16 %v29
    %v336 = vunpack.c.h.b16 %v29
    %v337 = vunpack.c.l.b16 %v30
    %v338 = vunpack.c.l.b16 %v31
    %v339 = vunpack.c.h.b16 %v31
    %v340 = vunpack.c.l.b16 %v32
    %v341 = vunpack.c.l.b16 %v33
    %v342 = vunpack.c.h.b16 %v33
    %v343 = vunpack.c.l.b16 %v34
    %v344 = vunpack.c.l.b16 %v35
    %v345 = vunpack.c.h.b16 %v35
    %v346 = vunpack.c.l.b16 %v36
    %v347 = vunpack.c.l.b16 %v37
    %v348 = vunpack.c.h.b16 %v37
    %v349 = vunpack.c.l.b16 %v38
    %v350 = vunpack.c.l.b16 %v39
    %v351 = vunpack.c.h.b16 %v39
    %v352 = vunpack.c.l.b16 %v40
    %v353 = vunpack.c.l.b16 %v41
    %v354 = vunpack.c.h.b16 %v41
    %v355 = vunpack.c.l.b16 %v42
    %v356 = vunpack.c.l.b16 %v43
    %v357 = vunpack.c.h.b16 %v43
    %v358 = vunpack.c.l.b16 %v44
    %v359 = vunpack.c.l.b16 %v45
    %v360 = vunpack.c.h.b16 %v45
    %v361 = vunpack.c.l.b16 %v46
    %v362 = vunpack.c.l.b16 %v47
    %v363 = vunpack.c.h.b16 %v47
    %v364 = vunpack.c.l.b16 %v48
    %v365 = vunpack.c.l.b16 %v49
    %v366 = vunpack.c.h.b16 %v49
    %v367 = vunpack.c.l.b16 %v50
    %v368 = vunpack.c.l.b16 %v51
    %v369 = vunpack.c.h.b16 %v51
    %v370 = vunpack.c.l.b16 %v52
    %v371 = vunpack.c.l.b16 %v53
    %v372 = vunpack.c.h.b16 %v53
    %v373 = vunpack.c.l.b16 %v54
    %v374 = vunpack.c.l.b16 %v55
    %v375 = vunpack.c.h.b16 %v55
    %v376 = vunpack.c.l.b16 %v56
    %v377 = vpack.c.b16 %v332, %v329
    %v378 = vpack.c.b16 %v333, %v330
    %v379 = vpack.c.b16 %v334, %v331
    %v380 = vpack.c.b16 %v338, %v335
    %v381 = vpack.c.b16 %v339, %v336
    %v382 = vpack.c.b16 %v340, %v337
    %v383 = vpack.c.b16 %v344, %v341
    %v384 = vpack.c.b16 %v345, %v342
    %v385 = vpack.c.b16 %v346, %v343
    %v386 = vpack.c.b16 %v350, %v347
    %v387 = vpack.c.b16 %v351, %v348
    %v388 = vpack.c.b16 %v352, %v349
    %v389 = vpack.c.b16 %v356, %v353
    %v390 = vpack.c.b16 %v357, %v354
    %v391 = vpack.c.b16 %v358, %v355
    %v392 = vpack.c.b16 %v362, %v359
    %v393 = vpack.c.b16 %v363, %v360
    %v394 = vpack.c.b16 %v364, %v361
    %v395 = vpack.c.b16 %v368, %v365
    %v396 = vpack.c.b16 %v369, %v366
    %v397 = vpack.c.b16 %v370, %v367
    %v398 = vpack.c.b16 %v374, %v371
    %v399 = vpack.c.b16 %v375, %v372
    %v400 = vpack.c.b16 %v376, %v373
    %v665 = vunpack.c.l.b16 %v57
    %v666 = vunpack.c.h.b16 %v57
    %v667 = vunpack.c.l.b16 %v58
    %v668 = vunpack.c.h.b16 %v58
    %v669 = vunpack.c.l.b16 %v59
    %v670 = vunpack.c.h.b16 %v59
    %v671 = vunpack.c.l.b16 %v60
    %v672 = vunpack.c.h.b16 %v60
    %v673 = vunpack.c.l.b16 %v61
    %v674 = vunpack.c.h.b16 %v61
    %v675 = vunpack.c.l.b16 %v62
    %v676 = vunpack.c.h.b16 %v62
    %v677 = vunpack.c.l.b16 %v63
    %v678 = vunpack.c.h.b16 %v63
    %v679 = vunpack.c.l.b16 %v64
    %v680 = vunpack.c.h.b16 %v64
    %v681 = vunpack.c.l.b16 %v65
    %v682 = vunpack.c.h.b16 %v65
    %v683 = vunpack.c.l.b16 %v66
    %v684 = vunpack.c.h.b16 %v66
    %v685 = vunpack.c.l.b16 %v67
    %v686 = vunpack.c.h.b16 %v67
    %v687 = vunpack.c.l.b16 %v68
    %v688 = vunpack.c.h.b16 %v68
    %v689 = vunpack.c.l.b16 %v69
    %v690 = vunpack.c.h.b16 %v69
    %v691 = vunpack.c.l.b16 %v70
    %v692 = vunpack.c.h.b16 %v70
    %v693 = vunpack.c.l.b16 %v71
    %v694 = vunpack.c.h.b16 %v71
    %v695 = vunpack.c.l.b16 %v72
    %v696 = vunpack.c.h.b16 %v72
    %v697 = vunpack.c.l.b16 %v73
    %v698 = vunpack.c.h.b16 %v73
    %v699 = vunpack.c.l.b16 %v74
    %v700 = vunpack.c.h.b16 %v74
    %v701 = vunpack.c.l.b16 %v75
    %v702 = vunpack.c.h.b16 %v75
    %v703 = vunpack.c.l.b16 %v76
    %v704 = vunpack.c.h.b16 %v76
    %v705 = vunpack.c.l.b16 %v77
    %v706 = vunpack.c.h.b16 %v77
    %v707 = vunpack.c.l.b16 %v78
    %v708 = vunpack.c.h.b16 %v78
    %v709 = vunpack.c.l.b16 %v79
    %v710 = vunpack.c.h.b16 %v79
    %v711 = vunpack.c.l.b16 %v80
    %v712 = vunpack.c.h.b16 %v80
    %v713 = vunpack.c.l.b16 %v81
    %v714 = vunpack.c.h.b16 %v81
    %v715 = vunpack.c.l.b16 %v82
    %v716 = vunpack.c.h.b16 %v82
    %v717 = vunpack.c.l.b16 %v83
    %v718 = vunpack.c.h.b16 %v83
    %v719 = vunpack.c.l.b16 %v84
    %v720 = vunpack.c.h.b16 %v84
    %v721 = vunpack.c.l.b16 %v85
    %v722 = vunpack.c.h.b16 %v85
    %v723 = vunpack.c.l.b16 %v86
    %v724 = vunpack.c.h.b16 %v86
    %v725 = vunpack.c.l.b16 %v87
    %v726 = vunpack.c.h.b16 %v87
    %v727 = vunpack.c.l.b16 %v88
    %v728 = vunpack.c.h.b16 %v88
    %v729 = vunpack.c.l.b16 %v89
    %v730 = vunpack.c.h.b16 %v89
    %v731 = vunpack.c.l.b16 %v90
    %v732 = vunpack.c.h.b16 %v90
    %v733 = vunpack.c.l.b16 %v91
    %v734 = vunpack.c.h.b16 %v91
    %v735 = vunpack.c.l.b16 %v92
    %v736 = vunpack.c.h.b16 %v92
    %v737 = vunpack.c.l.b16 %v93
    %v738 = vunpack.c.h.b16 %v93
    %v739 = vunpack.c.l.b16 %v94
    %v740 = vunpack.c.h.b16 %v94
    %v741 = vunpack.c.l.b16 %v95
    %v742 = vunpack.c.h.b16 %v95
    %v743 = vunpack.c.l.b16 %v96
    %v744 = vunpack.c.h.b16 %v96
    %v745 = vunpack.c.l.b16 %v97
    %v746 = vunpack.c.h.b16 %v97
    %v747 = vunpack.c.l.b16 %v98
    %v748 = vunpack.c.h.b16 %v98
    %v749 = vunpack.c.l.b16 %v99
    %v750 = vunpack.c.h.b16 %v99
    %v751 = vunpack.c.l.b16 %v100
    %v752 = vunpack.c.h.b16 %v100
    %v753 = vunpack.c.l.b16 %v101
    %v754 = vunpack.c.h.b16 %v101
    %v755 = vunpack.c.l.b16 %v102
    %v756 = vunpack.c.h.b16 %v102
    %v757 = vunpack.c.l.b16 %v103
    %v758 = vunpack.c.h.b16 %v103
    %v759 = vunpack.c.l.b16 %v104
    %v760 = vunpack.c.h.b16 %v104
    %v761 = vunpack.c.l.b16 %v105
    %v762 = vunpack.c.h.b16 %v105
    %v763 = vunpack.c.l.b16 %v106
    %v764 = vunpack.c.h.b16 %v106
    %v765 = vunpack.c.l.b16 %v107
    %v766 = vunpack.c.h.b16 %v107
    %v767 = vunpack.c.l.b16 %v108
    %v768 = vunpack.c.h.b16 %v108
    %v769 = vunpack.c.l.b16 %v109
    %v770 = vunpack.c.h.b16 %v109
    %v771 = vunpack.c.l.b16 %v110
    %v772 = vunpack.c.h.b16 %v110
    %v773 = vunpack.c.l.b16 %v111
    %v774 = vunpack.c.h.b16 %v111
    %v775 = vunpack.c.l.b16 %v112
    %v776 = vunpack.c.h.b16 %v112
    %v777 = vunpack.c.l.b16 %v113
    %v778 = vunpack.c.h.b16 %v113
    %v779 = vunpack.c.l.b16 %v114
    %v780 = vunpack.c.h.b16 %v114
    %v781 = vunpack.c.l.b16 %v115
    %v782 = vunpack.c.h.b16 %v115
    %v783 = vunpack.c.l.b16 %v116
    %v784 = vunpack.c.h.b16 %v116
    %v785 = vunpack.c.l.b16 %v117
    %v786 = vunpack.c.h.b16 %v117
    %v787 = vunpack.c.l.b16 %v118
    %v788 = vunpack.c.h.b16 %v118
    %v789 = vunpack.c.l.b16 %v119
    %v790 = vunpack.c.h.b16 %v119
    %v791 = vunpack.c.l.b16 %v120
    %v792 = vunpack.c.h.b16 %v120
    %v793 = vunpack.c.l.b16 %v121
    %v794 = vunpack.c.h.b16 %v121
    %v795 = vunpack.c.l.b16 %v122
    %v796 = vunpack.c.h.b16 %v122
    %v797 = vunpack.c.l.b16 %v123
    %v798 = vunpack.c.h.b16 %v123
    %v799 = vunpack.c.l.b16 %v124
    %v800 = vunpack.c.h.b16 %v124
    %v801 = vunpack.c.l.b16 %v125
    %v802 = vunpack.c.h.b16 %v125
    %v803 = vunpack.c.l.b16 %v126
    %v804 = vunpack.c.h.b16 %v126
    %v805 = vunpack.c.l.b16 %v127
    %v806 = vunpack.c.h.b16 %v127
    %v807 = vunpack.c.l.b16 %v128
    %v808 = vunpack.c.h.b16 %v128
    %v809 = vunpack.c.l.b16 %v129
    %v810 = vunpack.c.h.b16 %v129
    %v811 = vunpack.c.l.b16 %v130
    %v812 = vunpack.c.h.b16 %v130
    %v813 = vunpack.c.l.b16 %v131
    %v814 = vunpack.c.h.b16 %v131
    %v815 = vunpack.c.l.b16 %v132
    %v816 = vunpack.c.h.b16 %v132
    %v817 = vunpack.c.l.b16 %v133
    %v818 = vunpack.c.h.b16 %v133
    %v819 = vunpack.c.l.b16 %v134
    %v820 = vunpack.c.h.b16 %v134
    %v821 = vunpack.c.l.b16 %v135
    %v822 = vunpack.c.h.b16 %v135
    %v823 = vunpack.c.l.b16 %v136
    %v824 = vunpack.c.h.b16 %v136
    %v825 = vunpack.c.l.b16 %v137
    %v826 = vunpack.c.h.b16 %v137
    %v827 = vunpack.c.l.b16 %v138
    %v828 = vunpack.c.h.b16 %v138
    %v829 = vunpack.c.l.b16 %v139
    %v830 = vunpack.c.h.b16 %v139
    %v831 = vunpack.c.l.b16 %v140
    %v832 = vunpack.c.h.b16 %v140
    %v833 = vunpack.c.l.b16 %v141
    %v834 = vunpack.c.h.b16 %v141
    %v835 = vunpack.c.l.b16 %v142
    %v836 = vunpack.c.h.b16 %v142
    %v837 = vunpack.c.l.b16 %v143
    %v838 = vunpack.c.h.b16 %v143
    %v839 = vunpack.c.l.b16 %v144
    %v840 = vunpack.c.h.b16 %v144
    %v841 = vunpack.c.l.b16 %v145
    %v842 = vunpack.c.h.b16 %v145
    %v843 = vunpack.c.l.b16 %v146
    %v844 = vunpack.c.h.b16 %v146
    %v845 = vunpack.c.l.b16 %v147
    %v846 = vunpack.c.h.b16 %v147
    %v847 = vunpack.c.l.b16 %v148
    %v848 = vunpack.c.h.b16 %v148
    %v849 = vunpack.c.l.b16 %v149
    %v850 = vunpack.c.h.b16 %v149
    %v851 = vunpack.c.l.b16 %v150
    %v852 = vunpack.c.h.b16 %v150
    %v853 = vunpack.c.l.b16 %v151
    %v854 = vunpack.c.h.b16 %v151
    %v855 = vunpack.c.l.b16 %v152
    %v856 = vunpack.c.h.b16 %v152
    %v857 = vunpack.c.l.b16 %v153
    %v858 = vunpack.c.h.b16 %v153
    %v859 = vunpack.c.l.b16 %v154
    %v860 = vunpack.c.h.b16 %v154
    %v861 = vunpack.c.l.b16 %v155
    %v862 = vunpack.c.h.b16 %v155
    %v863 = vunpack.c.l.b16 %v156
    %v864 = vunpack.c.h.b16 %v156
    %v865 = vunpack.c.l.b16 %v157
    %v866 = vunpack.c.h.b16 %v157
    %v867 = vunpack.c.l.b16 %v158
    %v868 = vunpack.c.h.b16 %v158
    %v869 = vunpack.c.l.b16 %v159
    %v870 = vunpack.c.h.b16 %v159
    %v871 = vunpack.c.l.b16 %v160
    %v872 = vunpack.c.h.b16 %v160
    %v873 = vunpack.c.l.b16 %v161
    %v874 = vunpack.c.h.b16 %v161
    %v875 = vunpack.c.l.b16 %v162
    %v876 = vunpack.c.h.b16 %v162
    %v877 = vunpack.c.l.b16 %v163
    %v878 = vunpack.c.h.b16 %v163
    %v879 = vunpack.c.l.b16 %v164
    %v880 = vunpack.c.h.b16 %v164
    %v881 = vunpack.c.l.b16 %v165
    %v882 = vunpack.c.h.b16 %v165
    %v883 = vunpack.c.l.b16 %v166
    %v884 = vunpack.c.h.b16 %v166
    %v885 = vunpack.c.l.b16 %v167
    %v886 = vunpack.c.h.b16 %v167
    %v887 = vunpack.c.l.b16 %v168
    %v888 = vunpack.c.h.b16 %v168
    %v889 = vunpack.c.l.b16 %v169
    %v890 = vunpack.c.h.b16 %v169
    %v891 = vunpack.c.l.b16 %v170
    %v892 = vunpack.c.h.b16 %v170
    %v893 = vunpack.c.l.b16 %v171
    %v894 = vunpack.c.h.b16 %v171
    %v895 = vunpack.c.l.b16 %v172
    %v896 = vunpack.c.h.b16 %v172
    %v897 = vunpack.c.l.b16 %v173
    %v898 = vunpack.c.h.b16 %v173
    %v899 = vunpack.c.l.b16 %v174
    %v900 = vunpack.c.h.b16 %v174
    %v901 = vunpack.c.l.b16 %v175
    %v902 = vunpack.c.h.b16 %v175
    %v903 = vunpack.c.l.b16 %v176
    %v904 = vunpack.c.h.b16 %v176
    %v905 = vunpack.c.l.b16 %v177
    %v906 = vunpack.c.h.b16 %v177
    %v907 = vunpack.c.l.b16 %v178
    %v908 = vunpack.c.h.b16 %v178
    %v909 = vunpack.c.l.b16 %v179
    %v910 = vunpack.c.h.b16 %v179
    %v911 = vunpack.c.l.b16 %v180
    %v912 = vunpack.c.h.b16 %v180
    %v913 = vunpack.c.l.b16 %v181
    %v914 = vunpack.c.h.b16 %v181
    %v915 = vunpack.c.l.b16 %v182
    %v916 = vunpack.c.h.b16 %v182
    %v917 = vunpack.c.l.b16 %v183
    %v918 = vunpack.c.h.b16 %v183
    %v919 = vunpack.c.l.b16 %v184
    %v920 = vunpack.c.h.b16 %v184
    %v921 = vunpack.c.l.b16 %v185
    %v922 = vunpack.c.h.b16 %v185
    %v923 = vunpack.c.l.b16 %v186
    %v924 = vunpack.c.h.b16 %v186
    %v925 = vunpack.c.l.b16 %v187
    %v926 = vunpack.c.h.b16 %v187
    %v927 = vunpack.c.l.b16 %v188
    %v928 = vunpack.c.h.b16 %v188
    %v929 = vunpack.c.l.b16 %v189
    %v930 = vunpack.c.h.b16 %v189
    %v931 = vunpack.c.l.b16 %v190
    %v932 = vunpack.c.h.b16 %v190
    %v933 = vunpack.c.l.b16 %v191
    %v934 = vunpack.c.h.b16 %v191
    %v935 = vunpack.c.l.b16 %v192
    %v936 = vunpack.c.h.b16 %v192
    %v937 = vunpack.c.l.b16 %v193
    %v938 = vunpack.c.h.b16 %v193
    %v939 = vunpack.c.l.b16 %v194
    %v940 = vunpack.c.h.b16 %v194
    %v941 = vunpack.c.l.b16 %v195
    %v942 = vunpack.c.h.b16 %v195
    %v943 = vunpack.c.l.b16 %v196
    %v944 = vunpack.c.h.b16 %v196
    %v945 = vunpack.c.l.b16 %v197
    %v946 = vunpack.c.h.b16 %v197
    %v947 = vunpack.c.l.b16 %v198
    %v948 = vunpack.c.h.b16 %v198
    %v949 = vunpack.c.l.b16 %v199
    %v950 = vunpack.c.h.b16 %v199
    %v951 = vunpack.c.l.b16 %v200
    %v952 = vunpack.c.h.b16 %v200
    %v953 = vunpack.c.l.b16 %v201
    %v954 = vunpack.c.h.b16 %v201
    %v955 = vunpack.c.l.b16 %v202
    %v956 = vunpack.c.h.b16 %v202
    %v957 = vunpack.c.l.b16 %v203
    %v958 = vunpack.c.h.b16 %v203
    %v959 = vunpack.c.l.b16 %v204
    %v960 = vunpack.c.h.b16 %v204
    %v961 = vunpack.c.l.b16 %v205
    %v962 = vunpack.c.h.b16 %v205
    %v963 = vunpack.c.l.b16 %v206
    %v964 = vunpack.c.h.b16 %v206
    %v965 = vunpack.c.l.b16 %v207
    %v966 = vunpack.c.h.b16 %v207
    %v967 = vunpack.c.l.b16 %v208
    %v968 = vunpack.c.h.b16 %v208
    %v969 = vunpack.c.l.b16 %v209
    %v970 = vunpack.c.h.b16 %v209
    %v971 = vunpack.c.l.b16 %v210
    %v972 = vunpack.c.h.b16 %v210
    %v973 = vunpack.c.l.b16 %v211
    %v974 = vunpack.c.h.b16 %v211
    %v975 = vunpack.c.l.b16 %v212
    %v976 = vunpack.c.h.b16 %v212
    %v977 = vunpack.c.l.b16 %v213
    %v978 = vunpack.c.h.b16 %v213
    %v979 = vunpack.c.l.b16 %v214
    %v980 = vunpack.c.h.b16 %v214
    %v981 = vunpack.c.l.b16 %v215
    %v982 = vunpack.c.h.b16 %v215
    %v983 = vunpack.c.l.b16 %v216
    %v984 = vunpack.c.h.b16 %v216
    %v985 = vunpack.c.l.b16 %v217
    %v986 = vunpack.c.h.b16 %v217
    %v987 = vunpack.c.l.b16 %v218
    %v988 = vunpack.c.h.b16 %v218
    %v989 = vunpack.c.l.b16 %v219
    %v990 = vunpack.c.h.b16 %v219
    %v991 = vunpack.c.l.b16 %v220
    %v992 = vunpack.c.h.b16 %v220
    %v993 = vunpack.c.l.b16 %v221
    %v994 = vunpack.c.h.b16 %v221
    %v995 = vunpack.c.l.b16 %v222
    %v996 = vunpack.c.h.b16 %v222
    %v997 = vunpack.c.l.b16 %v223
    %v998 = vunpack.c.h.b16 %v223
    %v999 = vunpack.c.l.b16 %v224
    %v1000 = vunpack.c.h.b16 %v224
    %v1001 = vunpack.c.l.b16 %v225
    %v1002 = vunpack.c.h.b16 %v225
    %v1003 = vunpack.c.l.b16 %v226
    %v1004 = vunpack.c.h.b16 %v226
    %v1005 = vunpack.c.l.b16 %v227
    %v1006 = vunpack.c.h.b16 %v227
    %v1007 = vunpack.c.l.b16 %v228
    %v1008 = vunpack.c.h.b16 %v228
    %v1009 = vunpack.c.l.b16 %v229
    %v1010 = vunpack.c.h.b16 %v229
    %v1011 = vunpack.c.l.b16 %v230
    %v1012 = vunpack.c.h.b16 %v230
    %v1013 = vunpack.c.l.b16 %v231
    %v1014 = vunpack.c.h.b16 %v231
    %v1015 = vunpack.c.l.b16 %v232
    %v1016 = vunpack.c.h.b16 %v232
    %v1017 = vunpack.c.l.b16 %v233
    %v1018 = vunpack.c.h.b16 %v233
    %v1019 = vunpack.c.l.b16 %v234
    %v1020 = vunpack.c.h.b16 %v234
    %v1021 = vunpack.c.l.b16 %v235
    %v1022 = vunpack.c.h.b16 %v235
    %v1023 = vunpack.c.l.b16 %v236
    %v1024 = vunpack.c.h.b16 %v236
    %v1025 = vunpack.c.l.b16 %v237
    %v1026 = vunpack.c.h.b16 %v237
    %v1027 = vunpack.c.l.b16 %v238
    %v1028 = vunpack.c.h.b16 %v238
    %v1029 = vunpack.c.l.b16 %v239
    %v1030 = vunpack.c.h.b16 %v239
    %v1031 = vunpack.c.l.b16 %v240
    %v1032 = vunpack.c.h.b16 %v240
    %v1033 = vunpack.c.l.b16 %v241
    %v1034 = vunpack.c.h.b16 %v241
    %v1035 = vunpack.c.l.b16 %v242
    %v1036 = vunpack.c.h.b16 %v242
    %v1037 = vunpack.c.l.b16 %v243
    %v1038 = vunpack.c.h.b16 %v243
    %v1039 = vunpack.c.l.b16 %v244
    %v1040 = vunpack.c.h.b16 %v244
    %v1041 = vunpack.c.l.b16 %v245
    %v1042 = vunpack.c.h.b16 %v245
    %v1043 = vunpack.c.l.b16 %v246
    %v1044 = vunpack.c.h.b16 %v246
    %v1045 = vunpack.c.l.b16 %v247
    %v1046 = vunpack.c.h.b16 %v247
    %v1047 = vunpack.c.l.b16 %v248
    %v1048 = vunpack.c.h.b16 %v248
    %v1049 = vunpack.c.l.b16 %v249
    %v1050 = vunpack.c.h.b16 %v249
    %v1051 = vunpack.c.l.b16 %v250
    %v1052 = vunpack.c.h.b16 %v250
    %v1053 = vunpack.c.l.b16 %v251
    %v1054 = vunpack.c.h.b16 %v251
    %v1055 = vunpack.c.l.b16 %v252
    %v1056 = vunpack.c.h.b16 %v252
    %v1057 = vunpack.c.l.b16 %v253
    %v1058 = vunpack.c.h.b16 %v253
    %v1059 = vunpack.c.l.b16 %v254
    %v1060 = vunpack.c.h.b16 %v254
    %v1061 = vunpack.c.l.b16 %v255
    %v1062 = vunpack.c.h.b16 %v255
    %v1063 = vunpack.c.l.b16 %v256
    %v1064 = vunpack.c.h.b16 %v256
    %v1065 = vunpack.c.l.b16 %v257
    %v1066 = vunpack.c.h.b16 %v257
    %v1067 = vunpack.c.l.b16 %v258
    %v1068 = vunpack.c.h.b16 %v258
    %v1069 = vunpack.c.l.b16 %v259
    %v1070 = vunpack.c.h.b16 %v259
    %v1071 = vunpack.c.l.b16 %v260
    %v1072 = vunpack.c.h.b16 %v260
    %v1073 = vunpack.c.l.b16 %v261
    %v1074 = vunpack.c.h.b16 %v261
    %v1075 = vunpack.c.l.b16 %v262
    %v1076 = vunpack.c.h.b16 %v262
    %v1077 = vunpack.c.l.b16 %v263
    %v1078 = vunpack.c.h.b16 %v263
    %v1079 = vunpack.c.l.b16 %v264
    %v1080 = vunpack.c.h.b16 %v264
    %v1081 = vunpack.c.l.b16 %v265
    %v1082 = vunpack.c.h.b16 %v265
    %v1083 = vunpack.c.l.b16 %v266
    %v1084 = vunpack.c.h.b16 %v266
    %v1085 = vunpack.c.l.b16 %v267
    %v1086 = vunpack.c.h.b16 %v267
    %v1087 = vunpack.c.l.b16 %v268
    %v1088 = vunpack.c.h.b16 %v268
    %v1089 = vunpack.c.l.b16 %v269
    %v1090 = vunpack.c.h.b16 %v269
    %v1091 = vunpack.c.l.b16 %v270
    %v1092 = vunpack.c.h.b16 %v270
    %v1093 = vunpack.c.l.b16 %v271
    %v1094 = vunpack.c.h.b16 %v271
    %v1095 = vunpack.c.l.b16 %v272
    %v1096 = vunpack.c.h.b16 %v272
    %v1097 = vunpack.c.l.b16 %v273
    %v1098 = vunpack.c.h.b16 %v273
    %v1099 = vunpack.c.l.b16 %v274
    %v1100 = vunpack.c.h.b16 %v274
    %v1101 = vunpack.c.l.b16 %v275
    %v1102 = vunpack.c.h.b16 %v275
    %v1103 = vunpack.c.l.b16 %v276
    %v1104 = vunpack.c.h.b16 %v276
    %v1105 = vunpack.c.l.b16 %v277
    %v1106 = vunpack.c.h.b16 %v277
    %v1107 = vunpack.c.l.b16 %v278
    %v1108 = vunpack.c.h.b16 %v278
    %v1109 = vunpack.c.l.b16 %v279
    %v1110 = vunpack.c.h.b16 %v279
    %v1111 = vunpack.c.l.b16 %v280
    %v1112 = vunpack.c.h.b16 %v280
    %v1113 = vunpack.c.l.b16 %v281
    %v1114 = vunpack.c.h.b16 %v281
    %v1115 = vunpack.c.l.b16 %v282
    %v1116 = vunpack.c.h.b16 %v282
    %v1117 = vunpack.c.l.b16 %v283
    %v1118 = vunpack.c.h.b16 %v283
    %v1119 = vunpack.c.l.b16 %v284
    %v1120 = vunpack.c.h.b16 %v284
    %v1121 = vunpack.c.l.b16 %v285
    %v1122 = vunpack.c.h.b16 %v285
    %v1123 = vunpack.c.l.b16 %v286
    %v1124 = vunpack.c.h.b16 %v286
    %v1125 = vunpack.c.l.b16 %v287
    %v1126 = vunpack.c.h.b16 %v287
    %v1127 = vunpack.c.l.b16 %v288
    %v1128 = vunpack.c.h.b16 %v288
    %v1129 = vunpack.c.l.b16 %v289
    %v1130 = vunpack.c.h.b16 %v289
    %v1131 = vunpack.c.l.b16 %v290
    %v1132 = vunpack.c.h.b16 %v290
    %v1133 = vunpack.c.l.b16 %v291
    %v1134 = vunpack.c.h.b16 %v291
    %v1135 = vunpack.c.l.b16 %v292
    %v1136 = vunpack.c.h.b16 %v292
    %v1137 = vunpack.c.l.b16 %v293
    %v1138 = vunpack.c.h.b16 %v293
    %v1139 = vunpack.c.l.b16 %v294
    %v1140 = vunpack.c.h.b16 %v294
    %v1141 = vunpack.c.l.b16 %v295
    %v1142 = vunpack.c.h.b16 %v295
    %v1143 = vunpack.c.l.b16 %v296
    %v1144 = vunpack.c.h.b16 %v296
    %v1145 = vpack.c.b16 %v675, %v665
    %v1146 = vpack.c.b16 %v676, %v666
    %v1147 = vpack.c.b16 %v677, %v667
    %v1148 = vpack.c.b16 %v678, %v668
    %v1149 = vpack.c.b16 %v679, %v669
    %v1150 = vpack.c.b16 %v680, %v670
    %v1151 = vpack.c.b16 %v681, %v671
    %v1152 = vpack.c.b16 %v682, %v672
    %v1153 = vpack.c.b16 %v683, %v673
    %v1154 = vpack.c.b16 %v684, %v674
    %v1155 = vpack.c.b16 %v695, %v685
    %v1156 = vpack.c.b16 %v696, %v686
    %v1157 = vpack.c.b16 %v697, %v687
    %v1158 = vpack.c.b16 %v698, %v688
    %v1159 = vpack.c.b16 %v699, %v689
    %v1160 = vpack.c.b16 %v700, %v690
    %v1161 = vpack.c.b16 %v701, %v691
    %v1162 = vpack.c.b16 %v702, %v692
    %v1163 = vpack.c.b16 %v703, %v693
    %v1164 = vpack.c.b16 %v704, %v694
    %v1165 = vpack.c.b16 %v715, %v705
    %v1166 = vpack.c.b16 %v716, %v706
    %v1167 = vpack.c.b16 %v717, %v707
    %v1168 = vpack.c.b16 %v718, %v708
    %v1169 = vpack.c.b16 %v719, %v709
    %v1170 = vpack.c.b16 %v720, %v710
    %v1171 = vpack.c.b16 %v721, %v711
    %v1172 = vpack.c.b16 %v722, %v712
    %v1173 = vpack.c.b16 %v723, %v713
    %v1174 = vpack.c.b16 %v724, %v714
    %v1175 = vpack.c.b16 %v735, %v725
    %v1176 = vpack.c.b16 %v736, %v726
    %v1177 = vpack.c.b16 %v737, %v727
    %v1178 = vpack.c.b16 %v738, %v728
    %v1179 = vpack.c.b16 %v739, %v729
    %v1180 = vpack.c.b16 %v740, %v730
    %v1181 = vpack.c.b16 %v741, %v731
    %v1182 = vpack.c.b16 %v742, %v732
    %v1183 = vpack.c.b16 %v743, %v733
    %v1184 = vpack.c.b16 %v744, %v734
    %v1185 = vpack.c.b16 %v755, %v745
    %v1186 = vpack.c.b16 %v756, %v746
    %v1187 = vpack.c.b16 %v757, %v747
    %v1188 = vpack.c.b16 %v758, %v748
    %v1189 = vpack.c.b16 %v759, %v749
    %v1190 = vpack.c.b16 %v760, %v750
    %v1191 = vpack.c.b16 %v761, %v751
    %v1192 = vpack.c.b16 %v762, %v752
    %v1193 = vpack.c.b16 %v763, %v753
    %v1194 = vpack.c.b16 %v764, %v754
    %v1195 = vpack.c.b16 %v775, %v765
    %v1196 = vpack.c.b16 %v776, %v766
    %v1197 = vpack.c.b16 %v777, %v767
    %v1198 = vpack.c.b16 %v778, %v768
    %v1199 = vpack.c.b16 %v779, %v769
    %v1200 = vpack.c.b16 %v780, %v770
    %v1201 = vpack.c.b16 %v781, %v771
    %v1202 = vpack.c.b16 %v782, %v772
    %v1203 = vpack.c.b16 %v783, %v773
    %v1204 = vpack.c.b16 %v784, %v774
    %v1205 = vpack.c.b16 %v795, %v785
    %v1206 = vpack.c.b16 %v796, %v786
    %v1207 = vpack.c.b16 %v797, %v787
    %v1208 = vpack.c.b16 %v798, %v788
    %v1209 = vpack.c.b16 %v799, %v789
    %v1210 = vpack.c.b16 %v800, %v790
    %v1211 = vpack.c.b16 %v801, %v791
    %v1212 = vpack.c.b16 %v802, %v792
    %v1213 = vpack.c.b16 %v803, %v793
    %v1214 = vpack.c.b16 %v804, %v794
    %v1215 = vpack.c.b16 %v815, %v805
    %v1216 = vpack.c.b16 %v816, %v806
    %v1217 = vpack.c.b16 %v817, %v807
    %v1218 = vpack.c.b16 %v818, %v808
    %v1219 = vpack.c.b16 %v819, %v809
    %v1220 = vpack.c.b16 %v820, %v810
    %v1221 = vpack.c.b16 %v821, %v811
    %v1222 = vpack.c.b16 %v822, %v812
    %v1223 = vpack.c.b16 %v823, %v813
    %v1224 = vpack.c.b16 %v824, %v814
    %v1225 = vpack.c.b16 %v835, %v825
    %v1226 = vpack.c.b16 %v836, %v826
    %v1227 = vpack.c.b16 %v837, %v827
    %v1228 = vpack.c.b16 %v838, %v828
    %v1229 = vpack.c.b16 %v839, %v829
    %v1230 = vpack.c.b16 %v840, %v830
    %v1231 = vpack.c.b16 %v841, %v831
    %v1232 = vpack.c.b16 %v842, %v832
    %v1233 = vpack.c.b16 %v843, %v833
    %v1234 = vpack.c.b16 %v844, %v834
    %v1235 = vpack.c.b16 %v855, %v845
    %v1236 = vpack.c.b16 %v856, %v846
    %v1237 = vpack.c.b16 %v857, %v847
    %v1238 = vpack.c.b16 %v858, %v848
    %v1239 = vpack.c.b16 %v859, %v849
    %v1240 = vpack.c.b16 %v860, %v850
    %v1241 = vpack.c.b16 %v861, %v851
    %v1242 = vpack.c.b16 %v862, %v852
    %v1243 = vpack.c.b16 %v863, %v853
    %v1244 = vpack.c.b16 %v864, %v854
    %v1245 = vpack.c.b16 %v875, %v865
    %v1246 = vpack.c.b16 %v876, %v866
    %v1247 = vpack.c.b16 %v877, %v867
    %v1248 = vpack.c.b16 %v878, %v868
    %v1249 = vpack.c.b16 %v879, %v869
    %v1250 = vpack.c.b16 %v880, %v870
    %v1251 = vpack.c.b16 %v881, %v871
    %v1252 = vpack.c.b16 %v882, %v872
    %v1253 = vpack.c.b16 %v883, %v873
    %v1254 = vpack.c.b16 %v884, %v874
    %v1255 = vpack.c.b16 %v895, %v885
    %v1256 = vpack.c.b16 %v896, %v886
    %v1257 = vpack.c.b16 %v897, %v887
    %v1258 = vpack.c.b16 %v898, %v888
    %v1259 = vpack.c.b16 %v899, %v889
    %v1260 = vpack.c.b16 %v900, %v890
    %v1261 = vpack.c.b16 %v901, %v891
    %v1262 = vpack.c.b16 %v902, %v892
    %v1263 = vpack.c.b16 %v903, %v893
    %v1264 = vpack.c.b16 %v904, %v894
    %v1265 = vpack.c.b16 %v915, %v905
    %v1266 = vpack.c.b16 %v916, %v906
    %v1267 = vpack.c.b16 %v917, %v907
    %v1268 = vpack.c.b16 %v918, %v908
    %v1269 = vpack.c.b16 %v919, %v909
    %v1270 = vpack.c.b16 %v920, %v910
    %v1271 = vpack.c.b16 %v921, %v911
    %v1272 = vpack.c.b16 %v922, %v912
    %v1273 = vpack.c.b16 %v923, %v913
    %v1274 = vpack.c.b16 %v924, %v914
    %v1275 = vpack.c.b16 %v935, %v925
    %v1276 = vpack.c.b16 %v936, %v926
    %v1277 = vpack.c.b16 %v937, %v927
    %v1278 = vpack.c.b16 %v938, %v928
    %v1279 = vpack.c.b16 %v939, %v929
    %v1280 = vpack.c.b16 %v940, %v930
    %v1281 = vpack.c.b16 %v941, %v931
    %v1282 = vpack.c.b16 %v942, %v932
    %v1283 = vpack.c.b16 %v943, %v933
    %v1284 = vpack.c.b16 %v944, %v934
    %v1285 = vpack.c.b16 %v955, %v945
    %v1286 = vpack.c.b16 %v956, %v946
    %v1287 = vpack.c.b16 %v957, %v947
    %v1288 = vpack.c.b16 %v958, %v948
    %v1289 = vpack.c.b16 %v959, %v949
    %v1290 = vpack.c.b16 %v960, %v950
    %v1291 = vpack.c.b16 %v961, %v951
    %v1292 = vpack.c.b16 %v962, %v952
    %v1293 = vpack.c.b16 %v963, %v953
    %v1294 = vpack.c.b16 %v964, %v954
    %v1295 = vpack.c.b16 %v975, %v965
    %v1296 = vpack.c.b16 %v976, %v966
    %v1297 = vpack.c.b16 %v977, %v967
    %v1298 = vpack.c.b16 %v978, %v968
    %v1299 = vpack.c.b16 %v979, %v969
    %v1300 = vpack.c.b16 %v980, %v970
    %v1301 = vpack.c.b16 %v981, %v971
    %v1302 = vpack.c.b16 %v982, %v972
    %v1303 = vpack.c.b16 %v983, %v973
    %v1304 = vpack.c.b16 %v984, %v974
    %v1305 = vpack.c.b16 %v995, %v985
    %v1306 = vpack.c.b16 %v996, %v986
    %v1307 = vpack.c.b16 %v997, %v987
    %v1308 = vpack.c.b16 %v998, %v988
    %v1309 = vpack.c.b16 %v999, %v989
    %v1310 = vpack.c.b16 %v1000, %v990
    %v1311 = vpack.c.b16 %v1001, %v991
    %v1312 = vpack.c.b16 %v1002, %v992
    %v1313 = vpack.c.b16 %v1003, %v993
    %v1314 = vpack.c.b16 %v1004, %v994
    %v1315 = vpack.c.b16 %v1015, %v1005
    %v1316 = vpack.c.b16 %v1016, %v1006
    %v1317 = vpack.c.b16 %v1017, %v1007
    %v1318 = vpack.c.b16 %v1018, %v1008
    %v1319 = vpack.c.b16 %v1019, %v1009
    %v1320 = vpack.c.b16 %v1020, %v1010
    %v1321 = vpack.c.b16 %v1021, %v1011
    %v1322 = vpack.c.b16 %v1022, %v1012
    %v1323 = vpack.c.b16 %v1023, %v1013
    %v1324 = vpack.c.b16 %v1024, %v1014
    %v1325 = vpack.c.b16 %v1035, %v1025
    %v1326 = vpack.c.b16 %v1036, %v1026
    %v1327 = vpack.c.b16 %v1037, %v1027
    %v1328 = vpack.c.b16 %v1038, %v1028
    %v1329 = vpack.c.b16 %v1039, %v1029
    %v1330 = vpack.c.b16 %v1040, %v1030
    %v1331 = vpack.c.b16 %v1041, %v1031
    %v1332 = vpack.c.b16 %v1042, %v1032
    %v1333 = vpack.c.b16 %v1043, %v1033
    %v1334 = vpack.c.b16 %v1044, %v1034
    %v1335 = vpack.c.b16 %v1055, %v1045
    %v1336 = vpack.c.b16 %v1056, %v1046
    %v1337 = vpack.c.b16 %v1057, %v1047
    %v1338 = vpack.c.b16 %v1058, %v1048
    %v1339 = vpack.c.b16 %v1059, %v1049
    %v1340 = vpack.c.b16 %v1060, %v1050
    %v1341 = vpack.c.b16 %v1061, %v1051
    %v1342 = vpack.c.b16 %v1062, %v1052
    %v1343 = vpack.c.b16 %v1063, %v1053
    %v1344 = vpack.c.b16 %v1064, %v1054
    %v1345 = vpack.c.b16 %v1075, %v1065
    %v1346 = vpack.c.b16 %v1076, %v1066
    %v1347 = vpack.c.b16 %v1077, %v1067
    %v1348 = vpack.c.b16 %v1078, %v1068
    %v1349 = vpack.c.b16 %v1079, %v1069
    %v1350 = vpack.c.b16 %v1080, %v1070
    %v1351 = vpack.c.b16 %v1081, %v1071
    %v1352 = vpack.c.b16 %v1082, %v1072
    %v1353 = vpack.c.b16 %v1083, %v1073
    %v1354 = vpack.c.b16 %v1084, %v1074
    %v1355 = vpack.c.b16 %v1095, %v1085
    %v1356 = vpack.c.b16 %v1096, %v1086
    %v1357 = vpack.c.b16 %v1097, %v1087
    %v1358 = vpack.c.b16 %v1098, %v1088
    %v1359 = vpack.c.b16 %v1099, %v1089
    %v1360 = vpack.c.b16 %v1100, %v1090
    %v1361 = vpack.c.b16 %v1101, %v1091
    %v1362 = vpack.c.b16 %v1102, %v1092
    %v1363 = vpack.c.b16 %v1103, %v1093
    %v1364 = vpack.c.b16 %v1104, %v1094
    %v1365 = vpack.c.b16 %v1115, %v1105
    %v1366 = vpack.c.b16 %v1116, %v1106
    %v1367 = vpack.c.b16 %v1117, %v1107
    %v1368 = vpack.c.b16 %v1118, %v1108
    %v1369 = vpack.c.b16 %v1119, %v1109
    %v1370 = vpack.c.b16 %v1120, %v1110
    %v1371 = vpack.c.b16 %v1121, %v1111
    %v1372 = vpack.c.b16 %v1122, %v1112
    %v1373 = vpack.c.b16 %v1123, %v1113
    %v1374 = vpack.c.b16 %v1124, %v1114
    %v1375 = vpack.c.b16 %v1135, %v1125
    %v1376 = vpack.c.b16 %v1136, %v1126
    %v1377 = vpack.c.b16 %v1137, %v1127
    %v1378 = vpack.c.b16 %v1138, %v1128
    %v1379 = vpack.c.b16 %v1139, %v1129
    %v1380 = vpack.c.b16 %v1140, %v1130
    %v1381 = vpack.c.b16 %v1141, %v1131
    %v1382 = vpack.c.b16 %v1142, %v1132
    %v1383 = vpack.c.b16 %v1143, %v1133
    %v1384 = vpack.c.b16 %v1144, %v1134
    %1625 = vmatprep.subr.bf16.mxu0 %v1146
    %1626 = vmatpush1.bf16.msra.mxu0 %v1145
    %1627 = vmatprep.subr.bf16.mxu0 %v1156
    %1628 = vmatpush1.bf16.msra.mxu0 %v1155
    %1629 = vmatprep.subr.bf16.mxu0 %v1166
    %1630 = vmatpush1.bf16.msra.mxu0 %v1165
    %1631 = vmatprep.subr.bf16.mxu0 %v1176
    %1632 = vmatpush1.bf16.msra.mxu0 %v1175
    %1633 = vmatprep.subr.bf16.mxu0 %v1186
    %1634 = vmatpush1.bf16.msra.mxu0 %v1185
    %1635 = vmatprep.subr.bf16.mxu0 %v1196
    %1636 = vmatpush1.bf16.msra.mxu0 %v1195
    %1637 = vmatprep.subr.bf16.mxu0 %v1206
    %1638 = vmatpush1.bf16.msra.mxu0 %v1205
    %1639 = vmatprep.subr.bf16.mxu0 %v1216
    %1640 = vmatpush1.bf16.msra.mxu0 %v1215
    %1641 = vmatprep.subr.bf16.mxu0 %v1226
    %1642 = vmatpush1.bf16.msra.mxu0 %v1225
    %1643 = vmatprep.subr.bf16.mxu0 %v1236
    %1644 = vmatpush1.bf16.msra.mxu0 %v1235
    %1645 = vmatprep.subr.bf16.mxu0 %v1246
    %1646 = vmatpush1.bf16.msra.mxu0 %v1245
    %1647 = vmatprep.subr.bf16.mxu0 %v1256
    %1648 = vmatpush1.bf16.msra.mxu0 %v1255
    %1649 = vmatprep.subr.bf16.mxu0 %v1266
    %1650 = vmatpush1.bf16.msra.mxu0 %v1265
    %1651 = vmatprep.subr.bf16.mxu0 %v1276
    %1652 = vmatpush1.bf16.msra.mxu0 %v1275
    %1653 = vmatprep.subr.bf16.mxu0 %v1286
    %1654 = vmatpush1.bf16.msra.mxu0 %v1285
    %1655 = vmatprep.subr.bf16.mxu0 %v1296
    %1656 = vmatpush1.bf16.msra.mxu0 %v1295
    %1657 = vmatprep.mubr.bf16.mxu0 %v378
    %1658 = vmatmul.mubr.bf16.gmra.mrb[0].mxu0 %v377
    %v1659 = vpop.f32.mrb[0].mxu0
    %v1660 = vadd.f32 0.0, %v1659
    %v1661 = vpop.f32.mrb[0].mxu0
    %v1662 = vadd.f32 0.0, %v1661
    %v1663 = vpop.f32.mrb[0].mxu0
    %v1664 = vadd.f32 0.0, %v1663
    %v1665 = vpop.f32.mrb[0].mxu0
    %v1666 = vadd.f32 0.0, %v1665
    %1667 = vmatprep.mubr.bf16.mxu0 %v381
    %1668 = vmatmul.mubr.bf16.gmra.mrb[0].mxu0 %v380
    %v1669 = vpop.f32.mrb[0].mxu0
    %v1670 = vadd.f32 0.0, %v1669
    %v1671 = vpop.f32.mrb[0].mxu0
    %v1672 = vadd.f32 0.0, %v1671
    %v1673 = vpop.f32.mrb[0].mxu0
    %v1674 = vadd.f32 0.0, %v1673
    %v1675 = vpop.f32.mrb[0].mxu0
    %v1676 = vadd.f32 0.0, %v1675
    %1677 = vmatprep.mubr.bf16.mxu0 %v384
    %1678 = vmatmul.mubr.bf16.gmra.mrb[0].mxu0 %v383
    %v1679 = vpop.f32.mrb[0].mxu0
    %v1680 = vadd.f32 0.0, %v1679
    %v1681 = vpop.f32.mrb[0].mxu0
    %v1682 = vadd.f32 0.0, %v1681
    %v1683 = vpop.f32.mrb[0].mxu0
    %v1684 = vadd.f32 0.0, %v1683
    %v1685 = vpop.f32.mrb[0].mxu0
    %v1686 = vadd.f32 0.0, %v1685
    %1687 = vmatprep.mubr.bf16.mxu0 %v387
    %1688 = vmatmul.mubr.bf16.gmra.mrb[0].mxu0 %v386
    %v1689 = vpop.f32.mrb[0].mxu0
    %v1690 = vadd.f32 0.0, %v1689
    %v1691 = vpop.f32.mrb[0].mxu0
    %v1692 = vadd.f32 0.0, %v1691
    %v1693 = vpop.f32.mrb[0].mxu0
    %v1694 = vadd.f32 0.0, %v1693
    %v1695 = vpop.f32.mrb[0].mxu0
    %v1696 = vadd.f32 0.0, %v1695
    %1697 = vmatprep.mubr.bf16.mxu0 %v390
    %1698 = vmatmul.mubr.bf16.gmra.mrb[0].mxu0 %v389
    %v1699 = vpop.f32.mrb[0].mxu0
    %v1700 = vadd.f32 0.0, %v1699
    %v1701 = vpop.f32.mrb[0].mxu0
    %v1702 = vadd.f32 0.0, %v1701
    %v1703 = vpop.f32.mrb[0].mxu0
    %v1704 = vadd.f32 0.0, %v1703
    %v1705 = vpop.f32.mrb[0].mxu0
    %v1706 = vadd.f32 0.0, %v1705
    %1707 = vmatprep.mubr.bf16.mxu0 %v393
    %1708 = vmatmul.mubr.bf16.gmra.mrb[0].mxu0 %v392
    %v1709 = vpop.f32.mrb[0].mxu0
    %v1710 = vadd.f32 0.0, %v1709
    %v1711 = vpop.f32.mrb[0].mxu0
    %v1712 = vadd.f32 0.0, %v1711
    %v1713 = vpop.f32.mrb[0].mxu0
    %v1714 = vadd.f32 0.0, %v1713
    %v1715 = vpop.f32.mrb[0].mxu0
    %v1716 = vadd.f32 0.0, %v1715
    %1717 = vmatprep.mubr.bf16.mxu0 %v396
    %1718 = vmatmul.mubr.bf16.gmra.mrb[0].mxu0 %v395
    %v1719 = vpop.f32.mrb[0].mxu0
    %v1720 = vadd.f32 0.0, %v1719
    %v1721 = vpop.f32.mrb[0].mxu0
    %v1722 = vadd.f32 0.0, %v1721
    %v1723 = vpop.f32.mrb[0].mxu0
    %v1724 = vadd.f32 0.0, %v1723
    %v1725 = vpop.f32.mrb[0].mxu0
    %v1726 = vadd.f32 0.0, %v1725
    %1727 = vmatprep.mubr.bf16.mxu0 %v399
    %1728 = vmatmul.mubr.bf16.gmra.mrb[0].mxu0 %v398
    %v1729 = vpop.f32.mrb[0].mxu0
    %v1730 = vadd.f32 0.0, %v1729
    %v1731 = vpop.f32.mrb[0].mxu0
    %v1732 = vadd.f32 0.0, %v1731
    %v1733 = vpop.f32.mrb[0].mxu0
    %v1734 = vadd.f32 0.0, %v1733
    %v1735 = vpop.f32.mrb[0].mxu0
    %v1736 = vadd.f32 0.0, %v1735
    %1737 = vdwg.mxu0
    %1738 = vmatprep.subr.bf16.mxu0 %v1306
    %1739 = vmatpush1.bf16.msra.mxu0 %v1305
    %1740 = vmatprep.subr.bf16.mxu0 %v1316
    %1741 = vmatpush1.bf16.msra.mxu0 %v1315
    %1742 = vmatprep.subr.bf16.mxu0 %v1326
    %1743 = vmatpush1.bf16.msra.mxu0 %v1325
    %1744 = vmatprep.subr.bf16.mxu0 %v1336
    %1745 = vmatpush1.bf16.msra.mxu0 %v1335
    %1746 = vmatprep.subr.bf16.mxu0 %v1346
    %1747 = vmatpush1.bf16.msra.mxu0 %v1345
    %1748 = vmatprep.subr.bf16.mxu0 %v1356
    %1749 = vmatpush1.bf16.msra.mxu0 %v1355
    %1750 = vmatprep.subr.bf16.mxu0 %v1366
    %1751 = vmatpush1.bf16.msra.mxu0 %v1365
    %1752 = vmatprep.subr.bf16.mxu0 %v1376
    %1753 = vmatpush1.bf16.msra.mxu0 %v1375
    %1754 = vmatprep.subr.bf16.mxu0 0
    %1755 = vmatpush1.bf16.msra.mxu0 0
    %1756 = vmatprep.subr.bf16.mxu0 0
    %1757 = vmatpush1.bf16.msra.mxu0 0
    %1758 = vmatprep.subr.bf16.mxu0 0
    %1759 = vmatpush1.bf16.msra.mxu0 0
    %1760 = vmatprep.subr.bf16.mxu0 0
    %1761 = vmatpush1.bf16.msra.mxu0 0
    %1762 = vmatprep.subr.bf16.mxu0 0
    %1763 = vmatpush1.bf16.msra.mxu0 0
    %1764 = vmatprep.subr.bf16.mxu0 0
    %1765 = vmatpush1.bf16.msra.mxu0 0
    %1766 = vmatprep.subr.bf16.mxu0 0
    %1767 = vmatpush1.bf16.msra.mxu0 0
    %1768 = vmatprep.subr.bf16.mxu0 0
    %1769 = vmatpush1.bf16.msra.mxu0 0
    %1770 = vmatprep.mubr.bf16.mxu0 0
    %1771 = vmatmul.mubr.bf16.gmra.mrb[0].mxu0 %v379
    %v1772 = vpop.f32.mrb[0].mxu0
    %v1773 = vadd.f32 %v1660, %v1772
    %v1774 = vpop.f32.mrb[0].mxu0
    %v1775 = vadd.f32 %v1662, %v1774
    %v1776 = vpop.f32.mrb[0].mxu0
    %v1777 = vadd.f32 %v1664, %v1776
    %v1778 = vpop.f32.mrb[0].mxu0
    %v1779 = vadd.f32 %v1666, %v1778
    %1780 = vmatprep.mubr.bf16.mxu0 0
    %1781 = vmatmul.mubr.bf16.gmra.mrb[0].mxu0 %v382
    %v1782 = vpop.f32.mrb[0].mxu0
    %v1783 = vadd.f32 %v1670, %v1782
    %v1784 = vpop.f32.mrb[0].mxu0
    %v1785 = vadd.f32 %v1672, %v1784
    %v1786 = vpop.f32.mrb[0].mxu0
    %v1787 = vadd.f32 %v1674, %v1786
    %v1788 = vpop.f32.mrb[0].mxu0
    %v1789 = vadd.f32 %v1676, %v1788
    %1790 = vmatprep.mubr.bf16.mxu0 0
    %1791 = vmatmul.mubr.bf16.gmra.mrb[0].mxu0 %v385
    %v1792 = vpop.f32.mrb[0].mxu0
    %v1793 = vadd.f32 %v1680, %v1792
    %v1794 = vpop.f32.mrb[0].mxu0
    %v1795 = vadd.f32 %v1682, %v1794
    %v1796 = vpop.f32.mrb[0].mxu0
    %v1797 = vadd.f32 %v1684, %v1796
    %v1798 = vpop.f32.mrb[0].mxu0
    %v1799 = vadd.f32 %v1686, %v1798
    %1800 = vmatprep.mubr.bf16.mxu0 0
    %1801 = vmatmul.mubr.bf16.gmra.mrb[0].mxu0 %v388
    %v1802 = vpop.f32.mrb[0].mxu0
    %v1803 = vadd.f32 %v1690, %v1802
    %v1804 = vpop.f32.mrb[0].mxu0
    %v1805 = vadd.f32 %v1692, %v1804
    %v1806 = vpop.f32.mrb[0].mxu0
    %v1807 = vadd.f32 %v1694, %v1806
    %v1808 = vpop.f32.mrb[0].mxu0
    %v1809 = vadd.f32 %v1696, %v1808
    %1810 = vmatprep.mubr.bf16.mxu0 0
    %1811 = vmatmul.mubr.bf16.gmra.mrb[0].mxu0 %v391
    %v1812 = vpop.f32.mrb[0].mxu0
    %v1813 = vadd.f32 %v1700, %v1812
    %v1814 = vpop.f32.mrb[0].mxu0
    %v1815 = vadd.f32 %v1702, %v1814
    %v1816 = vpop.f32.mrb[0].mxu0
    %v1817 = vadd.f32 %v1704, %v1816
    %v1818 = vpop.f32.mrb[0].mxu0
    %v1819 = vadd.f32 %v1706, %v1818
    %1820 = vmatprep.mubr.bf16.mxu0 0
    %1821 = vmatmul.mubr.bf16.gmra.mrb[0].mxu0 %v394
    %v1822 = vpop.f32.mrb[0].mxu0
    %v1823 = vadd.f32 %v1710, %v1822
    %v1824 = vpop.f32.mrb[0].mxu0
    %v1825 = vadd.f32 %v1712, %v1824
    %v1826 = vpop.f32.mrb[0].mxu0
    %v1827 = vadd.f32 %v1714, %v1826
    %v1828 = vpop.f32.mrb[0].mxu0
    %v1829 = vadd.f32 %v1716, %v1828
    %1830 = vmatprep.mubr.bf16.mxu0 0
    %1831 = vmatmul.mubr.bf16.gmra.mrb[0].mxu0 %v397
    %v1832 = vpop.f32.mrb[0].mxu0
    %v1833 = vadd.f32 %v1720, %v1832
    %v1834 = vpop.f32.mrb[0].mxu0
    %v1835 = vadd.f32 %v1722, %v1834
    %v1836 = vpop.f32.mrb[0].mxu0
    %v1837 = vadd.f32 %v1724, %v1836
    %v1838 = vpop.f32.mrb[0].mxu0
    %v1839 = vadd.f32 %v1726, %v1838
    %1840 = vmatprep.mubr.bf16.mxu0 0
    %1841 = vmatmul.mubr.bf16.gmra.mrb[0].mxu0 %v400
    %v1842 = vpop.f32.mrb[0].mxu0
    %v1843 = vadd.f32 %v1730, %v1842
    %v1844 = vpop.f32.mrb[0].mxu0
    %v1845 = vadd.f32 %v1732, %v1844
    %v1846 = vpop.f32.mrb[0].mxu0
    %v1847 = vadd.f32 %v1734, %v1846
    %v1848 = vpop.f32.mrb[0].mxu0
    %v1849 = vadd.f32 %v1736, %v1848
    %1850 = vdwg.mxu0
    %1851 = vmatprep.subr.bf16.mxu0 %v1148
    %1852 = vmatpush1.bf16.msra.mxu0 %v1147
    %1853 = vmatprep.subr.bf16.mxu0 %v1158
    %1854 = vmatpush1.bf16.msra.mxu0 %v1157
    %1855 = vmatprep.subr.bf16.mxu0 %v1168
    %1856 = vmatpush1.bf16.msra.mxu0 %v1167
    %1857 = vmatprep.subr.bf16.mxu0 %v1178
    %1858 = vmatpush1.bf16.msra.mxu0 %v1177
    %1859 = vmatprep.subr.bf16.mxu0 %v1188
    %1860 = vmatpush1.bf16.msra.mxu0 %v1187
    %1861 = vmatprep.subr.bf16.mxu0 %v1198
    %1862 = vmatpush1.bf16.msra.mxu0 %v1197
    %1863 = vmatprep.subr.bf16.mxu0 %v1208
    %1864 = vmatpush1.bf16.msra.mxu0 %v1207
    %1865 = vmatprep.subr.bf16.mxu0 %v1218
    %1866 = vmatpush1.bf16.msra.mxu0 %v1217
    %1867 = vmatprep.subr.bf16.mxu0 %v1228
    %1868 = vmatpush1.bf16.msra.mxu0 %v1227
    %1869 = vmatprep.subr.bf16.mxu0 %v1238
    %1870 = vmatpush1.bf16.msra.mxu0 %v1237
    %1871 = vmatprep.subr.bf16.mxu0 %v1248
    %1872 = vmatpush1.bf16.msra.mxu0 %v1247
    %1873 = vmatprep.subr.bf16.mxu0 %v1258
    %1874 = vmatpush1.bf16.msra.mxu0 %v1257
    %1875 = vmatprep.subr.bf16.mxu0 %v1268
    %1876 = vmatpush1.bf16.msra.mxu0 %v1267
    %1877 = vmatprep.subr.bf16.mxu0 %v1278
    %1878 = vmatpush1.bf16.msra.mxu0 %v1277
    %1879 = vmatprep.subr.bf16.mxu0 %v1288
    %1880 = vmatpush1.bf16.msra.mxu0 %v1287
    %1881 = vmatprep.subr.bf16.mxu0 %v1298
    %1882 = vmatpush1.bf16.msra.mxu0 %v1297
    %1883 = vmatprep.mubr.bf16.mxu0 %v378
    %1884 = vmatmul.mubr.bf16.gmra.mrb[0].mxu0 %v377
    %v1885 = vpop.f32.mrb[0].mxu0
    %v1886 = vadd.f32 0.0, %v1885
    %v1887 = vpop.f32.mrb[0].mxu0
    %v1888 = vadd.f32 0.0, %v1887
    %v1889 = vpop.f32.mrb[0].mxu0
    %v1890 = vadd.f32 0.0, %v1889
    %v1891 = vpop.f32.mrb[0].mxu0
    %v1892 = vadd.f32 0.0, %v1891
    %1893 = vmatprep.mubr.bf16.mxu0 %v381
    %1894 = vmatmul.mubr.bf16.gmra.mrb[0].mxu0 %v380
    %v1895 = vpop.f32.mrb[0].mxu0
    %v1896 = vadd.f32 0.0, %v1895
    %v1897 = vpop.f32.mrb[0].mxu0
    %v1898 = vadd.f32 0.0, %v1897
    %v1899 = vpop.f32.mrb[0].mxu0
    %v1900 = vadd.f32 0.0, %v1899
    %v1901 = vpop.f32.mrb[0].mxu0
    %v1902 = vadd.f32 0.0, %v1901
    %1903 = vmatprep.mubr.bf16.mxu0 %v384
    %1904 = vmatmul.mubr.bf16.gmra.mrb[0].mxu0 %v383
    %v1905 = vpop.f32.mrb[0].mxu0
    %v1906 = vadd.f32 0.0, %v1905
    %v1907 = vpop.f32.mrb[0].mxu0
    %v1908 = vadd.f32 0.0, %v1907
    %v1909 = vpop.f32.mrb[0].mxu0
    %v1910 = vadd.f32 0.0, %v1909
    %v1911 = vpop.f32.mrb[0].mxu0
    %v1912 = vadd.f32 0.0, %v1911
    %1913 = vmatprep.mubr.bf16.mxu0 %v387
    %1914 = vmatmul.mubr.bf16.gmra.mrb[0].mxu0 %v386
    %v1915 = vpop.f32.mrb[0].mxu0
    %v1916 = vadd.f32 0.0, %v1915
    %v1917 = vpop.f32.mrb[0].mxu0
    %v1918 = vadd.f32 0.0, %v1917
    %v1919 = vpop.f32.mrb[0].mxu0
    %v1920 = vadd.f32 0.0, %v1919
    %v1921 = vpop.f32.mrb[0].mxu0
    %v1922 = vadd.f32 0.0, %v1921
    %1923 = vmatprep.mubr.bf16.mxu0 %v390
    %1924 = vmatmul.mubr.bf16.gmra.mrb[0].mxu0 %v389
    %v1925 = vpop.f32.mrb[0].mxu0
    %v1926 = vadd.f32 0.0, %v1925
    %v1927 = vpop.f32.mrb[0].mxu0
    %v1928 = vadd.f32 0.0, %v1927
    %v1929 = vpop.f32.mrb[0].mxu0
    %v1930 = vadd.f32 0.0, %v1929
    %v1931 = vpop.f32.mrb[0].mxu0
    %v1932 = vadd.f32 0.0, %v1931
    %1933 = vmatprep.mubr.bf16.mxu0 %v393
    %1934 = vmatmul.mubr.bf16.gmra.mrb[0].mxu0 %v392
    %v1935 = vpop.f32.mrb[0].mxu0
    %v1936 = vadd.f32 0.0, %v1935
    %v1937 = vpop.f32.mrb[0].mxu0
    %v1938 = vadd.f32 0.0, %v1937
    %v1939 = vpop.f32.mrb[0].mxu0
    %v1940 = vadd.f32 0.0, %v1939
    %v1941 = vpop.f32.mrb[0].mxu0
    %v1942 = vadd.f32 0.0, %v1941
    %1943 = vmatprep.mubr.bf16.mxu0 %v396
    %1944 = vmatmul.mubr.bf16.gmra.mrb[0].mxu0 %v395
    %v1945 = vpop.f32.mrb[0].mxu0
    %v1946 = vadd.f32 0.0, %v1945
    %v1947 = vpop.f32.mrb[0].mxu0
    %v1948 = vadd.f32 0.0, %v1947
    %v1949 = vpop.f32.mrb[0].mxu0
    %v1950 = vadd.f32 0.0, %v1949
    %v1951 = vpop.f32.mrb[0].mxu0
    %v1952 = vadd.f32 0.0, %v1951
    %1953 = vmatprep.mubr.bf16.mxu0 %v399
    %1954 = vmatmul.mubr.bf16.gmra.mrb[0].mxu0 %v398
    %v1955 = vpop.f32.mrb[0].mxu0
    %v1956 = vadd.f32 0.0, %v1955
    %v1957 = vpop.f32.mrb[0].mxu0
    %v1958 = vadd.f32 0.0, %v1957
    %v1959 = vpop.f32.mrb[0].mxu0
    %v1960 = vadd.f32 0.0, %v1959
    %v1961 = vpop.f32.mrb[0].mxu0
    %v1962 = vadd.f32 0.0, %v1961
    %1963 = vdwg.mxu0
    %1964 = vmatprep.subr.bf16.mxu0 %v1308
    %1965 = vmatpush1.bf16.msra.mxu0 %v1307
    %1966 = vmatprep.subr.bf16.mxu0 %v1318
    %1967 = vmatpush1.bf16.msra.mxu0 %v1317
    %1968 = vmatprep.subr.bf16.mxu0 %v1328
    %1969 = vmatpush1.bf16.msra.mxu0 %v1327
    %1970 = vmatprep.subr.bf16.mxu0 %v1338
    %1971 = vmatpush1.bf16.msra.mxu0 %v1337
    %1972 = vmatprep.subr.bf16.mxu0 %v1348
    %1973 = vmatpush1.bf16.msra.mxu0 %v1347
    %1974 = vmatprep.subr.bf16.mxu0 %v1358
    %1975 = vmatpush1.bf16.msra.mxu0 %v1357
    %1976 = vmatprep.subr.bf16.mxu0 %v1368
    %1977 = vmatpush1.bf16.msra.mxu0 %v1367
    %1978 = vmatprep.subr.bf16.mxu0 %v1378
    %1979 = vmatpush1.bf16.msra.mxu0 %v1377
    %1980 = vmatprep.subr.bf16.mxu0 0
    %1981 = vmatpush1.bf16.msra.mxu0 0
    %1982 = vmatprep.subr.bf16.mxu0 0
    %1983 = vmatpush1.bf16.msra.mxu0 0
    %1984 = vmatprep.subr.bf16.mxu0 0
    %1985 = vmatpush1.bf16.msra.mxu0 0
    %1986 = vmatprep.subr.bf16.mxu0 0
    %1987 = vmatpush1.bf16.msra.mxu0 0
    %1988 = vmatprep.subr.bf16.mxu0 0
    %1989 = vmatpush1.bf16.msra.mxu0 0
    %1990 = vmatprep.subr.bf16.mxu0 0
    %1991 = vmatpush1.bf16.msra.mxu0 0
    %1992 = vmatprep.subr.bf16.mxu0 0
    %1993 = vmatpush1.bf16.msra.mxu0 0
    %1994 = vmatprep.subr.bf16.mxu0 0
    %1995 = vmatpush1.bf16.msra.mxu0 0
    %1996 = vmatprep.mubr.bf16.mxu0 0
    %1997 = vmatmul.mubr.bf16.gmra.mrb[0].mxu0 %v379
    %v1998 = vpop.f32.mrb[0].mxu0
    %v1999 = vadd.f32 %v1886, %v1998
    %v2000 = vpop.f32.mrb[0].mxu0
    %v2001 = vadd.f32 %v1888, %v2000
    %v2002 = vpop.f32.mrb[0].mxu0
    %v2003 = vadd.f32 %v1890, %v2002
    %v2004 = vpop.f32.mrb[0].mxu0
    %v2005 = vadd.f32 %v1892, %v2004
    %2006 = vmatprep.mubr.bf16.mxu0 0
    %2007 = vmatmul.mubr.bf16.gmra.mrb[0].mxu0 %v382
    %v2008 = vpop.f32.mrb[0].mxu0
    %v2009 = vadd.f32 %v1896, %v2008
    %v2010 = vpop.f32.mrb[0].mxu0
    %v2011 = vadd.f32 %v1898, %v2010
    %v2012 = vpop.f32.mrb[0].mxu0
    %v2013 = vadd.f32 %v1900, %v2012
    %v2014 = vpop.f32.mrb[0].mxu0
    %v2015 = vadd.f32 %v1902, %v2014
    %2016 = vmatprep.mubr.bf16.mxu0 0
    %2017 = vmatmul.mubr.bf16.gmra.mrb[0].mxu0 %v385
    %v2018 = vpop.f32.mrb[0].mxu0
    %v2019 = vadd.f32 %v1906, %v2018
    %v2020 = vpop.f32.mrb[0].mxu0
    %v2021 = vadd.f32 %v1908, %v2020
    %v2022 = vpop.f32.mrb[0].mxu0
    %v2023 = vadd.f32 %v1910, %v2022
    %v2024 = vpop.f32.mrb[0].mxu0
    %v2025 = vadd.f32 %v1912, %v2024
    %2026 = vmatprep.mubr.bf16.mxu0 0
    %2027 = vmatmul.mubr.bf16.gmra.mrb[0].mxu0 %v388
    %v2028 = vpop.f32.mrb[0].mxu0
    %v2029 = vadd.f32 %v1916, %v2028
    %v2030 = vpop.f32.mrb[0].mxu0
    %v2031 = vadd.f32 %v1918, %v2030
    %v2032 = vpop.f32.mrb[0].mxu0
    %v2033 = vadd.f32 %v1920, %v2032
    %v2034 = vpop.f32.mrb[0].mxu0
    %v2035 = vadd.f32 %v1922, %v2034
    %2036 = vmatprep.mubr.bf16.mxu0 0
    %2037 = vmatmul.mubr.bf16.gmra.mrb[0].mxu0 %v391
    %v2038 = vpop.f32.mrb[0].mxu0
    %v2039 = vadd.f32 %v1926, %v2038
    %v2040 = vpop.f32.mrb[0].mxu0
    %v2041 = vadd.f32 %v1928, %v2040
    %v2042 = vpop.f32.mrb[0].mxu0
    %v2043 = vadd.f32 %v1930, %v2042
    %v2044 = vpop.f32.mrb[0].mxu0
    %v2045 = vadd.f32 %v1932, %v2044
    %2046 = vmatprep.mubr.bf16.mxu0 0
    %2047 = vmatmul.mubr.bf16.gmra.mrb[0].mxu0 %v394
    %v2048 = vpop.f32.mrb[0].mxu0
    %v2049 = vadd.f32 %v1936, %v2048
    %v2050 = vpop.f32.mrb[0].mxu0
    %v2051 = vadd.f32 %v1938, %v2050
    %v2052 = vpop.f32.mrb[0].mxu0
    %v2053 = vadd.f32 %v1940, %v2052
    %v2054 = vpop.f32.mrb[0].mxu0
    %v2055 = vadd.f32 %v1942, %v2054
    %2056 = vmatprep.mubr.bf16.mxu0 0
    %2057 = vmatmul.mubr.bf16.gmra.mrb[0].mxu0 %v397
    %v2058 = vpop.f32.mrb[0].mxu0
    %v2059 = vadd.f32 %v1946, %v2058
    %v2060 = vpop.f32.mrb[0].mxu0
    %v2061 = vadd.f32 %v1948, %v2060
    %v2062 = vpop.f32.mrb[0].mxu0
    %v2063 = vadd.f32 %v1950, %v2062
    %v2064 = vpop.f32.mrb[0].mxu0
    %v2065 = vadd.f32 %v1952, %v2064
    %2066 = vmatprep.mubr.bf16.mxu0 0
    %2067 = vmatmul.mubr.bf16.gmra.mrb[0].mxu0 %v400
    %v2068 = vpop.f32.mrb[0].mxu0
    %v2069 = vadd.f32 %v1956, %v2068
    %v2070 = vpop.f32.mrb[0].mxu0
    %v2071 = vadd.f32 %v1958, %v2070
    %v2072 = vpop.f32.mrb[0].mxu0
    %v2073 = vadd.f32 %v1960, %v2072
    %v2074 = vpop.f32.mrb[0].mxu0
    %v2075 = vadd.f32 %v1962, %v2074
    %2076 = vdwg.mxu0
    %2077 = vmatprep.subr.bf16.mxu0 %v1150
    %2078 = vmatpush1.bf16.msra.mxu0 %v1149
    %2079 = vmatprep.subr.bf16.mxu0 %v1160
    %2080 = vmatpush1.bf16.msra.mxu0 %v1159
    %2081 = vmatprep.subr.bf16.mxu0 %v1170
    %2082 = vmatpush1.bf16.msra.mxu0 %v1169
    %2083 = vmatprep.subr.bf16.mxu0 %v1180
    %2084 = vmatpush1.bf16.msra.mxu0 %v1179
    %2085 = vmatprep.subr.bf16.mxu0 %v1190
    %2086 = vmatpush1.bf16.msra.mxu0 %v1189
    %2087 = vmatprep.subr.bf16.mxu0 %v1200
    %2088 = vmatpush1.bf16.msra.mxu0 %v1199
    %2089 = vmatprep.subr.bf16.mxu0 %v1210
    %2090 = vmatpush1.bf16.msra.mxu0 %v1209
    %2091 = vmatprep.subr.bf16.mxu0 %v1220
    %2092 = vmatpush1.bf16.msra.mxu0 %v1219
    %2093 = vmatprep.subr.bf16.mxu0 %v1230
    %2094 = vmatpush1.bf16.msra.mxu0 %v1229
    %2095 = vmatprep.subr.bf16.mxu0 %v1240
    %2096 = vmatpush1.bf16.msra.mxu0 %v1239
    %2097 = vmatprep.subr.bf16.mxu0 %v1250
    %2098 = vmatpush1.bf16.msra.mxu0 %v1249
    %2099 = vmatprep.subr.bf16.mxu0 %v1260
    %2100 = vmatpush1.bf16.msra.mxu0 %v1259
    %2101 = vmatprep.subr.bf16.mxu0 %v1270
    %2102 = vmatpush1.bf16.msra.mxu0 %v1269
    %2103 = vmatprep.subr.bf16.mxu0 %v1280
    %2104 = vmatpush1.bf16.msra.mxu0 %v1279
    %2105 = vmatprep.subr.bf16.mxu0 %v1290
    %2106 = vmatpush1.bf16.msra.mxu0 %v1289
    %2107 = vmatprep.subr.bf16.mxu0 %v1300
    %2108 = vmatpush1.bf16.msra.mxu0 %v1299
    %2109 = vmatprep.mubr.bf16.mxu0 %v378
    %2110 = vmatmul.mubr.bf16.gmra.mrb[0].mxu0 %v377
    %v2111 = vpop.f32.mrb[0].mxu0
    %v2112 = vadd.f32 0.0, %v2111
    %v2113 = vpop.f32.mrb[0].mxu0
    %v2114 = vadd.f32 0.0, %v2113
    %v2115 = vpop.f32.mrb[0].mxu0
    %v2116 = vadd.f32 0.0, %v2115
    %v2117 = vpop.f32.mrb[0].mxu0
    %v2118 = vadd.f32 0.0, %v2117
    %2119 = vmatprep.mubr.bf16.mxu0 %v381
    %2120 = vmatmul.mubr.bf16.gmra.mrb[0].mxu0 %v380
    %v2121 = vpop.f32.mrb[0].mxu0
    %v2122 = vadd.f32 0.0, %v2121
    %v2123 = vpop.f32.mrb[0].mxu0
    %v2124 = vadd.f32 0.0, %v2123
    %v2125 = vpop.f32.mrb[0].mxu0
    %v2126 = vadd.f32 0.0, %v2125
    %v2127 = vpop.f32.mrb[0].mxu0
    %v2128 = vadd.f32 0.0, %v2127
    %2129 = vmatprep.mubr.bf16.mxu0 %v384
    %2130 = vmatmul.mubr.bf16.gmra.mrb[0].mxu0 %v383
    %v2131 = vpop.f32.mrb[0].mxu0
    %v2132 = vadd.f32 0.0, %v2131
    %v2133 = vpop.f32.mrb[0].mxu0
    %v2134 = vadd.f32 0.0, %v2133
    %v2135 = vpop.f32.mrb[0].mxu0
    %v2136 = vadd.f32 0.0, %v2135
    %v2137 = vpop.f32.mrb[0].mxu0
    %v2138 = vadd.f32 0.0, %v2137
    %2139 = vmatprep.mubr.bf16.mxu0 %v387
    %2140 = vmatmul.mubr.bf16.gmra.mrb[0].mxu0 %v386
    %v2141 = vpop.f32.mrb[0].mxu0
    %v2142 = vadd.f32 0.0, %v2141
    %v2143 = vpop.f32.mrb[0].mxu0
    %v2144 = vadd.f32 0.0, %v2143
    %v2145 = vpop.f32.mrb[0].mxu0
    %v2146 = vadd.f32 0.0, %v2145
    %v2147 = vpop.f32.mrb[0].mxu0
    %v2148 = vadd.f32 0.0, %v2147
    %2149 = vmatprep.mubr.bf16.mxu0 %v390
    %2150 = vmatmul.mubr.bf16.gmra.mrb[0].mxu0 %v389
    %v2151 = vpop.f32.mrb[0].mxu0
    %v2152 = vadd.f32 0.0, %v2151
    %v2153 = vpop.f32.mrb[0].mxu0
    %v2154 = vadd.f32 0.0, %v2153
    %v2155 = vpop.f32.mrb[0].mxu0
    %v2156 = vadd.f32 0.0, %v2155
    %v2157 = vpop.f32.mrb[0].mxu0
    %v2158 = vadd.f32 0.0, %v2157
    %2159 = vmatprep.mubr.bf16.mxu0 %v393
    %2160 = vmatmul.mubr.bf16.gmra.mrb[0].mxu0 %v392
    %v2161 = vpop.f32.mrb[0].mxu0
    %v2162 = vadd.f32 0.0, %v2161
    %v2163 = vpop.f32.mrb[0].mxu0
    %v2164 = vadd.f32 0.0, %v2163
    %v2165 = vpop.f32.mrb[0].mxu0
    %v2166 = vadd.f32 0.0, %v2165
    %v2167 = vpop.f32.mrb[0].mxu0
    %v2168 = vadd.f32 0.0, %v2167
    %2169 = vmatprep.mubr.bf16.mxu0 %v396
    %2170 = vmatmul.mubr.bf16.gmra.mrb[0].mxu0 %v395
    %v2171 = vpop.f32.mrb[0].mxu0
    %v2172 = vadd.f32 0.0, %v2171
    %v2173 = vpop.f32.mrb[0].mxu0
    %v2174 = vadd.f32 0.0, %v2173
    %v2175 = vpop.f32.mrb[0].mxu0
    %v2176 = vadd.f32 0.0, %v2175
    %v2177 = vpop.f32.mrb[0].mxu0
    %v2178 = vadd.f32 0.0, %v2177
    %2179 = vmatprep.mubr.bf16.mxu0 %v399
    %2180 = vmatmul.mubr.bf16.gmra.mrb[0].mxu0 %v398
    %v2181 = vpop.f32.mrb[0].mxu0
    %v2182 = vadd.f32 0.0, %v2181
    %v2183 = vpop.f32.mrb[0].mxu0
    %v2184 = vadd.f32 0.0, %v2183
    %v2185 = vpop.f32.mrb[0].mxu0
    %v2186 = vadd.f32 0.0, %v2185
    %v2187 = vpop.f32.mrb[0].mxu0
    %v2188 = vadd.f32 0.0, %v2187
    %2189 = vdwg.mxu0
    %2190 = vmatprep.subr.bf16.mxu0 %v1310
    %2191 = vmatpush1.bf16.msra.mxu0 %v1309
    %2192 = vmatprep.subr.bf16.mxu0 %v1320
    %2193 = vmatpush1.bf16.msra.mxu0 %v1319
    %2194 = vmatprep.subr.bf16.mxu0 %v1330
    %2195 = vmatpush1.bf16.msra.mxu0 %v1329
    %2196 = vmatprep.subr.bf16.mxu0 %v1340
    %2197 = vmatpush1.bf16.msra.mxu0 %v1339
    %2198 = vmatprep.subr.bf16.mxu0 %v1350
    %2199 = vmatpush1.bf16.msra.mxu0 %v1349
    %2200 = vmatprep.subr.bf16.mxu0 %v1360
    %2201 = vmatpush1.bf16.msra.mxu0 %v1359
    %2202 = vmatprep.subr.bf16.mxu0 %v1370
    %2203 = vmatpush1.bf16.msra.mxu0 %v1369
    %2204 = vmatprep.subr.bf16.mxu0 %v1380
    %2205 = vmatpush1.bf16.msra.mxu0 %v1379
    %2206 = vmatprep.subr.bf16.mxu0 0
    %2207 = vmatpush1.bf16.msra.mxu0 0
    %2208 = vmatprep.subr.bf16.mxu0 0
    %2209 = vmatpush1.bf16.msra.mxu0 0
    %2210 = vmatprep.subr.bf16.mxu0 0
    %2211 = vmatpush1.bf16.msra.mxu0 0
    %2212 = vmatprep.subr.bf16.mxu0 0
    %2213 = vmatpush1.bf16.msra.mxu0 0
    %2214 = vmatprep.subr.bf16.mxu0 0
    %2215 = vmatpush1.bf16.msra.mxu0 0
    %2216 = vmatprep.subr.bf16.mxu0 0
    %2217 = vmatpush1.bf16.msra.mxu0 0
    %2218 = vmatprep.subr.bf16.mxu0 0
    %2219 = vmatpush1.bf16.msra.mxu0 0
    %2220 = vmatprep.subr.bf16.mxu0 0
    %2221 = vmatpush1.bf16.msra.mxu0 0
    %2222 = vmatprep.mubr.bf16.mxu0 0
    %2223 = vmatmul.mubr.bf16.gmra.mrb[0].mxu0 %v379
    %v2224 = vpop.f32.mrb[0].mxu0
    %v2225 = vadd.f32 %v2112, %v2224
    %v2226 = vpop.f32.mrb[0].mxu0
    %v2227 = vadd.f32 %v2114, %v2226
    %v2228 = vpop.f32.mrb[0].mxu0
    %v2229 = vadd.f32 %v2116, %v2228
    %v2230 = vpop.f32.mrb[0].mxu0
    %v2231 = vadd.f32 %v2118, %v2230
    %2232 = vmatprep.mubr.bf16.mxu0 0
    %2233 = vmatmul.mubr.bf16.gmra.mrb[0].mxu0 %v382
    %v2234 = vpop.f32.mrb[0].mxu0
    %v2235 = vadd.f32 %v2122, %v2234
    %v2236 = vpop.f32.mrb[0].mxu0
    %v2237 = vadd.f32 %v2124, %v2236
    %v2238 = vpop.f32.mrb[0].mxu0
    %v2239 = vadd.f32 %v2126, %v2238
    %v2240 = vpop.f32.mrb[0].mxu0
    %v2241 = vadd.f32 %v2128, %v2240
    %2242 = vmatprep.mubr.bf16.mxu0 0
    %2243 = vmatmul.mubr.bf16.gmra.mrb[0].mxu0 %v385
    %v2244 = vpop.f32.mrb[0].mxu0
    %v2245 = vadd.f32 %v2132, %v2244
    %v2246 = vpop.f32.mrb[0].mxu0
    %v2247 = vadd.f32 %v2134, %v2246
    %v2248 = vpop.f32.mrb[0].mxu0
    %v2249 = vadd.f32 %v2136, %v2248
    %v2250 = vpop.f32.mrb[0].mxu0
    %v2251 = vadd.f32 %v2138, %v2250
    %2252 = vmatprep.mubr.bf16.mxu0 0
    %2253 = vmatmul.mubr.bf16.gmra.mrb[0].mxu0 %v388
    %v2254 = vpop.f32.mrb[0].mxu0
    %v2255 = vadd.f32 %v2142, %v2254
    %v2256 = vpop.f32.mrb[0].mxu0
    %v2257 = vadd.f32 %v2144, %v2256
    %v2258 = vpop.f32.mrb[0].mxu0
    %v2259 = vadd.f32 %v2146, %v2258
    %v2260 = vpop.f32.mrb[0].mxu0
    %v2261 = vadd.f32 %v2148, %v2260
    %2262 = vmatprep.mubr.bf16.mxu0 0
    %2263 = vmatmul.mubr.bf16.gmra.mrb[0].mxu0 %v391
    %v2264 = vpop.f32.mrb[0].mxu0
    %v2265 = vadd.f32 %v2152, %v2264
    %v2266 = vpop.f32.mrb[0].mxu0
    %v2267 = vadd.f32 %v2154, %v2266
    %v2268 = vpop.f32.mrb[0].mxu0
    %v2269 = vadd.f32 %v2156, %v2268
    %v2270 = vpop.f32.mrb[0].mxu0
    %v2271 = vadd.f32 %v2158, %v2270
    %2272 = vmatprep.mubr.bf16.mxu0 0
    %2273 = vmatmul.mubr.bf16.gmra.mrb[0].mxu0 %v394
    %v2274 = vpop.f32.mrb[0].mxu0
    %v2275 = vadd.f32 %v2162, %v2274
    %v2276 = vpop.f32.mrb[0].mxu0
    %v2277 = vadd.f32 %v2164, %v2276
    %v2278 = vpop.f32.mrb[0].mxu0
    %v2279 = vadd.f32 %v2166, %v2278
    %v2280 = vpop.f32.mrb[0].mxu0
    %v2281 = vadd.f32 %v2168, %v2280
    %2282 = vmatprep.mubr.bf16.mxu0 0
    %2283 = vmatmul.mubr.bf16.gmra.mrb[0].mxu0 %v397
    %v2284 = vpop.f32.mrb[0].mxu0
    %v2285 = vadd.f32 %v2172, %v2284
    %v2286 = vpop.f32.mrb[0].mxu0
    %v2287 = vadd.f32 %v2174, %v2286
    %v2288 = vpop.f32.mrb[0].mxu0
    %v2289 = vadd.f32 %v2176, %v2288
    %v2290 = vpop.f32.mrb[0].mxu0
    %v2291 = vadd.f32 %v2178, %v2290
    %2292 = vmatprep.mubr.bf16.mxu0 0
    %2293 = vmatmul.mubr.bf16.gmra.mrb[0].mxu0 %v400
    %v2294 = vpop.f32.mrb[0].mxu0
    %v2295 = vadd.f32 %v2182, %v2294
    %v2296 = vpop.f32.mrb[0].mxu0
    %v2297 = vadd.f32 %v2184, %v2296
    %v2298 = vpop.f32.mrb[0].mxu0
    %v2299 = vadd.f32 %v2186, %v2298
    %v2300 = vpop.f32.mrb[0].mxu0
    %v2301 = vadd.f32 %v2188, %v2300
    %2302 = vdwg.mxu0
    %2303 = vmatprep.subr.bf16.mxu0 %v1152
    %2304 = vmatpush1.bf16.msra.mxu0 %v1151
    %2305 = vmatprep.subr.bf16.mxu0 %v1162
    %2306 = vmatpush1.bf16.msra.mxu0 %v1161
    %2307 = vmatprep.subr.bf16.mxu0 %v1172
    %2308 = vmatpush1.bf16.msra.mxu0 %v1171
    %2309 = vmatprep.subr.bf16.mxu0 %v1182
    %2310 = vmatpush1.bf16.msra.mxu0 %v1181
    %2311 = vmatprep.subr.bf16.mxu0 %v1192
    %2312 = vmatpush1.bf16.msra.mxu0 %v1191
    %2313 = vmatprep.subr.bf16.mxu0 %v1202
    %2314 = vmatpush1.bf16.msra.mxu0 %v1201
    %2315 = vmatprep.subr.bf16.mxu0 %v1212
    %2316 = vmatpush1.bf16.msra.mxu0 %v1211
    %2317 = vmatprep.subr.bf16.mxu0 %v1222
    %2318 = vmatpush1.bf16.msra.mxu0 %v1221
    %2319 = vmatprep.subr.bf16.mxu0 %v1232
    %2320 = vmatpush1.bf16.msra.mxu0 %v1231
    %2321 = vmatprep.subr.bf16.mxu0 %v1242
    %2322 = vmatpush1.bf16.msra.mxu0 %v1241
    %2323 = vmatprep.subr.bf16.mxu0 %v1252
    %2324 = vmatpush1.bf16.msra.mxu0 %v1251
    %2325 = vmatprep.subr.bf16.mxu0 %v1262
    %2326 = vmatpush1.bf16.msra.mxu0 %v1261
    %2327 = vmatprep.subr.bf16.mxu0 %v1272
    %2328 = vmatpush1.bf16.msra.mxu0 %v1271
    %2329 = vmatprep.subr.bf16.mxu0 %v1282
    %2330 = vmatpush1.bf16.msra.mxu0 %v1281
    %2331 = vmatprep.subr.bf16.mxu0 %v1292
    %2332 = vmatpush1.bf16.msra.mxu0 %v1291
    %2333 = vmatprep.subr.bf16.mxu0 %v1302
    %2334 = vmatpush1.bf16.msra.mxu0 %v1301
    %2335 = vmatprep.mubr.bf16.mxu0 %v378
    %2336 = vmatmul.mubr.bf16.gmra.mrb[0].mxu0 %v377
    %v2337 = vpop.f32.mrb[0].mxu0
    %v2338 = vadd.f32 0.0, %v2337
    %v2339 = vpop.f32.mrb[0].mxu0
    %v2340 = vadd.f32 0.0, %v2339
    %v2341 = vpop.f32.mrb[0].mxu0
    %v2342 = vadd.f32 0.0, %v2341
    %v2343 = vpop.f32.mrb[0].mxu0
    %v2344 = vadd.f32 0.0, %v2343
    %2345 = vmatprep.mubr.bf16.mxu0 %v381
    %2346 = vmatmul.mubr.bf16.gmra.mrb[0].mxu0 %v380
    %v2347 = vpop.f32.mrb[0].mxu0
    %v2348 = vadd.f32 0.0, %v2347
    %v2349 = vpop.f32.mrb[0].mxu0
    %v2350 = vadd.f32 0.0, %v2349
    %v2351 = vpop.f32.mrb[0].mxu0
    %v2352 = vadd.f32 0.0, %v2351
    %v2353 = vpop.f32.mrb[0].mxu0
    %v2354 = vadd.f32 0.0, %v2353
    %2355 = vmatprep.mubr.bf16.mxu0 %v384
    %2356 = vmatmul.mubr.bf16.gmra.mrb[0].mxu0 %v383
    %v2357 = vpop.f32.mrb[0].mxu0
    %v2358 = vadd.f32 0.0, %v2357
    %v2359 = vpop.f32.mrb[0].mxu0
    %v2360 = vadd.f32 0.0, %v2359
    %v2361 = vpop.f32.mrb[0].mxu0
    %v2362 = vadd.f32 0.0, %v2361
    %v2363 = vpop.f32.mrb[0].mxu0
    %v2364 = vadd.f32 0.0, %v2363
    %2365 = vmatprep.mubr.bf16.mxu0 %v387
    %2366 = vmatmul.mubr.bf16.gmra.mrb[0].mxu0 %v386
    %v2367 = vpop.f32.mrb[0].mxu0
    %v2368 = vadd.f32 0.0, %v2367
    %v2369 = vpop.f32.mrb[0].mxu0
    %v2370 = vadd.f32 0.0, %v2369
    %v2371 = vpop.f32.mrb[0].mxu0
    %v2372 = vadd.f32 0.0, %v2371
    %v2373 = vpop.f32.mrb[0].mxu0
    %v2374 = vadd.f32 0.0, %v2373
    %2375 = vmatprep.mubr.bf16.mxu0 %v390
    %2376 = vmatmul.mubr.bf16.gmra.mrb[0].mxu0 %v389
    %v2377 = vpop.f32.mrb[0].mxu0
    %v2378 = vadd.f32 0.0, %v2377
    %v2379 = vpop.f32.mrb[0].mxu0
    %v2380 = vadd.f32 0.0, %v2379
    %v2381 = vpop.f32.mrb[0].mxu0
    %v2382 = vadd.f32 0.0, %v2381
    %v2383 = vpop.f32.mrb[0].mxu0
    %v2384 = vadd.f32 0.0, %v2383
    %2385 = vmatprep.mubr.bf16.mxu0 %v393
    %2386 = vmatmul.mubr.bf16.gmra.mrb[0].mxu0 %v392
    %v2387 = vpop.f32.mrb[0].mxu0
    %v2388 = vadd.f32 0.0, %v2387
    %v2389 = vpop.f32.mrb[0].mxu0
    %v2390 = vadd.f32 0.0, %v2389
    %v2391 = vpop.f32.mrb[0].mxu0
    %v2392 = vadd.f32 0.0, %v2391
    %v2393 = vpop.f32.mrb[0].mxu0
    %v2394 = vadd.f32 0.0, %v2393
    %2395 = vmatprep.mubr.bf16.mxu0 %v396
    %2396 = vmatmul.mubr.bf16.gmra.mrb[0].mxu0 %v395
    %v2397 = vpop.f32.mrb[0].mxu0
    %v2398 = vadd.f32 0.0, %v2397
    %v2399 = vpop.f32.mrb[0].mxu0
    %v2400 = vadd.f32 0.0, %v2399
    %v2401 = vpop.f32.mrb[0].mxu0
    %v2402 = vadd.f32 0.0, %v2401
    %v2403 = vpop.f32.mrb[0].mxu0
    %v2404 = vadd.f32 0.0, %v2403
    %2405 = vmatprep.mubr.bf16.mxu0 %v399
    %2406 = vmatmul.mubr.bf16.gmra.mrb[0].mxu0 %v398
    %v2407 = vpop.f32.mrb[0].mxu0
    %v2408 = vadd.f32 0.0, %v2407
    %v2409 = vpop.f32.mrb[0].mxu0
    %v2410 = vadd.f32 0.0, %v2409
    %v2411 = vpop.f32.mrb[0].mxu0
    %v2412 = vadd.f32 0.0, %v2411
    %v2413 = vpop.f32.mrb[0].mxu0
    %v2414 = vadd.f32 0.0, %v2413
    %2415 = vdwg.mxu0
    %2416 = vmatprep.subr.bf16.mxu0 %v1312
    %2417 = vmatpush1.bf16.msra.mxu0 %v1311
    %2418 = vmatprep.subr.bf16.mxu0 %v1322
    %2419 = vmatpush1.bf16.msra.mxu0 %v1321
    %2420 = vmatprep.subr.bf16.mxu0 %v1332
    %2421 = vmatpush1.bf16.msra.mxu0 %v1331
    %2422 = vmatprep.subr.bf16.mxu0 %v1342
    %2423 = vmatpush1.bf16.msra.mxu0 %v1341
    %2424 = vmatprep.subr.bf16.mxu0 %v1352
    %2425 = vmatpush1.bf16.msra.mxu0 %v1351
    %2426 = vmatprep.subr.bf16.mxu0 %v1362
    %2427 = vmatpush1.bf16.msra.mxu0 %v1361
    %2428 = vmatprep.subr.bf16.mxu0 %v1372
    %2429 = vmatpush1.bf16.msra.mxu0 %v1371
    %2430 = vmatprep.subr.bf16.mxu0 %v1382
    %2431 = vmatpush1.bf16.msra.mxu0 %v1381
    %2432 = vmatprep.subr.bf16.mxu0 0
    %2433 = vmatpush1.bf16.msra.mxu0 0
    %2434 = vmatprep.subr.bf16.mxu0 0
    %2435 = vmatpush1.bf16.msra.mxu0 0
    %2436 = vmatprep.subr.bf16.mxu0 0
    %2437 = vmatpush1.bf16.msra.mxu0 0
    %2438 = vmatprep.subr.bf16.mxu0 0
    %2439 = vmatpush1.bf16.msra.mxu0 0
    %2440 = vmatprep.subr.bf16.mxu0 0
    %2441 = vmatpush1.bf16.msra.mxu0 0
    %2442 = vmatprep.subr.bf16.mxu0 0
    %2443 = vmatpush1.bf16.msra.mxu0 0
    %2444 = vmatprep.subr.bf16.mxu0 0
    %2445 = vmatpush1.bf16.msra.mxu0 0
    %2446 = vmatprep.subr.bf16.mxu0 0
    %2447 = vmatpush1.bf16.msra.mxu0 0
    %2448 = vmatprep.mubr.bf16.mxu0 0
    %2449 = vmatmul.mubr.bf16.gmra.mrb[0].mxu0 %v379
    %v2450 = vpop.f32.mrb[0].mxu0
    %v2451 = vadd.f32 %v2338, %v2450
    %v2452 = vpop.f32.mrb[0].mxu0
    %v2453 = vadd.f32 %v2340, %v2452
    %v2454 = vpop.f32.mrb[0].mxu0
    %v2455 = vadd.f32 %v2342, %v2454
    %v2456 = vpop.f32.mrb[0].mxu0
    %v2457 = vadd.f32 %v2344, %v2456
    %2458 = vmatprep.mubr.bf16.mxu0 0
    %2459 = vmatmul.mubr.bf16.gmra.mrb[0].mxu0 %v382
    %v2460 = vpop.f32.mrb[0].mxu0
    %v2461 = vadd.f32 %v2348, %v2460
    %v2462 = vpop.f32.mrb[0].mxu0
    %v2463 = vadd.f32 %v2350, %v2462
    %v2464 = vpop.f32.mrb[0].mxu0
    %v2465 = vadd.f32 %v2352, %v2464
    %v2466 = vpop.f32.mrb[0].mxu0
    %v2467 = vadd.f32 %v2354, %v2466
    %2468 = vmatprep.mubr.bf16.mxu0 0
    %2469 = vmatmul.mubr.bf16.gmra.mrb[0].mxu0 %v385
    %v2470 = vpop.f32.mrb[0].mxu0
    %v2471 = vadd.f32 %v2358, %v2470
    %v2472 = vpop.f32.mrb[0].mxu0
    %v2473 = vadd.f32 %v2360, %v2472
    %v2474 = vpop.f32.mrb[0].mxu0
    %v2475 = vadd.f32 %v2362, %v2474
    %v2476 = vpop.f32.mrb[0].mxu0
    %v2477 = vadd.f32 %v2364, %v2476
    %2478 = vmatprep.mubr.bf16.mxu0 0
    %2479 = vmatmul.mubr.bf16.gmra.mrb[0].mxu0 %v388
    %v2480 = vpop.f32.mrb[0].mxu0
    %v2481 = vadd.f32 %v2368, %v2480
    %v2482 = vpop.f32.mrb[0].mxu0
    %v2483 = vadd.f32 %v2370, %v2482
    %v2484 = vpop.f32.mrb[0].mxu0
    %v2485 = vadd.f32 %v2372, %v2484
    %v2486 = vpop.f32.mrb[0].mxu0
    %v2487 = vadd.f32 %v2374, %v2486
    %2488 = vmatprep.mubr.bf16.mxu0 0
    %2489 = vmatmul.mubr.bf16.gmra.mrb[0].mxu0 %v391
    %v2490 = vpop.f32.mrb[0].mxu0
    %v2491 = vadd.f32 %v2378, %v2490
    %v2492 = vpop.f32.mrb[0].mxu0
    %v2493 = vadd.f32 %v2380, %v2492
    %v2494 = vpop.f32.mrb[0].mxu0
    %v2495 = vadd.f32 %v2382, %v2494
    %v2496 = vpop.f32.mrb[0].mxu0
    %v2497 = vadd.f32 %v2384, %v2496
    %2498 = vmatprep.mubr.bf16.mxu0 0
    %2499 = vmatmul.mubr.bf16.gmra.mrb[0].mxu0 %v394
    %v2500 = vpop.f32.mrb[0].mxu0
    %v2501 = vadd.f32 %v2388, %v2500
    %v2502 = vpop.f32.mrb[0].mxu0
    %v2503 = vadd.f32 %v2390, %v2502
    %v2504 = vpop.f32.mrb[0].mxu0
    %v2505 = vadd.f32 %v2392, %v2504
    %v2506 = vpop.f32.mrb[0].mxu0
    %v2507 = vadd.f32 %v2394, %v2506
    %2508 = vmatprep.mubr.bf16.mxu0 0
    %2509 = vmatmul.mubr.bf16.gmra.mrb[0].mxu0 %v397
    %v2510 = vpop.f32.mrb[0].mxu0
    %v2511 = vadd.f32 %v2398, %v2510
    %v2512 = vpop.f32.mrb[0].mxu0
    %v2513 = vadd.f32 %v2400, %v2512
    %v2514 = vpop.f32.mrb[0].mxu0
    %v2515 = vadd.f32 %v2402, %v2514
    %v2516 = vpop.f32.mrb[0].mxu0
    %v2517 = vadd.f32 %v2404, %v2516
    %2518 = vmatprep.mubr.bf16.mxu0 0
    %2519 = vmatmul.mubr.bf16.gmra.mrb[0].mxu0 %v400
    %v2520 = vpop.f32.mrb[0].mxu0
    %v2521 = vadd.f32 %v2408, %v2520
    %v2522 = vpop.f32.mrb[0].mxu0
    %v2523 = vadd.f32 %v2410, %v2522
    %v2524 = vpop.f32.mrb[0].mxu0
    %v2525 = vadd.f32 %v2412, %v2524
    %v2526 = vpop.f32.mrb[0].mxu0
    %v2527 = vadd.f32 %v2414, %v2526
    %2528 = vdwg.mxu0
    %2529 = vmatprep.subr.bf16.mxu0 %v1154
    %2530 = vmatpush1.bf16.msra.mxu0 %v1153
    %2531 = vmatprep.subr.bf16.mxu0 %v1164
    %2532 = vmatpush1.bf16.msra.mxu0 %v1163
    %2533 = vmatprep.subr.bf16.mxu0 %v1174
    %2534 = vmatpush1.bf16.msra.mxu0 %v1173
    %2535 = vmatprep.subr.bf16.mxu0 %v1184
    %2536 = vmatpush1.bf16.msra.mxu0 %v1183
    %2537 = vmatprep.subr.bf16.mxu0 %v1194
    %2538 = vmatpush1.bf16.msra.mxu0 %v1193
    %2539 = vmatprep.subr.bf16.mxu0 %v1204
    %2540 = vmatpush1.bf16.msra.mxu0 %v1203
    %2541 = vmatprep.subr.bf16.mxu0 %v1214
    %2542 = vmatpush1.bf16.msra.mxu0 %v1213
    %2543 = vmatprep.subr.bf16.mxu0 %v1224
    %2544 = vmatpush1.bf16.msra.mxu0 %v1223
    %2545 = vmatprep.subr.bf16.mxu0 %v1234
    %2546 = vmatpush1.bf16.msra.mxu0 %v1233
    %2547 = vmatprep.subr.bf16.mxu0 %v1244
    %2548 = vmatpush1.bf16.msra.mxu0 %v1243
    %2549 = vmatprep.subr.bf16.mxu0 %v1254
    %2550 = vmatpush1.bf16.msra.mxu0 %v1253
    %2551 = vmatprep.subr.bf16.mxu0 %v1264
    %2552 = vmatpush1.bf16.msra.mxu0 %v1263
    %2553 = vmatprep.subr.bf16.mxu0 %v1274
    %2554 = vmatpush1.bf16.msra.mxu0 %v1273
    %2555 = vmatprep.subr.bf16.mxu0 %v1284
    %2556 = vmatpush1.bf16.msra.mxu0 %v1283
    %2557 = vmatprep.subr.bf16.mxu0 %v1294
    %2558 = vmatpush1.bf16.msra.mxu0 %v1293
    %2559 = vmatprep.subr.bf16.mxu0 %v1304
    %2560 = vmatpush1.bf16.msra.mxu0 %v1303
    %2561 = vmatprep.mubr.bf16.mxu0 %v378
    %2562 = vmatmul.mubr.bf16.gmra.mrb[0].mxu0 %v377
    %v2563 = vpop.f32.mrb[0].mxu0
    %v2564 = vadd.f32 0.0, %v2563
    %v2565 = vpop.f32.mrb[0].mxu0
    %v2566 = vadd.f32 0.0, %v2565
    %v2567 = vpop.f32.mrb[0].mxu0
    %v2568 = vadd.f32 0.0, %v2567
    %v2569 = vpop.f32.mrb[0].mxu0
    %v2570 = vadd.f32 0.0, %v2569
    %2571 = vmatprep.mubr.bf16.mxu0 %v381
    %2572 = vmatmul.mubr.bf16.gmra.mrb[0].mxu0 %v380
    %v2573 = vpop.f32.mrb[0].mxu0
    %v2574 = vadd.f32 0.0, %v2573
    %v2575 = vpop.f32.mrb[0].mxu0
    %v2576 = vadd.f32 0.0, %v2575
    %v2577 = vpop.f32.mrb[0].mxu0
    %v2578 = vadd.f32 0.0, %v2577
    %v2579 = vpop.f32.mrb[0].mxu0
    %v2580 = vadd.f32 0.0, %v2579
    %2581 = vmatprep.mubr.bf16.mxu0 %v384
    %2582 = vmatmul.mubr.bf16.gmra.mrb[0].mxu0 %v383
    %v2583 = vpop.f32.mrb[0].mxu0
    %v2584 = vadd.f32 0.0, %v2583
    %v2585 = vpop.f32.mrb[0].mxu0
    %v2586 = vadd.f32 0.0, %v2585
    %v2587 = vpop.f32.mrb[0].mxu0
    %v2588 = vadd.f32 0.0, %v2587
    %v2589 = vpop.f32.mrb[0].mxu0
    %v2590 = vadd.f32 0.0, %v2589
    %2591 = vmatprep.mubr.bf16.mxu0 %v387
    %2592 = vmatmul.mubr.bf16.gmra.mrb[0].mxu0 %v386
    %v2593 = vpop.f32.mrb[0].mxu0
    %v2594 = vadd.f32 0.0, %v2593
    %v2595 = vpop.f32.mrb[0].mxu0
    %v2596 = vadd.f32 0.0, %v2595
    %v2597 = vpop.f32.mrb[0].mxu0
    %v2598 = vadd.f32 0.0, %v2597
    %v2599 = vpop.f32.mrb[0].mxu0
    %v2600 = vadd.f32 0.0, %v2599
    %2601 = vmatprep.mubr.bf16.mxu0 %v390
    %2602 = vmatmul.mubr.bf16.gmra.mrb[0].mxu0 %v389
    %v2603 = vpop.f32.mrb[0].mxu0
    %v2604 = vadd.f32 0.0, %v2603
    %v2605 = vpop.f32.mrb[0].mxu0
    %v2606 = vadd.f32 0.0, %v2605
    %v2607 = vpop.f32.mrb[0].mxu0
    %v2608 = vadd.f32 0.0, %v2607
    %v2609 = vpop.f32.mrb[0].mxu0
    %v2610 = vadd.f32 0.0, %v2609
    %2611 = vmatprep.mubr.bf16.mxu0 %v393
    %2612 = vmatmul.mubr.bf16.gmra.mrb[0].mxu0 %v392
    %v2613 = vpop.f32.mrb[0].mxu0
    %v2614 = vadd.f32 0.0, %v2613
    %v2615 = vpop.f32.mrb[0].mxu0
    %v2616 = vadd.f32 0.0, %v2615
    %v2617 = vpop.f32.mrb[0].mxu0
    %v2618 = vadd.f32 0.0, %v2617
    %v2619 = vpop.f32.mrb[0].mxu0
    %v2620 = vadd.f32 0.0, %v2619
    %2621 = vmatprep.mubr.bf16.mxu0 %v396
    %2622 = vmatmul.mubr.bf16.gmra.mrb[0].mxu0 %v395
    %v2623 = vpop.f32.mrb[0].mxu0
    %v2624 = vadd.f32 0.0, %v2623
    %v2625 = vpop.f32.mrb[0].mxu0
    %v2626 = vadd.f32 0.0, %v2625
    %v2627 = vpop.f32.mrb[0].mxu0
    %v2628 = vadd.f32 0.0, %v2627
    %v2629 = vpop.f32.mrb[0].mxu0
    %v2630 = vadd.f32 0.0, %v2629
    %2631 = vmatprep.mubr.bf16.mxu0 %v399
    %2632 = vmatmul.mubr.bf16.gmra.mrb[0].mxu0 %v398
    %v2633 = vpop.f32.mrb[0].mxu0
    %v2634 = vadd.f32 0.0, %v2633
    %v2635 = vpop.f32.mrb[0].mxu0
    %v2636 = vadd.f32 0.0, %v2635
    %v2637 = vpop.f32.mrb[0].mxu0
    %v2638 = vadd.f32 0.0, %v2637
    %v2639 = vpop.f32.mrb[0].mxu0
    %v2640 = vadd.f32 0.0, %v2639
    %2641 = vdwg.mxu0
    %2642 = vmatprep.subr.bf16.mxu0 %v1314
    %2643 = vmatpush1.bf16.msra.mxu0 %v1313
    %2644 = vmatprep.subr.bf16.mxu0 %v1324
    %2645 = vmatpush1.bf16.msra.mxu0 %v1323
    %2646 = vmatprep.subr.bf16.mxu0 %v1334
    %2647 = vmatpush1.bf16.msra.mxu0 %v1333
    %2648 = vmatprep.subr.bf16.mxu0 %v1344
    %2649 = vmatpush1.bf16.msra.mxu0 %v1343
    %2650 = vmatprep.subr.bf16.mxu0 %v1354
    %2651 = vmatpush1.bf16.msra.mxu0 %v1353
    %2652 = vmatprep.subr.bf16.mxu0 %v1364
    %2653 = vmatpush1.bf16.msra.mxu0 %v1363
    %2654 = vmatprep.subr.bf16.mxu0 %v1374
    %2655 = vmatpush1.bf16.msra.mxu0 %v1373
    %2656 = vmatprep.subr.bf16.mxu0 %v1384
    %2657 = vmatpush1.bf16.msra.mxu0 %v1383
    %2658 = vmatprep.subr.bf16.mxu0 0
    %2659 = vmatpush1.bf16.msra.mxu0 0
    %2660 = vmatprep.subr.bf16.mxu0 0
    %2661 = vmatpush1.bf16.msra.mxu0 0
    %2662 = vmatprep.subr.bf16.mxu0 0
    %2663 = vmatpush1.bf16.msra.mxu0 0
    %2664 = vmatprep.subr.bf16.mxu0 0
    %2665 = vmatpush1.bf16.msra.mxu0 0
    %2666 = vmatprep.subr.bf16.mxu0 0
    %2667 = vmatpush1.bf16.msra.mxu0 0
    %2668 = vmatprep.subr.bf16.mxu0 0
    %2669 = vmatpush1.bf16.msra.mxu0 0
    %2670 = vmatprep.subr.bf16.mxu0 0
    %2671 = vmatpush1.bf16.msra.mxu0 0
    %2672 = vmatprep.subr.bf16.mxu0 0
    %2673 = vmatpush1.bf16.msra.mxu0 0
    %2674 = vmatprep.mubr.bf16.mxu0 0
    %2675 = vmatmul.mubr.bf16.gmra.mrb[0].mxu0 %v379
    %v2676 = vpop.f32.mrb[0].mxu0
    %v2677 = vadd.f32 %v2564, %v2676
    %v2678 = vpop.f32.mrb[0].mxu0
    %v2679 = vadd.f32 %v2566, %v2678
    %v2680 = vpop.f32.mrb[0].mxu0
    %v2681 = vadd.f32 %v2568, %v2680
    %v2682 = vpop.f32.mrb[0].mxu0
    %v2683 = vadd.f32 %v2570, %v2682
    %2684 = vmatprep.mubr.bf16.mxu0 0
    %2685 = vmatmul.mubr.bf16.gmra.mrb[0].mxu0 %v382
    %v2686 = vpop.f32.mrb[0].mxu0
    %v2687 = vadd.f32 %v2574, %v2686
    %v2688 = vpop.f32.mrb[0].mxu0
    %v2689 = vadd.f32 %v2576, %v2688
    %v2690 = vpop.f32.mrb[0].mxu0
    %v2691 = vadd.f32 %v2578, %v2690
    %v2692 = vpop.f32.mrb[0].mxu0
    %v2693 = vadd.f32 %v2580, %v2692
    %2694 = vmatprep.mubr.bf16.mxu0 0
    %2695 = vmatmul.mubr.bf16.gmra.mrb[0].mxu0 %v385
    %v2696 = vpop.f32.mrb[0].mxu0
    %v2697 = vadd.f32 %v2584, %v2696
    %v2698 = vpop.f32.mrb[0].mxu0
    %v2699 = vadd.f32 %v2586, %v2698
    %v2700 = vpop.f32.mrb[0].mxu0
    %v2701 = vadd.f32 %v2588, %v2700
    %v2702 = vpop.f32.mrb[0].mxu0
    %v2703 = vadd.f32 %v2590, %v2702
    %2704 = vmatprep.mubr.bf16.mxu0 0
    %2705 = vmatmul.mubr.bf16.gmra.mrb[0].mxu0 %v388
    %v2706 = vpop.f32.mrb[0].mxu0
    %v2707 = vadd.f32 %v2594, %v2706
    %v2708 = vpop.f32.mrb[0].mxu0
    %v2709 = vadd.f32 %v2596, %v2708
    %v2710 = vpop.f32.mrb[0].mxu0
    %v2711 = vadd.f32 %v2598, %v2710
    %v2712 = vpop.f32.mrb[0].mxu0
    %v2713 = vadd.f32 %v2600, %v2712
    %2714 = vmatprep.mubr.bf16.mxu0 0
    %2715 = vmatmul.mubr.bf16.gmra.mrb[0].mxu0 %v391
    %v2716 = vpop.f32.mrb[0].mxu0
    %v2717 = vadd.f32 %v2604, %v2716
    %v2718 = vpop.f32.mrb[0].mxu0
    %v2719 = vadd.f32 %v2606, %v2718
    %v2720 = vpop.f32.mrb[0].mxu0
    %v2721 = vadd.f32 %v2608, %v2720
    %v2722 = vpop.f32.mrb[0].mxu0
    %v2723 = vadd.f32 %v2610, %v2722
    %2724 = vmatprep.mubr.bf16.mxu0 0
    %2725 = vmatmul.mubr.bf16.gmra.mrb[0].mxu0 %v394
    %v2726 = vpop.f32.mrb[0].mxu0
    %v2727 = vadd.f32 %v2614, %v2726
    %v2728 = vpop.f32.mrb[0].mxu0
    %v2729 = vadd.f32 %v2616, %v2728
    %v2730 = vpop.f32.mrb[0].mxu0
    %v2731 = vadd.f32 %v2618, %v2730
    %v2732 = vpop.f32.mrb[0].mxu0
    %v2733 = vadd.f32 %v2620, %v2732
    %2734 = vmatprep.mubr.bf16.mxu0 0
    %2735 = vmatmul.mubr.bf16.gmra.mrb[0].mxu0 %v397
    %v2736 = vpop.f32.mrb[0].mxu0
    %v2737 = vadd.f32 %v2624, %v2736
    %v2738 = vpop.f32.mrb[0].mxu0
    %v2739 = vadd.f32 %v2626, %v2738
    %v2740 = vpop.f32.mrb[0].mxu0
    %v2741 = vadd.f32 %v2628, %v2740
    %v2742 = vpop.f32.mrb[0].mxu0
    %v2743 = vadd.f32 %v2630, %v2742
    %2744 = vmatprep.mubr.bf16.mxu0 0
    %2745 = vmatmul.mubr.bf16.gmra.mrb[0].mxu0 %v400
    %v2746 = vpop.f32.mrb[0].mxu0
    %v2747 = vadd.f32 %v2634, %v2746
    %v2748 = vpop.f32.mrb[0].mxu0
    %v2749 = vadd.f32 %v2636, %v2748
    %v2750 = vpop.f32.mrb[0].mxu0
    %v2751 = vadd.f32 %v2638, %v2750
    %v2752 = vpop.f32.mrb[0].mxu0
    %v2753 = vadd.f32 %v2640, %v2752
    %2754 = vdwg.mxu0
    %v2755 = vld [vmem:[%s2] sm:$0xff]
    %v2756 = vld [vmem:[%s2 + $0x8] sm:$0x3]
    %v2759 = vlaneseq
    %v2760 = vshrl.u32 %v2759, 7
    %v2761 = vsub.s32 0, %v2760
    %v2762 = vrot.slane %v2755, %v2761
    %v2763 = vlaneseq
    %v2764 = vshrl.u32 %v2763, 7
    %v2765 = vsub.s32 1, %v2764
    %v2766 = vrot.slane %v2755, %v2765
    %v2767 = vlaneseq
    %v2768 = vshrl.u32 %v2767, 7
    %v2769 = vsub.s32 2, %v2768
    %v2770 = vrot.slane %v2755, %v2769
    %v2771 = vlaneseq
    %v2772 = vshrl.u32 %v2771, 7
    %v2773 = vsub.s32 3, %v2772
    %v2774 = vrot.slane %v2755, %v2773
    %v2775 = vlaneseq
    %v2776 = vshrl.u32 %v2775, 7
    %v2777 = vsub.s32 4, %v2776
    %v2778 = vrot.slane %v2755, %v2777
    %v2779 = vlaneseq
    %v2780 = vshrl.u32 %v2779, 7
    %v2781 = vsub.s32 5, %v2780
    %v2782 = vrot.slane %v2755, %v2781
    %v2783 = vlaneseq
    %v2784 = vshrl.u32 %v2783, 7
    %v2785 = vsub.s32 6, %v2784
    %v2786 = vrot.slane %v2755, %v2785
    %v2787 = vlaneseq
    %v2788 = vshrl.u32 %v2787, 7
    %v2789 = vsub.s32 7, %v2788
    %v2790 = vrot.slane %v2755, %v2789
    %v2791 = vlaneseq
    %v2792 = vshrl.u32 %v2791, 7
    %v2793 = vsub.s32 0, %v2792
    %v2794 = vrot.slane %v2756, %v2793
    %v2795 = vlaneseq
    %v2796 = vshrl.u32 %v2795, 7
    %v2797 = vsub.s32 1, %v2796
    %v2798 = vrot.slane %v2756, %v2797
    %v2809 = vmul.f32 %v1773, %v2762
    %v2810 = vmul.f32 %v1775, %v2766
    %v2811 = vmul.f32 %v1999, %v2770
    %v2812 = vmul.f32 %v2001, %v2774
    %v2813 = vmul.f32 %v2225, %v2778
    %v2814 = vmul.f32 %v2227, %v2782
    %v2815 = vmul.f32 %v2451, %v2786
    %v2816 = vmul.f32 %v2453, %v2790
    %v2817 = vmul.f32 %v2677, %v2794
    %v2818 = vmul.f32 %v2679, %v2798
    %v2819 = vmul.f32 %v1777, %v2762
    %v2820 = vmul.f32 %v1779, %v2766
    %v2821 = vmul.f32 %v2003, %v2770
    %v2822 = vmul.f32 %v2005, %v2774
    %v2823 = vmul.f32 %v2229, %v2778
    %v2824 = vmul.f32 %v2231, %v2782
    %v2825 = vmul.f32 %v2455, %v2786
    %v2826 = vmul.f32 %v2457, %v2790
    %v2827 = vmul.f32 %v2681, %v2794
    %v2828 = vmul.f32 %v2683, %v2798
    %v2829 = vmul.f32 %v1783, %v2762
    %v2830 = vmul.f32 %v1785, %v2766
    %v2831 = vmul.f32 %v2009, %v2770
    %v2832 = vmul.f32 %v2011, %v2774
    %v2833 = vmul.f32 %v2235, %v2778
    %v2834 = vmul.f32 %v2237, %v2782
    %v2835 = vmul.f32 %v2461, %v2786
    %v2836 = vmul.f32 %v2463, %v2790
    %v2837 = vmul.f32 %v2687, %v2794
    %v2838 = vmul.f32 %v2689, %v2798
    %v2839 = vmul.f32 %v1787, %v2762
    %v2840 = vmul.f32 %v1789, %v2766
    %v2841 = vmul.f32 %v2013, %v2770
    %v2842 = vmul.f32 %v2015, %v2774
    %v2843 = vmul.f32 %v2239, %v2778
    %v2844 = vmul.f32 %v2241, %v2782
    %v2845 = vmul.f32 %v2465, %v2786
    %v2846 = vmul.f32 %v2467, %v2790
    %v2847 = vmul.f32 %v2691, %v2794
    %v2848 = vmul.f32 %v2693, %v2798
    %v2849 = vmul.f32 %v1793, %v2762
    %v2850 = vmul.f32 %v1795, %v2766
    %v2851 = vmul.f32 %v2019, %v2770
    %v2852 = vmul.f32 %v2021, %v2774
    %v2853 = vmul.f32 %v2245, %v2778
    %v2854 = vmul.f32 %v2247, %v2782
    %v2855 = vmul.f32 %v2471, %v2786
    %v2856 = vmul.f32 %v2473, %v2790
    %v2857 = vmul.f32 %v2697, %v2794
    %v2858 = vmul.f32 %v2699, %v2798
    %v2859 = vmul.f32 %v1797, %v2762
    %v2860 = vmul.f32 %v1799, %v2766
    %v2861 = vmul.f32 %v2023, %v2770
    %v2862 = vmul.f32 %v2025, %v2774
    %v2863 = vmul.f32 %v2249, %v2778
    %v2864 = vmul.f32 %v2251, %v2782
    %v2865 = vmul.f32 %v2475, %v2786
    %v2866 = vmul.f32 %v2477, %v2790
    %v2867 = vmul.f32 %v2701, %v2794
    %v2868 = vmul.f32 %v2703, %v2798
    %v2869 = vmul.f32 %v1803, %v2762
    %v2870 = vmul.f32 %v1805, %v2766
    %v2871 = vmul.f32 %v2029, %v2770
    %v2872 = vmul.f32 %v2031, %v2774
    %v2873 = vmul.f32 %v2255, %v2778
    %v2874 = vmul.f32 %v2257, %v2782
    %v2875 = vmul.f32 %v2481, %v2786
    %v2876 = vmul.f32 %v2483, %v2790
    %v2877 = vmul.f32 %v2707, %v2794
    %v2878 = vmul.f32 %v2709, %v2798
    %v2879 = vmul.f32 %v1807, %v2762
    %v2880 = vmul.f32 %v1809, %v2766
    %v2881 = vmul.f32 %v2033, %v2770
    %v2882 = vmul.f32 %v2035, %v2774
    %v2883 = vmul.f32 %v2259, %v2778
    %v2884 = vmul.f32 %v2261, %v2782
    %v2885 = vmul.f32 %v2485, %v2786
    %v2886 = vmul.f32 %v2487, %v2790
    %v2887 = vmul.f32 %v2711, %v2794
    %v2888 = vmul.f32 %v2713, %v2798
    %v2889 = vmul.f32 %v1813, %v2762
    %v2890 = vmul.f32 %v1815, %v2766
    %v2891 = vmul.f32 %v2039, %v2770
    %v2892 = vmul.f32 %v2041, %v2774
    %v2893 = vmul.f32 %v2265, %v2778
    %v2894 = vmul.f32 %v2267, %v2782
    %v2895 = vmul.f32 %v2491, %v2786
    %v2896 = vmul.f32 %v2493, %v2790
    %v2897 = vmul.f32 %v2717, %v2794
    %v2898 = vmul.f32 %v2719, %v2798
    %v2899 = vmul.f32 %v1817, %v2762
    %v2900 = vmul.f32 %v1819, %v2766
    %v2901 = vmul.f32 %v2043, %v2770
    %v2902 = vmul.f32 %v2045, %v2774
    %v2903 = vmul.f32 %v2269, %v2778
    %v2904 = vmul.f32 %v2271, %v2782
    %v2905 = vmul.f32 %v2495, %v2786
    %v2906 = vmul.f32 %v2497, %v2790
    %v2907 = vmul.f32 %v2721, %v2794
    %v2908 = vmul.f32 %v2723, %v2798
    %v2909 = vmul.f32 %v1823, %v2762
    %v2910 = vmul.f32 %v1825, %v2766
    %v2911 = vmul.f32 %v2049, %v2770
    %v2912 = vmul.f32 %v2051, %v2774
    %v2913 = vmul.f32 %v2275, %v2778
    %v2914 = vmul.f32 %v2277, %v2782
    %v2915 = vmul.f32 %v2501, %v2786
    %v2916 = vmul.f32 %v2503, %v2790
    %v2917 = vmul.f32 %v2727, %v2794
    %v2918 = vmul.f32 %v2729, %v2798
    %v2919 = vmul.f32 %v1827, %v2762
    %v2920 = vmul.f32 %v1829, %v2766
    %v2921 = vmul.f32 %v2053, %v2770
    %v2922 = vmul.f32 %v2055, %v2774
    %v2923 = vmul.f32 %v2279, %v2778
    %v2924 = vmul.f32 %v2281, %v2782
    %v2925 = vmul.f32 %v2505, %v2786
    %v2926 = vmul.f32 %v2507, %v2790
    %v2927 = vmul.f32 %v2731, %v2794
    %v2928 = vmul.f32 %v2733, %v2798
    %v2929 = vmul.f32 %v1833, %v2762
    %v2930 = vmul.f32 %v1835, %v2766
    %v2931 = vmul.f32 %v2059, %v2770
    %v2932 = vmul.f32 %v2061, %v2774
    %v2933 = vmul.f32 %v2285, %v2778
    %v2934 = vmul.f32 %v2287, %v2782
    %v2935 = vmul.f32 %v2511, %v2786
    %v2936 = vmul.f32 %v2513, %v2790
    %v2937 = vmul.f32 %v2737, %v2794
    %v2938 = vmul.f32 %v2739, %v2798
    %v2939 = vmul.f32 %v1837, %v2762
    %v2940 = vmul.f32 %v1839, %v2766
    %v2941 = vmul.f32 %v2063, %v2770
    %v2942 = vmul.f32 %v2065, %v2774
    %v2943 = vmul.f32 %v2289, %v2778
    %v2944 = vmul.f32 %v2291, %v2782
    %v2945 = vmul.f32 %v2515, %v2786
    %v2946 = vmul.f32 %v2517, %v2790
    %v2947 = vmul.f32 %v2741, %v2794
    %v2948 = vmul.f32 %v2743, %v2798
    %v2949 = vmul.f32 %v1843, %v2762
    %v2950 = vmul.f32 %v1845, %v2766
    %v2951 = vmul.f32 %v2069, %v2770
    %v2952 = vmul.f32 %v2071, %v2774
    %v2953 = vmul.f32 %v2295, %v2778
    %v2954 = vmul.f32 %v2297, %v2782
    %v2955 = vmul.f32 %v2521, %v2786
    %v2956 = vmul.f32 %v2523, %v2790
    %v2957 = vmul.f32 %v2747, %v2794
    %v2958 = vmul.f32 %v2749, %v2798
    %v2959 = vmul.f32 %v1847, %v2762
    %v2960 = vmul.f32 %v1849, %v2766
    %v2961 = vmul.f32 %v2073, %v2770
    %v2962 = vmul.f32 %v2075, %v2774
    %v2963 = vmul.f32 %v2299, %v2778
    %v2964 = vmul.f32 %v2301, %v2782
    %v2965 = vmul.f32 %v2525, %v2786
    %v2966 = vmul.f32 %v2527, %v2790
    %v2967 = vmul.f32 %v2751, %v2794
    %v2968 = vmul.f32 %v2753, %v2798
    %v2969 = vld [vmem:[%s3] sm:$0xff]
    %v2970 = vld [vmem:[%s3 + $0x8] sm:$0x3]
    %v2973 = vlaneseq
    %v2974 = vshrl.u32 %v2973, 7
    %v2975 = vsub.s32 0, %v2974
    %v2976 = vrot.slane %v2969, %v2975
    %v2977 = vlaneseq
    %v2978 = vshrl.u32 %v2977, 7
    %v2979 = vsub.s32 1, %v2978
    %v2980 = vrot.slane %v2969, %v2979
    %v2981 = vlaneseq
    %v2982 = vshrl.u32 %v2981, 7
    %v2983 = vsub.s32 2, %v2982
    %v2984 = vrot.slane %v2969, %v2983
    %v2985 = vlaneseq
    %v2986 = vshrl.u32 %v2985, 7
    %v2987 = vsub.s32 3, %v2986
    %v2988 = vrot.slane %v2969, %v2987
    %v2989 = vlaneseq
    %v2990 = vshrl.u32 %v2989, 7
    %v2991 = vsub.s32 4, %v2990
    %v2992 = vrot.slane %v2969, %v2991
    %v2993 = vlaneseq
    %v2994 = vshrl.u32 %v2993, 7
    %v2995 = vsub.s32 5, %v2994
    %v2996 = vrot.slane %v2969, %v2995
    %v2997 = vlaneseq
    %v2998 = vshrl.u32 %v2997, 7
    %v2999 = vsub.s32 6, %v2998
    %v3000 = vrot.slane %v2969, %v2999
    %v3001 = vlaneseq
    %v3002 = vshrl.u32 %v3001, 7
    %v3003 = vsub.s32 7, %v3002
    %v3004 = vrot.slane %v2969, %v3003
    %v3005 = vlaneseq
    %v3006 = vshrl.u32 %v3005, 7
    %v3007 = vsub.s32 0, %v3006
    %v3008 = vrot.slane %v2970, %v3007
    %v3009 = vlaneseq
    %v3010 = vshrl.u32 %v3009, 7
    %v3011 = vsub.s32 1, %v3010
    %v3012 = vrot.slane %v2970, %v3011
    %v3023 = vadd.f32 %v2809, %v2976
    %v3024 = vadd.f32 %v2810, %v2980
    %v3025 = vadd.f32 %v2811, %v2984
    %v3026 = vadd.f32 %v2812, %v2988
    %v3027 = vadd.f32 %v2813, %v2992
    %v3028 = vadd.f32 %v2814, %v2996
    %v3029 = vadd.f32 %v2815, %v3000
    %v3030 = vadd.f32 %v2816, %v3004
    %v3031 = vadd.f32 %v2817, %v3008
    %v3032 = vadd.f32 %v2818, %v3012
    %v3033 = vadd.f32 %v2819, %v2976
    %v3034 = vadd.f32 %v2820, %v2980
    %v3035 = vadd.f32 %v2821, %v2984
    %v3036 = vadd.f32 %v2822, %v2988
    %v3037 = vadd.f32 %v2823, %v2992
    %v3038 = vadd.f32 %v2824, %v2996
    %v3039 = vadd.f32 %v2825, %v3000
    %v3040 = vadd.f32 %v2826, %v3004
    %v3041 = vadd.f32 %v2827, %v3008
    %v3042 = vadd.f32 %v2828, %v3012
    %v3043 = vadd.f32 %v2829, %v2976
    %v3044 = vadd.f32 %v2830, %v2980
    %v3045 = vadd.f32 %v2831, %v2984
    %v3046 = vadd.f32 %v2832, %v2988
    %v3047 = vadd.f32 %v2833, %v2992
    %v3048 = vadd.f32 %v2834, %v2996
    %v3049 = vadd.f32 %v2835, %v3000
    %v3050 = vadd.f32 %v2836, %v3004
    %v3051 = vadd.f32 %v2837, %v3008
    %v3052 = vadd.f32 %v2838, %v3012
    %v3053 = vadd.f32 %v2839, %v2976
    %v3054 = vadd.f32 %v2840, %v2980
    %v3055 = vadd.f32 %v2841, %v2984
    %v3056 = vadd.f32 %v2842, %v2988
    %v3057 = vadd.f32 %v2843, %v2992
    %v3058 = vadd.f32 %v2844, %v2996
    %v3059 = vadd.f32 %v2845, %v3000
    %v3060 = vadd.f32 %v2846, %v3004
    %v3061 = vadd.f32 %v2847, %v3008
    %v3062 = vadd.f32 %v2848, %v3012
    %v3063 = vadd.f32 %v2849, %v2976
    %v3064 = vadd.f32 %v2850, %v2980
    %v3065 = vadd.f32 %v2851, %v2984
    %v3066 = vadd.f32 %v2852, %v2988
    %v3067 = vadd.f32 %v2853, %v2992
    %v3068 = vadd.f32 %v2854, %v2996
    %v3069 = vadd.f32 %v2855, %v3000
    %v3070 = vadd.f32 %v2856, %v3004
    %v3071 = vadd.f32 %v2857, %v3008
    %v3072 = vadd.f32 %v2858, %v3012
    %v3073 = vadd.f32 %v2859, %v2976
    %v3074 = vadd.f32 %v2860, %v2980
    %v3075 = vadd.f32 %v2861, %v2984
    %v3076 = vadd.f32 %v2862, %v2988
    %v3077 = vadd.f32 %v2863, %v2992
    %v3078 = vadd.f32 %v2864, %v2996
    %v3079 = vadd.f32 %v2865, %v3000
    %v3080 = vadd.f32 %v2866, %v3004
    %v3081 = vadd.f32 %v2867, %v3008
    %v3082 = vadd.f32 %v2868, %v3012
    %v3083 = vadd.f32 %v2869, %v2976
    %v3084 = vadd.f32 %v2870, %v2980
    %v3085 = vadd.f32 %v2871, %v2984
    %v3086 = vadd.f32 %v2872, %v2988
    %v3087 = vadd.f32 %v2873, %v2992
    %v3088 = vadd.f32 %v2874, %v2996
    %v3089 = vadd.f32 %v2875, %v3000
    %v3090 = vadd.f32 %v2876, %v3004
    %v3091 = vadd.f32 %v2877, %v3008
    %v3092 = vadd.f32 %v2878, %v3012
    %v3093 = vadd.f32 %v2879, %v2976
    %v3094 = vadd.f32 %v2880, %v2980
    %v3095 = vadd.f32 %v2881, %v2984
    %v3096 = vadd.f32 %v2882, %v2988
    %v3097 = vadd.f32 %v2883, %v2992
    %v3098 = vadd.f32 %v2884, %v2996
    %v3099 = vadd.f32 %v2885, %v3000
    %v3100 = vadd.f32 %v2886, %v3004
    %v3101 = vadd.f32 %v2887, %v3008
    %v3102 = vadd.f32 %v2888, %v3012
    %v3103 = vadd.f32 %v2889, %v2976
    %v3104 = vadd.f32 %v2890, %v2980
    %v3105 = vadd.f32 %v2891, %v2984
    %v3106 = vadd.f32 %v2892, %v2988
    %v3107 = vadd.f32 %v2893, %v2992
    %v3108 = vadd.f32 %v2894, %v2996
    %v3109 = vadd.f32 %v2895, %v3000
    %v3110 = vadd.f32 %v2896, %v3004
    %v3111 = vadd.f32 %v2897, %v3008
    %v3112 = vadd.f32 %v2898, %v3012
    %v3113 = vadd.f32 %v2899, %v2976
    %v3114 = vadd.f32 %v2900, %v2980
    %v3115 = vadd.f32 %v2901, %v2984
    %v3116 = vadd.f32 %v2902, %v2988
    %v3117 = vadd.f32 %v2903, %v2992
    %v3118 = vadd.f32 %v2904, %v2996
    %v3119 = vadd.f32 %v2905, %v3000
    %v3120 = vadd.f32 %v2906, %v3004
    %v3121 = vadd.f32 %v2907, %v3008
    %v3122 = vadd.f32 %v2908, %v3012
    %v3123 = vadd.f32 %v2909, %v2976
    %v3124 = vadd.f32 %v2910, %v2980
    %v3125 = vadd.f32 %v2911, %v2984
    %v3126 = vadd.f32 %v2912, %v2988
    %v3127 = vadd.f32 %v2913, %v2992
    %v3128 = vadd.f32 %v2914, %v2996
    %v3129 = vadd.f32 %v2915, %v3000
    %v3130 = vadd.f32 %v2916, %v3004
    %v3131 = vadd.f32 %v2917, %v3008
    %v3132 = vadd.f32 %v2918, %v3012
    %v3133 = vadd.f32 %v2919, %v2976
    %v3134 = vadd.f32 %v2920, %v2980
    %v3135 = vadd.f32 %v2921, %v2984
    %v3136 = vadd.f32 %v2922, %v2988
    %v3137 = vadd.f32 %v2923, %v2992
    %v3138 = vadd.f32 %v2924, %v2996
    %v3139 = vadd.f32 %v2925, %v3000
    %v3140 = vadd.f32 %v2926, %v3004
    %v3141 = vadd.f32 %v2927, %v3008
    %v3142 = vadd.f32 %v2928, %v3012
    %v3143 = vadd.f32 %v2929, %v2976
    %v3144 = vadd.f32 %v2930, %v2980
    %v3145 = vadd.f32 %v2931, %v2984
    %v3146 = vadd.f32 %v2932, %v2988
    %v3147 = vadd.f32 %v2933, %v2992
    %v3148 = vadd.f32 %v2934, %v2996
    %v3149 = vadd.f32 %v2935, %v3000
    %v3150 = vadd.f32 %v2936, %v3004
    %v3151 = vadd.f32 %v2937, %v3008
    %v3152 = vadd.f32 %v2938, %v3012
    %v3153 = vadd.f32 %v2939, %v2976
    %v3154 = vadd.f32 %v2940, %v2980
    %v3155 = vadd.f32 %v2941, %v2984
    %v3156 = vadd.f32 %v2942, %v2988
    %v3157 = vadd.f32 %v2943, %v2992
    %v3158 = vadd.f32 %v2944, %v2996
    %v3159 = vadd.f32 %v2945, %v3000
    %v3160 = vadd.f32 %v2946, %v3004
    %v3161 = vadd.f32 %v2947, %v3008
    %v3162 = vadd.f32 %v2948, %v3012
    %v3163 = vadd.f32 %v2949, %v2976
    %v3164 = vadd.f32 %v2950, %v2980
    %v3165 = vadd.f32 %v2951, %v2984
    %v3166 = vadd.f32 %v2952, %v2988
    %v3167 = vadd.f32 %v2953, %v2992
    %v3168 = vadd.f32 %v2954, %v2996
    %v3169 = vadd.f32 %v2955, %v3000
    %v3170 = vadd.f32 %v2956, %v3004
    %v3171 = vadd.f32 %v2957, %v3008
    %v3172 = vadd.f32 %v2958, %v3012
    %v3173 = vadd.f32 %v2959, %v2976
    %v3174 = vadd.f32 %v2960, %v2980
    %v3175 = vadd.f32 %v2961, %v2984
    %v3176 = vadd.f32 %v2962, %v2988
    %v3177 = vadd.f32 %v2963, %v2992
    %v3178 = vadd.f32 %v2964, %v2996
    %v3179 = vadd.f32 %v2965, %v3000
    %v3180 = vadd.f32 %v2966, %v3004
    %v3181 = vadd.f32 %v2967, %v3008
    %v3182 = vadd.f32 %v2968, %v3012
    %v3183 = vxor.u32 %v3023, 2147483648
    %v3184 = vxor.u32 %v3024, 2147483648
    %v3185 = vxor.u32 %v3025, 2147483648
    %v3186 = vxor.u32 %v3026, 2147483648
    %v3187 = vxor.u32 %v3027, 2147483648
    %v3188 = vxor.u32 %v3028, 2147483648
    %v3189 = vxor.u32 %v3029, 2147483648
    %v3190 = vxor.u32 %v3030, 2147483648
    %v3191 = vxor.u32 %v3031, 2147483648
    %v3192 = vxor.u32 %v3032, 2147483648
    %v3193 = vxor.u32 %v3033, 2147483648
    %v3194 = vxor.u32 %v3034, 2147483648
    %v3195 = vxor.u32 %v3035, 2147483648
    %v3196 = vxor.u32 %v3036, 2147483648
    %v3197 = vxor.u32 %v3037, 2147483648
    %v3198 = vxor.u32 %v3038, 2147483648
    %v3199 = vxor.u32 %v3039, 2147483648
    %v3200 = vxor.u32 %v3040, 2147483648
    %v3201 = vxor.u32 %v3041, 2147483648
    %v3202 = vxor.u32 %v3042, 2147483648
    %v3203 = vxor.u32 %v3043, 2147483648
    %v3204 = vxor.u32 %v3044, 2147483648
    %v3205 = vxor.u32 %v3045, 2147483648
    %v3206 = vxor.u32 %v3046, 2147483648
    %v3207 = vxor.u32 %v3047, 2147483648
    %v3208 = vxor.u32 %v3048, 2147483648
    %v3209 = vxor.u32 %v3049, 2147483648
    %v3210 = vxor.u32 %v3050, 2147483648
    %v3211 = vxor.u32 %v3051, 2147483648
    %v3212 = vxor.u32 %v3052, 2147483648
    %v3213 = vxor.u32 %v3053, 2147483648
    %v3214 = vxor.u32 %v3054, 2147483648
    %v3215 = vxor.u32 %v3055, 2147483648
    %v3216 = vxor.u32 %v3056, 2147483648
    %v3217 = vxor.u32 %v3057, 2147483648
    %v3218 = vxor.u32 %v3058, 2147483648
    %v3219 = vxor.u32 %v3059, 2147483648
    %v3220 = vxor.u32 %v3060, 2147483648
    %v3221 = vxor.u32 %v3061, 2147483648
    %v3222 = vxor.u32 %v3062, 2147483648
    %v3223 = vxor.u32 %v3063, 2147483648
    %v3224 = vxor.u32 %v3064, 2147483648
    %v3225 = vxor.u32 %v3065, 2147483648
    %v3226 = vxor.u32 %v3066, 2147483648
    %v3227 = vxor.u32 %v3067, 2147483648
    %v3228 = vxor.u32 %v3068, 2147483648
    %v3229 = vxor.u32 %v3069, 2147483648
    %v3230 = vxor.u32 %v3070, 2147483648
    %v3231 = vxor.u32 %v3071, 2147483648
    %v3232 = vxor.u32 %v3072, 2147483648
    %v3233 = vxor.u32 %v3073, 2147483648
    %v3234 = vxor.u32 %v3074, 2147483648
    %v3235 = vxor.u32 %v3075, 2147483648
    %v3236 = vxor.u32 %v3076, 2147483648
    %v3237 = vxor.u32 %v3077, 2147483648
    %v3238 = vxor.u32 %v3078, 2147483648
    %v3239 = vxor.u32 %v3079, 2147483648
    %v3240 = vxor.u32 %v3080, 2147483648
    %v3241 = vxor.u32 %v3081, 2147483648
    %v3242 = vxor.u32 %v3082, 2147483648
    %v3243 = vxor.u32 %v3083, 2147483648
    %v3244 = vxor.u32 %v3084, 2147483648
    %v3245 = vxor.u32 %v3085, 2147483648
    %v3246 = vxor.u32 %v3086, 2147483648
    %v3247 = vxor.u32 %v3087, 2147483648
    %v3248 = vxor.u32 %v3088, 2147483648
    %v3249 = vxor.u32 %v3089, 2147483648
    %v3250 = vxor.u32 %v3090, 2147483648
    %v3251 = vxor.u32 %v3091, 2147483648
    %v3252 = vxor.u32 %v3092, 2147483648
    %v3253 = vxor.u32 %v3093, 2147483648
    %v3254 = vxor.u32 %v3094, 2147483648
    %v3255 = vxor.u32 %v3095, 2147483648
    %v3256 = vxor.u32 %v3096, 2147483648
    %v3257 = vxor.u32 %v3097, 2147483648
    %v3258 = vxor.u32 %v3098, 2147483648
    %v3259 = vxor.u32 %v3099, 2147483648
    %v3260 = vxor.u32 %v3100, 2147483648
    %v3261 = vxor.u32 %v3101, 2147483648
    %v3262 = vxor.u32 %v3102, 2147483648
    %v3263 = vxor.u32 %v3103, 2147483648
    %v3264 = vxor.u32 %v3104, 2147483648
    %v3265 = vxor.u32 %v3105, 2147483648
    %v3266 = vxor.u32 %v3106, 2147483648
    %v3267 = vxor.u32 %v3107, 2147483648
    %v3268 = vxor.u32 %v3108, 2147483648
    %v3269 = vxor.u32 %v3109, 2147483648
    %v3270 = vxor.u32 %v3110, 2147483648
    %v3271 = vxor.u32 %v3111, 2147483648
    %v3272 = vxor.u32 %v3112, 2147483648
    %v3273 = vxor.u32 %v3113, 2147483648
    %v3274 = vxor.u32 %v3114, 2147483648
    %v3275 = vxor.u32 %v3115, 2147483648
    %v3276 = vxor.u32 %v3116, 2147483648
    %v3277 = vxor.u32 %v3117, 2147483648
    %v3278 = vxor.u32 %v3118, 2147483648
    %v3279 = vxor.u32 %v3119, 2147483648
    %v3280 = vxor.u32 %v3120, 2147483648
    %v3281 = vxor.u32 %v3121, 2147483648
    %v3282 = vxor.u32 %v3122, 2147483648
    %v3283 = vxor.u32 %v3123, 2147483648
    %v3284 = vxor.u32 %v3124, 2147483648
    %v3285 = vxor.u32 %v3125, 2147483648
    %v3286 = vxor.u32 %v3126, 2147483648
    %v3287 = vxor.u32 %v3127, 2147483648
    %v3288 = vxor.u32 %v3128, 2147483648
    %v3289 = vxor.u32 %v3129, 2147483648
    %v3290 = vxor.u32 %v3130, 2147483648
    %v3291 = vxor.u32 %v3131, 2147483648
    %v3292 = vxor.u32 %v3132, 2147483648
    %v3293 = vxor.u32 %v3133, 2147483648
    %v3294 = vxor.u32 %v3134, 2147483648
    %v3295 = vxor.u32 %v3135, 2147483648
    %v3296 = vxor.u32 %v3136, 2147483648
    %v3297 = vxor.u32 %v3137, 2147483648
    %v3298 = vxor.u32 %v3138, 2147483648
    %v3299 = vxor.u32 %v3139, 2147483648
    %v3300 = vxor.u32 %v3140, 2147483648
    %v3301 = vxor.u32 %v3141, 2147483648
    %v3302 = vxor.u32 %v3142, 2147483648
    %v3303 = vxor.u32 %v3143, 2147483648
    %v3304 = vxor.u32 %v3144, 2147483648
    %v3305 = vxor.u32 %v3145, 2147483648
    %v3306 = vxor.u32 %v3146, 2147483648
    %v3307 = vxor.u32 %v3147, 2147483648
    %v3308 = vxor.u32 %v3148, 2147483648
    %v3309 = vxor.u32 %v3149, 2147483648
    %v3310 = vxor.u32 %v3150, 2147483648
    %v3311 = vxor.u32 %v3151, 2147483648
    %v3312 = vxor.u32 %v3152, 2147483648
    %v3313 = vxor.u32 %v3153, 2147483648
    %v3314 = vxor.u32 %v3154, 2147483648
    %v3315 = vxor.u32 %v3155, 2147483648
    %v3316 = vxor.u32 %v3156, 2147483648
    %v3317 = vxor.u32 %v3157, 2147483648
    %v3318 = vxor.u32 %v3158, 2147483648
    %v3319 = vxor.u32 %v3159, 2147483648
    %v3320 = vxor.u32 %v3160, 2147483648
    %v3321 = vxor.u32 %v3161, 2147483648
    %v3322 = vxor.u32 %v3162, 2147483648
    %v3323 = vxor.u32 %v3163, 2147483648
    %v3324 = vxor.u32 %v3164, 2147483648
    %v3325 = vxor.u32 %v3165, 2147483648
    %v3326 = vxor.u32 %v3166, 2147483648
    %v3327 = vxor.u32 %v3167, 2147483648
    %v3328 = vxor.u32 %v3168, 2147483648
    %v3329 = vxor.u32 %v3169, 2147483648
    %v3330 = vxor.u32 %v3170, 2147483648
    %v3331 = vxor.u32 %v3171, 2147483648
    %v3332 = vxor.u32 %v3172, 2147483648
    %v3333 = vxor.u32 %v3173, 2147483648
    %v3334 = vxor.u32 %v3174, 2147483648
    %v3335 = vxor.u32 %v3175, 2147483648
    %v3336 = vxor.u32 %v3176, 2147483648
    %v3337 = vxor.u32 %v3177, 2147483648
    %v3338 = vxor.u32 %v3178, 2147483648
    %v3339 = vxor.u32 %v3179, 2147483648
    %v3340 = vxor.u32 %v3180, 2147483648
    %v3341 = vxor.u32 %v3181, 2147483648
    %v3342 = vxor.u32 %v3182, 2147483648
    %v3343 = vmul.f32 %v3183, 1.442695
    %v3344 = vpow.pop %v3343
    %v3345 = vmul.f32 %v3184, 1.442695
    %v3346 = vpow.pop %v3345
    %v3347 = vmul.f32 %v3185, 1.442695
    %v3348 = vpow.pop %v3347
    %v3349 = vmul.f32 %v3186, 1.442695
    %v3350 = vpow.pop %v3349
    %v3351 = vmul.f32 %v3187, 1.442695
    %v3352 = vpow.pop %v3351
    %v3353 = vmul.f32 %v3188, 1.442695
    %v3354 = vpow.pop %v3353
    %v3355 = vmul.f32 %v3189, 1.442695
    %v3356 = vpow.pop %v3355
    %v3357 = vmul.f32 %v3190, 1.442695
    %v3358 = vpow.pop %v3357
    %v3359 = vmul.f32 %v3191, 1.442695
    %v3360 = vpow.pop %v3359
    %v3361 = vmul.f32 %v3192, 1.442695
    %v3362 = vpow.pop %v3361
    %v3363 = vmul.f32 %v3193, 1.442695
    %v3364 = vpow.pop %v3363
    %v3365 = vmul.f32 %v3194, 1.442695
    %v3366 = vpow.pop %v3365
    %v3367 = vmul.f32 %v3195, 1.442695
    %v3368 = vpow.pop %v3367
    %v3369 = vmul.f32 %v3196, 1.442695
    %v3370 = vpow.pop %v3369
    %v3371 = vmul.f32 %v3197, 1.442695
    %v3372 = vpow.pop %v3371
    %v3373 = vmul.f32 %v3198, 1.442695
    %v3374 = vpow.pop %v3373
    %v3375 = vmul.f32 %v3199, 1.442695
    %v3376 = vpow.pop %v3375
    %v3377 = vmul.f32 %v3200, 1.442695
    %v3378 = vpow.pop %v3377
    %v3379 = vmul.f32 %v3201, 1.442695
    %v3380 = vpow.pop %v3379
    %v3381 = vmul.f32 %v3202, 1.442695
    %v3382 = vpow.pop %v3381
    %v3383 = vmul.f32 %v3203, 1.442695
    %v3384 = vpow.pop %v3383
    %v3385 = vmul.f32 %v3204, 1.442695
    %v3386 = vpow.pop %v3385
    %v3387 = vmul.f32 %v3205, 1.442695
    %v3388 = vpow.pop %v3387
    %v3389 = vmul.f32 %v3206, 1.442695
    %v3390 = vpow.pop %v3389
    %v3391 = vmul.f32 %v3207, 1.442695
    %v3392 = vpow.pop %v3391
    %v3393 = vmul.f32 %v3208, 1.442695
    %v3394 = vpow.pop %v3393
    %v3395 = vmul.f32 %v3209, 1.442695
    %v3396 = vpow.pop %v3395
    %v3397 = vmul.f32 %v3210, 1.442695
    %v3398 = vpow.pop %v3397
    %v3399 = vmul.f32 %v3211, 1.442695
    %v3400 = vpow.pop %v3399
    %v3401 = vmul.f32 %v3212, 1.442695
    %v3402 = vpow.pop %v3401
    %v3403 = vmul.f32 %v3213, 1.442695
    %v3404 = vpow.pop %v3403
    %v3405 = vmul.f32 %v3214, 1.442695
    %v3406 = vpow.pop %v3405
    %v3407 = vmul.f32 %v3215, 1.442695
    %v3408 = vpow.pop %v3407
    %v3409 = vmul.f32 %v3216, 1.442695
    %v3410 = vpow.pop %v3409
    %v3411 = vmul.f32 %v3217, 1.442695
    %v3412 = vpow.pop %v3411
    %v3413 = vmul.f32 %v3218, 1.442695
    %v3414 = vpow.pop %v3413
    %v3415 = vmul.f32 %v3219, 1.442695
    %v3416 = vpow.pop %v3415
    %v3417 = vmul.f32 %v3220, 1.442695
    %v3418 = vpow.pop %v3417
    %v3419 = vmul.f32 %v3221, 1.442695
    %v3420 = vpow.pop %v3419
    %v3421 = vmul.f32 %v3222, 1.442695
    %v3422 = vpow.pop %v3421
    %v3423 = vmul.f32 %v3223, 1.442695
    %v3424 = vpow.pop %v3423
    %v3425 = vmul.f32 %v3224, 1.442695
    %v3426 = vpow.pop %v3425
    %v3427 = vmul.f32 %v3225, 1.442695
    %v3428 = vpow.pop %v3427
    %v3429 = vmul.f32 %v3226, 1.442695
    %v3430 = vpow.pop %v3429
    %v3431 = vmul.f32 %v3227, 1.442695
    %v3432 = vpow.pop %v3431
    %v3433 = vmul.f32 %v3228, 1.442695
    %v3434 = vpow.pop %v3433
    %v3435 = vmul.f32 %v3229, 1.442695
    %v3436 = vpow.pop %v3435
    %v3437 = vmul.f32 %v3230, 1.442695
    %v3438 = vpow.pop %v3437
    %v3439 = vmul.f32 %v3231, 1.442695
    %v3440 = vpow.pop %v3439
    %v3441 = vmul.f32 %v3232, 1.442695
    %v3442 = vpow.pop %v3441
    %v3443 = vmul.f32 %v3233, 1.442695
    %v3444 = vpow.pop %v3443
    %v3445 = vmul.f32 %v3234, 1.442695
    %v3446 = vpow.pop %v3445
    %v3447 = vmul.f32 %v3235, 1.442695
    %v3448 = vpow.pop %v3447
    %v3449 = vmul.f32 %v3236, 1.442695
    %v3450 = vpow.pop %v3449
    %v3451 = vmul.f32 %v3237, 1.442695
    %v3452 = vpow.pop %v3451
    %v3453 = vmul.f32 %v3238, 1.442695
    %v3454 = vpow.pop %v3453
    %v3455 = vmul.f32 %v3239, 1.442695
    %v3456 = vpow.pop %v3455
    %v3457 = vmul.f32 %v3240, 1.442695
    %v3458 = vpow.pop %v3457
    %v3459 = vmul.f32 %v3241, 1.442695
    %v3460 = vpow.pop %v3459
    %v3461 = vmul.f32 %v3242, 1.442695
    %v3462 = vpow.pop %v3461
    %v3463 = vmul.f32 %v3243, 1.442695
    %v3464 = vpow.pop %v3463
    %v3465 = vmul.f32 %v3244, 1.442695
    %v3466 = vpow.pop %v3465
    %v3467 = vmul.f32 %v3245, 1.442695
    %v3468 = vpow.pop %v3467
    %v3469 = vmul.f32 %v3246, 1.442695
    %v3470 = vpow.pop %v3469
    %v3471 = vmul.f32 %v3247, 1.442695
    %v3472 = vpow.pop %v3471
    %v3473 = vmul.f32 %v3248, 1.442695
    %v3474 = vpow.pop %v3473
    %v3475 = vmul.f32 %v3249, 1.442695
    %v3476 = vpow.pop %v3475
    %v3477 = vmul.f32 %v3250, 1.442695
    %v3478 = vpow.pop %v3477
    %v3479 = vmul.f32 %v3251, 1.442695
    %v3480 = vpow.pop %v3479
    %v3481 = vmul.f32 %v3252, 1.442695
    %v3482 = vpow.pop %v3481
    %v3483 = vmul.f32 %v3253, 1.442695
    %v3484 = vpow.pop %v3483
    %v3485 = vmul.f32 %v3254, 1.442695
    %v3486 = vpow.pop %v3485
    %v3487 = vmul.f32 %v3255, 1.442695
    %v3488 = vpow.pop %v3487
    %v3489 = vmul.f32 %v3256, 1.442695
    %v3490 = vpow.pop %v3489
    %v3491 = vmul.f32 %v3257, 1.442695
    %v3492 = vpow.pop %v3491
    %v3493 = vmul.f32 %v3258, 1.442695
    %v3494 = vpow.pop %v3493
    %v3495 = vmul.f32 %v3259, 1.442695
    %v3496 = vpow.pop %v3495
    %v3497 = vmul.f32 %v3260, 1.442695
    %v3498 = vpow.pop %v3497
    %v3499 = vmul.f32 %v3261, 1.442695
    %v3500 = vpow.pop %v3499
    %v3501 = vmul.f32 %v3262, 1.442695
    %v3502 = vpow.pop %v3501
    %v3503 = vmul.f32 %v3263, 1.442695
    %v3504 = vpow.pop %v3503
    %v3505 = vmul.f32 %v3264, 1.442695
    %v3506 = vpow.pop %v3505
    %v3507 = vmul.f32 %v3265, 1.442695
    %v3508 = vpow.pop %v3507
    %v3509 = vmul.f32 %v3266, 1.442695
    %v3510 = vpow.pop %v3509
    %v3511 = vmul.f32 %v3267, 1.442695
    %v3512 = vpow.pop %v3511
    %v3513 = vmul.f32 %v3268, 1.442695
    %v3514 = vpow.pop %v3513
    %v3515 = vmul.f32 %v3269, 1.442695
    %v3516 = vpow.pop %v3515
    %v3517 = vmul.f32 %v3270, 1.442695
    %v3518 = vpow.pop %v3517
    %v3519 = vmul.f32 %v3271, 1.442695
    %v3520 = vpow.pop %v3519
    %v3521 = vmul.f32 %v3272, 1.442695
    %v3522 = vpow.pop %v3521
    %v3523 = vmul.f32 %v3273, 1.442695
    %v3524 = vpow.pop %v3523
    %v3525 = vmul.f32 %v3274, 1.442695
    %v3526 = vpow.pop %v3525
    %v3527 = vmul.f32 %v3275, 1.442695
    %v3528 = vpow.pop %v3527
    %v3529 = vmul.f32 %v3276, 1.442695
    %v3530 = vpow.pop %v3529
    %v3531 = vmul.f32 %v3277, 1.442695
    %v3532 = vpow.pop %v3531
    %v3533 = vmul.f32 %v3278, 1.442695
    %v3534 = vpow.pop %v3533
    %v3535 = vmul.f32 %v3279, 1.442695
    %v3536 = vpow.pop %v3535
    %v3537 = vmul.f32 %v3280, 1.442695
    %v3538 = vpow.pop %v3537
    %v3539 = vmul.f32 %v3281, 1.442695
    %v3540 = vpow.pop %v3539
    %v3541 = vmul.f32 %v3282, 1.442695
    %v3542 = vpow.pop %v3541
    %v3543 = vmul.f32 %v3283, 1.442695
    %v3544 = vpow.pop %v3543
    %v3545 = vmul.f32 %v3284, 1.442695
    %v3546 = vpow.pop %v3545
    %v3547 = vmul.f32 %v3285, 1.442695
    %v3548 = vpow.pop %v3547
    %v3549 = vmul.f32 %v3286, 1.442695
    %v3550 = vpow.pop %v3549
    %v3551 = vmul.f32 %v3287, 1.442695
    %v3552 = vpow.pop %v3551
    %v3553 = vmul.f32 %v3288, 1.442695
    %v3554 = vpow.pop %v3553
    %v3555 = vmul.f32 %v3289, 1.442695
    %v3556 = vpow.pop %v3555
    %v3557 = vmul.f32 %v3290, 1.442695
    %v3558 = vpow.pop %v3557
    %v3559 = vmul.f32 %v3291, 1.442695
    %v3560 = vpow.pop %v3559
    %v3561 = vmul.f32 %v3292, 1.442695
    %v3562 = vpow.pop %v3561
    %v3563 = vmul.f32 %v3293, 1.442695
    %v3564 = vpow.pop %v3563
    %v3565 = vmul.f32 %v3294, 1.442695
    %v3566 = vpow.pop %v3565
    %v3567 = vmul.f32 %v3295, 1.442695
    %v3568 = vpow.pop %v3567
    %v3569 = vmul.f32 %v3296, 1.442695
    %v3570 = vpow.pop %v3569
    %v3571 = vmul.f32 %v3297, 1.442695
    %v3572 = vpow.pop %v3571
    %v3573 = vmul.f32 %v3298, 1.442695
    %v3574 = vpow.pop %v3573
    %v3575 = vmul.f32 %v3299, 1.442695
    %v3576 = vpow.pop %v3575
    %v3577 = vmul.f32 %v3300, 1.442695
    %v3578 = vpow.pop %v3577
    %v3579 = vmul.f32 %v3301, 1.442695
    %v3580 = vpow.pop %v3579
    %v3581 = vmul.f32 %v3302, 1.442695
    %v3582 = vpow.pop %v3581
    %v3583 = vmul.f32 %v3303, 1.442695
    %v3584 = vpow.pop %v3583
    %v3585 = vmul.f32 %v3304, 1.442695
    %v3586 = vpow.pop %v3585
    %v3587 = vmul.f32 %v3305, 1.442695
    %v3588 = vpow.pop %v3587
    %v3589 = vmul.f32 %v3306, 1.442695
    %v3590 = vpow.pop %v3589
    %v3591 = vmul.f32 %v3307, 1.442695
    %v3592 = vpow.pop %v3591
    %v3593 = vmul.f32 %v3308, 1.442695
    %v3594 = vpow.pop %v3593
    %v3595 = vmul.f32 %v3309, 1.442695
    %v3596 = vpow.pop %v3595
    %v3597 = vmul.f32 %v3310, 1.442695
    %v3598 = vpow.pop %v3597
    %v3599 = vmul.f32 %v3311, 1.442695
    %v3600 = vpow.pop %v3599
    %v3601 = vmul.f32 %v3312, 1.442695
    %v3602 = vpow.pop %v3601
    %v3603 = vmul.f32 %v3313, 1.442695
    %v3604 = vpow.pop %v3603
    %v3605 = vmul.f32 %v3314, 1.442695
    %v3606 = vpow.pop %v3605
    %v3607 = vmul.f32 %v3315, 1.442695
    %v3608 = vpow.pop %v3607
    %v3609 = vmul.f32 %v3316, 1.442695
    %v3610 = vpow.pop %v3609
    %v3611 = vmul.f32 %v3317, 1.442695
    %v3612 = vpow.pop %v3611
    %v3613 = vmul.f32 %v3318, 1.442695
    %v3614 = vpow.pop %v3613
    %v3615 = vmul.f32 %v3319, 1.442695
    %v3616 = vpow.pop %v3615
    %v3617 = vmul.f32 %v3320, 1.442695
    %v3618 = vpow.pop %v3617
    %v3619 = vmul.f32 %v3321, 1.442695
    %v3620 = vpow.pop %v3619
    %v3621 = vmul.f32 %v3322, 1.442695
    %v3622 = vpow.pop %v3621
    %v3623 = vmul.f32 %v3323, 1.442695
    %v3624 = vpow.pop %v3623
    %v3625 = vmul.f32 %v3324, 1.442695
    %v3626 = vpow.pop %v3625
    %v3627 = vmul.f32 %v3325, 1.442695
    %v3628 = vpow.pop %v3627
    %v3629 = vmul.f32 %v3326, 1.442695
    %v3630 = vpow.pop %v3629
    %v3631 = vmul.f32 %v3327, 1.442695
    %v3632 = vpow.pop %v3631
    %v3633 = vmul.f32 %v3328, 1.442695
    %v3634 = vpow.pop %v3633
    %v3635 = vmul.f32 %v3329, 1.442695
    %v3636 = vpow.pop %v3635
    %v3637 = vmul.f32 %v3330, 1.442695
    %v3638 = vpow.pop %v3637
    %v3639 = vmul.f32 %v3331, 1.442695
    %v3640 = vpow.pop %v3639
    %v3641 = vmul.f32 %v3332, 1.442695
    %v3642 = vpow.pop %v3641
    %v3643 = vmul.f32 %v3333, 1.442695
    %v3644 = vpow.pop %v3643
    %v3645 = vmul.f32 %v3334, 1.442695
    %v3646 = vpow.pop %v3645
    %v3647 = vmul.f32 %v3335, 1.442695
    %v3648 = vpow.pop %v3647
    %v3649 = vmul.f32 %v3336, 1.442695
    %v3650 = vpow.pop %v3649
    %v3651 = vmul.f32 %v3337, 1.442695
    %v3652 = vpow.pop %v3651
    %v3653 = vmul.f32 %v3338, 1.442695
    %v3654 = vpow.pop %v3653
    %v3655 = vmul.f32 %v3339, 1.442695
    %v3656 = vpow.pop %v3655
    %v3657 = vmul.f32 %v3340, 1.442695
    %v3658 = vpow.pop %v3657
    %v3659 = vmul.f32 %v3341, 1.442695
    %v3660 = vpow.pop %v3659
    %v3661 = vmul.f32 %v3342, 1.442695
    %v3662 = vpow.pop %v3661
    %v3663 = vadd.f32 %v3344, 1.0
    %v3664 = vadd.f32 %v3346, 1.0
    %v3665 = vadd.f32 %v3348, 1.0
    %v3666 = vadd.f32 %v3350, 1.0
    %v3667 = vadd.f32 %v3352, 1.0
    %v3668 = vadd.f32 %v3354, 1.0
    %v3669 = vadd.f32 %v3356, 1.0
    %v3670 = vadd.f32 %v3358, 1.0
    %v3671 = vadd.f32 %v3360, 1.0
    %v3672 = vadd.f32 %v3362, 1.0
    %v3673 = vadd.f32 %v3364, 1.0
    %v3674 = vadd.f32 %v3366, 1.0
    %v3675 = vadd.f32 %v3368, 1.0
    %v3676 = vadd.f32 %v3370, 1.0
    %v3677 = vadd.f32 %v3372, 1.0
    %v3678 = vadd.f32 %v3374, 1.0
    %v3679 = vadd.f32 %v3376, 1.0
    %v3680 = vadd.f32 %v3378, 1.0
    %v3681 = vadd.f32 %v3380, 1.0
    %v3682 = vadd.f32 %v3382, 1.0
    %v3683 = vadd.f32 %v3384, 1.0
    %v3684 = vadd.f32 %v3386, 1.0
    %v3685 = vadd.f32 %v3388, 1.0
    %v3686 = vadd.f32 %v3390, 1.0
    %v3687 = vadd.f32 %v3392, 1.0
    %v3688 = vadd.f32 %v3394, 1.0
    %v3689 = vadd.f32 %v3396, 1.0
    %v3690 = vadd.f32 %v3398, 1.0
    %v3691 = vadd.f32 %v3400, 1.0
    %v3692 = vadd.f32 %v3402, 1.0
    %v3693 = vadd.f32 %v3404, 1.0
    %v3694 = vadd.f32 %v3406, 1.0
    %v3695 = vadd.f32 %v3408, 1.0
    %v3696 = vadd.f32 %v3410, 1.0
    %v3697 = vadd.f32 %v3412, 1.0
    %v3698 = vadd.f32 %v3414, 1.0
    %v3699 = vadd.f32 %v3416, 1.0
    %v3700 = vadd.f32 %v3418, 1.0
    %v3701 = vadd.f32 %v3420, 1.0
    %v3702 = vadd.f32 %v3422, 1.0
    %v3703 = vadd.f32 %v3424, 1.0
    %v3704 = vadd.f32 %v3426, 1.0
    %v3705 = vadd.f32 %v3428, 1.0
    %v3706 = vadd.f32 %v3430, 1.0
    %v3707 = vadd.f32 %v3432, 1.0
    %v3708 = vadd.f32 %v3434, 1.0
    %v3709 = vadd.f32 %v3436, 1.0
    %v3710 = vadd.f32 %v3438, 1.0
    %v3711 = vadd.f32 %v3440, 1.0
    %v3712 = vadd.f32 %v3442, 1.0
    %v3713 = vadd.f32 %v3444, 1.0
    %v3714 = vadd.f32 %v3446, 1.0
    %v3715 = vadd.f32 %v3448, 1.0
    %v3716 = vadd.f32 %v3450, 1.0
    %v3717 = vadd.f32 %v3452, 1.0
    %v3718 = vadd.f32 %v3454, 1.0
    %v3719 = vadd.f32 %v3456, 1.0
    %v3720 = vadd.f32 %v3458, 1.0
    %v3721 = vadd.f32 %v3460, 1.0
    %v3722 = vadd.f32 %v3462, 1.0
    %v3723 = vadd.f32 %v3464, 1.0
    %v3724 = vadd.f32 %v3466, 1.0
    %v3725 = vadd.f32 %v3468, 1.0
    %v3726 = vadd.f32 %v3470, 1.0
    %v3727 = vadd.f32 %v3472, 1.0
    %v3728 = vadd.f32 %v3474, 1.0
    %v3729 = vadd.f32 %v3476, 1.0
    %v3730 = vadd.f32 %v3478, 1.0
    %v3731 = vadd.f32 %v3480, 1.0
    %v3732 = vadd.f32 %v3482, 1.0
    %v3733 = vadd.f32 %v3484, 1.0
    %v3734 = vadd.f32 %v3486, 1.0
    %v3735 = vadd.f32 %v3488, 1.0
    %v3736 = vadd.f32 %v3490, 1.0
    %v3737 = vadd.f32 %v3492, 1.0
    %v3738 = vadd.f32 %v3494, 1.0
    %v3739 = vadd.f32 %v3496, 1.0
    %v3740 = vadd.f32 %v3498, 1.0
    %v3741 = vadd.f32 %v3500, 1.0
    %v3742 = vadd.f32 %v3502, 1.0
    %v3743 = vadd.f32 %v3504, 1.0
    %v3744 = vadd.f32 %v3506, 1.0
    %v3745 = vadd.f32 %v3508, 1.0
    %v3746 = vadd.f32 %v3510, 1.0
    %v3747 = vadd.f32 %v3512, 1.0
    %v3748 = vadd.f32 %v3514, 1.0
    %v3749 = vadd.f32 %v3516, 1.0
    %v3750 = vadd.f32 %v3518, 1.0
    %v3751 = vadd.f32 %v3520, 1.0
    %v3752 = vadd.f32 %v3522, 1.0
    %v3753 = vadd.f32 %v3524, 1.0
    %v3754 = vadd.f32 %v3526, 1.0
    %v3755 = vadd.f32 %v3528, 1.0
    %v3756 = vadd.f32 %v3530, 1.0
    %v3757 = vadd.f32 %v3532, 1.0
    %v3758 = vadd.f32 %v3534, 1.0
    %v3759 = vadd.f32 %v3536, 1.0
    %v3760 = vadd.f32 %v3538, 1.0
    %v3761 = vadd.f32 %v3540, 1.0
    %v3762 = vadd.f32 %v3542, 1.0
    %v3763 = vadd.f32 %v3544, 1.0
    %v3764 = vadd.f32 %v3546, 1.0
    %v3765 = vadd.f32 %v3548, 1.0
    %v3766 = vadd.f32 %v3550, 1.0
    %v3767 = vadd.f32 %v3552, 1.0
    %v3768 = vadd.f32 %v3554, 1.0
    %v3769 = vadd.f32 %v3556, 1.0
    %v3770 = vadd.f32 %v3558, 1.0
    %v3771 = vadd.f32 %v3560, 1.0
    %v3772 = vadd.f32 %v3562, 1.0
    %v3773 = vadd.f32 %v3564, 1.0
    %v3774 = vadd.f32 %v3566, 1.0
    %v3775 = vadd.f32 %v3568, 1.0
    %v3776 = vadd.f32 %v3570, 1.0
    %v3777 = vadd.f32 %v3572, 1.0
    %v3778 = vadd.f32 %v3574, 1.0
    %v3779 = vadd.f32 %v3576, 1.0
    %v3780 = vadd.f32 %v3578, 1.0
    %v3781 = vadd.f32 %v3580, 1.0
    %v3782 = vadd.f32 %v3582, 1.0
    %v3783 = vadd.f32 %v3584, 1.0
    %v3784 = vadd.f32 %v3586, 1.0
    %v3785 = vadd.f32 %v3588, 1.0
    %v3786 = vadd.f32 %v3590, 1.0
    %v3787 = vadd.f32 %v3592, 1.0
    %v3788 = vadd.f32 %v3594, 1.0
    %v3789 = vadd.f32 %v3596, 1.0
    %v3790 = vadd.f32 %v3598, 1.0
    %v3791 = vadd.f32 %v3600, 1.0
    %v3792 = vadd.f32 %v3602, 1.0
    %v3793 = vadd.f32 %v3604, 1.0
    %v3794 = vadd.f32 %v3606, 1.0
    %v3795 = vadd.f32 %v3608, 1.0
    %v3796 = vadd.f32 %v3610, 1.0
    %v3797 = vadd.f32 %v3612, 1.0
    %v3798 = vadd.f32 %v3614, 1.0
    %v3799 = vadd.f32 %v3616, 1.0
    %v3800 = vadd.f32 %v3618, 1.0
    %v3801 = vadd.f32 %v3620, 1.0
    %v3802 = vadd.f32 %v3622, 1.0
    %v3803 = vadd.f32 %v3624, 1.0
    %v3804 = vadd.f32 %v3626, 1.0
    %v3805 = vadd.f32 %v3628, 1.0
    %v3806 = vadd.f32 %v3630, 1.0
    %v3807 = vadd.f32 %v3632, 1.0
    %v3808 = vadd.f32 %v3634, 1.0
    %v3809 = vadd.f32 %v3636, 1.0
    %v3810 = vadd.f32 %v3638, 1.0
    %v3811 = vadd.f32 %v3640, 1.0
    %v3812 = vadd.f32 %v3642, 1.0
    %v3813 = vadd.f32 %v3644, 1.0
    %v3814 = vadd.f32 %v3646, 1.0
    %v3815 = vadd.f32 %v3648, 1.0
    %v3816 = vadd.f32 %v3650, 1.0
    %v3817 = vadd.f32 %v3652, 1.0
    %v3818 = vadd.f32 %v3654, 1.0
    %v3819 = vadd.f32 %v3656, 1.0
    %v3820 = vadd.f32 %v3658, 1.0
    %v3821 = vadd.f32 %v3660, 1.0
    %v3822 = vadd.f32 %v3662, 1.0
    %v3823 = vrcp.pop %v3663
    %v3824 = vmul.f32 1.0, %v3823
    %v3825 = vrcp.pop %v3664
    %v3826 = vmul.f32 1.0, %v3825
    %v3827 = vrcp.pop %v3665
    %v3828 = vmul.f32 1.0, %v3827
    %v3829 = vrcp.pop %v3666
    %v3830 = vmul.f32 1.0, %v3829
    %v3831 = vrcp.pop %v3667
    %v3832 = vmul.f32 1.0, %v3831
    %v3833 = vrcp.pop %v3668
    %v3834 = vmul.f32 1.0, %v3833
    %v3835 = vrcp.pop %v3669
    %v3836 = vmul.f32 1.0, %v3835
    %v3837 = vrcp.pop %v3670
    %v3838 = vmul.f32 1.0, %v3837
    %v3839 = vrcp.pop %v3671
    %v3840 = vmul.f32 1.0, %v3839
    %v3841 = vrcp.pop %v3672
    %v3842 = vmul.f32 1.0, %v3841
    %v3843 = vrcp.pop %v3673
    %v3844 = vmul.f32 1.0, %v3843
    %v3845 = vrcp.pop %v3674
    %v3846 = vmul.f32 1.0, %v3845
    %v3847 = vrcp.pop %v3675
    %v3848 = vmul.f32 1.0, %v3847
    %v3849 = vrcp.pop %v3676
    %v3850 = vmul.f32 1.0, %v3849
    %v3851 = vrcp.pop %v3677
    %v3852 = vmul.f32 1.0, %v3851
    %v3853 = vrcp.pop %v3678
    %v3854 = vmul.f32 1.0, %v3853
    %v3855 = vrcp.pop %v3679
    %v3856 = vmul.f32 1.0, %v3855
    %v3857 = vrcp.pop %v3680
    %v3858 = vmul.f32 1.0, %v3857
    %v3859 = vrcp.pop %v3681
    %v3860 = vmul.f32 1.0, %v3859
    %v3861 = vrcp.pop %v3682
    %v3862 = vmul.f32 1.0, %v3861
    %v3863 = vrcp.pop %v3683
    %v3864 = vmul.f32 1.0, %v3863
    %v3865 = vrcp.pop %v3684
    %v3866 = vmul.f32 1.0, %v3865
    %v3867 = vrcp.pop %v3685
    %v3868 = vmul.f32 1.0, %v3867
    %v3869 = vrcp.pop %v3686
    %v3870 = vmul.f32 1.0, %v3869
    %v3871 = vrcp.pop %v3687
    %v3872 = vmul.f32 1.0, %v3871
    %v3873 = vrcp.pop %v3688
    %v3874 = vmul.f32 1.0, %v3873
    %v3875 = vrcp.pop %v3689
    %v3876 = vmul.f32 1.0, %v3875
    %v3877 = vrcp.pop %v3690
    %v3878 = vmul.f32 1.0, %v3877
    %v3879 = vrcp.pop %v3691
    %v3880 = vmul.f32 1.0, %v3879
    %v3881 = vrcp.pop %v3692
    %v3882 = vmul.f32 1.0, %v3881
    %v3883 = vrcp.pop %v3693
    %v3884 = vmul.f32 1.0, %v3883
    %v3885 = vrcp.pop %v3694
    %v3886 = vmul.f32 1.0, %v3885
    %v3887 = vrcp.pop %v3695
    %v3888 = vmul.f32 1.0, %v3887
    %v3889 = vrcp.pop %v3696
    %v3890 = vmul.f32 1.0, %v3889
    %v3891 = vrcp.pop %v3697
    %v3892 = vmul.f32 1.0, %v3891
    %v3893 = vrcp.pop %v3698
    %v3894 = vmul.f32 1.0, %v3893
    %v3895 = vrcp.pop %v3699
    %v3896 = vmul.f32 1.0, %v3895
    %v3897 = vrcp.pop %v3700
    %v3898 = vmul.f32 1.0, %v3897
    %v3899 = vrcp.pop %v3701
    %v3900 = vmul.f32 1.0, %v3899
    %v3901 = vrcp.pop %v3702
    %v3902 = vmul.f32 1.0, %v3901
    %v3903 = vrcp.pop %v3703
    %v3904 = vmul.f32 1.0, %v3903
    %v3905 = vrcp.pop %v3704
    %v3906 = vmul.f32 1.0, %v3905
    %v3907 = vrcp.pop %v3705
    %v3908 = vmul.f32 1.0, %v3907
    %v3909 = vrcp.pop %v3706
    %v3910 = vmul.f32 1.0, %v3909
    %v3911 = vrcp.pop %v3707
    %v3912 = vmul.f32 1.0, %v3911
    %v3913 = vrcp.pop %v3708
    %v3914 = vmul.f32 1.0, %v3913
    %v3915 = vrcp.pop %v3709
    %v3916 = vmul.f32 1.0, %v3915
    %v3917 = vrcp.pop %v3710
    %v3918 = vmul.f32 1.0, %v3917
    %v3919 = vrcp.pop %v3711
    %v3920 = vmul.f32 1.0, %v3919
    %v3921 = vrcp.pop %v3712
    %v3922 = vmul.f32 1.0, %v3921
    %v3923 = vrcp.pop %v3713
    %v3924 = vmul.f32 1.0, %v3923
    %v3925 = vrcp.pop %v3714
    %v3926 = vmul.f32 1.0, %v3925
    %v3927 = vrcp.pop %v3715
    %v3928 = vmul.f32 1.0, %v3927
    %v3929 = vrcp.pop %v3716
    %v3930 = vmul.f32 1.0, %v3929
    %v3931 = vrcp.pop %v3717
    %v3932 = vmul.f32 1.0, %v3931
    %v3933 = vrcp.pop %v3718
    %v3934 = vmul.f32 1.0, %v3933
    %v3935 = vrcp.pop %v3719
    %v3936 = vmul.f32 1.0, %v3935
    %v3937 = vrcp.pop %v3720
    %v3938 = vmul.f32 1.0, %v3937
    %v3939 = vrcp.pop %v3721
    %v3940 = vmul.f32 1.0, %v3939
    %v3941 = vrcp.pop %v3722
    %v3942 = vmul.f32 1.0, %v3941
    %v3943 = vrcp.pop %v3723
    %v3944 = vmul.f32 1.0, %v3943
    %v3945 = vrcp.pop %v3724
    %v3946 = vmul.f32 1.0, %v3945
    %v3947 = vrcp.pop %v3725
    %v3948 = vmul.f32 1.0, %v3947
    %v3949 = vrcp.pop %v3726
    %v3950 = vmul.f32 1.0, %v3949
    %v3951 = vrcp.pop %v3727
    %v3952 = vmul.f32 1.0, %v3951
    %v3953 = vrcp.pop %v3728
    %v3954 = vmul.f32 1.0, %v3953
    %v3955 = vrcp.pop %v3729
    %v3956 = vmul.f32 1.0, %v3955
    %v3957 = vrcp.pop %v3730
    %v3958 = vmul.f32 1.0, %v3957
    %v3959 = vrcp.pop %v3731
    %v3960 = vmul.f32 1.0, %v3959
    %v3961 = vrcp.pop %v3732
    %v3962 = vmul.f32 1.0, %v3961
    %v3963 = vrcp.pop %v3733
    %v3964 = vmul.f32 1.0, %v3963
    %v3965 = vrcp.pop %v3734
    %v3966 = vmul.f32 1.0, %v3965
    %v3967 = vrcp.pop %v3735
    %v3968 = vmul.f32 1.0, %v3967
    %v3969 = vrcp.pop %v3736
    %v3970 = vmul.f32 1.0, %v3969
    %v3971 = vrcp.pop %v3737
    %v3972 = vmul.f32 1.0, %v3971
    %v3973 = vrcp.pop %v3738
    %v3974 = vmul.f32 1.0, %v3973
    %v3975 = vrcp.pop %v3739
    %v3976 = vmul.f32 1.0, %v3975
    %v3977 = vrcp.pop %v3740
    %v3978 = vmul.f32 1.0, %v3977
    %v3979 = vrcp.pop %v3741
    %v3980 = vmul.f32 1.0, %v3979
    %v3981 = vrcp.pop %v3742
    %v3982 = vmul.f32 1.0, %v3981
    %v3983 = vrcp.pop %v3743
    %v3984 = vmul.f32 1.0, %v3983
    %v3985 = vrcp.pop %v3744
    %v3986 = vmul.f32 1.0, %v3985
    %v3987 = vrcp.pop %v3745
    %v3988 = vmul.f32 1.0, %v3987
    %v3989 = vrcp.pop %v3746
    %v3990 = vmul.f32 1.0, %v3989
    %v3991 = vrcp.pop %v3747
    %v3992 = vmul.f32 1.0, %v3991
    %v3993 = vrcp.pop %v3748
    %v3994 = vmul.f32 1.0, %v3993
    %v3995 = vrcp.pop %v3749
    %v3996 = vmul.f32 1.0, %v3995
    %v3997 = vrcp.pop %v3750
    %v3998 = vmul.f32 1.0, %v3997
    %v3999 = vrcp.pop %v3751
    %v4000 = vmul.f32 1.0, %v3999
    %v4001 = vrcp.pop %v3752
    %v4002 = vmul.f32 1.0, %v4001
    %v4003 = vrcp.pop %v3753
    %v4004 = vmul.f32 1.0, %v4003
    %v4005 = vrcp.pop %v3754
    %v4006 = vmul.f32 1.0, %v4005
    %v4007 = vrcp.pop %v3755
    %v4008 = vmul.f32 1.0, %v4007
    %v4009 = vrcp.pop %v3756
    %v4010 = vmul.f32 1.0, %v4009
    %v4011 = vrcp.pop %v3757
    %v4012 = vmul.f32 1.0, %v4011
    %v4013 = vrcp.pop %v3758
    %v4014 = vmul.f32 1.0, %v4013
    %v4015 = vrcp.pop %v3759
    %v4016 = vmul.f32 1.0, %v4015
    %v4017 = vrcp.pop %v3760
    %v4018 = vmul.f32 1.0, %v4017
    %v4019 = vrcp.pop %v3761
    %v4020 = vmul.f32 1.0, %v4019
    %v4021 = vrcp.pop %v3762
    %v4022 = vmul.f32 1.0, %v4021
    %v4023 = vrcp.pop %v3763
    %v4024 = vmul.f32 1.0, %v4023
    %v4025 = vrcp.pop %v3764
    %v4026 = vmul.f32 1.0, %v4025
    %v4027 = vrcp.pop %v3765
    %v4028 = vmul.f32 1.0, %v4027
    %v4029 = vrcp.pop %v3766
    %v4030 = vmul.f32 1.0, %v4029
    %v4031 = vrcp.pop %v3767
    %v4032 = vmul.f32 1.0, %v4031
    %v4033 = vrcp.pop %v3768
    %v4034 = vmul.f32 1.0, %v4033
    %v4035 = vrcp.pop %v3769
    %v4036 = vmul.f32 1.0, %v4035
    %v4037 = vrcp.pop %v3770
    %v4038 = vmul.f32 1.0, %v4037
    %v4039 = vrcp.pop %v3771
    %v4040 = vmul.f32 1.0, %v4039
    %v4041 = vrcp.pop %v3772
    %v4042 = vmul.f32 1.0, %v4041
    %v4043 = vrcp.pop %v3773
    %v4044 = vmul.f32 1.0, %v4043
    %v4045 = vrcp.pop %v3774
    %v4046 = vmul.f32 1.0, %v4045
    %v4047 = vrcp.pop %v3775
    %v4048 = vmul.f32 1.0, %v4047
    %v4049 = vrcp.pop %v3776
    %v4050 = vmul.f32 1.0, %v4049
    %v4051 = vrcp.pop %v3777
    %v4052 = vmul.f32 1.0, %v4051
    %v4053 = vrcp.pop %v3778
    %v4054 = vmul.f32 1.0, %v4053
    %v4055 = vrcp.pop %v3779
    %v4056 = vmul.f32 1.0, %v4055
    %v4057 = vrcp.pop %v3780
    %v4058 = vmul.f32 1.0, %v4057
    %v4059 = vrcp.pop %v3781
    %v4060 = vmul.f32 1.0, %v4059
    %v4061 = vrcp.pop %v3782
    %v4062 = vmul.f32 1.0, %v4061
    %v4063 = vrcp.pop %v3783
    %v4064 = vmul.f32 1.0, %v4063
    %v4065 = vrcp.pop %v3784
    %v4066 = vmul.f32 1.0, %v4065
    %v4067 = vrcp.pop %v3785
    %v4068 = vmul.f32 1.0, %v4067
    %v4069 = vrcp.pop %v3786
    %v4070 = vmul.f32 1.0, %v4069
    %v4071 = vrcp.pop %v3787
    %v4072 = vmul.f32 1.0, %v4071
    %v4073 = vrcp.pop %v3788
    %v4074 = vmul.f32 1.0, %v4073
    %v4075 = vrcp.pop %v3789
    %v4076 = vmul.f32 1.0, %v4075
    %v4077 = vrcp.pop %v3790
    %v4078 = vmul.f32 1.0, %v4077
    %v4079 = vrcp.pop %v3791
    %v4080 = vmul.f32 1.0, %v4079
    %v4081 = vrcp.pop %v3792
    %v4082 = vmul.f32 1.0, %v4081
    %v4083 = vrcp.pop %v3793
    %v4084 = vmul.f32 1.0, %v4083
    %v4085 = vrcp.pop %v3794
    %v4086 = vmul.f32 1.0, %v4085
    %v4087 = vrcp.pop %v3795
    %v4088 = vmul.f32 1.0, %v4087
    %v4089 = vrcp.pop %v3796
    %v4090 = vmul.f32 1.0, %v4089
    %v4091 = vrcp.pop %v3797
    %v4092 = vmul.f32 1.0, %v4091
    %v4093 = vrcp.pop %v3798
    %v4094 = vmul.f32 1.0, %v4093
    %v4095 = vrcp.pop %v3799
    %v4096 = vmul.f32 1.0, %v4095
    %v4097 = vrcp.pop %v3800
    %v4098 = vmul.f32 1.0, %v4097
    %v4099 = vrcp.pop %v3801
    %v4100 = vmul.f32 1.0, %v4099
    %v4101 = vrcp.pop %v3802
    %v4102 = vmul.f32 1.0, %v4101
    %v4103 = vrcp.pop %v3803
    %v4104 = vmul.f32 1.0, %v4103
    %v4105 = vrcp.pop %v3804
    %v4106 = vmul.f32 1.0, %v4105
    %v4107 = vrcp.pop %v3805
    %v4108 = vmul.f32 1.0, %v4107
    %v4109 = vrcp.pop %v3806
    %v4110 = vmul.f32 1.0, %v4109
    %v4111 = vrcp.pop %v3807
    %v4112 = vmul.f32 1.0, %v4111
    %v4113 = vrcp.pop %v3808
    %v4114 = vmul.f32 1.0, %v4113
    %v4115 = vrcp.pop %v3809
    %v4116 = vmul.f32 1.0, %v4115
    %v4117 = vrcp.pop %v3810
    %v4118 = vmul.f32 1.0, %v4117
    %v4119 = vrcp.pop %v3811
    %v4120 = vmul.f32 1.0, %v4119
    %v4121 = vrcp.pop %v3812
    %v4122 = vmul.f32 1.0, %v4121
    %v4123 = vrcp.pop %v3813
    %v4124 = vmul.f32 1.0, %v4123
    %v4125 = vrcp.pop %v3814
    %v4126 = vmul.f32 1.0, %v4125
    %v4127 = vrcp.pop %v3815
    %v4128 = vmul.f32 1.0, %v4127
    %v4129 = vrcp.pop %v3816
    %v4130 = vmul.f32 1.0, %v4129
    %v4131 = vrcp.pop %v3817
    %v4132 = vmul.f32 1.0, %v4131
    %v4133 = vrcp.pop %v3818
    %v4134 = vmul.f32 1.0, %v4133
    %v4135 = vrcp.pop %v3819
    %v4136 = vmul.f32 1.0, %v4135
    %v4137 = vrcp.pop %v3820
    %v4138 = vmul.f32 1.0, %v4137
    %v4139 = vrcp.pop %v3821
    %v4140 = vmul.f32 1.0, %v4139
    %v4141 = vrcp.pop %v3822
    %v4142 = vmul.f32 1.0, %v4141
    %v4143 = vmul.f32 %v3023, %v3824
    %v4144 = vmul.f32 %v3024, %v3826
    %v4145 = vmul.f32 %v3025, %v3828
    %v4146 = vmul.f32 %v3026, %v3830
    %v4147 = vmul.f32 %v3027, %v3832
    %v4148 = vmul.f32 %v3028, %v3834
    %v4149 = vmul.f32 %v3029, %v3836
    %v4150 = vmul.f32 %v3030, %v3838
    %v4151 = vmul.f32 %v3031, %v3840
    %v4152 = vmul.f32 %v3032, %v3842
    %v4153 = vmul.f32 %v3033, %v3844
    %v4154 = vmul.f32 %v3034, %v3846
    %v4155 = vmul.f32 %v3035, %v3848
    %v4156 = vmul.f32 %v3036, %v3850
    %v4157 = vmul.f32 %v3037, %v3852
    %v4158 = vmul.f32 %v3038, %v3854
    %v4159 = vmul.f32 %v3039, %v3856
    %v4160 = vmul.f32 %v3040, %v3858
    %v4161 = vmul.f32 %v3041, %v3860
    %v4162 = vmul.f32 %v3042, %v3862
    %v4163 = vmul.f32 %v3043, %v3864
    %v4164 = vmul.f32 %v3044, %v3866
    %v4165 = vmul.f32 %v3045, %v3868
    %v4166 = vmul.f32 %v3046, %v3870
    %v4167 = vmul.f32 %v3047, %v3872
    %v4168 = vmul.f32 %v3048, %v3874
    %v4169 = vmul.f32 %v3049, %v3876
    %v4170 = vmul.f32 %v3050, %v3878
    %v4171 = vmul.f32 %v3051, %v3880
    %v4172 = vmul.f32 %v3052, %v3882
    %v4173 = vmul.f32 %v3053, %v3884
    %v4174 = vmul.f32 %v3054, %v3886
    %v4175 = vmul.f32 %v3055, %v3888
    %v4176 = vmul.f32 %v3056, %v3890
    %v4177 = vmul.f32 %v3057, %v3892
    %v4178 = vmul.f32 %v3058, %v3894
    %v4179 = vmul.f32 %v3059, %v3896
    %v4180 = vmul.f32 %v3060, %v3898
    %v4181 = vmul.f32 %v3061, %v3900
    %v4182 = vmul.f32 %v3062, %v3902
    %v4183 = vmul.f32 %v3063, %v3904
    %v4184 = vmul.f32 %v3064, %v3906
    %v4185 = vmul.f32 %v3065, %v3908
    %v4186 = vmul.f32 %v3066, %v3910
    %v4187 = vmul.f32 %v3067, %v3912
    %v4188 = vmul.f32 %v3068, %v3914
    %v4189 = vmul.f32 %v3069, %v3916
    %v4190 = vmul.f32 %v3070, %v3918
    %v4191 = vmul.f32 %v3071, %v3920
    %v4192 = vmul.f32 %v3072, %v3922
    %v4193 = vmul.f32 %v3073, %v3924
    %v4194 = vmul.f32 %v3074, %v3926
    %v4195 = vmul.f32 %v3075, %v3928
    %v4196 = vmul.f32 %v3076, %v3930
    %v4197 = vmul.f32 %v3077, %v3932
    %v4198 = vmul.f32 %v3078, %v3934
    %v4199 = vmul.f32 %v3079, %v3936
    %v4200 = vmul.f32 %v3080, %v3938
    %v4201 = vmul.f32 %v3081, %v3940
    %v4202 = vmul.f32 %v3082, %v3942
    %v4203 = vmul.f32 %v3083, %v3944
    %v4204 = vmul.f32 %v3084, %v3946
    %v4205 = vmul.f32 %v3085, %v3948
    %v4206 = vmul.f32 %v3086, %v3950
    %v4207 = vmul.f32 %v3087, %v3952
    %v4208 = vmul.f32 %v3088, %v3954
    %v4209 = vmul.f32 %v3089, %v3956
    %v4210 = vmul.f32 %v3090, %v3958
    %v4211 = vmul.f32 %v3091, %v3960
    %v4212 = vmul.f32 %v3092, %v3962
    %v4213 = vmul.f32 %v3093, %v3964
    %v4214 = vmul.f32 %v3094, %v3966
    %v4215 = vmul.f32 %v3095, %v3968
    %v4216 = vmul.f32 %v3096, %v3970
    %v4217 = vmul.f32 %v3097, %v3972
    %v4218 = vmul.f32 %v3098, %v3974
    %v4219 = vmul.f32 %v3099, %v3976
    %v4220 = vmul.f32 %v3100, %v3978
    %v4221 = vmul.f32 %v3101, %v3980
    %v4222 = vmul.f32 %v3102, %v3982
    %v4223 = vmul.f32 %v3103, %v3984
    %v4224 = vmul.f32 %v3104, %v3986
    %v4225 = vmul.f32 %v3105, %v3988
    %v4226 = vmul.f32 %v3106, %v3990
    %v4227 = vmul.f32 %v3107, %v3992
    %v4228 = vmul.f32 %v3108, %v3994
    %v4229 = vmul.f32 %v3109, %v3996
    %v4230 = vmul.f32 %v3110, %v3998
    %v4231 = vmul.f32 %v3111, %v4000
    %v4232 = vmul.f32 %v3112, %v4002
    %v4233 = vmul.f32 %v3113, %v4004
    %v4234 = vmul.f32 %v3114, %v4006
    %v4235 = vmul.f32 %v3115, %v4008
    %v4236 = vmul.f32 %v3116, %v4010
    %v4237 = vmul.f32 %v3117, %v4012
    %v4238 = vmul.f32 %v3118, %v4014
    %v4239 = vmul.f32 %v3119, %v4016
    %v4240 = vmul.f32 %v3120, %v4018
    %v4241 = vmul.f32 %v3121, %v4020
    %v4242 = vmul.f32 %v3122, %v4022
    %v4243 = vmul.f32 %v3123, %v4024
    %v4244 = vmul.f32 %v3124, %v4026
    %v4245 = vmul.f32 %v3125, %v4028
    %v4246 = vmul.f32 %v3126, %v4030
    %v4247 = vmul.f32 %v3127, %v4032
    %v4248 = vmul.f32 %v3128, %v4034
    %v4249 = vmul.f32 %v3129, %v4036
    %v4250 = vmul.f32 %v3130, %v4038
    %v4251 = vmul.f32 %v3131, %v4040
    %v4252 = vmul.f32 %v3132, %v4042
    %v4253 = vmul.f32 %v3133, %v4044
    %v4254 = vmul.f32 %v3134, %v4046
    %v4255 = vmul.f32 %v3135, %v4048
    %v4256 = vmul.f32 %v3136, %v4050
    %v4257 = vmul.f32 %v3137, %v4052
    %v4258 = vmul.f32 %v3138, %v4054
    %v4259 = vmul.f32 %v3139, %v4056
    %v4260 = vmul.f32 %v3140, %v4058
    %v4261 = vmul.f32 %v3141, %v4060
    %v4262 = vmul.f32 %v3142, %v4062
    %v4263 = vmul.f32 %v3143, %v4064
    %v4264 = vmul.f32 %v3144, %v4066
    %v4265 = vmul.f32 %v3145, %v4068
    %v4266 = vmul.f32 %v3146, %v4070
    %v4267 = vmul.f32 %v3147, %v4072
    %v4268 = vmul.f32 %v3148, %v4074
    %v4269 = vmul.f32 %v3149, %v4076
    %v4270 = vmul.f32 %v3150, %v4078
    %v4271 = vmul.f32 %v3151, %v4080
    %v4272 = vmul.f32 %v3152, %v4082
    %v4273 = vmul.f32 %v3153, %v4084
    %v4274 = vmul.f32 %v3154, %v4086
    %v4275 = vmul.f32 %v3155, %v4088
    %v4276 = vmul.f32 %v3156, %v4090
    %v4277 = vmul.f32 %v3157, %v4092
    %v4278 = vmul.f32 %v3158, %v4094
    %v4279 = vmul.f32 %v3159, %v4096
    %v4280 = vmul.f32 %v3160, %v4098
    %v4281 = vmul.f32 %v3161, %v4100
    %v4282 = vmul.f32 %v3162, %v4102
    %v4283 = vmul.f32 %v3163, %v4104
    %v4284 = vmul.f32 %v3164, %v4106
    %v4285 = vmul.f32 %v3165, %v4108
    %v4286 = vmul.f32 %v3166, %v4110
    %v4287 = vmul.f32 %v3167, %v4112
    %v4288 = vmul.f32 %v3168, %v4114
    %v4289 = vmul.f32 %v3169, %v4116
    %v4290 = vmul.f32 %v3170, %v4118
    %v4291 = vmul.f32 %v3171, %v4120
    %v4292 = vmul.f32 %v3172, %v4122
    %v4293 = vmul.f32 %v3173, %v4124
    %v4294 = vmul.f32 %v3174, %v4126
    %v4295 = vmul.f32 %v3175, %v4128
    %v4296 = vmul.f32 %v3176, %v4130
    %v4297 = vmul.f32 %v3177, %v4132
    %v4298 = vmul.f32 %v3178, %v4134
    %v4299 = vmul.f32 %v3179, %v4136
    %v4300 = vmul.f32 %v3180, %v4138
    %v4301 = vmul.f32 %v3181, %v4140
    %v4302 = vmul.f32 %v3182, %v4142
    %v4303 = vadd.f32 %v4143, %v4153
    %v4304 = vadd.f32 %v4303, %v4163
    %v4305 = vadd.f32 %v4304, %v4173
    %v4306 = vadd.f32 %v4305, %v4183
    %v4307 = vadd.f32 %v4306, %v4193
    %v4308 = vadd.f32 %v4307, %v4203
    %v4309 = vadd.f32 %v4308, %v4213
    %v4310 = vrot.slane %v4309, 4
    %v4311 = vadd.f32 %v4309, %v4310
    %v4312 = vrot.slane %v4311, 2
    %v4313 = vadd.f32 %v4311, %v4312
    %v4314 = vrot.slane %v4313, 1
    %v4315 = vadd.f32 %v4313, %v4314
    %v4316 = vadd.f32 %v4144, %v4154
    %v4317 = vadd.f32 %v4316, %v4164
    %v4318 = vadd.f32 %v4317, %v4174
    %v4319 = vadd.f32 %v4318, %v4184
    %v4320 = vadd.f32 %v4319, %v4194
    %v4321 = vadd.f32 %v4320, %v4204
    %v4322 = vadd.f32 %v4321, %v4214
    %v4323 = vrot.slane %v4322, 4
    %v4324 = vadd.f32 %v4322, %v4323
    %v4325 = vrot.slane %v4324, 2
    %v4326 = vadd.f32 %v4324, %v4325
    %v4327 = vrot.slane %v4326, 1
    %v4328 = vadd.f32 %v4326, %v4327
    %v4329 = vadd.f32 %v4145, %v4155
    %v4330 = vadd.f32 %v4329, %v4165
    %v4331 = vadd.f32 %v4330, %v4175
    %v4332 = vadd.f32 %v4331, %v4185
    %v4333 = vadd.f32 %v4332, %v4195
    %v4334 = vadd.f32 %v4333, %v4205
    %v4335 = vadd.f32 %v4334, %v4215
    %v4336 = vrot.slane %v4335, 4
    %v4337 = vadd.f32 %v4335, %v4336
    %v4338 = vrot.slane %v4337, 2
    %v4339 = vadd.f32 %v4337, %v4338
    %v4340 = vrot.slane %v4339, 1
    %v4341 = vadd.f32 %v4339, %v4340
    %v4342 = vadd.f32 %v4146, %v4156
    %v4343 = vadd.f32 %v4342, %v4166
    %v4344 = vadd.f32 %v4343, %v4176
    %v4345 = vadd.f32 %v4344, %v4186
    %v4346 = vadd.f32 %v4345, %v4196
    %v4347 = vadd.f32 %v4346, %v4206
    %v4348 = vadd.f32 %v4347, %v4216
    %v4349 = vrot.slane %v4348, 4
    %v4350 = vadd.f32 %v4348, %v4349
    %v4351 = vrot.slane %v4350, 2
    %v4352 = vadd.f32 %v4350, %v4351
    %v4353 = vrot.slane %v4352, 1
    %v4354 = vadd.f32 %v4352, %v4353
    %v4355 = vadd.f32 %v4147, %v4157
    %v4356 = vadd.f32 %v4355, %v4167
    %v4357 = vadd.f32 %v4356, %v4177
    %v4358 = vadd.f32 %v4357, %v4187
    %v4359 = vadd.f32 %v4358, %v4197
    %v4360 = vadd.f32 %v4359, %v4207
    %v4361 = vadd.f32 %v4360, %v4217
    %v4362 = vrot.slane %v4361, 4
    %v4363 = vadd.f32 %v4361, %v4362
    %v4364 = vrot.slane %v4363, 2
    %v4365 = vadd.f32 %v4363, %v4364
    %v4366 = vrot.slane %v4365, 1
    %v4367 = vadd.f32 %v4365, %v4366
    %v4368 = vadd.f32 %v4148, %v4158
    %v4369 = vadd.f32 %v4368, %v4168
    %v4370 = vadd.f32 %v4369, %v4178
    %v4371 = vadd.f32 %v4370, %v4188
    %v4372 = vadd.f32 %v4371, %v4198
    %v4373 = vadd.f32 %v4372, %v4208
    %v4374 = vadd.f32 %v4373, %v4218
    %v4375 = vrot.slane %v4374, 4
    %v4376 = vadd.f32 %v4374, %v4375
    %v4377 = vrot.slane %v4376, 2
    %v4378 = vadd.f32 %v4376, %v4377
    %v4379 = vrot.slane %v4378, 1
    %v4380 = vadd.f32 %v4378, %v4379
    %v4381 = vadd.f32 %v4149, %v4159
    %v4382 = vadd.f32 %v4381, %v4169
    %v4383 = vadd.f32 %v4382, %v4179
    %v4384 = vadd.f32 %v4383, %v4189
    %v4385 = vadd.f32 %v4384, %v4199
    %v4386 = vadd.f32 %v4385, %v4209
    %v4387 = vadd.f32 %v4386, %v4219
    %v4388 = vrot.slane %v4387, 4
    %v4389 = vadd.f32 %v4387, %v4388
    %v4390 = vrot.slane %v4389, 2
    %v4391 = vadd.f32 %v4389, %v4390
    %v4392 = vrot.slane %v4391, 1
    %v4393 = vadd.f32 %v4391, %v4392
    %v4394 = vadd.f32 %v4150, %v4160
    %v4395 = vadd.f32 %v4394, %v4170
    %v4396 = vadd.f32 %v4395, %v4180
    %v4397 = vadd.f32 %v4396, %v4190
    %v4398 = vadd.f32 %v4397, %v4200
    %v4399 = vadd.f32 %v4398, %v4210
    %v4400 = vadd.f32 %v4399, %v4220
    %v4401 = vrot.slane %v4400, 4
    %v4402 = vadd.f32 %v4400, %v4401
    %v4403 = vrot.slane %v4402, 2
    %v4404 = vadd.f32 %v4402, %v4403
    %v4405 = vrot.slane %v4404, 1
    %v4406 = vadd.f32 %v4404, %v4405
    %v4407 = vadd.f32 %v4151, %v4161
    %v4408 = vadd.f32 %v4407, %v4171
    %v4409 = vadd.f32 %v4408, %v4181
    %v4410 = vadd.f32 %v4409, %v4191
    %v4411 = vadd.f32 %v4410, %v4201
    %v4412 = vadd.f32 %v4411, %v4211
    %v4413 = vadd.f32 %v4412, %v4221
    %v4414 = vrot.slane %v4413, 4
    %v4415 = vadd.f32 %v4413, %v4414
    %v4416 = vrot.slane %v4415, 2
    %v4417 = vadd.f32 %v4415, %v4416
    %v4418 = vrot.slane %v4417, 1
    %v4419 = vadd.f32 %v4417, %v4418
    %v4420 = vadd.f32 %v4152, %v4162
    %v4421 = vadd.f32 %v4420, %v4172
    %v4422 = vadd.f32 %v4421, %v4182
    %v4423 = vadd.f32 %v4422, %v4192
    %v4424 = vadd.f32 %v4423, %v4202
    %v4425 = vadd.f32 %v4424, %v4212
    %v4426 = vadd.f32 %v4425, %v4222
    %v4427 = vrot.slane %v4426, 4
    %v4428 = vadd.f32 %v4426, %v4427
    %v4429 = vrot.slane %v4428, 2
    %v4430 = vadd.f32 %v4428, %v4429
    %v4431 = vrot.slane %v4430, 1
    %v4432 = vadd.f32 %v4430, %v4431
    %v4433 = vadd.f32 %v4223, %v4233
    %v4434 = vadd.f32 %v4433, %v4243
    %v4435 = vadd.f32 %v4434, %v4253
    %v4436 = vadd.f32 %v4435, %v4263
    %v4437 = vadd.f32 %v4436, %v4273
    %v4438 = vadd.f32 %v4437, %v4283
    %v4439 = vadd.f32 %v4438, %v4293
    %v4440 = vrot.slane %v4439, 4
    %v4441 = vadd.f32 %v4439, %v4440
    %v4442 = vrot.slane %v4441, 2
    %v4443 = vadd.f32 %v4441, %v4442
    %v4444 = vrot.slane %v4443, 1
    %v4445 = vadd.f32 %v4443, %v4444
    %v4446 = vadd.f32 %v4224, %v4234
    %v4447 = vadd.f32 %v4446, %v4244
    %v4448 = vadd.f32 %v4447, %v4254
    %v4449 = vadd.f32 %v4448, %v4264
    %v4450 = vadd.f32 %v4449, %v4274
    %v4451 = vadd.f32 %v4450, %v4284
    %v4452 = vadd.f32 %v4451, %v4294
    %v4453 = vrot.slane %v4452, 4
    %v4454 = vadd.f32 %v4452, %v4453
    %v4455 = vrot.slane %v4454, 2
    %v4456 = vadd.f32 %v4454, %v4455
    %v4457 = vrot.slane %v4456, 1
    %v4458 = vadd.f32 %v4456, %v4457
    %v4459 = vadd.f32 %v4225, %v4235
    %v4460 = vadd.f32 %v4459, %v4245
    %v4461 = vadd.f32 %v4460, %v4255
    %v4462 = vadd.f32 %v4461, %v4265
    %v4463 = vadd.f32 %v4462, %v4275
    %v4464 = vadd.f32 %v4463, %v4285
    %v4465 = vadd.f32 %v4464, %v4295
    %v4466 = vrot.slane %v4465, 4
    %v4467 = vadd.f32 %v4465, %v4466
    %v4468 = vrot.slane %v4467, 2
    %v4469 = vadd.f32 %v4467, %v4468
    %v4470 = vrot.slane %v4469, 1
    %v4471 = vadd.f32 %v4469, %v4470
    %v4472 = vadd.f32 %v4226, %v4236
    %v4473 = vadd.f32 %v4472, %v4246
    %v4474 = vadd.f32 %v4473, %v4256
    %v4475 = vadd.f32 %v4474, %v4266
    %v4476 = vadd.f32 %v4475, %v4276
    %v4477 = vadd.f32 %v4476, %v4286
    %v4478 = vadd.f32 %v4477, %v4296
    %v4479 = vrot.slane %v4478, 4
    %v4480 = vadd.f32 %v4478, %v4479
    %v4481 = vrot.slane %v4480, 2
    %v4482 = vadd.f32 %v4480, %v4481
    %v4483 = vrot.slane %v4482, 1
    %v4484 = vadd.f32 %v4482, %v4483
    %v4485 = vadd.f32 %v4227, %v4237
    %v4486 = vadd.f32 %v4485, %v4247
    %v4487 = vadd.f32 %v4486, %v4257
    %v4488 = vadd.f32 %v4487, %v4267
    %v4489 = vadd.f32 %v4488, %v4277
    %v4490 = vadd.f32 %v4489, %v4287
    %v4491 = vadd.f32 %v4490, %v4297
    %v4492 = vrot.slane %v4491, 4
    %v4493 = vadd.f32 %v4491, %v4492
    %v4494 = vrot.slane %v4493, 2
    %v4495 = vadd.f32 %v4493, %v4494
    %v4496 = vrot.slane %v4495, 1
    %v4497 = vadd.f32 %v4495, %v4496
    %v4498 = vadd.f32 %v4228, %v4238
    %v4499 = vadd.f32 %v4498, %v4248
    %v4500 = vadd.f32 %v4499, %v4258
    %v4501 = vadd.f32 %v4500, %v4268
    %v4502 = vadd.f32 %v4501, %v4278
    %v4503 = vadd.f32 %v4502, %v4288
    %v4504 = vadd.f32 %v4503, %v4298
    %v4505 = vrot.slane %v4504, 4
    %v4506 = vadd.f32 %v4504, %v4505
    %v4507 = vrot.slane %v4506, 2
    %v4508 = vadd.f32 %v4506, %v4507
    %v4509 = vrot.slane %v4508, 1
    %v4510 = vadd.f32 %v4508, %v4509
    %v4511 = vadd.f32 %v4229, %v4239
    %v4512 = vadd.f32 %v4511, %v4249
    %v4513 = vadd.f32 %v4512, %v4259
    %v4514 = vadd.f32 %v4513, %v4269
    %v4515 = vadd.f32 %v4514, %v4279
    %v4516 = vadd.f32 %v4515, %v4289
    %v4517 = vadd.f32 %v4516, %v4299
    %v4518 = vrot.slane %v4517, 4
    %v4519 = vadd.f32 %v4517, %v4518
    %v4520 = vrot.slane %v4519, 2
    %v4521 = vadd.f32 %v4519, %v4520
    %v4522 = vrot.slane %v4521, 1
    %v4523 = vadd.f32 %v4521, %v4522
    %v4524 = vadd.f32 %v4230, %v4240
    %v4525 = vadd.f32 %v4524, %v4250
    %v4526 = vadd.f32 %v4525, %v4260
    %v4527 = vadd.f32 %v4526, %v4270
    %v4528 = vadd.f32 %v4527, %v4280
    %v4529 = vadd.f32 %v4528, %v4290
    %v4530 = vadd.f32 %v4529, %v4300
    %v4531 = vrot.slane %v4530, 4
    %v4532 = vadd.f32 %v4530, %v4531
    %v4533 = vrot.slane %v4532, 2
    %v4534 = vadd.f32 %v4532, %v4533
    %v4535 = vrot.slane %v4534, 1
    %v4536 = vadd.f32 %v4534, %v4535
    %v4537 = vadd.f32 %v4231, %v4241
    %v4538 = vadd.f32 %v4537, %v4251
    %v4539 = vadd.f32 %v4538, %v4261
    %v4540 = vadd.f32 %v4539, %v4271
    %v4541 = vadd.f32 %v4540, %v4281
    %v4542 = vadd.f32 %v4541, %v4291
    %v4543 = vadd.f32 %v4542, %v4301
    %v4544 = vrot.slane %v4543, 4
    %v4545 = vadd.f32 %v4543, %v4544
    %v4546 = vrot.slane %v4545, 2
    %v4547 = vadd.f32 %v4545, %v4546
    %v4548 = vrot.slane %v4547, 1
    %v4549 = vadd.f32 %v4547, %v4548
    %v4550 = vadd.f32 %v4232, %v4242
    %v4551 = vadd.f32 %v4550, %v4252
    %v4552 = vadd.f32 %v4551, %v4262
    %v4553 = vadd.f32 %v4552, %v4272
    %v4554 = vadd.f32 %v4553, %v4282
    %v4555 = vadd.f32 %v4554, %v4292
    %v4556 = vadd.f32 %v4555, %v4302
    %v4557 = vrot.slane %v4556, 4
    %v4558 = vadd.f32 %v4556, %v4557
    %v4559 = vrot.slane %v4558, 2
    %v4560 = vadd.f32 %v4558, %v4559
    %v4561 = vrot.slane %v4560, 1
    %v4562 = vadd.f32 %v4560, %v4561
    %v4563 = vrcp.pop 64.0
    %v4564 = vmul.f32 %v4315, %v4563
    %v4565 = vmul.f32 %v4328, %v4563
    %v4566 = vmul.f32 %v4341, %v4563
    %v4567 = vmul.f32 %v4354, %v4563
    %v4568 = vmul.f32 %v4367, %v4563
    %v4569 = vmul.f32 %v4380, %v4563
    %v4570 = vmul.f32 %v4393, %v4563
    %v4571 = vmul.f32 %v4406, %v4563
    %v4572 = vmul.f32 %v4419, %v4563
    %v4573 = vmul.f32 %v4432, %v4563
    %v4574 = vmul.f32 %v4445, %v4563
    %v4575 = vmul.f32 %v4458, %v4563
    %v4576 = vmul.f32 %v4471, %v4563
    %v4577 = vmul.f32 %v4484, %v4563
    %v4578 = vmul.f32 %v4497, %v4563
    %v4579 = vmul.f32 %v4510, %v4563
    %v4580 = vmul.f32 %v4523, %v4563
    %v4581 = vmul.f32 %v4536, %v4563
    %v4582 = vmul.f32 %v4549, %v4563
    %v4583 = vmul.f32 %v4562, %v4563
    %v4584 = vpack.c.bf16 %v4564, %v4564
    %v4585 = vpack.c.bf16 %v4565, %v4565
    %v4586 = vpack.c.bf16 %v4566, %v4566
    %v4587 = vpack.c.bf16 %v4567, %v4567
    %v4588 = vpack.c.bf16 %v4568, %v4568
    %v4589 = vpack.c.bf16 %v4569, %v4569
    %v4590 = vpack.c.bf16 %v4570, %v4570
    %v4591 = vpack.c.bf16 %v4571, %v4571
    %v4592 = vpack.c.bf16 %v4572, %v4572
    %v4593 = vpack.c.bf16 %v4573, %v4573
    %v4594 = vpack.c.bf16 %v4574, %v4574
    %v4595 = vpack.c.bf16 %v4575, %v4575
    %v4596 = vpack.c.bf16 %v4576, %v4576
    %v4597 = vpack.c.bf16 %v4577, %v4577
    %v4598 = vpack.c.bf16 %v4578, %v4578
    %v4599 = vpack.c.bf16 %v4579, %v4579
    %v4600 = vpack.c.bf16 %v4580, %v4580
    %v4601 = vpack.c.bf16 %v4581, %v4581
    %v4602 = vpack.c.bf16 %v4582, %v4582
    %v4603 = vpack.c.bf16 %v4583, %v4583
    %v4604 = vld [vmem:[%s4] sm:$0xf]
    %v4605 = vld [vmem:[%s4 + $0x4] sm:$0xf]
    %v4606 = vld [vmem:[%s4 + $0x8] sm:$0xf]
    %v4607 = vld [vmem:[%s4 + $0xc] sm:$0xf]
    %v4608 = vld [vmem:[%s4 + $0x10] sm:$0xf]
    %v4609 = vld [vmem:[%s4 + $0x14] sm:$0xf]
    %v4610 = vld [vmem:[%s4 + $0x18] sm:$0xf]
    %v4611 = vld [vmem:[%s4 + $0x1c] sm:$0xf]
    %v4612 = vld [vmem:[%s4 + $0x20] sm:$0xf]
    %v4613 = vld [vmem:[%s4 + $0x24] sm:$0xf]
    %v4614 = vld [vmem:[%s4 + $0x28] sm:$0xf]
    %v4615 = vld [vmem:[%s4 + $0x2c] sm:$0xf]
    %v4616 = vld [vmem:[%s4 + $0x30] sm:$0xf]
    %v4617 = vld [vmem:[%s4 + $0x34] sm:$0xf]
    %v4618 = vld [vmem:[%s4 + $0x38] sm:$0xf]
    %v4619 = vld [vmem:[%s4 + $0x3c] sm:$0xf]
    %v4620 = vld [vmem:[%s4 + $0x40] sm:$0xf]
    %v4621 = vld [vmem:[%s4 + $0x44] sm:$0xf]
    %v4622 = vld [vmem:[%s4 + $0x48] sm:$0xf]
    %v4623 = vld [vmem:[%s4 + $0x4c] sm:$0xf]
    %v4624 = vld [vmem:[%s4 + $0x50] sm:$0xf]
    %v4625 = vld [vmem:[%s4 + $0x54] sm:$0xf]
    %v4626 = vld [vmem:[%s4 + $0x58] sm:$0xf]
    %v4627 = vld [vmem:[%s4 + $0x5c] sm:$0xf]
    %v4628 = vld [vmem:[%s4 + $0x60] sm:$0xf]
    %v4629 = vld [vmem:[%s4 + $0x64] sm:$0xf]
    %v4630 = vld [vmem:[%s4 + $0x68] sm:$0xf]
    %v4631 = vld [vmem:[%s4 + $0x6c] sm:$0xf]
    %v4632 = vld [vmem:[%s4 + $0x70] sm:$0xf]
    %v4633 = vld [vmem:[%s4 + $0x74] sm:$0xf]
    %v4634 = vld [vmem:[%s4 + $0x78] sm:$0xf]
    %v4635 = vld [vmem:[%s4 + $0x7c] sm:$0xf]
    %v4636 = vld [vmem:[%s4 + $0x80] sm:$0xf]
    %v4637 = vld [vmem:[%s4 + $0x84] sm:$0xf]
    %v4638 = vld [vmem:[%s4 + $0x88] sm:$0xf]
    %v4639 = vld [vmem:[%s4 + $0x8c] sm:$0xf]
    %v4640 = vld [vmem:[%s4 + $0x90] sm:$0xf]
    %v4641 = vld [vmem:[%s4 + $0x94] sm:$0xf]
    %v4642 = vld [vmem:[%s4 + $0x98] sm:$0xf]
    %v4643 = vld [vmem:[%s4 + $0x9c] sm:$0xf]
    %v4644 = vld [vmem:[%s4 + $0xa0] sm:$0xf]
    %v4645 = vld [vmem:[%s4 + $0xa4] sm:$0xf]
    %v4646 = vld [vmem:[%s4 + $0xa8] sm:$0xf]
    %v4647 = vld [vmem:[%s4 + $0xac] sm:$0xf]
    %v4648 = vld [vmem:[%s4 + $0xb0] sm:$0xf]
    %v4649 = vld [vmem:[%s4 + $0xb4] sm:$0xf]
    %v4650 = vld [vmem:[%s4 + $0xb8] sm:$0xf]
    %v4651 = vld [vmem:[%s4 + $0xbc] sm:$0xf]
    %v4652 = vld [vmem:[%s4 + $0xc0] sm:$0xf]
    %v4653 = vld [vmem:[%s4 + $0xc4] sm:$0xf]
    %v4654 = vld [vmem:[%s4 + $0xc8] sm:$0xf]
    %v4655 = vld [vmem:[%s4 + $0xcc] sm:$0xf]
    %v4656 = vld [vmem:[%s4 + $0xd0] sm:$0xf]
    %v4657 = vld [vmem:[%s4 + $0xd4] sm:$0xf]
    %v4658 = vld [vmem:[%s4 + $0xd8] sm:$0xf]
    %v4659 = vld [vmem:[%s4 + $0xdc] sm:$0xf]
    %v4660 = vld [vmem:[%s4 + $0xe0] sm:$0xf]
    %v4661 = vld [vmem:[%s4 + $0xe4] sm:$0xf]
    %v4662 = vld [vmem:[%s4 + $0xe8] sm:$0xf]
    %v4663 = vld [vmem:[%s4 + $0xec] sm:$0xf]
    %v4664 = vld [vmem:[%s4 + $0xf0] sm:$0xf]
    %v4665 = vld [vmem:[%s4 + $0xf4] sm:$0xf]
    %v4666 = vld [vmem:[%s4 + $0xf8] sm:$0xf]
    %v4667 = vld [vmem:[%s4 + $0xfc] sm:$0xf]
    %v4668 = vld [vmem:[%s4 + $0x100] sm:$0xf]
    %v4669 = vld [vmem:[%s4 + $0x104] sm:$0xf]
    %v4670 = vld [vmem:[%s4 + $0x108] sm:$0xf]
    %v4671 = vld [vmem:[%s4 + $0x10c] sm:$0xf]
    %v4672 = vld [vmem:[%s4 + $0x110] sm:$0xf]
    %v4673 = vld [vmem:[%s4 + $0x114] sm:$0xf]
    %v4674 = vld [vmem:[%s4 + $0x118] sm:$0xf]
    %v4675 = vld [vmem:[%s4 + $0x11c] sm:$0xf]
    %v4676 = vld [vmem:[%s4 + $0x120] sm:$0xf]
    %v4677 = vld [vmem:[%s4 + $0x124] sm:$0xf]
    %v4678 = vld [vmem:[%s4 + $0x128] sm:$0xf]
    %v4679 = vld [vmem:[%s4 + $0x12c] sm:$0xf]
    %v4680 = vld [vmem:[%s4 + $0x130] sm:$0xf]
    %v4681 = vld [vmem:[%s4 + $0x134] sm:$0xf]
    %v4682 = vld [vmem:[%s4 + $0x138] sm:$0xf]
    %v4683 = vld [vmem:[%s4 + $0x13c] sm:$0xf]
    %v4684 = vld [vmem:[%s4 + $0x140] sm:$0xf]
    %v4685 = vld [vmem:[%s4 + $0x144] sm:$0xf]
    %v4686 = vld [vmem:[%s4 + $0x148] sm:$0xf]
    %v4687 = vld [vmem:[%s4 + $0x14c] sm:$0xf]
    %v4688 = vld [vmem:[%s4 + $0x150] sm:$0xf]
    %v4689 = vld [vmem:[%s4 + $0x154] sm:$0xf]
    %v4690 = vld [vmem:[%s4 + $0x158] sm:$0xf]
    %v4691 = vld [vmem:[%s4 + $0x15c] sm:$0xf]
    %v4692 = vld [vmem:[%s4 + $0x160] sm:$0xf]
    %v4693 = vld [vmem:[%s4 + $0x164] sm:$0xf]
    %v4694 = vld [vmem:[%s4 + $0x168] sm:$0xf]
    %v4695 = vld [vmem:[%s4 + $0x16c] sm:$0xf]
    %v4696 = vld [vmem:[%s4 + $0x170] sm:$0xf]
    %v4697 = vld [vmem:[%s4 + $0x174] sm:$0xf]
    %v4698 = vld [vmem:[%s4 + $0x178] sm:$0xf]
    %v4699 = vld [vmem:[%s4 + $0x17c] sm:$0xf]
    %v4700 = vld [vmem:[%s4 + $0x180] sm:$0xf]
    %v4701 = vld [vmem:[%s4 + $0x184] sm:$0xf]
    %v4702 = vld [vmem:[%s4 + $0x188] sm:$0xf]
    %v4703 = vld [vmem:[%s4 + $0x18c] sm:$0xf]
    %v4704 = vld [vmem:[%s4 + $0x190] sm:$0xf]
    %v4705 = vld [vmem:[%s4 + $0x194] sm:$0xf]
    %v4706 = vld [vmem:[%s4 + $0x198] sm:$0xf]
    %v4707 = vld [vmem:[%s4 + $0x19c] sm:$0xf]
    %v4708 = vld [vmem:[%s4 + $0x1a0] sm:$0xf]
    %v4709 = vld [vmem:[%s4 + $0x1a4] sm:$0xf]
    %v4710 = vld [vmem:[%s4 + $0x1a8] sm:$0xf]
    %v4711 = vld [vmem:[%s4 + $0x1ac] sm:$0xf]
    %v4712 = vld [vmem:[%s4 + $0x1b0] sm:$0xf]
    %v4713 = vld [vmem:[%s4 + $0x1b4] sm:$0xf]
    %v4714 = vld [vmem:[%s4 + $0x1b8] sm:$0xf]
    %v4715 = vld [vmem:[%s4 + $0x1bc] sm:$0xf]
    %v4716 = vld [vmem:[%s4 + $0x1c0] sm:$0xf]
    %v4717 = vld [vmem:[%s4 + $0x1c4] sm:$0xf]
    %v4718 = vld [vmem:[%s4 + $0x1c8] sm:$0xf]
    %v4719 = vld [vmem:[%s4 + $0x1cc] sm:$0xf]
    %v4720 = vld [vmem:[%s4 + $0x1d0] sm:$0xf]
    %v4721 = vld [vmem:[%s4 + $0x1d4] sm:$0xf]
    %v4722 = vld [vmem:[%s4 + $0x1d8] sm:$0xf]
    %v4723 = vld [vmem:[%s4 + $0x1dc] sm:$0xf]
    %v4724 = vld [vmem:[%s4 + $0x1e0] sm:$0xf]
    %v4725 = vld [vmem:[%s4 + $0x1e4] sm:$0xf]
    %v4726 = vld [vmem:[%s4 + $0x1e8] sm:$0xf]
    %v4727 = vld [vmem:[%s4 + $0x1ec] sm:$0xf]
    %v4728 = vld [vmem:[%s4 + $0x1f0] sm:$0xf]
    %v4729 = vld [vmem:[%s4 + $0x1f4] sm:$0xf]
    %v4730 = vld [vmem:[%s4 + $0x1f8] sm:$0xf]
    %v4731 = vld [vmem:[%s4 + $0x1fc] sm:$0xf]
    %v4732 = vld [vmem:[%s4 + $0x200] sm:$0xf]
    %v4733 = vld [vmem:[%s4 + $0x204] sm:$0xf]
    %v4734 = vld [vmem:[%s4 + $0x208] sm:$0xf]
    %v4735 = vld [vmem:[%s4 + $0x20c] sm:$0xf]
    %v4736 = vld [vmem:[%s4 + $0x210] sm:$0xf]
    %v4737 = vld [vmem:[%s4 + $0x214] sm:$0xf]
    %v4738 = vld [vmem:[%s4 + $0x218] sm:$0xf]
    %v4739 = vld [vmem:[%s4 + $0x21c] sm:$0xf]
    %v4740 = vld [vmem:[%s4 + $0x220] sm:$0xf]
    %v4741 = vld [vmem:[%s4 + $0x224] sm:$0xf]
    %v4742 = vld [vmem:[%s4 + $0x228] sm:$0xf]
    %v4743 = vld [vmem:[%s4 + $0x22c] sm:$0xf]
    %v4744 = vld [vmem:[%s4 + $0x230] sm:$0xf]
    %v4745 = vld [vmem:[%s4 + $0x234] sm:$0xf]
    %v4746 = vld [vmem:[%s4 + $0x238] sm:$0xf]
    %v4747 = vld [vmem:[%s4 + $0x23c] sm:$0xf]
    %v4748 = vld [vmem:[%s4 + $0x240] sm:$0xf]
    %v4749 = vld [vmem:[%s4 + $0x244] sm:$0xf]
    %v4750 = vld [vmem:[%s4 + $0x248] sm:$0xf]
    %v4751 = vld [vmem:[%s4 + $0x24c] sm:$0xf]
    %v4752 = vld [vmem:[%s4 + $0x250] sm:$0xf]
    %v4753 = vld [vmem:[%s4 + $0x254] sm:$0xf]
    %v4754 = vld [vmem:[%s4 + $0x258] sm:$0xf]
    %v4755 = vld [vmem:[%s4 + $0x25c] sm:$0xf]
    %v4756 = vld [vmem:[%s4 + $0x260] sm:$0xf]
    %v4757 = vld [vmem:[%s4 + $0x264] sm:$0xf]
    %v4758 = vld [vmem:[%s4 + $0x268] sm:$0xf]
    %v4759 = vld [vmem:[%s4 + $0x26c] sm:$0xf]
    %v4760 = vld [vmem:[%s4 + $0x270] sm:$0xf]
    %v4761 = vld [vmem:[%s4 + $0x274] sm:$0xf]
    %v4762 = vld [vmem:[%s4 + $0x278] sm:$0xf]
    %v4763 = vld [vmem:[%s4 + $0x27c] sm:$0xf]
    %v4764 = vld [vmem:[%s5] sm:$0x1]
    %v4766 = vlaneseq
    %v4767 = vshrl.u32 %v4766, 7
    %v4768 = vsub.s32 0, %v4767
    %v4769 = vrot.slane %v4764, %v4768
    %v4791 = vunpack.c.l.b16 %v4584
    %v4792 = vunpack.c.l.b16 %v4585
    %v4793 = vunpack.c.l.b16 %v4586
    %v4794 = vunpack.c.l.b16 %v4587
    %v4795 = vunpack.c.l.b16 %v4588
    %v4796 = vunpack.c.l.b16 %v4589
    %v4797 = vunpack.c.l.b16 %v4590
    %v4798 = vunpack.c.l.b16 %v4591
    %v4799 = vunpack.c.l.b16 %v4592
    %v4800 = vunpack.c.l.b16 %v4593
    %v4801 = vunpack.c.l.b16 %v4594
    %v4802 = vunpack.c.l.b16 %v4595
    %v4803 = vunpack.c.l.b16 %v4596
    %v4804 = vunpack.c.l.b16 %v4597
    %v4805 = vunpack.c.l.b16 %v4598
    %v4806 = vunpack.c.l.b16 %v4599
    %v4807 = vunpack.c.l.b16 %v4600
    %v4808 = vunpack.c.l.b16 %v4601
    %v4809 = vunpack.c.l.b16 %v4602
    %v4810 = vunpack.c.l.b16 %v4603
    %vm4811 = vcmask 1041409
    %v4812 = vsel %vm4811, %v4801, %v4791
    %v4813 = vsel %vm4811, %v4802, %v4792
    %v4814 = vsel %vm4811, %v4803, %v4793
    %v4815 = vsel %vm4811, %v4804, %v4794
    %v4816 = vsel %vm4811, %v4805, %v4795
    %v4817 = vsel %vm4811, %v4806, %v4796
    %v4818 = vsel %vm4811, %v4807, %v4797
    %v4819 = vsel %vm4811, %v4808, %v4798
    %v4820 = vsel %vm4811, %v4809, %v4799
    %v4821 = vsel %vm4811, %v4810, %v4800
    %v4822 = vpack.c.b16 %v4812, %v4812
    %v4823 = vpack.c.b16 %v4813, %v4813
    %v4824 = vpack.c.b16 %v4814, %v4814
    %v4825 = vpack.c.b16 %v4815, %v4815
    %v4826 = vpack.c.b16 %v4816, %v4816
    %v4827 = vpack.c.b16 %v4817, %v4817
    %v4828 = vpack.c.b16 %v4818, %v4818
    %v4829 = vpack.c.b16 %v4819, %v4819
    %v4830 = vpack.c.b16 %v4820, %v4820
    %v4831 = vpack.c.b16 %v4821, %v4821
    %v5002 = vunpack.c.l.b16 %v4604
    %v5003 = vunpack.c.l.b16 %v4605
    %v5004 = vunpack.c.l.b16 %v4606
    %v5005 = vunpack.c.l.b16 %v4607
    %v5006 = vunpack.c.l.b16 %v4608
    %v5007 = vunpack.c.l.b16 %v4609
    %v5008 = vunpack.c.l.b16 %v4610
    %v5009 = vunpack.c.l.b16 %v4611
    %v5010 = vunpack.c.l.b16 %v4612
    %v5011 = vunpack.c.l.b16 %v4613
    %v5012 = vunpack.c.l.b16 %v4614
    %v5013 = vunpack.c.l.b16 %v4615
    %v5014 = vunpack.c.l.b16 %v4616
    %v5015 = vunpack.c.l.b16 %v4617
    %v5016 = vunpack.c.l.b16 %v4618
    %v5017 = vunpack.c.l.b16 %v4619
    %v5018 = vunpack.c.l.b16 %v4620
    %v5019 = vunpack.c.l.b16 %v4621
    %v5020 = vunpack.c.l.b16 %v4622
    %v5021 = vunpack.c.l.b16 %v4623
    %v5022 = vunpack.c.l.b16 %v4624
    %v5023 = vunpack.c.l.b16 %v4625
    %v5024 = vunpack.c.l.b16 %v4626
    %v5025 = vunpack.c.l.b16 %v4627
    %v5026 = vunpack.c.l.b16 %v4628
    %v5027 = vunpack.c.l.b16 %v4629
    %v5028 = vunpack.c.l.b16 %v4630
    %v5029 = vunpack.c.l.b16 %v4631
    %v5030 = vunpack.c.l.b16 %v4632
    %v5031 = vunpack.c.l.b16 %v4633
    %v5032 = vunpack.c.l.b16 %v4634
    %v5033 = vunpack.c.l.b16 %v4635
    %v5034 = vunpack.c.l.b16 %v4636
    %v5035 = vunpack.c.l.b16 %v4637
    %v5036 = vunpack.c.l.b16 %v4638
    %v5037 = vunpack.c.l.b16 %v4639
    %v5038 = vunpack.c.l.b16 %v4640
    %v5039 = vunpack.c.l.b16 %v4641
    %v5040 = vunpack.c.l.b16 %v4642
    %v5041 = vunpack.c.l.b16 %v4643
    %v5042 = vunpack.c.l.b16 %v4644
    %v5043 = vunpack.c.l.b16 %v4645
    %v5044 = vunpack.c.l.b16 %v4646
    %v5045 = vunpack.c.l.b16 %v4647
    %v5046 = vunpack.c.l.b16 %v4648
    %v5047 = vunpack.c.l.b16 %v4649
    %v5048 = vunpack.c.l.b16 %v4650
    %v5049 = vunpack.c.l.b16 %v4651
    %v5050 = vunpack.c.l.b16 %v4652
    %v5051 = vunpack.c.l.b16 %v4653
    %v5052 = vunpack.c.l.b16 %v4654
    %v5053 = vunpack.c.l.b16 %v4655
    %v5054 = vunpack.c.l.b16 %v4656
    %v5055 = vunpack.c.l.b16 %v4657
    %v5056 = vunpack.c.l.b16 %v4658
    %v5057 = vunpack.c.l.b16 %v4659
    %v5058 = vunpack.c.l.b16 %v4660
    %v5059 = vunpack.c.l.b16 %v4661
    %v5060 = vunpack.c.l.b16 %v4662
    %v5061 = vunpack.c.l.b16 %v4663
    %v5062 = vunpack.c.l.b16 %v4664
    %v5063 = vunpack.c.l.b16 %v4665
    %v5064 = vunpack.c.l.b16 %v4666
    %v5065 = vunpack.c.l.b16 %v4667
    %v5066 = vunpack.c.l.b16 %v4668
    %v5067 = vunpack.c.l.b16 %v4669
    %v5068 = vunpack.c.l.b16 %v4670
    %v5069 = vunpack.c.l.b16 %v4671
    %v5070 = vunpack.c.l.b16 %v4672
    %v5071 = vunpack.c.l.b16 %v4673
    %v5072 = vunpack.c.l.b16 %v4674
    %v5073 = vunpack.c.l.b16 %v4675
    %v5074 = vunpack.c.l.b16 %v4676
    %v5075 = vunpack.c.l.b16 %v4677
    %v5076 = vunpack.c.l.b16 %v4678
    %v5077 = vunpack.c.l.b16 %v4679
    %v5078 = vunpack.c.l.b16 %v4680
    %v5079 = vunpack.c.l.b16 %v4681
    %v5080 = vunpack.c.l.b16 %v4682
    %v5081 = vunpack.c.l.b16 %v4683
    %v5082 = vunpack.c.l.b16 %v4684
    %v5083 = vunpack.c.l.b16 %v4685
    %v5084 = vunpack.c.l.b16 %v4686
    %v5085 = vunpack.c.l.b16 %v4687
    %v5086 = vunpack.c.l.b16 %v4688
    %v5087 = vunpack.c.l.b16 %v4689
    %v5088 = vunpack.c.l.b16 %v4690
    %v5089 = vunpack.c.l.b16 %v4691
    %v5090 = vunpack.c.l.b16 %v4692
    %v5091 = vunpack.c.l.b16 %v4693
    %v5092 = vunpack.c.l.b16 %v4694
    %v5093 = vunpack.c.l.b16 %v4695
    %v5094 = vunpack.c.l.b16 %v4696
    %v5095 = vunpack.c.l.b16 %v4697
    %v5096 = vunpack.c.l.b16 %v4698
    %v5097 = vunpack.c.l.b16 %v4699
    %v5098 = vunpack.c.l.b16 %v4700
    %v5099 = vunpack.c.l.b16 %v4701
    %v5100 = vunpack.c.l.b16 %v4702
    %v5101 = vunpack.c.l.b16 %v4703
    %v5102 = vunpack.c.l.b16 %v4704
    %v5103 = vunpack.c.l.b16 %v4705
    %v5104 = vunpack.c.l.b16 %v4706
    %v5105 = vunpack.c.l.b16 %v4707
    %v5106 = vunpack.c.l.b16 %v4708
    %v5107 = vunpack.c.l.b16 %v4709
    %v5108 = vunpack.c.l.b16 %v4710
    %v5109 = vunpack.c.l.b16 %v4711
    %v5110 = vunpack.c.l.b16 %v4712
    %v5111 = vunpack.c.l.b16 %v4713
    %v5112 = vunpack.c.l.b16 %v4714
    %v5113 = vunpack.c.l.b16 %v4715
    %v5114 = vunpack.c.l.b16 %v4716
    %v5115 = vunpack.c.l.b16 %v4717
    %v5116 = vunpack.c.l.b16 %v4718
    %v5117 = vunpack.c.l.b16 %v4719
    %v5118 = vunpack.c.l.b16 %v4720
    %v5119 = vunpack.c.l.b16 %v4721
    %v5120 = vunpack.c.l.b16 %v4722
    %v5121 = vunpack.c.l.b16 %v4723
    %v5122 = vunpack.c.l.b16 %v4724
    %v5123 = vunpack.c.l.b16 %v4725
    %v5124 = vunpack.c.l.b16 %v4726
    %v5125 = vunpack.c.l.b16 %v4727
    %v5126 = vunpack.c.l.b16 %v4728
    %v5127 = vunpack.c.l.b16 %v4729
    %v5128 = vunpack.c.l.b16 %v4730
    %v5129 = vunpack.c.l.b16 %v4731
    %v5130 = vunpack.c.l.b16 %v4732
    %v5131 = vunpack.c.l.b16 %v4733
    %v5132 = vunpack.c.l.b16 %v4734
    %v5133 = vunpack.c.l.b16 %v4735
    %v5134 = vunpack.c.l.b16 %v4736
    %v5135 = vunpack.c.l.b16 %v4737
    %v5136 = vunpack.c.l.b16 %v4738
    %v5137 = vunpack.c.l.b16 %v4739
    %v5138 = vunpack.c.l.b16 %v4740
    %v5139 = vunpack.c.l.b16 %v4741
    %v5140 = vunpack.c.l.b16 %v4742
    %v5141 = vunpack.c.l.b16 %v4743
    %v5142 = vunpack.c.l.b16 %v4744
    %v5143 = vunpack.c.l.b16 %v4745
    %v5144 = vunpack.c.l.b16 %v4746
    %v5145 = vunpack.c.l.b16 %v4747
    %v5146 = vunpack.c.l.b16 %v4748
    %v5147 = vunpack.c.l.b16 %v4749
    %v5148 = vunpack.c.l.b16 %v4750
    %v5149 = vunpack.c.l.b16 %v4751
    %v5150 = vunpack.c.l.b16 %v4752
    %v5151 = vunpack.c.l.b16 %v4753
    %v5152 = vunpack.c.l.b16 %v4754
    %v5153 = vunpack.c.l.b16 %v4755
    %v5154 = vunpack.c.l.b16 %v4756
    %v5155 = vunpack.c.l.b16 %v4757
    %v5156 = vunpack.c.l.b16 %v4758
    %v5157 = vunpack.c.l.b16 %v4759
    %v5158 = vunpack.c.l.b16 %v4760
    %v5159 = vunpack.c.l.b16 %v4761
    %v5160 = vunpack.c.l.b16 %v4762
    %v5161 = vunpack.c.l.b16 %v4763
    %v5162 = vpack.c.b16 %v5003, %v5002
    %v5163 = vpack.c.b16 %v5005, %v5004
    %v5164 = vpack.c.b16 %v5007, %v5006
    %v5165 = vpack.c.b16 %v5009, %v5008
    %v5166 = vpack.c.b16 %v5011, %v5010
    %v5167 = vpack.c.b16 %v5013, %v5012
    %v5168 = vpack.c.b16 %v5015, %v5014
    %v5169 = vpack.c.b16 %v5017, %v5016
    %v5170 = vpack.c.b16 %v5019, %v5018
    %v5171 = vpack.c.b16 %v5021, %v5020
    %v5172 = vpack.c.b16 %v5023, %v5022
    %v5173 = vpack.c.b16 %v5025, %v5024
    %v5174 = vpack.c.b16 %v5027, %v5026
    %v5175 = vpack.c.b16 %v5029, %v5028
    %v5176 = vpack.c.b16 %v5031, %v5030
    %v5177 = vpack.c.b16 %v5033, %v5032
    %v5178 = vpack.c.b16 %v5035, %v5034
    %v5179 = vpack.c.b16 %v5037, %v5036
    %v5180 = vpack.c.b16 %v5039, %v5038
    %v5181 = vpack.c.b16 %v5041, %v5040
    %v5182 = vpack.c.b16 %v5043, %v5042
    %v5183 = vpack.c.b16 %v5045, %v5044
    %v5184 = vpack.c.b16 %v5047, %v5046
    %v5185 = vpack.c.b16 %v5049, %v5048
    %v5186 = vpack.c.b16 %v5051, %v5050
    %v5187 = vpack.c.b16 %v5053, %v5052
    %v5188 = vpack.c.b16 %v5055, %v5054
    %v5189 = vpack.c.b16 %v5057, %v5056
    %v5190 = vpack.c.b16 %v5059, %v5058
    %v5191 = vpack.c.b16 %v5061, %v5060
    %v5192 = vpack.c.b16 %v5063, %v5062
    %v5193 = vpack.c.b16 %v5065, %v5064
    %v5194 = vpack.c.b16 %v5067, %v5066
    %v5195 = vpack.c.b16 %v5069, %v5068
    %v5196 = vpack.c.b16 %v5071, %v5070
    %v5197 = vpack.c.b16 %v5073, %v5072
    %v5198 = vpack.c.b16 %v5075, %v5074
    %v5199 = vpack.c.b16 %v5077, %v5076
    %v5200 = vpack.c.b16 %v5079, %v5078
    %v5201 = vpack.c.b16 %v5081, %v5080
    %v5202 = vpack.c.b16 %v5083, %v5082
    %v5203 = vpack.c.b16 %v5085, %v5084
    %v5204 = vpack.c.b16 %v5087, %v5086
    %v5205 = vpack.c.b16 %v5089, %v5088
    %v5206 = vpack.c.b16 %v5091, %v5090
    %v5207 = vpack.c.b16 %v5093, %v5092
    %v5208 = vpack.c.b16 %v5095, %v5094
    %v5209 = vpack.c.b16 %v5097, %v5096
    %v5210 = vpack.c.b16 %v5099, %v5098
    %v5211 = vpack.c.b16 %v5101, %v5100
    %v5212 = vpack.c.b16 %v5103, %v5102
    %v5213 = vpack.c.b16 %v5105, %v5104
    %v5214 = vpack.c.b16 %v5107, %v5106
    %v5215 = vpack.c.b16 %v5109, %v5108
    %v5216 = vpack.c.b16 %v5111, %v5110
    %v5217 = vpack.c.b16 %v5113, %v5112
    %v5218 = vpack.c.b16 %v5115, %v5114
    %v5219 = vpack.c.b16 %v5117, %v5116
    %v5220 = vpack.c.b16 %v5119, %v5118
    %v5221 = vpack.c.b16 %v5121, %v5120
    %v5222 = vpack.c.b16 %v5123, %v5122
    %v5223 = vpack.c.b16 %v5125, %v5124
    %v5224 = vpack.c.b16 %v5127, %v5126
    %v5225 = vpack.c.b16 %v5129, %v5128
    %v5226 = vpack.c.b16 %v5131, %v5130
    %v5227 = vpack.c.b16 %v5133, %v5132
    %v5228 = vpack.c.b16 %v5135, %v5134
    %v5229 = vpack.c.b16 %v5137, %v5136
    %v5230 = vpack.c.b16 %v5139, %v5138
    %v5231 = vpack.c.b16 %v5141, %v5140
    %v5232 = vpack.c.b16 %v5143, %v5142
    %v5233 = vpack.c.b16 %v5145, %v5144
    %v5234 = vpack.c.b16 %v5147, %v5146
    %v5235 = vpack.c.b16 %v5149, %v5148
    %v5236 = vpack.c.b16 %v5151, %v5150
    %v5237 = vpack.c.b16 %v5153, %v5152
    %v5238 = vpack.c.b16 %v5155, %v5154
    %v5239 = vpack.c.b16 %v5157, %v5156
    %v5240 = vpack.c.b16 %v5159, %v5158
    %v5241 = vpack.c.b16 %v5161, %v5160
    %5322 = vmatprep.subr.bf16.mxu0 0
    %5323 = vmatpush1.bf16.msra.mxu0 %v5162
    %5324 = vmatprep.subr.bf16.mxu0 0
    %5325 = vmatpush1.bf16.msra.mxu0 %v5163
    %5326 = vmatprep.subr.bf16.mxu0 0
    %5327 = vmatpush1.bf16.msra.mxu0 %v5164
    %5328 = vmatprep.subr.bf16.mxu0 0
    %5329 = vmatpush1.bf16.msra.mxu0 %v5165
    %5330 = vmatprep.subr.bf16.mxu0 0
    %5331 = vmatpush1.bf16.msra.mxu0 %v5166
    %5332 = vmatprep.subr.bf16.mxu0 0
    %5333 = vmatpush1.bf16.msra.mxu0 %v5167
    %5334 = vmatprep.subr.bf16.mxu0 0
    %5335 = vmatpush1.bf16.msra.mxu0 %v5168
    %5336 = vmatprep.subr.bf16.mxu0 0
    %5337 = vmatpush1.bf16.msra.mxu0 %v5169
    %5338 = vmatprep.subr.bf16.mxu0 0
    %5339 = vmatpush1.bf16.msra.mxu0 %v5170
    %5340 = vmatprep.subr.bf16.mxu0 0
    %5341 = vmatpush1.bf16.msra.mxu0 %v5171
    %5342 = vmatprep.subr.bf16.mxu0 0
    %5343 = vmatpush1.bf16.msra.mxu0 %v5172
    %5344 = vmatprep.subr.bf16.mxu0 0
    %5345 = vmatpush1.bf16.msra.mxu0 %v5173
    %5346 = vmatprep.subr.bf16.mxu0 0
    %5347 = vmatpush1.bf16.msra.mxu0 %v5174
    %5348 = vmatprep.subr.bf16.mxu0 0
    %5349 = vmatpush1.bf16.msra.mxu0 %v5175
    %5350 = vmatprep.subr.bf16.mxu0 0
    %5351 = vmatpush1.bf16.msra.mxu0 %v5176
    %5352 = vmatprep.subr.bf16.mxu0 0
    %5353 = vmatpush1.bf16.msra.mxu0 %v5177
    %5354 = vmatprep.mubr.bf16.mxu0 %v4823
    %5355 = vmatmul.mubr.bf16.gmra.mrb[0].mxu0 %v4822
    %v5356 = vpop.f32.mrb[0].mxu0
    %v5357 = vadd.f32 %v4769, %v5356
    %v5358 = vpop.f32.mrb[0].mxu0
    %v5359 = vpop.f32.mrb[0].mxu0
    %v5360 = vpop.f32.mrb[0].mxu0
    %5361 = vdwg.mxu0
    %5362 = vmatprep.subr.bf16.mxu0 0
    %5363 = vmatpush1.bf16.msra.mxu0 %v5178
    %5364 = vmatprep.subr.bf16.mxu0 0
    %5365 = vmatpush1.bf16.msra.mxu0 %v5179
    %5366 = vmatprep.subr.bf16.mxu0 0
    %5367 = vmatpush1.bf16.msra.mxu0 %v5180
    %5368 = vmatprep.subr.bf16.mxu0 0
    %5369 = vmatpush1.bf16.msra.mxu0 %v5181
    %5370 = vmatprep.subr.bf16.mxu0 0
    %5371 = vmatpush1.bf16.msra.mxu0 %v5182
    %5372 = vmatprep.subr.bf16.mxu0 0
    %5373 = vmatpush1.bf16.msra.mxu0 %v5183
    %5374 = vmatprep.subr.bf16.mxu0 0
    %5375 = vmatpush1.bf16.msra.mxu0 %v5184
    %5376 = vmatprep.subr.bf16.mxu0 0
    %5377 = vmatpush1.bf16.msra.mxu0 %v5185
    %5378 = vmatprep.subr.bf16.mxu0 0
    %5379 = vmatpush1.bf16.msra.mxu0 %v5186
    %5380 = vmatprep.subr.bf16.mxu0 0
    %5381 = vmatpush1.bf16.msra.mxu0 %v5187
    %5382 = vmatprep.subr.bf16.mxu0 0
    %5383 = vmatpush1.bf16.msra.mxu0 %v5188
    %5384 = vmatprep.subr.bf16.mxu0 0
    %5385 = vmatpush1.bf16.msra.mxu0 %v5189
    %5386 = vmatprep.subr.bf16.mxu0 0
    %5387 = vmatpush1.bf16.msra.mxu0 %v5190
    %5388 = vmatprep.subr.bf16.mxu0 0
    %5389 = vmatpush1.bf16.msra.mxu0 %v5191
    %5390 = vmatprep.subr.bf16.mxu0 0
    %5391 = vmatpush1.bf16.msra.mxu0 %v5192
    %5392 = vmatprep.subr.bf16.mxu0 0
    %5393 = vmatpush1.bf16.msra.mxu0 %v5193
    %5394 = vmatprep.mubr.bf16.mxu0 %v4825
    %5395 = vmatmul.mubr.bf16.gmra.mrb[0].mxu0 %v4824
    %v5396 = vpop.f32.mrb[0].mxu0
    %v5397 = vadd.f32 %v5357, %v5396
    %v5398 = vpop.f32.mrb[0].mxu0
    %v5399 = vpop.f32.mrb[0].mxu0
    %v5400 = vpop.f32.mrb[0].mxu0
    %5401 = vdwg.mxu0
    %5402 = vmatprep.subr.bf16.mxu0 0
    %5403 = vmatpush1.bf16.msra.mxu0 %v5194
    %5404 = vmatprep.subr.bf16.mxu0 0
    %5405 = vmatpush1.bf16.msra.mxu0 %v5195
    %5406 = vmatprep.subr.bf16.mxu0 0
    %5407 = vmatpush1.bf16.msra.mxu0 %v5196
    %5408 = vmatprep.subr.bf16.mxu0 0
    %5409 = vmatpush1.bf16.msra.mxu0 %v5197
    %5410 = vmatprep.subr.bf16.mxu0 0
    %5411 = vmatpush1.bf16.msra.mxu0 %v5198
    %5412 = vmatprep.subr.bf16.mxu0 0
    %5413 = vmatpush1.bf16.msra.mxu0 %v5199
    %5414 = vmatprep.subr.bf16.mxu0 0
    %5415 = vmatpush1.bf16.msra.mxu0 %v5200
    %5416 = vmatprep.subr.bf16.mxu0 0
    %5417 = vmatpush1.bf16.msra.mxu0 %v5201
    %5418 = vmatprep.subr.bf16.mxu0 0
    %5419 = vmatpush1.bf16.msra.mxu0 %v5202
    %5420 = vmatprep.subr.bf16.mxu0 0
    %5421 = vmatpush1.bf16.msra.mxu0 %v5203
    %5422 = vmatprep.subr.bf16.mxu0 0
    %5423 = vmatpush1.bf16.msra.mxu0 %v5204
    %5424 = vmatprep.subr.bf16.mxu0 0
    %5425 = vmatpush1.bf16.msra.mxu0 %v5205
    %5426 = vmatprep.subr.bf16.mxu0 0
    %5427 = vmatpush1.bf16.msra.mxu0 %v5206
    %5428 = vmatprep.subr.bf16.mxu0 0
    %5429 = vmatpush1.bf16.msra.mxu0 %v5207
    %5430 = vmatprep.subr.bf16.mxu0 0
    %5431 = vmatpush1.bf16.msra.mxu0 %v5208
    %5432 = vmatprep.subr.bf16.mxu0 0
    %5433 = vmatpush1.bf16.msra.mxu0 %v5209
    %5434 = vmatprep.mubr.bf16.mxu0 %v4827
    %5435 = vmatmul.mubr.bf16.gmra.mrb[0].mxu0 %v4826
    %v5436 = vpop.f32.mrb[0].mxu0
    %v5437 = vadd.f32 %v5397, %v5436
    %v5438 = vpop.f32.mrb[0].mxu0
    %v5439 = vpop.f32.mrb[0].mxu0
    %v5440 = vpop.f32.mrb[0].mxu0
    %5441 = vdwg.mxu0
    %5442 = vmatprep.subr.bf16.mxu0 0
    %5443 = vmatpush1.bf16.msra.mxu0 %v5210
    %5444 = vmatprep.subr.bf16.mxu0 0
    %5445 = vmatpush1.bf16.msra.mxu0 %v5211
    %5446 = vmatprep.subr.bf16.mxu0 0
    %5447 = vmatpush1.bf16.msra.mxu0 %v5212
    %5448 = vmatprep.subr.bf16.mxu0 0
    %5449 = vmatpush1.bf16.msra.mxu0 %v5213
    %5450 = vmatprep.subr.bf16.mxu0 0
    %5451 = vmatpush1.bf16.msra.mxu0 %v5214
    %5452 = vmatprep.subr.bf16.mxu0 0
    %5453 = vmatpush1.bf16.msra.mxu0 %v5215
    %5454 = vmatprep.subr.bf16.mxu0 0
    %5455 = vmatpush1.bf16.msra.mxu0 %v5216
    %5456 = vmatprep.subr.bf16.mxu0 0
    %5457 = vmatpush1.bf16.msra.mxu0 %v5217
    %5458 = vmatprep.subr.bf16.mxu0 0
    %5459 = vmatpush1.bf16.msra.mxu0 %v5218
    %5460 = vmatprep.subr.bf16.mxu0 0
    %5461 = vmatpush1.bf16.msra.mxu0 %v5219
    %5462 = vmatprep.subr.bf16.mxu0 0
    %5463 = vmatpush1.bf16.msra.mxu0 %v5220
    %5464 = vmatprep.subr.bf16.mxu0 0
    %5465 = vmatpush1.bf16.msra.mxu0 %v5221
    %5466 = vmatprep.subr.bf16.mxu0 0
    %5467 = vmatpush1.bf16.msra.mxu0 %v5222
    %5468 = vmatprep.subr.bf16.mxu0 0
    %5469 = vmatpush1.bf16.msra.mxu0 %v5223
    %5470 = vmatprep.subr.bf16.mxu0 0
    %5471 = vmatpush1.bf16.msra.mxu0 %v5224
    %5472 = vmatprep.subr.bf16.mxu0 0
    %5473 = vmatpush1.bf16.msra.mxu0 %v5225
    %5474 = vmatprep.mubr.bf16.mxu0 %v4829
    %5475 = vmatmul.mubr.bf16.gmra.mrb[0].mxu0 %v4828
    %v5476 = vpop.f32.mrb[0].mxu0
    %v5477 = vadd.f32 %v5437, %v5476
    %v5478 = vpop.f32.mrb[0].mxu0
    %v5479 = vpop.f32.mrb[0].mxu0
    %v5480 = vpop.f32.mrb[0].mxu0
    %5481 = vdwg.mxu0
    %5482 = vmatprep.subr.bf16.mxu0 0
    %5483 = vmatpush1.bf16.msra.mxu0 %v5226
    %5484 = vmatprep.subr.bf16.mxu0 0
    %5485 = vmatpush1.bf16.msra.mxu0 %v5227
    %5486 = vmatprep.subr.bf16.mxu0 0
    %5487 = vmatpush1.bf16.msra.mxu0 %v5228
    %5488 = vmatprep.subr.bf16.mxu0 0
    %5489 = vmatpush1.bf16.msra.mxu0 %v5229
    %5490 = vmatprep.subr.bf16.mxu0 0
    %5491 = vmatpush1.bf16.msra.mxu0 %v5230
    %5492 = vmatprep.subr.bf16.mxu0 0
    %5493 = vmatpush1.bf16.msra.mxu0 %v5231
    %5494 = vmatprep.subr.bf16.mxu0 0
    %5495 = vmatpush1.bf16.msra.mxu0 %v5232
    %5496 = vmatprep.subr.bf16.mxu0 0
    %5497 = vmatpush1.bf16.msra.mxu0 %v5233
    %5498 = vmatprep.subr.bf16.mxu0 0
    %5499 = vmatpush1.bf16.msra.mxu0 %v5234
    %5500 = vmatprep.subr.bf16.mxu0 0
    %5501 = vmatpush1.bf16.msra.mxu0 %v5235
    %5502 = vmatprep.subr.bf16.mxu0 0
    %5503 = vmatpush1.bf16.msra.mxu0 %v5236
    %5504 = vmatprep.subr.bf16.mxu0 0
    %5505 = vmatpush1.bf16.msra.mxu0 %v5237
    %5506 = vmatprep.subr.bf16.mxu0 0
    %5507 = vmatpush1.bf16.msra.mxu0 %v5238
    %5508 = vmatprep.subr.bf16.mxu0 0
    %5509 = vmatpush1.bf16.msra.mxu0 %v5239
    %5510 = vmatprep.subr.bf16.mxu0 0
    %5511 = vmatpush1.bf16.msra.mxu0 %v5240
    %5512 = vmatprep.subr.bf16.mxu0 0
    %5513 = vmatpush1.bf16.msra.mxu0 %v5241
    %5514 = vmatprep.mubr.bf16.mxu0 %v4831
    %5515 = vmatmul.mubr.bf16.gmra.mrb[0].mxu0 %v4830
    %v5516 = vpop.f32.mrb[0].mxu0
    %v5517 = vadd.f32 %v5477, %v5516
    %v5518 = vpop.f32.mrb[0].mxu0
    %v5519 = vpop.f32.mrb[0].mxu0
    %v5520 = vpop.f32.mrb[0].mxu0
    %5521 = vdwg.mxu0
    %5522 = vst [vmem:[#allocation2] sm:$0x3] %v5517
    // Predicated region
    $region26: #{card_classifier_forward.5} parent=1 // pred_check
      _
    $region27: #{card_classifier_forward.5} parent=1 // pred_check_branch
      %5524 = sbr.rel (0) target = $region29
    $region28: #{card_classifier_forward.5} parent=1 // pred_region
      %s5526 = ssub.s32 32, 32
      %5527 = vsyncadd [#allocation3], %s5526
      %s5529 = sshll.u32 [#allocation2], 4
      %s5530 = int_to_ptr.vmem [resolvable:$true] %s5529
      %5532 = dma.vmem_to_hbm [thread:$0]  %s5530, 32, %s6, [#allocation3]
    $region29: #{card_classifier_forward.5} parent=1 // pred_fallthru
      _
    // Predicated region
    $region30: #{card_classifier_forward.5} parent=1 // pred_check
      _
    $region31: #{card_classifier_forward.5} parent=1 // pred_check_branch
      %5534 = sbr.rel (0) target = $region33
    $region32: #{card_classifier_forward.5} parent=1 // pred_region
      %5535 = dma.done [#allocation3], 32
    $region33: #{card_classifier_forward.5} parent=1 // pred_fallthru
      _
    %5536 = vsyncpa [#allocation3], 1

</llo_original>
